<compile_context>
chip_gen: v5e
topology: v5e:2x2
jax: 0.10.0
libtpu: 0.0.40
codegen_flags: <defaults>
</compile_context>

<pallas_src>
import jax
import jax.numpy as jnp
from jax.experimental import pallas as pl
from jax.experimental.pallas import tpu as pltpu

BN_EPS = 1e-5
IN0 = 20        # encoder0 input features
IN1 = 59        # encoder1 input features
HIDDEN = 1024
OUT = 10
KPAD = 64       # common padded input width (>= max(IN0, IN1), multiple of 8)
NPAD = 128      # padded head width (lane-dense output tile)


def _two_encoder_kernel(x_ref, w1_ref, b1_ref, w2_ref, b2_ref,
                        w3_ref, b3_ref, w4_ref, b4_ref, o_ref):
    # Every ref carries a leading size-1 "encoder" dim selected by the grid.
    # x: (1, B, KPAD) f32; wN: (1, K, N) bf16; bN: (1, 1, N) f32; o: (1, B, NPAD) f32.
    h = x_ref[0].astype(jnp.bfloat16)                                     # (B, KPAD)
    h = jnp.maximum(
        jnp.dot(h, w1_ref[0], preferred_element_type=jnp.float32) + b1_ref[0], 0.0)
    h = jnp.maximum(
        jnp.dot(h.astype(jnp.bfloat16), w2_ref[0],
                preferred_element_type=jnp.float32) + b2_ref[0], 0.0)
    h = jnp.maximum(
        jnp.dot(h.astype(jnp.bfloat16), w3_ref[0],
                preferred_element_type=jnp.float32) + b3_ref[0], 0.0)
    h = jnp.maximum(
        jnp.dot(h.astype(jnp.bfloat16), w4_ref[0],
                preferred_element_type=jnp.float32) + b4_ref[0], 0.0)
    o_ref[0] = h                                                          # (B, NPAD) f32


def _pallas_forward(x, params):
    # x: (2, B, KPAD) f32; params = (w1, b1, w2, b2, w3, b3, w4, b4), stacked over encoders.
    w1, b1, w2, b2, w3, b3, w4, b4 = params
    B = x.shape[1]

    def wspec(k, n):
        return pl.BlockSpec((1, k, n), lambda e: (e, 0, 0))

    def bspec(n):
        return pl.BlockSpec((1, 1, n), lambda e: (e, 0, 0))

    return pl.pallas_call(
        _two_encoder_kernel,
        out_shape=jax.ShapeDtypeStruct((2, B, NPAD), jnp.float32),
        grid_spec=pltpu.PrefetchScalarGridSpec(
            num_scalar_prefetch=0,
            grid=(2,),
            in_specs=[
                pl.BlockSpec((1, B, KPAD), lambda e: (e, 0, 0)),   # activations
                wspec(KPAD, HIDDEN), bspec(HIDDEN),                # layer 1
                wspec(HIDDEN, HIDDEN), bspec(HIDDEN),              # layer 2
                wspec(HIDDEN, HIDDEN), bspec(HIDDEN),              # layer 3
                wspec(HIDDEN, NPAD), bspec(NPAD),                  # layer 4 (head, padded)
            ],
            out_specs=pl.BlockSpec((1, B, NPAD), lambda e: (e, 0, 0)),
        ),
        compiler_params=pltpu.CompilerParams(
            dimension_semantics=("parallel",)),
    )(x, w1, b1, w2, b2, w3, b3, w4, b4)


@jax.jit
def mvcln_fc_scene_forward(x0, x1, params):
    """Matches MvCLNfcScene.forward in eval mode: (h0, h1), each (B, 10)."""
    B = x0.shape[0]
    x0f = x0.reshape(B, -1).astype(jnp.float32)
    x1f = x1.reshape(B, -1).astype(jnp.float32)
    x0p = jnp.pad(x0f, ((0, 0), (0, KPAD - x0f.shape[1])))
    x1p = jnp.pad(x1f, ((0, 0), (0, KPAD - x1f.shape[1])))
    x = jnp.stack([x0p, x1p], axis=0)                       # (2, B, KPAD)
    out = _pallas_forward(x, params)                        # (2, B, NPAD)
    return out[0, :, :OUT], out[1, :, :OUT]


# ----------------------------- parameter construction -----------------------------

def _init_linear(key, fan_in, fan_out):
    """PyTorch nn.Linear default init: U(-1/sqrt(fan_in), 1/sqrt(fan_in))."""
    kw, kb = jax.random.split(key)
    bound = 1.0 / float(fan_in) ** 0.5
    w = jax.random.uniform(kw, (fan_in, fan_out), jnp.float32, -bound, bound)
    b = jax.random.uniform(kb, (fan_out,), jnp.float32, -bound, bound)
    return w, b


def _fold_bn(w, b, fan_out):
    """Fold eval-mode BatchNorm1d (default params/stats) into W and bias."""
    gamma = jnp.ones((fan_out,), jnp.float32)
    beta = jnp.zeros((fan_out,), jnp.float32)
    mean = jnp.zeros((fan_out,), jnp.float32)
    var = jnp.ones((fan_out,), jnp.float32)
    s = gamma / jnp.sqrt(var + BN_EPS)
    return w * s[None, :], b * s + (beta - mean * s)


def _make_params(key):
    """Build both encoders and stack layer-wise into (2, ...) arrays."""
    k0, k1 = jax.random.split(key)
    enc = []
    for k, in_dim in ((k0, IN0), (k1, IN1)):
        dims = [(in_dim, HIDDEN), (HIDDEN, HIDDEN), (HIDDEN, HIDDEN), (HIDDEN, OUT)]
        keys = jax.random.split(k, len(dims))
        ws, bs = [], []
        for li, ((fi, fo), kk) in enumerate(zip(dims, keys)):
            w, b = _init_linear(kk, fi, fo)
            w, b = _fold_bn(w, b, fo)
            if li == 0:                                   # pad input dim to KPAD
                w = jnp.pad(w, ((0, KPAD - fi), (0, 0)))
            if li == 3:                                   # pad head to NPAD
                w = jnp.pad(w, ((0, 0), (0, NPAD - fo)))
                b = jnp.pad(b, (0, NPAD - fo))
            ws.append(w.astype(jnp.bfloat16))
            bs.append(b.reshape(1, -1).astype(jnp.float32))
        enc.append((ws, bs))
    (ws0, bs0), (ws1, bs1) = enc
    stacked = []
    for i in range(4):
        stacked.append(jnp.stack([ws0[i], ws1[i]], axis=0))   # (2, K, N) bf16
        stacked.append(jnp.stack([bs0[i], bs1[i]], axis=0))   # (2, 1, N) f32
    return tuple(stacked)


def _reference_forward(x0, x1, params):
    """Pure-JAX reference with identical numerics (bf16 weights, f32 accumulate)."""
    w1, b1, w2, b2, w3, b3, w4, b4 = params
    B = x0.shape[0]
    x0p = jnp.pad(x0.reshape(B, -1).astype(jnp.float32), ((0, 0), (0, KPAD - IN0)))
    x1p = jnp.pad(x1.reshape(B, -1).astype(jnp.float32), ((0, 0), (0, KPAD - IN1)))
    outs = []
    for e, xp in ((0, x0p), (1, x1p)):
        h = xp.astype(jnp.bfloat16)
        for w, b in ((w1[e], b1[e]), (w2[e], b2[e]), (w3[e], b3[e]), (w4[e], b4[e])):
            h = jnp.maximum(
                jnp.dot(h, w, preferred_element_type=jnp.float32) + b, 0.0)
            h = h.astype(jnp.bfloat16)
        outs.append(h.astype(jnp.float32)[:, :OUT])
    return outs[0], outs[1]


if __name__ == "__main__":
    key = jax.random.PRNGKey(0)
    k_x0, k_x1, k_p = jax.random.split(key, 3)

    B = 8
    x0 = jax.random.normal(k_x0, (B, IN0), jnp.float32)
    x1 = jax.random.normal(k_x1, (B, IN1), jnp.float32)

    params = _make_params(k_p)

    h0, h1 = mvcln_fc_scene_forward(x0, x1, params)
    jax.block_until_ready((h0, h1))

    assert h0.shape == (B, OUT) and h1.shape == (B, OUT)
    assert bool(jnp.all(h0 >= 0.0)) and bool(jnp.all(h1 >= 0.0))  # ReLU outputs

    r0, r1 = _reference_forward(x0, x1, params)
    assert bool(jnp.allclose(h0, r0, rtol=1e-2, atol=1e-2))
    assert bool(jnp.allclose(h1, r1, rtol=1e-2, atol=1e-2))

    print("KERNEL_OK")
</pallas_src>

<mosaic_0001>
module attributes {stable_mosaic.version = 11 : i64} {
  func.func @_two_encoder_kernel(%arg0: i32, %arg1: memref<1x8x64xf32, #tpu.memory_space<vmem>>, %arg2: memref<1x64x1024xbf16, #tpu.memory_space<vmem>>, %arg3: memref<1x1x1024xf32, #tpu.memory_space<vmem>>, %arg4: memref<1x1024x1024xbf16, #tpu.memory_space<vmem>>, %arg5: memref<1x1x1024xf32, #tpu.memory_space<vmem>>, %arg6: memref<1x1024x1024xbf16, #tpu.memory_space<vmem>>, %arg7: memref<1x1x1024xf32, #tpu.memory_space<vmem>>, %arg8: memref<1x1024x128xbf16, #tpu.memory_space<vmem>>, %arg9: memref<1x1x128xf32, #tpu.memory_space<vmem>>, %arg10: memref<1x8x128xf32, #tpu.memory_space<vmem>>) attributes {dimension_semantics = [#tpu.dimension_semantics<parallel>], iteration_bounds = array<i64: 2>, scalar_prefetch = 0 : i64, scratch_operands = 0 : i64, tpu.core_type = #tpu.core_type<tc>, window_params = [{transform_indices = @transform_0, window_bounds = array<i64: 1, 8, 64>}, {transform_indices = @transform_1, window_bounds = array<i64: 1, 64, 1024>}, {transform_indices = @transform_2, window_bounds = array<i64: 1, 1, 1024>}, {transform_indices = @transform_3, window_bounds = array<i64: 1, 1024, 1024>}, {transform_indices = @transform_4, window_bounds = array<i64: 1, 1, 1024>}, {transform_indices = @transform_5, window_bounds = array<i64: 1, 1024, 1024>}, {transform_indices = @transform_6, window_bounds = array<i64: 1, 1, 1024>}, {transform_indices = @transform_7, window_bounds = array<i64: 1, 1024, 128>}, {transform_indices = @transform_8, window_bounds = array<i64: 1, 1, 128>}, {transform_indices = @transform_9, window_bounds = array<i64: 1, 8, 128>}]} {
    %c0 = arith.constant 0 : index
    %c0_0 = arith.constant 0 : index
    %c0_1 = arith.constant 0 : index
    %0 = vector.load %arg1[%c0, %c0_0, %c0_1] : memref<1x8x64xf32, #tpu.memory_space<vmem>>, vector<1x8x64xf32>
    %1 = vector.shape_cast %0 : vector<1x8x64xf32> to vector<8x64xf32>
    %2 = arith.truncf %1 : vector<8x64xf32> to vector<8x64xbf16>
    %c0_2 = arith.constant 0 : index
    %c0_3 = arith.constant 0 : index
    %c0_4 = arith.constant 0 : index
    %3 = vector.load %arg2[%c0_2, %c0_3, %c0_4] : memref<1x64x1024xbf16, #tpu.memory_space<vmem>>, vector<1x64x1024xbf16>
    %4 = vector.shape_cast %3 : vector<1x64x1024xbf16> to vector<64x1024xbf16>
    %cst = arith.constant dense<0.000000e+00> : vector<8x1024xf32>
    %5 = tpu.matmul %2, %4, %cst {dimension_numbers = #tpu.dot_dimension_numbers<[1], [0], [0], [1], [0, 0, 1, 1], [], []>} : vector<8x64xbf16>, vector<64x1024xbf16>, vector<8x1024xf32> -> vector<8x1024xf32>
    %c0_5 = arith.constant 0 : index
    %c0_6 = arith.constant 0 : index
    %c0_7 = arith.constant 0 : index
    %6 = vector.load %arg3[%c0_5, %c0_6, %c0_7] : memref<1x1x1024xf32, #tpu.memory_space<vmem>>, vector<1x1x1024xf32>
    %7 = vector.shape_cast %6 : vector<1x1x1024xf32> to vector<1x1024xf32>
    %8 = vector.broadcast %7 : vector<1x1024xf32> to vector<8x1024xf32>
    %9 = arith.addf %5, %8 : vector<8x1024xf32>
    %cst_8 = arith.constant 0.000000e+00 : f32
    %10 = vector.broadcast %cst_8 : f32 to vector<8x1024xf32>
    %11 = arith.maximumf %9, %10 : vector<8x1024xf32>
    %12 = arith.truncf %11 : vector<8x1024xf32> to vector<8x1024xbf16>
    %c0_9 = arith.constant 0 : index
    %c0_10 = arith.constant 0 : index
    %c0_11 = arith.constant 0 : index
    %13 = vector.load %arg4[%c0_9, %c0_10, %c0_11] : memref<1x1024x1024xbf16, #tpu.memory_space<vmem>>, vector<1x1024x1024xbf16>
    %14 = vector.shape_cast %13 : vector<1x1024x1024xbf16> to vector<1024x1024xbf16>
    %cst_12 = arith.constant dense<0.000000e+00> : vector<8x1024xf32>
    %15 = tpu.matmul %12, %14, %cst_12 {dimension_numbers = #tpu.dot_dimension_numbers<[1], [0], [0], [1], [0, 0, 1, 1], [], []>} : vector<8x1024xbf16>, vector<1024x1024xbf16>, vector<8x1024xf32> -> vector<8x1024xf32>
    %c0_13 = arith.constant 0 : index
    %c0_14 = arith.constant 0 : index
    %c0_15 = arith.constant 0 : index
    %16 = vector.load %arg5[%c0_13, %c0_14, %c0_15] : memref<1x1x1024xf32, #tpu.memory_space<vmem>>, vector<1x1x1024xf32>
    %17 = vector.shape_cast %16 : vector<1x1x1024xf32> to vector<1x1024xf32>
    %18 = vector.broadcast %17 : vector<1x1024xf32> to vector<8x1024xf32>
    %19 = arith.addf %15, %18 : vector<8x1024xf32>
    %cst_16 = arith.constant 0.000000e+00 : f32
    %20 = vector.broadcast %cst_16 : f32 to vector<8x1024xf32>
    %21 = arith.maximumf %19, %20 : vector<8x1024xf32>
    %22 = arith.truncf %21 : vector<8x1024xf32> to vector<8x1024xbf16>
    %c0_17 = arith.constant 0 : index
    %c0_18 = arith.constant 0 : index
    %c0_19 = arith.constant 0 : index
    %23 = vector.load %arg6[%c0_17, %c0_18, %c0_19] : memref<1x1024x1024xbf16, #tpu.memory_space<vmem>>, vector<1x1024x1024xbf16>
    %24 = vector.shape_cast %23 : vector<1x1024x1024xbf16> to vector<1024x1024xbf16>
    %cst_20 = arith.constant dense<0.000000e+00> : vector<8x1024xf32>
    %25 = tpu.matmul %22, %24, %cst_20 {dimension_numbers = #tpu.dot_dimension_numbers<[1], [0], [0], [1], [0, 0, 1, 1], [], []>} : vector<8x1024xbf16>, vector<1024x1024xbf16>, vector<8x1024xf32> -> vector<8x1024xf32>
    %c0_21 = arith.constant 0 : index
    %c0_22 = arith.constant 0 : index
    %c0_23 = arith.constant 0 : index
    %26 = vector.load %arg7[%c0_21, %c0_22, %c0_23] : memref<1x1x1024xf32, #tpu.memory_space<vmem>>, vector<1x1x1024xf32>
    %27 = vector.shape_cast %26 : vector<1x1x1024xf32> to vector<1x1024xf32>
    %28 = vector.broadcast %27 : vector<1x1024xf32> to vector<8x1024xf32>
    %29 = arith.addf %25, %28 : vector<8x1024xf32>
    %cst_24 = arith.constant 0.000000e+00 : f32
    %30 = vector.broadcast %cst_24 : f32 to vector<8x1024xf32>
    %31 = arith.maximumf %29, %30 : vector<8x1024xf32>
    %32 = arith.truncf %31 : vector<8x1024xf32> to vector<8x1024xbf16>
    %c0_25 = arith.constant 0 : index
    %c0_26 = arith.constant 0 : index
    %c0_27 = arith.constant 0 : index
    %33 = vector.load %arg8[%c0_25, %c0_26, %c0_27] : memref<1x1024x128xbf16, #tpu.memory_space<vmem>>, vector<1x1024x128xbf16>
    %34 = vector.shape_cast %33 : vector<1x1024x128xbf16> to vector<1024x128xbf16>
    %cst_28 = arith.constant dense<0.000000e+00> : vector<8x128xf32>
    %35 = tpu.matmul %32, %34, %cst_28 {dimension_numbers = #tpu.dot_dimension_numbers<[1], [0], [0], [1], [0, 0, 1, 1], [], []>} : vector<8x1024xbf16>, vector<1024x128xbf16>, vector<8x128xf32> -> vector<8x128xf32>
    %c0_29 = arith.constant 0 : index
    %c0_30 = arith.constant 0 : index
    %c0_31 = arith.constant 0 : index
    %36 = vector.load %arg9[%c0_29, %c0_30, %c0_31] : memref<1x1x128xf32, #tpu.memory_space<vmem>>, vector<1x1x128xf32>
    %37 = vector.shape_cast %36 : vector<1x1x128xf32> to vector<1x128xf32>
    %38 = vector.broadcast %37 : vector<1x128xf32> to vector<8x128xf32>
    %39 = arith.addf %35, %38 : vector<8x128xf32>
    %cst_32 = arith.constant 0.000000e+00 : f32
    %40 = vector.broadcast %cst_32 : f32 to vector<8x128xf32>
    %41 = arith.maximumf %39, %40 : vector<8x128xf32>
    %c0_33 = arith.constant 0 : index
    %c0_34 = arith.constant 0 : index
    %c0_35 = arith.constant 0 : index
    %42 = vector.load %arg10[%c0_33, %c0_34, %c0_35] : memref<1x8x128xf32, #tpu.memory_space<vmem>>, vector<1x8x128xf32>
    %43 = vector.shape_cast %42 : vector<1x8x128xf32> to vector<8x128xf32>
    %44 = vector.shape_cast %41 : vector<8x128xf32> to vector<1x8x128xf32>
    tpu.vector_store %arg10[%c0_33, %c0_34, %c0_35], %44 {strides = array<i32>} : memref<1x8x128xf32, #tpu.memory_space<vmem>>, vector<1x8x128xf32>,
    return
  }
  func.func @transform_0(%arg0: i32) -> (i32, i32, i32) {
    %c0_i32 = arith.constant 0 : i32
    %c0_i32_0 = arith.constant 0 : i32
    %c0_i32_1 = arith.constant 0 : i32
    return %arg0, %c0_i32, %c0_i32_0 : i32, i32, i32
  }
  func.func @transform_1(%arg0: i32) -> (i32, i32, i32) {
    %c0_i32 = arith.constant 0 : i32
    %c0_i32_0 = arith.constant 0 : i32
    %c0_i32_1 = arith.constant 0 : i32
    return %arg0, %c0_i32, %c0_i32_0 : i32, i32, i32
  }
  func.func @transform_2(%arg0: i32) -> (i32, i32, i32) {
    %c0_i32 = arith.constant 0 : i32
    %c0_i32_0 = arith.constant 0 : i32
    %c0_i32_1 = arith.constant 0 : i32
    return %arg0, %c0_i32, %c0_i32_0 : i32, i32, i32
  }
  func.func @transform_3(%arg0: i32) -> (i32, i32, i32) {
    %c0_i32 = arith.constant 0 : i32
    %c0_i32_0 = arith.constant 0 : i32
    %c0_i32_1 = arith.constant 0 : i32
    return %arg0, %c0_i32, %c0_i32_0 : i32, i32, i32
  }
  func.func @transform_4(%arg0: i32) -> (i32, i32, i32) {
    %c0_i32 = arith.constant 0 : i32
    %c0_i32_0 = arith.constant 0 : i32
    %c0_i32_1 = arith.constant 0 : i32
    return %arg0, %c0_i32, %c0_i32_0 : i32, i32, i32
  }
  func.func @transform_5(%arg0: i32) -> (i32, i32, i32) {
    %c0_i32 = arith.constant 0 : i32
    %c0_i32_0 = arith.constant 0 : i32
    %c0_i32_1 = arith.constant 0 : i32
    return %arg0, %c0_i32, %c0_i32_0 : i32, i32, i32
  }
  func.func @transform_6(%arg0: i32) -> (i32, i32, i32) {
    %c0_i32 = arith.constant 0 : i32
    %c0_i32_0 = arith.constant 0 : i32
    %c0_i32_1 = arith.constant 0 : i32
    return %arg0, %c0_i32, %c0_i32_0 : i32, i32, i32
  }
  func.func @transform_7(%arg0: i32) -> (i32, i32, i32) {
    %c0_i32 = arith.constant 0 : i32
    %c0_i32_0 = arith.constant 0 : i32
    %c0_i32_1 = arith.constant 0 : i32
    return %arg0, %c0_i32, %c0_i32_0 : i32, i32, i32
  }
  func.func @transform_8(%arg0: i32) -> (i32, i32, i32) {
    %c0_i32 = arith.constant 0 : i32
    %c0_i32_0 = arith.constant 0 : i32
    %c0_i32_1 = arith.constant 0 : i32
    return %arg0, %c0_i32, %c0_i32_0 : i32, i32, i32
  }
  func.func @transform_9(%arg0: i32) -> (i32, i32, i32) {
    %c0_i32 = arith.constant 0 : i32
    %c0_i32_0 = arith.constant 0 : i32
    %c0_i32_1 = arith.constant 0 : i32
    return %arg0, %c0_i32, %c0_i32_0 : i32, i32, i32
  }
}

</mosaic_0001>

<llo_original>
// kernel: mvcln_fc_scene_forward.1
$region0: #{mvcln_fc_scene_forward.1}
  #allocation0 [shape = 'u32[]', space=smem, size = 0x4, offset = 0x4, fixed_abs, tag = 'smem constant byte address 0x4 - core index']
  #allocation1 [shape = 'u32[72,128]{1,0:T(1,128)}', space=vmem, size = 0x9000, scoped, tag = 'internal scratch']
  %s0 = inlined_call_operand.vmem [shape: f32[2,8,64], index: 0, kind: input, shape index: {}]
  %s1 = inlined_call_operand.hbm [shape: bf16[2,64,1024], index: 1, kind: input, shape index: {}]
  %s2 = inlined_call_operand.hbm [shape: f32[2,1,1024], index: 2, kind: input, shape index: {}]
  %s3 = inlined_call_operand.hbm [shape: bf16[2,1024,1024], index: 3, kind: input, shape index: {}]
  %s4 = inlined_call_operand.hbm [shape: f32[2,1,1024], index: 4, kind: input, shape index: {}]
  %s5 = inlined_call_operand.hbm [shape: bf16[2,1024,1024], index: 5, kind: input, shape index: {}]
  %s6 = inlined_call_operand.hbm [shape: f32[2,1,1024], index: 6, kind: input, shape index: {}]
  %s7 = inlined_call_operand.hbm [shape: bf16[2,1024,128], index: 7, kind: input, shape index: {}]
  %s8 = inlined_call_operand.hbm [shape: f32[2,1,128], index: 8, kind: input, shape index: {}]
  %s9 = inlined_call_operand.vmem [shape: f32[2,8,128], index: 9, kind: output, shape index: {}]
  %s10 = sld [smem:[#allocation0]]
  $region101: #{mvcln_fc_scene_forward.1} parent=0
    _
  %s12 = ssub.s32 1, %s10
  %s13 = scalar_select 0, %s12, %s10
  $region1: #{mvcln_fc_scene_forward.1} parent=0
    #allocation2 [shape = 'u8[262144]{0}', space=vmem, size = 0x40000, scoped, tag = 'input window, operand 1']
    #allocation3 [shape = 's32[2]{0}', space=sflag, size = 0x8, scoped, tag = 'scoped memory for mvcln_fc_scene_forward.1']
    #allocation4 [shape = 'u8[8192]{0}', space=vmem, size = 0x2000, scoped, tag = 'input window, operand 2']
    #allocation5 [shape = 's32[2]{0}', space=sflag, size = 0x8, scoped, tag = 'scoped memory for mvcln_fc_scene_forward.1']
    #allocation6 [shape = 'u8[4194304]{0}', space=vmem, size = 0x400000, scoped, tag = 'input window, operand 3']
    #allocation7 [shape = 'u8[8192]{0}', space=vmem, size = 0x2000, scoped, tag = 'input window, operand 4']
    #allocation8 [shape = 's32[2]{0}', space=sflag, size = 0x8, scoped, tag = 'scoped memory for mvcln_fc_scene_forward.1']
    #allocation9 [shape = 'u8[4194304]{0}', space=vmem, size = 0x400000, scoped, tag = 'input window, operand 5']
    #allocation10 [shape = 'u8[8192]{0}', space=vmem, size = 0x2000, scoped, tag = 'input window, operand 6']
    #allocation11 [shape = 's32[2]{0}', space=sflag, size = 0x8, scoped, tag = 'scoped memory for mvcln_fc_scene_forward.1']
    #allocation12 [shape = 'u8[524288]{0}', space=vmem, size = 0x80000, scoped, tag = 'input window, operand 7']
    #allocation13 [shape = 'u8[1024]{0}', space=vmem, size = 0x400, scoped, tag = 'input window, operand 8']
    #allocation14 [shape = 's32[2]{0}', space=sflag, size = 0x8, scoped, tag = 'scoped memory for mvcln_fc_scene_forward.1']
    %14 = vsyncpa [#allocation3], 0
    %s15 = scalar_lea.sflag [#allocation3], 1
    %16 = vsyncpa %s15, 0
    %17 = vsyncpa [#allocation5], 0
    %s18 = scalar_lea.sflag [#allocation5], 1
    %19 = vsyncpa %s18, 0
    %20 = vsyncpa [#allocation8], 0
    %s21 = scalar_lea.sflag [#allocation8], 1
    %22 = vsyncpa %s21, 0
    %23 = vsyncpa [#allocation11], 0
    %s24 = scalar_lea.sflag [#allocation11], 1
    %25 = vsyncpa %s24, 0
    %26 = vsyncpa [#allocation14], 0
    %s27 = scalar_lea.sflag [#allocation14], 1
    %28 = vsyncpa %s27, 0
    loop: start=0, step=1, limit=4
    $region2: #{mvcln_fc_scene_forward.1} parent=1 // loop_pre_header
      _
    $region3: #{mvcln_fc_scene_forward.1} parent=1 // loop_header
      %s30 = sphi 0, %s34
      %p31 = scmp.ge.s32.totalorder %s30, 4
      %s40 = sphi 0, %s42
      %s43 = sphi 0, %s40
      %s44 = sphi 0, %s43
      %s60 = sphi 0, %s44
      %s66 = sphi 0, %s68
      %s69 = sphi 0, %s66
      %s70 = sphi 0, %s69
      %s86 = sphi 0, %s70
      %s92 = sphi 0, %s94
      %s95 = sphi 0, %s92
      %s96 = sphi 0, %s95
      %s112 = sphi 0, %s96
      %s118 = sphi 0, %s120
      %s121 = sphi 0, %s118
      %s122 = sphi 0, %s121
      %s138 = sphi 0, %s122
      %s144 = sphi 0, %s146
      %s147 = sphi 0, %s144
      %s148 = sphi 0, %s147
      %s164 = sphi 0, %s148
      %s170 = sphi 0, %s172
      %s173 = sphi 0, %s170
      %s174 = sphi 0, %s173
      %s190 = sphi 0, %s174
      %s196 = sphi 0, %s198
      %s199 = sphi 0, %s196
      %s200 = sphi 0, %s199
      %s216 = sphi 0, %s200
      %s222 = sphi 0, %s224
      %s225 = sphi 0, %s222
      %s226 = sphi 0, %s225
      %s242 = sphi 0, %s226
      %s248 = sphi 0, %s250
      %s251 = sphi 0, %s248
      %s252 = sphi 0, %s251
      %s268 = sphi 0, %s252
      %s274 = sphi 0, %s276
      %s277 = sphi 0, %s274
      %s278 = sphi 0, %s277
      %s294 = sphi 0, %s278
    $region4: #{mvcln_fc_scene_forward.1} parent=1 // loop_header_branch
      %33 = sbr.rel (%p31) target = $region8
    $region5: #{mvcln_fc_scene_forward.1} parent=1 // loop_body
      %s35 = ssub.s32 %s30, 1
      %s36 = ssub.s32 %s30, 2
      %s37 = sadd.s32 %s30, 1
      %s38 = ssub.s32 %s30, %s37
      %p39 = scmp.eq.s32.totalorder %s38, 0
      %s41 = sadd.s32 %s40, 1
      %s42 = scalar_select %p39, %s40, %s41
      %p45 = pneg %p39
      %p46 = scmp.eq.s32.totalorder %s30, 1
      %p47 = por %p45, %p46
      %p48 = scmp.ne.s32.totalorder %s40, %s43
      %p49 = scmp.eq.s32.totalorder %s30, 0
      %p50 = por %p48, %p49
      %p51 = scmp.ne.s32.totalorder %s40, %s43
      %p52 = scmp.eq.s32.totalorder %s35, 1
      %p53 = por %p51, %p52
      %p54 = scmp.ne.s32.totalorder %s43, %s44
      %p55 = scmp.eq.s32.totalorder %s35, 0
      %p56 = por %p54, %p55
      %p57 = scmp.ne.s32.totalorder %s43, %s44
      %p58 = scmp.eq.s32.totalorder %s36, 1
      %p59 = por %p57, %p58
      %p61 = scmp.ne.s32.totalorder %s44, %s60
      %p62 = scmp.eq.s32.totalorder %s36, 0
      %p63 = por %p61, %p62
      %s64 = ssub.s32 %s30, %s37
      %p65 = scmp.eq.s32.totalorder %s64, 0
      %s67 = sadd.s32 %s66, 1
      %s68 = scalar_select %p65, %s66, %s67
      %p71 = pneg %p65
      %p72 = scmp.eq.s32.totalorder %s30, 1
      %p73 = por %p71, %p72
      %p74 = scmp.ne.s32.totalorder %s66, %s69
      %p75 = scmp.eq.s32.totalorder %s30, 0
      %p76 = por %p74, %p75
      %p77 = scmp.ne.s32.totalorder %s66, %s69
      %p78 = scmp.eq.s32.totalorder %s35, 1
      %p79 = por %p77, %p78
      %p80 = scmp.ne.s32.totalorder %s69, %s70
      %p81 = scmp.eq.s32.totalorder %s35, 0
      %p82 = por %p80, %p81
      %p83 = scmp.ne.s32.totalorder %s69, %s70
      %p84 = scmp.eq.s32.totalorder %s36, 1
      %p85 = por %p83, %p84
      %p87 = scmp.ne.s32.totalorder %s70, %s86
      %p88 = scmp.eq.s32.totalorder %s36, 0
      %p89 = por %p87, %p88
      %s90 = ssub.s32 %s30, %s37
      %p91 = scmp.eq.s32.totalorder %s90, 0
      %s93 = sadd.s32 %s92, 1
      %s94 = scalar_select %p91, %s92, %s93
      %p97 = pneg %p91
      %p98 = scmp.eq.s32.totalorder %s30, 1
      %p99 = por %p97, %p98
      %p100 = scmp.ne.s32.totalorder %s92, %s95
      %p101 = scmp.eq.s32.totalorder %s30, 0
      %p102 = por %p100, %p101
      %p103 = scmp.ne.s32.totalorder %s92, %s95
      %p104 = scmp.eq.s32.totalorder %s35, 1
      %p105 = por %p103, %p104
      %p106 = scmp.ne.s32.totalorder %s95, %s96
      %p107 = scmp.eq.s32.totalorder %s35, 0
      %p108 = por %p106, %p107
      %p109 = scmp.ne.s32.totalorder %s95, %s96
      %p110 = scmp.eq.s32.totalorder %s36, 1
      %p111 = por %p109, %p110
      %p113 = scmp.ne.s32.totalorder %s96, %s112
      %p114 = scmp.eq.s32.totalorder %s36, 0
      %p115 = por %p113, %p114
      %s116 = ssub.s32 %s30, %s37
      %p117 = scmp.eq.s32.totalorder %s116, 0
      %s119 = sadd.s32 %s118, 1
      %s120 = scalar_select %p117, %s118, %s119
      %p123 = pneg %p117
      %p124 = scmp.eq.s32.totalorder %s30, 1
      %p125 = por %p123, %p124
      %p126 = scmp.ne.s32.totalorder %s118, %s121
      %p127 = scmp.eq.s32.totalorder %s30, 0
      %p128 = por %p126, %p127
      %p129 = scmp.ne.s32.totalorder %s118, %s121
      %p130 = scmp.eq.s32.totalorder %s35, 1
      %p131 = por %p129, %p130
      %p132 = scmp.ne.s32.totalorder %s121, %s122
      %p133 = scmp.eq.s32.totalorder %s35, 0
      %p134 = por %p132, %p133
      %p135 = scmp.ne.s32.totalorder %s121, %s122
      %p136 = scmp.eq.s32.totalorder %s36, 1
      %p137 = por %p135, %p136
      %p139 = scmp.ne.s32.totalorder %s122, %s138
      %p140 = scmp.eq.s32.totalorder %s36, 0
      %p141 = por %p139, %p140
      %s142 = ssub.s32 %s30, %s37
      %p143 = scmp.eq.s32.totalorder %s142, 0
      %s145 = sadd.s32 %s144, 1
      %s146 = scalar_select %p143, %s144, %s145
      %p149 = pneg %p143
      %p150 = scmp.eq.s32.totalorder %s30, 1
      %p151 = por %p149, %p150
      %p152 = scmp.ne.s32.totalorder %s144, %s147
      %p153 = scmp.eq.s32.totalorder %s30, 0
      %p154 = por %p152, %p153
      %p155 = scmp.ne.s32.totalorder %s144, %s147
      %p156 = scmp.eq.s32.totalorder %s35, 1
      %p157 = por %p155, %p156
      %p158 = scmp.ne.s32.totalorder %s147, %s148
      %p159 = scmp.eq.s32.totalorder %s35, 0
      %p160 = por %p158, %p159
      %p161 = scmp.ne.s32.totalorder %s147, %s148
      %p162 = scmp.eq.s32.totalorder %s36, 1
      %p163 = por %p161, %p162
      %p165 = scmp.ne.s32.totalorder %s148, %s164
      %p166 = scmp.eq.s32.totalorder %s36, 0
      %p167 = por %p165, %p166
      %s168 = ssub.s32 %s30, %s37
      %p169 = scmp.eq.s32.totalorder %s168, 0
      %s171 = sadd.s32 %s170, 1
      %s172 = scalar_select %p169, %s170, %s171
      %p175 = pneg %p169
      %p176 = scmp.eq.s32.totalorder %s30, 1
      %p177 = por %p175, %p176
      %p178 = scmp.ne.s32.totalorder %s170, %s173
      %p179 = scmp.eq.s32.totalorder %s30, 0
      %p180 = por %p178, %p179
      %p181 = scmp.ne.s32.totalorder %s170, %s173
      %p182 = scmp.eq.s32.totalorder %s35, 1
      %p183 = por %p181, %p182
      %p184 = scmp.ne.s32.totalorder %s173, %s174
      %p185 = scmp.eq.s32.totalorder %s35, 0
      %p186 = por %p184, %p185
      %p187 = scmp.ne.s32.totalorder %s173, %s174
      %p188 = scmp.eq.s32.totalorder %s36, 1
      %p189 = por %p187, %p188
      %p191 = scmp.ne.s32.totalorder %s174, %s190
      %p192 = scmp.eq.s32.totalorder %s36, 0
      %p193 = por %p191, %p192
      %s194 = ssub.s32 %s30, %s37
      %p195 = scmp.eq.s32.totalorder %s194, 0
      %s197 = sadd.s32 %s196, 1
      %s198 = scalar_select %p195, %s196, %s197
      %p201 = pneg %p195
      %p202 = scmp.eq.s32.totalorder %s30, 1
      %p203 = por %p201, %p202
      %p204 = scmp.ne.s32.totalorder %s196, %s199
      %p205 = scmp.eq.s32.totalorder %s30, 0
      %p206 = por %p204, %p205
      %p207 = scmp.ne.s32.totalorder %s196, %s199
      %p208 = scmp.eq.s32.totalorder %s35, 1
      %p209 = por %p207, %p208
      %p210 = scmp.ne.s32.totalorder %s199, %s200
      %p211 = scmp.eq.s32.totalorder %s35, 0
      %p212 = por %p210, %p211
      %p213 = scmp.ne.s32.totalorder %s199, %s200
      %p214 = scmp.eq.s32.totalorder %s36, 1
      %p215 = por %p213, %p214
      %p217 = scmp.ne.s32.totalorder %s200, %s216
      %p218 = scmp.eq.s32.totalorder %s36, 0
      %p219 = por %p217, %p218
      %s220 = ssub.s32 %s30, %s37
      %p221 = scmp.eq.s32.totalorder %s220, 0
      %s223 = sadd.s32 %s222, 1
      %s224 = scalar_select %p221, %s222, %s223
      %p227 = pneg %p221
      %p228 = scmp.eq.s32.totalorder %s30, 1
      %p229 = por %p227, %p228
      %p230 = scmp.ne.s32.totalorder %s222, %s225
      %p231 = scmp.eq.s32.totalorder %s30, 0
      %p232 = por %p230, %p231
      %p233 = scmp.ne.s32.totalorder %s222, %s225
      %p234 = scmp.eq.s32.totalorder %s35, 1
      %p235 = por %p233, %p234
      %p236 = scmp.ne.s32.totalorder %s225, %s226
      %p237 = scmp.eq.s32.totalorder %s35, 0
      %p238 = por %p236, %p237
      %p239 = scmp.ne.s32.totalorder %s225, %s226
      %p240 = scmp.eq.s32.totalorder %s36, 1
      %p241 = por %p239, %p240
      %p243 = scmp.ne.s32.totalorder %s226, %s242
      %p244 = scmp.eq.s32.totalorder %s36, 0
      %p245 = por %p243, %p244
      %s246 = ssub.s32 %s30, %s37
      %p247 = scmp.eq.s32.totalorder %s246, 0
      %s249 = sadd.s32 %s248, 1
      %s250 = scalar_select %p247, %s248, %s249
      %p253 = pneg %p247
      %p254 = scmp.eq.s32.totalorder %s30, 1
      %p255 = por %p253, %p254
      %p256 = scmp.ne.s32.totalorder %s248, %s251
      %p257 = scmp.eq.s32.totalorder %s30, 0
      %p258 = por %p256, %p257
      %p259 = scmp.ne.s32.totalorder %s248, %s251
      %p260 = scmp.eq.s32.totalorder %s35, 1
      %p261 = por %p259, %p260
      %p262 = scmp.ne.s32.totalorder %s251, %s252
      %p263 = scmp.eq.s32.totalorder %s35, 0
      %p264 = por %p262, %p263
      %p265 = scmp.ne.s32.totalorder %s251, %s252
      %p266 = scmp.eq.s32.totalorder %s36, 1
      %p267 = por %p265, %p266
      %p269 = scmp.ne.s32.totalorder %s252, %s268
      %p270 = scmp.eq.s32.totalorder %s36, 0
      %p271 = por %p269, %p270
      %s272 = ssub.s32 %s30, %s37
      %p273 = scmp.eq.s32.totalorder %s272, 0
      %s275 = sadd.s32 %s274, 1
      %s276 = scalar_select %p273, %s274, %s275
      %p279 = pneg %p273
      %p280 = scmp.eq.s32.totalorder %s30, 1
      %p281 = por %p279, %p280
      %p282 = scmp.ne.s32.totalorder %s274, %s277
      %p283 = scmp.eq.s32.totalorder %s30, 0
      %p284 = por %p282, %p283
      %p285 = scmp.ne.s32.totalorder %s274, %s277
      %p286 = scmp.eq.s32.totalorder %s35, 1
      %p287 = por %p285, %p286
      %p288 = scmp.ne.s32.totalorder %s277, %s278
      %p289 = scmp.eq.s32.totalorder %s35, 0
      %p290 = por %p288, %p289
      %p291 = scmp.ne.s32.totalorder %s277, %s278
      %p292 = scmp.eq.s32.totalorder %s36, 1
      %p293 = por %p291, %p292
      %p295 = scmp.ne.s32.totalorder %s278, %s294
      %p296 = scmp.eq.s32.totalorder %s36, 0
      %p297 = por %p295, %p296
      %p298 = scmp.le.s32.totalorder 1, %s30
      %p299 = scmp.lt.s32.totalorder %s30, 3
      %p300 = pnand %p298, %p299
      %p301 = pneg %p300
      // Predicated region
      $region9: #{mvcln_fc_scene_forward.1} parent=5 // pred_check
        _
      $region10: #{mvcln_fc_scene_forward.1} parent=5 // pred_check_branch
        %303 = sbr.rel (%p300) target = $region12
      $region11: #{mvcln_fc_scene_forward.1} parent=5 // pred_region
        %s304 = ssub.s32 %s30, 1
      $region12: #{mvcln_fc_scene_forward.1} parent=5 // pred_fallthru
        _
      %p305 = scmp.lt.s32.totalorder %s30, 2
      // Predicated region
      $region13: #{mvcln_fc_scene_forward.1} parent=5 // pred_check
        %p306 = pneg %p305
      $region14: #{mvcln_fc_scene_forward.1} parent=5 // pred_check_branch
        %308 = sbr.rel (%p306) target = $region16
      $region15: #{mvcln_fc_scene_forward.1} parent=5 // pred_region
        // Predicated region
        $region17: #{mvcln_fc_scene_forward.1} parent=15 // pred_check
          %p309 = pneg %p50
        $region18: #{mvcln_fc_scene_forward.1} parent=15 // pred_check_branch
          %311 = sbr.rel (%p309) target = $region20
        $region19: #{mvcln_fc_scene_forward.1} parent=15 // pred_region
          %p312 = scmp.lt.s32.totalorder %s30, 1
          %s313 = scalar_select %p312, %s30, 1
          %s314 = smul.addr %s313, 8
          %s315 = scalar_lea.vmem %s0, %s314
        $region20: #{mvcln_fc_scene_forward.1} parent=15 // pred_fallthru
          _
        // Predicated region
        $region21: #{mvcln_fc_scene_forward.1} parent=15 // pred_check
          %p316 = pneg %p76
        $region22: #{mvcln_fc_scene_forward.1} parent=15 // pred_check_branch
          %318 = sbr.rel (%p316) target = $region24
        $region23: #{mvcln_fc_scene_forward.1} parent=15 // pred_region
          %s319 = sand.u32 %s66, 1
          %s320 = scalar_lea.sflag [#allocation3], %s319
          %s321 = sand.u32 %s66, 1
          %s322 = smul.addr %s321, 256
          %s323 = scalar_lea.vmem [#allocation2], %s322
          %325 = vsyncadd %s320, 0
          %s326 = smul.addr %s30, 64
          %s327 = smul.addr %s326, 4
          %s328 = scalar_lea.hbm %s1, %s327
          %s329 = sshll.u32 %s328, 4
          %s330 = int_to_ptr.hbm [resolvable:$true] %s329
          %s331 = sshll.u32 %s323, 4
          %s332 = int_to_ptr.vmem [resolvable:$true] %s331
          %337 = dma.hbm_to_vmem [thread:$0]  %s330, 4096, %s332, %s320, 512, 512, 32
        $region24: #{mvcln_fc_scene_forward.1} parent=15 // pred_fallthru
          _
        // Predicated region
        $region25: #{mvcln_fc_scene_forward.1} parent=15 // pred_check
          %p338 = pneg %p102
        $region26: #{mvcln_fc_scene_forward.1} parent=15 // pred_check_branch
          %340 = sbr.rel (%p338) target = $region28
        $region27: #{mvcln_fc_scene_forward.1} parent=15 // pred_region
          %s341 = sand.u32 %s30, 1
          %s342 = scalar_lea.sflag [#allocation5], %s341
          %s343 = sand.u32 %s92, 1
          %s344 = smul.addr %s343, 8
          %s345 = scalar_lea.vmem [#allocation4], %s344
          %347 = vsyncadd %s342, 0
          %s348 = smul.addr %s30, 8
          %s349 = scalar_lea.hbm %s2, %s348
          %s351 = sshll.u32 %s349, 4
          %s352 = int_to_ptr.hbm [resolvable:$true] %s351
          %s353 = sshll.u32 %s345, 4
          %s354 = int_to_ptr.vmem [resolvable:$true] %s353
          %356 = dma.hbm_to_vmem [thread:$0]  %s352, 128, %s354, %s342
        $region28: #{mvcln_fc_scene_forward.1} parent=15 // pred_fallthru
          _
        // Predicated region
        $region29: #{mvcln_fc_scene_forward.1} parent=15 // pred_check
          %p357 = pneg %p128
        $region30: #{mvcln_fc_scene_forward.1} parent=15 // pred_check_branch
          %359 = sbr.rel (%p357) target = $region32
        $region31: #{mvcln_fc_scene_forward.1} parent=15 // pred_region
          %s360 = sand.u32 %s30, 1
          %s361 = scalar_lea.sflag [#allocation5], %s360
          %s362 = sand.u32 %s118, 1
          %s363 = smul.addr %s362, 4096
          %s364 = scalar_lea.vmem [#allocation6], %s363
          %366 = vsyncadd %s361, 0
          %s367 = smul.addr %s30, 1024
          %s368 = smul.addr %s367, 4
          %s369 = scalar_lea.hbm %s3, %s368
          %s370 = sshll.u32 %s369, 4
          %s371 = int_to_ptr.hbm [resolvable:$true] %s370
          %s372 = sshll.u32 %s364, 4
          %s373 = int_to_ptr.vmem [resolvable:$true] %s372
          %378 = dma.hbm_to_vmem [thread:$0]  %s371, 65536, %s373, %s361, 512, 512, 32
        $region32: #{mvcln_fc_scene_forward.1} parent=15 // pred_fallthru
          _
        // Predicated region
        $region33: #{mvcln_fc_scene_forward.1} parent=15 // pred_check
          %p379 = pneg %p154
        $region34: #{mvcln_fc_scene_forward.1} parent=15 // pred_check_branch
          %381 = sbr.rel (%p379) target = $region36
        $region35: #{mvcln_fc_scene_forward.1} parent=15 // pred_region
          %s382 = sand.u32 %s30, 1
          %s383 = scalar_lea.sflag [#allocation8], %s382
          %s384 = sand.u32 %s144, 1
          %s385 = smul.addr %s384, 8
          %s386 = scalar_lea.vmem [#allocation7], %s385
          %388 = vsyncadd %s383, 0
          %s389 = smul.addr %s30, 8
          %s390 = scalar_lea.hbm %s4, %s389
          %s392 = sshll.u32 %s390, 4
          %s393 = int_to_ptr.hbm [resolvable:$true] %s392
          %s394 = sshll.u32 %s386, 4
          %s395 = int_to_ptr.vmem [resolvable:$true] %s394
          %397 = dma.hbm_to_vmem [thread:$0]  %s393, 128, %s395, %s383
        $region36: #{mvcln_fc_scene_forward.1} parent=15 // pred_fallthru
          _
        // Predicated region
        $region37: #{mvcln_fc_scene_forward.1} parent=15 // pred_check
          %p398 = pneg %p180
        $region38: #{mvcln_fc_scene_forward.1} parent=15 // pred_check_branch
          %400 = sbr.rel (%p398) target = $region40
        $region39: #{mvcln_fc_scene_forward.1} parent=15 // pred_region
          %s401 = sand.u32 %s30, 1
          %s402 = scalar_lea.sflag [#allocation8], %s401
          %s403 = sand.u32 %s170, 1
          %s404 = smul.addr %s403, 4096
          %s405 = scalar_lea.vmem [#allocation9], %s404
          %407 = vsyncadd %s402, 0
          %s408 = smul.addr %s30, 1024
          %s409 = smul.addr %s408, 4
          %s410 = scalar_lea.hbm %s5, %s409
          %s411 = sshll.u32 %s410, 4
          %s412 = int_to_ptr.hbm [resolvable:$true] %s411
          %s413 = sshll.u32 %s405, 4
          %s414 = int_to_ptr.vmem [resolvable:$true] %s413
          %419 = dma.hbm_to_vmem [thread:$0]  %s412, 65536, %s414, %s402, 512, 512, 32
        $region40: #{mvcln_fc_scene_forward.1} parent=15 // pred_fallthru
          _
        // Predicated region
        $region41: #{mvcln_fc_scene_forward.1} parent=15 // pred_check
          %p420 = pneg %p206
        $region42: #{mvcln_fc_scene_forward.1} parent=15 // pred_check_branch
          %422 = sbr.rel (%p420) target = $region44
        $region43: #{mvcln_fc_scene_forward.1} parent=15 // pred_region
          %s423 = sand.u32 %s30, 1
          %s424 = scalar_lea.sflag [#allocation11], %s423
          %s425 = sand.u32 %s196, 1
          %s426 = smul.addr %s425, 8
          %s427 = scalar_lea.vmem [#allocation10], %s426
          %429 = vsyncadd %s424, 0
          %s430 = smul.addr %s30, 8
          %s431 = scalar_lea.hbm %s6, %s430
          %s433 = sshll.u32 %s431, 4
          %s434 = int_to_ptr.hbm [resolvable:$true] %s433
          %s435 = sshll.u32 %s427, 4
          %s436 = int_to_ptr.vmem [resolvable:$true] %s435
          %438 = dma.hbm_to_vmem [thread:$0]  %s434, 128, %s436, %s424
        $region44: #{mvcln_fc_scene_forward.1} parent=15 // pred_fallthru
          _
        // Predicated region
        $region45: #{mvcln_fc_scene_forward.1} parent=15 // pred_check
          %p439 = pneg %p232
        $region46: #{mvcln_fc_scene_forward.1} parent=15 // pred_check_branch
          %441 = sbr.rel (%p439) target = $region48
        $region47: #{mvcln_fc_scene_forward.1} parent=15 // pred_region
          %s442 = sand.u32 %s30, 1
          %s443 = scalar_lea.sflag [#allocation11], %s442
          %s444 = sand.u32 %s222, 1
          %s445 = smul.addr %s444, 512
          %s446 = scalar_lea.vmem [#allocation12], %s445
          %448 = vsyncadd %s443, 0
          %s449 = smul.addr %s30, 128
          %s450 = smul.addr %s449, 4
          %s451 = scalar_lea.hbm %s7, %s450
          %s452 = sshll.u32 %s451, 4
          %s453 = int_to_ptr.hbm [resolvable:$true] %s452
          %s454 = sshll.u32 %s446, 4
          %s455 = int_to_ptr.vmem [resolvable:$true] %s454
          %460 = dma.hbm_to_vmem [thread:$0]  %s453, 8192, %s455, %s443, 64, 64, 4
        $region48: #{mvcln_fc_scene_forward.1} parent=15 // pred_fallthru
          _
        // Predicated region
        $region49: #{mvcln_fc_scene_forward.1} parent=15 // pred_check
          %p461 = pneg %p258
        $region50: #{mvcln_fc_scene_forward.1} parent=15 // pred_check_branch
          %463 = sbr.rel (%p461) target = $region52
        $region51: #{mvcln_fc_scene_forward.1} parent=15 // pred_region
          %s464 = sand.u32 %s248, 1
          %s465 = scalar_lea.sflag [#allocation14], %s464
          %s466 = sand.u32 %s248, 1
          %s467 = scalar_lea.vmem [#allocation13], %s466
          %469 = vsyncadd %s465, 0
          %s470 = scalar_lea.hbm %s8, %s30
          %s472 = sshll.u32 %s470, 4
          %s473 = int_to_ptr.hbm [resolvable:$true] %s472
          %s474 = sshll.u32 %s467, 4
          %s475 = int_to_ptr.vmem [resolvable:$true] %s474
          %477 = dma.hbm_to_vmem [thread:$0]  %s473, 16, %s475, %s465
        $region52: #{mvcln_fc_scene_forward.1} parent=15 // pred_fallthru
          _
      $region16: #{mvcln_fc_scene_forward.1} parent=5 // pred_fallthru
        _
      %p478 = scmp.le.s32.totalorder 1, %s30
      %p479 = scmp.lt.s32.totalorder %s30, 3
      %p480 = pnand %p478, %p479
      %p481 = pneg %p480
      // Predicated region
      $region53: #{mvcln_fc_scene_forward.1} parent=5 // pred_check
        _
      $region54: #{mvcln_fc_scene_forward.1} parent=5 // pred_check_branch
        %483 = sbr.rel (%p480) target = $region56
      $region55: #{mvcln_fc_scene_forward.1} parent=5 // pred_region
        %s484 = ssub.s32 %s30, 1
        %s485 = sand.u32 %s69, 1
        %s486 = scalar_lea.sflag [#allocation3], %s485
        %s487 = sand.u32 %s69, 1
        %s488 = smul.addr %s487, 256
        %s489 = scalar_lea.vmem [#allocation2], %s488
        // Predicated region
        $region57: #{mvcln_fc_scene_forward.1} parent=55 // pred_check
          %p490 = pneg %p82
        $region58: #{mvcln_fc_scene_forward.1} parent=55 // pred_check_branch
          %492 = sbr.rel (%p490) target = $region60
        $region59: #{mvcln_fc_scene_forward.1} parent=55 // pred_region
          %494 = dma.done %s486, 4096
        $region60: #{mvcln_fc_scene_forward.1} parent=55 // pred_fallthru
          _
        %s495 = sand.u32 %s35, 1
        %s496 = scalar_lea.sflag [#allocation5], %s495
        %s497 = sand.u32 %s95, 1
        %s498 = smul.addr %s497, 8
        %s499 = scalar_lea.vmem [#allocation4], %s498
        // Predicated region
        $region61: #{mvcln_fc_scene_forward.1} parent=55 // pred_check
          %p500 = pneg %p108
        $region62: #{mvcln_fc_scene_forward.1} parent=55 // pred_check_branch
          %502 = sbr.rel (%p500) target = $region64
        $region63: #{mvcln_fc_scene_forward.1} parent=55 // pred_region
          %504 = dma.done %s496, 128
        $region64: #{mvcln_fc_scene_forward.1} parent=55 // pred_fallthru
          _
        %s505 = sand.u32 %s35, 1
        %s506 = scalar_lea.sflag [#allocation5], %s505
        %s507 = sand.u32 %s121, 1
        %s508 = smul.addr %s507, 4096
        %s509 = scalar_lea.vmem [#allocation6], %s508
        // Predicated region
        $region65: #{mvcln_fc_scene_forward.1} parent=55 // pred_check
          %p510 = pneg %p134
        $region66: #{mvcln_fc_scene_forward.1} parent=55 // pred_check_branch
          %512 = sbr.rel (%p510) target = $region68
        $region67: #{mvcln_fc_scene_forward.1} parent=55 // pred_region
          %514 = dma.done %s506, 65536
        $region68: #{mvcln_fc_scene_forward.1} parent=55 // pred_fallthru
          _
        %s515 = sand.u32 %s35, 1
        %s516 = scalar_lea.sflag [#allocation8], %s515
        %s517 = sand.u32 %s147, 1
        %s518 = smul.addr %s517, 8
        %s519 = scalar_lea.vmem [#allocation7], %s518
        // Predicated region
        $region69: #{mvcln_fc_scene_forward.1} parent=55 // pred_check
          %p520 = pneg %p160
        $region70: #{mvcln_fc_scene_forward.1} parent=55 // pred_check_branch
          %522 = sbr.rel (%p520) target = $region72
        $region71: #{mvcln_fc_scene_forward.1} parent=55 // pred_region
          %524 = dma.done %s516, 128
        $region72: #{mvcln_fc_scene_forward.1} parent=55 // pred_fallthru
          _
        %s525 = sand.u32 %s35, 1
        %s526 = scalar_lea.sflag [#allocation8], %s525
        %s527 = sand.u32 %s173, 1
        %s528 = smul.addr %s527, 4096
        %s529 = scalar_lea.vmem [#allocation9], %s528
        // Predicated region
        $region73: #{mvcln_fc_scene_forward.1} parent=55 // pred_check
          %p530 = pneg %p186
        $region74: #{mvcln_fc_scene_forward.1} parent=55 // pred_check_branch
          %532 = sbr.rel (%p530) target = $region76
        $region75: #{mvcln_fc_scene_forward.1} parent=55 // pred_region
          %534 = dma.done %s526, 65536
        $region76: #{mvcln_fc_scene_forward.1} parent=55 // pred_fallthru
          _
        %s535 = sand.u32 %s35, 1
        %s536 = scalar_lea.sflag [#allocation11], %s535
        %s537 = sand.u32 %s199, 1
        %s538 = smul.addr %s537, 8
        %s539 = scalar_lea.vmem [#allocation10], %s538
        // Predicated region
        $region77: #{mvcln_fc_scene_forward.1} parent=55 // pred_check
          %p540 = pneg %p212
        $region78: #{mvcln_fc_scene_forward.1} parent=55 // pred_check_branch
          %542 = sbr.rel (%p540) target = $region80
        $region79: #{mvcln_fc_scene_forward.1} parent=55 // pred_region
          %544 = dma.done %s536, 128
        $region80: #{mvcln_fc_scene_forward.1} parent=55 // pred_fallthru
          _
        %s545 = sand.u32 %s35, 1
        %s546 = scalar_lea.sflag [#allocation11], %s545
        %s547 = sand.u32 %s225, 1
        %s548 = smul.addr %s547, 512
        %s549 = scalar_lea.vmem [#allocation12], %s548
        // Predicated region
        $region81: #{mvcln_fc_scene_forward.1} parent=55 // pred_check
          %p550 = pneg %p238
        $region82: #{mvcln_fc_scene_forward.1} parent=55 // pred_check_branch
          %552 = sbr.rel (%p550) target = $region84
        $region83: #{mvcln_fc_scene_forward.1} parent=55 // pred_region
          %554 = dma.done %s546, 8192
        $region84: #{mvcln_fc_scene_forward.1} parent=55 // pred_fallthru
          _
        %s555 = sand.u32 %s251, 1
        %s556 = scalar_lea.sflag [#allocation14], %s555
        %s557 = sand.u32 %s251, 1
        %s558 = scalar_lea.vmem [#allocation13], %s557
        // Predicated region
        $region85: #{mvcln_fc_scene_forward.1} parent=55 // pred_check
          %p559 = pneg %p264
        $region86: #{mvcln_fc_scene_forward.1} parent=55 // pred_check_branch
          %561 = sbr.rel (%p559) target = $region88
        $region87: #{mvcln_fc_scene_forward.1} parent=55 // pred_region
          %563 = dma.done %s556, 16
        $region88: #{mvcln_fc_scene_forward.1} parent=55 // pred_fallthru
          _
        %p564 = scmp.lt.s32.totalorder %s35, 1
        %s565 = scalar_select %p564, %s35, 1
        %s566 = smul.addr %s565, 8
        %s567 = scalar_lea.vmem %s0, %s566
        %p568 = pneg %p56
        %p569 = pneg %p53
        %s570 = sand.u32 %s69, 1
        %s571 = scalar_lea.sflag [#allocation3], %s570
        %s572 = sand.u32 %s69, 1
        %s573 = smul.addr %s572, 256
        %s574 = scalar_lea.vmem [#allocation2], %s573
        %p575 = pneg %p82
        %p576 = pneg %p79
        %s577 = sand.u32 %s35, 1
        %s578 = scalar_lea.sflag [#allocation5], %s577
        %s579 = sand.u32 %s95, 1
        %s580 = smul.addr %s579, 8
        %s581 = scalar_lea.vmem [#allocation4], %s580
        %p582 = pneg %p108
        %p583 = pneg %p105
        %s584 = sand.u32 %s35, 1
        %s585 = scalar_lea.sflag [#allocation5], %s584
        %s586 = sand.u32 %s121, 1
        %s587 = smul.addr %s586, 4096
        %s588 = scalar_lea.vmem [#allocation6], %s587
        %p589 = pneg %p134
        %p590 = pneg %p131
        %s591 = sand.u32 %s35, 1
        %s592 = scalar_lea.sflag [#allocation8], %s591
        %s593 = sand.u32 %s147, 1
        %s594 = smul.addr %s593, 8
        %s595 = scalar_lea.vmem [#allocation7], %s594
        %p596 = pneg %p160
        %p597 = pneg %p157
        %s598 = sand.u32 %s35, 1
        %s599 = scalar_lea.sflag [#allocation8], %s598
        %s600 = sand.u32 %s173, 1
        %s601 = smul.addr %s600, 4096
        %s602 = scalar_lea.vmem [#allocation9], %s601
        %p603 = pneg %p186
        %p604 = pneg %p183
        %s605 = sand.u32 %s35, 1
        %s606 = scalar_lea.sflag [#allocation11], %s605
        %s607 = sand.u32 %s199, 1
        %s608 = smul.addr %s607, 8
        %s609 = scalar_lea.vmem [#allocation10], %s608
        %p610 = pneg %p212
        %p611 = pneg %p209
        %s612 = sand.u32 %s35, 1
        %s613 = scalar_lea.sflag [#allocation11], %s612
        %s614 = sand.u32 %s225, 1
        %s615 = smul.addr %s614, 512
        %s616 = scalar_lea.vmem [#allocation12], %s615
        %p617 = pneg %p238
        %p618 = pneg %p235
        %s619 = sand.u32 %s251, 1
        %s620 = scalar_lea.sflag [#allocation14], %s619
        %s621 = sand.u32 %s251, 1
        %s622 = scalar_lea.vmem [#allocation13], %s621
        %p623 = pneg %p264
        %p624 = pneg %p261
        %p625 = pneg %p290
        %p626 = pneg %p287
        %p627 = scmp.lt.s32.totalorder %s35, 1
        %s628 = scalar_select %p627, %s35, 1
        %s629 = smul.addr %s628, 8
        %s630 = scalar_lea.vmem %s9, %s629
        %p631 = scmp.lt.s32.totalorder %s35, 1
        %s632 = scalar_select %p631, %s35, 1
        %s633 = smul.addr %s632, 8
        %s634 = scalar_lea.vmem %s0, %s633
        %p635 = scmp.lt.s32.totalorder %s35, 1
        %s636 = scalar_select %p635, %s35, 1
        %s637 = smul.addr %s636, 8
        %s638 = scalar_lea.vmem %s9, %s637
        %v640 = vld [vmem:[%s634] sm:$0xff]
        %v641 = vpack.c.bf16 %v640, %v640
        %v642 = vld [vmem:[%s489] sm:$0xff]
        %v643 = vld [vmem:[%s489 + $0x8] sm:$0xff]
        %v644 = vld [vmem:[%s489 + $0x10] sm:$0xff]
        %v645 = vld [vmem:[%s489 + $0x18] sm:$0xff]
        %v646 = vld [vmem:[%s489 + $0x20] sm:$0xff]
        %v647 = vld [vmem:[%s489 + $0x28] sm:$0xff]
        %v648 = vld [vmem:[%s489 + $0x30] sm:$0xff]
        %v649 = vld [vmem:[%s489 + $0x38] sm:$0xff]
        %v650 = vld [vmem:[%s489 + $0x40] sm:$0xff]
        %v651 = vld [vmem:[%s489 + $0x48] sm:$0xff]
        %v652 = vld [vmem:[%s489 + $0x50] sm:$0xff]
        %v653 = vld [vmem:[%s489 + $0x58] sm:$0xff]
        %v654 = vld [vmem:[%s489 + $0x60] sm:$0xff]
        %v655 = vld [vmem:[%s489 + $0x68] sm:$0xff]
        %v656 = vld [vmem:[%s489 + $0x70] sm:$0xff]
        %v657 = vld [vmem:[%s489 + $0x78] sm:$0xff]
        %v658 = vld [vmem:[%s489 + $0x80] sm:$0xff]
        %v659 = vld [vmem:[%s489 + $0x88] sm:$0xff]
        %v660 = vld [vmem:[%s489 + $0x90] sm:$0xff]
        %v661 = vld [vmem:[%s489 + $0x98] sm:$0xff]
        %v662 = vld [vmem:[%s489 + $0xa0] sm:$0xff]
        %v663 = vld [vmem:[%s489 + $0xa8] sm:$0xff]
        %v664 = vld [vmem:[%s489 + $0xb0] sm:$0xff]
        %v665 = vld [vmem:[%s489 + $0xb8] sm:$0xff]
        %v666 = vld [vmem:[%s489 + $0xc0] sm:$0xff]
        %v667 = vld [vmem:[%s489 + $0xc8] sm:$0xff]
        %v668 = vld [vmem:[%s489 + $0xd0] sm:$0xff]
        %v669 = vld [vmem:[%s489 + $0xd8] sm:$0xff]
        %v670 = vld [vmem:[%s489 + $0xe0] sm:$0xff]
        %v671 = vld [vmem:[%s489 + $0xe8] sm:$0xff]
        %v672 = vld [vmem:[%s489 + $0xf0] sm:$0xff]
        %v673 = vld [vmem:[%s489 + $0xf8] sm:$0xff]
        %v674 = vld [vmem:[%s499] sm:$0xff]
        %v676 = vperm.slane %v674, 0
        %v677 = vperm.slane %v674, 1
        %v678 = vperm.slane %v674, 2
        %v679 = vperm.slane %v674, 3
        %v680 = vperm.slane %v674, 4
        %v681 = vperm.slane %v674, 5
        %v682 = vperm.slane %v674, 6
        %v683 = vperm.slane %v674, 7
        %v724 = vunpack.c.l.b16 %v642
        %v725 = vunpack.c.h.b16 %v642
        %v726 = vunpack.c.l.b16 %v643
        %v727 = vunpack.c.h.b16 %v643
        %v728 = vunpack.c.l.b16 %v644
        %v729 = vunpack.c.h.b16 %v644
        %v730 = vunpack.c.l.b16 %v645
        %v731 = vunpack.c.h.b16 %v645
        %v732 = vunpack.c.l.b16 %v646
        %v733 = vunpack.c.h.b16 %v646
        %v734 = vunpack.c.l.b16 %v647
        %v735 = vunpack.c.h.b16 %v647
        %v736 = vunpack.c.l.b16 %v648
        %v737 = vunpack.c.h.b16 %v648
        %v738 = vunpack.c.l.b16 %v649
        %v739 = vunpack.c.h.b16 %v649
        %v740 = vunpack.c.l.b16 %v650
        %v741 = vunpack.c.h.b16 %v650
        %v742 = vunpack.c.l.b16 %v651
        %v743 = vunpack.c.h.b16 %v651
        %v744 = vunpack.c.l.b16 %v652
        %v745 = vunpack.c.h.b16 %v652
        %v746 = vunpack.c.l.b16 %v653
        %v747 = vunpack.c.h.b16 %v653
        %v748 = vunpack.c.l.b16 %v654
        %v749 = vunpack.c.h.b16 %v654
        %v750 = vunpack.c.l.b16 %v655
        %v751 = vunpack.c.h.b16 %v655
        %v752 = vunpack.c.l.b16 %v656
        %v753 = vunpack.c.h.b16 %v656
        %v754 = vunpack.c.l.b16 %v657
        %v755 = vunpack.c.h.b16 %v657
        %v756 = vunpack.c.l.b16 %v658
        %v757 = vunpack.c.h.b16 %v658
        %v758 = vunpack.c.l.b16 %v659
        %v759 = vunpack.c.h.b16 %v659
        %v760 = vunpack.c.l.b16 %v660
        %v761 = vunpack.c.h.b16 %v660
        %v762 = vunpack.c.l.b16 %v661
        %v763 = vunpack.c.h.b16 %v661
        %v764 = vunpack.c.l.b16 %v662
        %v765 = vunpack.c.h.b16 %v662
        %v766 = vunpack.c.l.b16 %v663
        %v767 = vunpack.c.h.b16 %v663
        %v768 = vunpack.c.l.b16 %v664
        %v769 = vunpack.c.h.b16 %v664
        %v770 = vunpack.c.l.b16 %v665
        %v771 = vunpack.c.h.b16 %v665
        %v772 = vunpack.c.l.b16 %v666
        %v773 = vunpack.c.h.b16 %v666
        %v774 = vunpack.c.l.b16 %v667
        %v775 = vunpack.c.h.b16 %v667
        %v776 = vunpack.c.l.b16 %v668
        %v777 = vunpack.c.h.b16 %v668
        %v778 = vunpack.c.l.b16 %v669
        %v779 = vunpack.c.h.b16 %v669
        %v780 = vunpack.c.l.b16 %v670
        %v781 = vunpack.c.h.b16 %v670
        %v782 = vunpack.c.l.b16 %v671
        %v783 = vunpack.c.h.b16 %v671
        %v784 = vunpack.c.l.b16 %v672
        %v785 = vunpack.c.h.b16 %v672
        %v786 = vunpack.c.l.b16 %v673
        %v787 = vunpack.c.h.b16 %v673
        %v788 = vpack.c.b16 %v732, %v724
        %v789 = vpack.c.b16 %v733, %v725
        %v790 = vpack.c.b16 %v734, %v726
        %v791 = vpack.c.b16 %v735, %v727
        %v792 = vpack.c.b16 %v736, %v728
        %v793 = vpack.c.b16 %v737, %v729
        %v794 = vpack.c.b16 %v738, %v730
        %v795 = vpack.c.b16 %v739, %v731
        %v796 = vpack.c.b16 %v748, %v740
        %v797 = vpack.c.b16 %v749, %v741
        %v798 = vpack.c.b16 %v750, %v742
        %v799 = vpack.c.b16 %v751, %v743
        %v800 = vpack.c.b16 %v752, %v744
        %v801 = vpack.c.b16 %v753, %v745
        %v802 = vpack.c.b16 %v754, %v746
        %v803 = vpack.c.b16 %v755, %v747
        %v804 = vpack.c.b16 %v764, %v756
        %v805 = vpack.c.b16 %v765, %v757
        %v806 = vpack.c.b16 %v766, %v758
        %v807 = vpack.c.b16 %v767, %v759
        %v808 = vpack.c.b16 %v768, %v760
        %v809 = vpack.c.b16 %v769, %v761
        %v810 = vpack.c.b16 %v770, %v762
        %v811 = vpack.c.b16 %v771, %v763
        %v812 = vpack.c.b16 %v780, %v772
        %v813 = vpack.c.b16 %v781, %v773
        %v814 = vpack.c.b16 %v782, %v774
        %v815 = vpack.c.b16 %v783, %v775
        %v816 = vpack.c.b16 %v784, %v776
        %v817 = vpack.c.b16 %v785, %v777
        %v818 = vpack.c.b16 %v786, %v778
        %v819 = vpack.c.b16 %v787, %v779
        %vm852 = vcmask 523264
        %v854 = vsel %vm852, %v641, 0
        %856 = vmatpush.bf16.msra.mxu0 0
        %857 = vmatpush.bf16.msra.mxu0 0
        %858 = vmatpush.bf16.msra.mxu0 0
        %859 = vmatpush.bf16.msra.mxu0 0
        %860 = vmatpush.bf16.msra.mxu0 %v812
        %861 = vmatpush.bf16.msra.mxu0 %v804
        %862 = vmatpush.bf16.msra.mxu0 %v796
        %863 = vmatpush.bf16.msra.mxu0 %v788
        %864 = vmatmul.bf16.gmra.mxu0 %v854
        %v865 = vpop.f32.mrf.mxu0
        %v866 = vadd.f32 %v676, %v865
        %v867 = vpop.f32.mrf.mxu0
        %868 = vdwg.mxu0
        %869 = vmatpush.bf16.msra.mxu0 0
        %870 = vmatpush.bf16.msra.mxu0 0
        %871 = vmatpush.bf16.msra.mxu0 0
        %872 = vmatpush.bf16.msra.mxu0 0
        %873 = vmatpush.bf16.msra.mxu0 %v813
        %874 = vmatpush.bf16.msra.mxu0 %v805
        %875 = vmatpush.bf16.msra.mxu0 %v797
        %876 = vmatpush.bf16.msra.mxu0 %v789
        %877 = vmatmul.bf16.gmra.mxu0 %v854
        %v878 = vpop.f32.mrf.mxu0
        %v879 = vadd.f32 %v677, %v878
        %v880 = vpop.f32.mrf.mxu0
        %881 = vdwg.mxu0
        %882 = vmatpush.bf16.msra.mxu0 0
        %883 = vmatpush.bf16.msra.mxu0 0
        %884 = vmatpush.bf16.msra.mxu0 0
        %885 = vmatpush.bf16.msra.mxu0 0
        %886 = vmatpush.bf16.msra.mxu0 %v814
        %887 = vmatpush.bf16.msra.mxu0 %v806
        %888 = vmatpush.bf16.msra.mxu0 %v798
        %889 = vmatpush.bf16.msra.mxu0 %v790
        %890 = vmatmul.bf16.gmra.mxu0 %v854
        %v891 = vpop.f32.mrf.mxu0
        %v892 = vadd.f32 %v678, %v891
        %v893 = vpop.f32.mrf.mxu0
        %894 = vdwg.mxu0
        %895 = vmatpush.bf16.msra.mxu0 0
        %896 = vmatpush.bf16.msra.mxu0 0
        %897 = vmatpush.bf16.msra.mxu0 0
        %898 = vmatpush.bf16.msra.mxu0 0
        %899 = vmatpush.bf16.msra.mxu0 %v815
        %900 = vmatpush.bf16.msra.mxu0 %v807
        %901 = vmatpush.bf16.msra.mxu0 %v799
        %902 = vmatpush.bf16.msra.mxu0 %v791
        %903 = vmatmul.bf16.gmra.mxu0 %v854
        %v904 = vpop.f32.mrf.mxu0
        %v905 = vadd.f32 %v679, %v904
        %v906 = vpop.f32.mrf.mxu0
        %907 = vdwg.mxu0
        %908 = vmatpush.bf16.msra.mxu0 0
        %909 = vmatpush.bf16.msra.mxu0 0
        %910 = vmatpush.bf16.msra.mxu0 0
        %911 = vmatpush.bf16.msra.mxu0 0
        %912 = vmatpush.bf16.msra.mxu0 %v816
        %913 = vmatpush.bf16.msra.mxu0 %v808
        %914 = vmatpush.bf16.msra.mxu0 %v800
        %915 = vmatpush.bf16.msra.mxu0 %v792
        %916 = vmatmul.bf16.gmra.mxu0 %v854
        %v917 = vpop.f32.mrf.mxu0
        %v918 = vadd.f32 %v680, %v917
        %v919 = vpop.f32.mrf.mxu0
        %920 = vdwg.mxu0
        %921 = vmatpush.bf16.msra.mxu0 0
        %922 = vmatpush.bf16.msra.mxu0 0
        %923 = vmatpush.bf16.msra.mxu0 0
        %924 = vmatpush.bf16.msra.mxu0 0
        %925 = vmatpush.bf16.msra.mxu0 %v817
        %926 = vmatpush.bf16.msra.mxu0 %v809
        %927 = vmatpush.bf16.msra.mxu0 %v801
        %928 = vmatpush.bf16.msra.mxu0 %v793
        %929 = vmatmul.bf16.gmra.mxu0 %v854
        %v930 = vpop.f32.mrf.mxu0
        %v931 = vadd.f32 %v681, %v930
        %v932 = vpop.f32.mrf.mxu0
        %933 = vdwg.mxu0
        %934 = vmatpush.bf16.msra.mxu0 0
        %935 = vmatpush.bf16.msra.mxu0 0
        %936 = vmatpush.bf16.msra.mxu0 0
        %937 = vmatpush.bf16.msra.mxu0 0
        %938 = vmatpush.bf16.msra.mxu0 %v818
        %939 = vmatpush.bf16.msra.mxu0 %v810
        %940 = vmatpush.bf16.msra.mxu0 %v802
        %941 = vmatpush.bf16.msra.mxu0 %v794
        %942 = vmatmul.bf16.gmra.mxu0 %v854
        %v943 = vpop.f32.mrf.mxu0
        %v944 = vadd.f32 %v682, %v943
        %v945 = vpop.f32.mrf.mxu0
        %946 = vdwg.mxu0
        %947 = vmatpush.bf16.msra.mxu0 0
        %948 = vmatpush.bf16.msra.mxu0 0
        %949 = vmatpush.bf16.msra.mxu0 0
        %950 = vmatpush.bf16.msra.mxu0 0
        %951 = vmatpush.bf16.msra.mxu0 %v819
        %952 = vmatpush.bf16.msra.mxu0 %v811
        %953 = vmatpush.bf16.msra.mxu0 %v803
        %954 = vmatpush.bf16.msra.mxu0 %v795
        %955 = vmatmul.bf16.gmra.mxu0 %v854
        %v956 = vpop.f32.mrf.mxu0
        %v957 = vadd.f32 %v683, %v956
        %v958 = vpop.f32.mrf.mxu0
        %959 = vdwg.mxu0
        %v960 = vmax.f32 %v866, 0.0
        %v961 = vmax.f32 %v879, 0.0
        %v962 = vmax.f32 %v892, 0.0
        %v963 = vmax.f32 %v905, 0.0
        %v964 = vmax.f32 %v918, 0.0
        %v965 = vmax.f32 %v931, 0.0
        %v966 = vmax.f32 %v944, 0.0
        %v967 = vmax.f32 %v957, 0.0
        %v968 = vpack.c.bf16 %v960, %v960
        %v969 = vpack.c.bf16 %v961, %v961
        %v970 = vpack.c.bf16 %v962, %v962
        %v971 = vpack.c.bf16 %v963, %v963
        %v972 = vpack.c.bf16 %v964, %v964
        %v973 = vpack.c.bf16 %v965, %v965
        %v974 = vpack.c.bf16 %v966, %v966
        %v975 = vpack.c.bf16 %v967, %v967
        %v976 = vld [vmem:[%s509] sm:$0xff]
        %v977 = vld [vmem:[%s509 + $0x8] sm:$0xff]
        %v978 = vld [vmem:[%s509 + $0x10] sm:$0xff]
        %v979 = vld [vmem:[%s509 + $0x18] sm:$0xff]
        %v980 = vld [vmem:[%s509 + $0x20] sm:$0xff]
        %v981 = vld [vmem:[%s509 + $0x28] sm:$0xff]
        %v982 = vld [vmem:[%s509 + $0x30] sm:$0xff]
        %v983 = vld [vmem:[%s509 + $0x38] sm:$0xff]
        %v984 = vld [vmem:[%s509 + $0x40] sm:$0xff]
        %v985 = vld [vmem:[%s509 + $0x48] sm:$0xff]
        %v986 = vld [vmem:[%s509 + $0x50] sm:$0xff]
        %v987 = vld [vmem:[%s509 + $0x58] sm:$0xff]
        %v988 = vld [vmem:[%s509 + $0x60] sm:$0xff]
        %v989 = vld [vmem:[%s509 + $0x68] sm:$0xff]
        %v990 = vld [vmem:[%s509 + $0x70] sm:$0xff]
        %v991 = vld [vmem:[%s509 + $0x78] sm:$0xff]
        %v992 = vld [vmem:[%s509 + $0x80] sm:$0xff]
        %v993 = vld [vmem:[%s509 + $0x88] sm:$0xff]
        %v994 = vld [vmem:[%s509 + $0x90] sm:$0xff]
        %v995 = vld [vmem:[%s509 + $0x98] sm:$0xff]
        %v996 = vld [vmem:[%s509 + $0xa0] sm:$0xff]
        %v997 = vld [vmem:[%s509 + $0xa8] sm:$0xff]
        %v998 = vld [vmem:[%s509 + $0xb0] sm:$0xff]
        %v999 = vld [vmem:[%s509 + $0xb8] sm:$0xff]
        %v1000 = vld [vmem:[%s509 + $0xc0] sm:$0xff]
        %v1001 = vld [vmem:[%s509 + $0xc8] sm:$0xff]
        %v1002 = vld [vmem:[%s509 + $0xd0] sm:$0xff]
        %v1003 = vld [vmem:[%s509 + $0xd8] sm:$0xff]
        %v1004 = vld [vmem:[%s509 + $0xe0] sm:$0xff]
        %v1005 = vld [vmem:[%s509 + $0xe8] sm:$0xff]
        %v1006 = vld [vmem:[%s509 + $0xf0] sm:$0xff]
        %v1007 = vld [vmem:[%s509 + $0xf8] sm:$0xff]
        %v1008 = vld [vmem:[%s509 + $0x100] sm:$0xff]
        %v1009 = vld [vmem:[%s509 + $0x108] sm:$0xff]
        %v1010 = vld [vmem:[%s509 + $0x110] sm:$0xff]
        %v1011 = vld [vmem:[%s509 + $0x118] sm:$0xff]
        %v1012 = vld [vmem:[%s509 + $0x120] sm:$0xff]
        %v1013 = vld [vmem:[%s509 + $0x128] sm:$0xff]
        %v1014 = vld [vmem:[%s509 + $0x130] sm:$0xff]
        %v1015 = vld [vmem:[%s509 + $0x138] sm:$0xff]
        %v1016 = vld [vmem:[%s509 + $0x140] sm:$0xff]
        %v1017 = vld [vmem:[%s509 + $0x148] sm:$0xff]
        %v1018 = vld [vmem:[%s509 + $0x150] sm:$0xff]
        %v1019 = vld [vmem:[%s509 + $0x158] sm:$0xff]
        %v1020 = vld [vmem:[%s509 + $0x160] sm:$0xff]
        %v1021 = vld [vmem:[%s509 + $0x168] sm:$0xff]
        %v1022 = vld [vmem:[%s509 + $0x170] sm:$0xff]
        %v1023 = vld [vmem:[%s509 + $0x178] sm:$0xff]
        %v1024 = vld [vmem:[%s509 + $0x180] sm:$0xff]
        %v1025 = vld [vmem:[%s509 + $0x188] sm:$0xff]
        %v1026 = vld [vmem:[%s509 + $0x190] sm:$0xff]
        %v1027 = vld [vmem:[%s509 + $0x198] sm:$0xff]
        %v1028 = vld [vmem:[%s509 + $0x1a0] sm:$0xff]
        %v1029 = vld [vmem:[%s509 + $0x1a8] sm:$0xff]
        %v1030 = vld [vmem:[%s509 + $0x1b0] sm:$0xff]
        %v1031 = vld [vmem:[%s509 + $0x1b8] sm:$0xff]
        %v1032 = vld [vmem:[%s509 + $0x1c0] sm:$0xff]
        %v1033 = vld [vmem:[%s509 + $0x1c8] sm:$0xff]
        %v1034 = vld [vmem:[%s509 + $0x1d0] sm:$0xff]
        %v1035 = vld [vmem:[%s509 + $0x1d8] sm:$0xff]
        %v1036 = vld [vmem:[%s509 + $0x1e0] sm:$0xff]
        %v1037 = vld [vmem:[%s509 + $0x1e8] sm:$0xff]
        %v1038 = vld [vmem:[%s509 + $0x1f0] sm:$0xff]
        %v1039 = vld [vmem:[%s509 + $0x1f8] sm:$0xff]
        %v1040 = vld [vmem:[%s509 + $0x200] sm:$0xff]
        %v1041 = vld [vmem:[%s509 + $0x208] sm:$0xff]
        %v1042 = vld [vmem:[%s509 + $0x210] sm:$0xff]
        %v1043 = vld [vmem:[%s509 + $0x218] sm:$0xff]
        %v1044 = vld [vmem:[%s509 + $0x220] sm:$0xff]
        %v1045 = vld [vmem:[%s509 + $0x228] sm:$0xff]
        %v1046 = vld [vmem:[%s509 + $0x230] sm:$0xff]
        %v1047 = vld [vmem:[%s509 + $0x238] sm:$0xff]
        %v1048 = vld [vmem:[%s509 + $0x240] sm:$0xff]
        %v1049 = vld [vmem:[%s509 + $0x248] sm:$0xff]
        %v1050 = vld [vmem:[%s509 + $0x250] sm:$0xff]
        %v1051 = vld [vmem:[%s509 + $0x258] sm:$0xff]
        %v1052 = vld [vmem:[%s509 + $0x260] sm:$0xff]
        %v1053 = vld [vmem:[%s509 + $0x268] sm:$0xff]
        %v1054 = vld [vmem:[%s509 + $0x270] sm:$0xff]
        %v1055 = vld [vmem:[%s509 + $0x278] sm:$0xff]
        %v1056 = vld [vmem:[%s509 + $0x280] sm:$0xff]
        %v1057 = vld [vmem:[%s509 + $0x288] sm:$0xff]
        %v1058 = vld [vmem:[%s509 + $0x290] sm:$0xff]
        %v1059 = vld [vmem:[%s509 + $0x298] sm:$0xff]
        %v1060 = vld [vmem:[%s509 + $0x2a0] sm:$0xff]
        %v1061 = vld [vmem:[%s509 + $0x2a8] sm:$0xff]
        %v1062 = vld [vmem:[%s509 + $0x2b0] sm:$0xff]
        %v1063 = vld [vmem:[%s509 + $0x2b8] sm:$0xff]
        %v1064 = vld [vmem:[%s509 + $0x2c0] sm:$0xff]
        %v1065 = vld [vmem:[%s509 + $0x2c8] sm:$0xff]
        %v1066 = vld [vmem:[%s509 + $0x2d0] sm:$0xff]
        %v1067 = vld [vmem:[%s509 + $0x2d8] sm:$0xff]
        %v1068 = vld [vmem:[%s509 + $0x2e0] sm:$0xff]
        %v1069 = vld [vmem:[%s509 + $0x2e8] sm:$0xff]
        %v1070 = vld [vmem:[%s509 + $0x2f0] sm:$0xff]
        %v1071 = vld [vmem:[%s509 + $0x2f8] sm:$0xff]
        %v1072 = vld [vmem:[%s509 + $0x300] sm:$0xff]
        %v1073 = vld [vmem:[%s509 + $0x308] sm:$0xff]
        %v1074 = vld [vmem:[%s509 + $0x310] sm:$0xff]
        %v1075 = vld [vmem:[%s509 + $0x318] sm:$0xff]
        %v1076 = vld [vmem:[%s509 + $0x320] sm:$0xff]
        %v1077 = vld [vmem:[%s509 + $0x328] sm:$0xff]
        %v1078 = vld [vmem:[%s509 + $0x330] sm:$0xff]
        %v1079 = vld [vmem:[%s509 + $0x338] sm:$0xff]
        %v1080 = vld [vmem:[%s509 + $0x340] sm:$0xff]
        %v1081 = vld [vmem:[%s509 + $0x348] sm:$0xff]
        %v1082 = vld [vmem:[%s509 + $0x350] sm:$0xff]
        %v1083 = vld [vmem:[%s509 + $0x358] sm:$0xff]
        %v1084 = vld [vmem:[%s509 + $0x360] sm:$0xff]
        %v1085 = vld [vmem:[%s509 + $0x368] sm:$0xff]
        %v1086 = vld [vmem:[%s509 + $0x370] sm:$0xff]
        %v1087 = vld [vmem:[%s509 + $0x378] sm:$0xff]
        %v1088 = vld [vmem:[%s509 + $0x380] sm:$0xff]
        %v1089 = vld [vmem:[%s509 + $0x388] sm:$0xff]
        %v1090 = vld [vmem:[%s509 + $0x390] sm:$0xff]
        %v1091 = vld [vmem:[%s509 + $0x398] sm:$0xff]
        %v1092 = vld [vmem:[%s509 + $0x3a0] sm:$0xff]
        %v1093 = vld [vmem:[%s509 + $0x3a8] sm:$0xff]
        %v1094 = vld [vmem:[%s509 + $0x3b0] sm:$0xff]
        %v1095 = vld [vmem:[%s509 + $0x3b8] sm:$0xff]
        %v1096 = vld [vmem:[%s509 + $0x3c0] sm:$0xff]
        %v1097 = vld [vmem:[%s509 + $0x3c8] sm:$0xff]
        %v1098 = vld [vmem:[%s509 + $0x3d0] sm:$0xff]
        %v1099 = vld [vmem:[%s509 + $0x3d8] sm:$0xff]
        %v1100 = vld [vmem:[%s509 + $0x3e0] sm:$0xff]
        %v1101 = vld [vmem:[%s509 + $0x3e8] sm:$0xff]
        %v1102 = vld [vmem:[%s509 + $0x3f0] sm:$0xff]
        %v1103 = vld [vmem:[%s509 + $0x3f8] sm:$0xff]
        %v1104 = vld [vmem:[%s509 + $0x400] sm:$0xff]
        %v1105 = vld [vmem:[%s509 + $0x408] sm:$0xff]
        %v1106 = vld [vmem:[%s509 + $0x410] sm:$0xff]
        %v1107 = vld [vmem:[%s509 + $0x418] sm:$0xff]
        %v1108 = vld [vmem:[%s509 + $0x420] sm:$0xff]
        %v1109 = vld [vmem:[%s509 + $0x428] sm:$0xff]
        %v1110 = vld [vmem:[%s509 + $0x430] sm:$0xff]
        %v1111 = vld [vmem:[%s509 + $0x438] sm:$0xff]
        %v1112 = vld [vmem:[%s509 + $0x440] sm:$0xff]
        %v1113 = vld [vmem:[%s509 + $0x448] sm:$0xff]
        %v1114 = vld [vmem:[%s509 + $0x450] sm:$0xff]
        %v1115 = vld [vmem:[%s509 + $0x458] sm:$0xff]
        %v1116 = vld [vmem:[%s509 + $0x460] sm:$0xff]
        %v1117 = vld [vmem:[%s509 + $0x468] sm:$0xff]
        %v1118 = vld [vmem:[%s509 + $0x470] sm:$0xff]
        %v1119 = vld [vmem:[%s509 + $0x478] sm:$0xff]
        %v1120 = vld [vmem:[%s509 + $0x480] sm:$0xff]
        %v1121 = vld [vmem:[%s509 + $0x488] sm:$0xff]
        %v1122 = vld [vmem:[%s509 + $0x490] sm:$0xff]
        %v1123 = vld [vmem:[%s509 + $0x498] sm:$0xff]
        %v1124 = vld [vmem:[%s509 + $0x4a0] sm:$0xff]
        %v1125 = vld [vmem:[%s509 + $0x4a8] sm:$0xff]
        %v1126 = vld [vmem:[%s509 + $0x4b0] sm:$0xff]
        %v1127 = vld [vmem:[%s509 + $0x4b8] sm:$0xff]
        %v1128 = vld [vmem:[%s509 + $0x4c0] sm:$0xff]
        %v1129 = vld [vmem:[%s509 + $0x4c8] sm:$0xff]
        %v1130 = vld [vmem:[%s509 + $0x4d0] sm:$0xff]
        %v1131 = vld [vmem:[%s509 + $0x4d8] sm:$0xff]
        %v1132 = vld [vmem:[%s509 + $0x4e0] sm:$0xff]
        %v1133 = vld [vmem:[%s509 + $0x4e8] sm:$0xff]
        %v1134 = vld [vmem:[%s509 + $0x4f0] sm:$0xff]
        %v1135 = vld [vmem:[%s509 + $0x4f8] sm:$0xff]
        %v1136 = vld [vmem:[%s509 + $0x500] sm:$0xff]
        %v1137 = vld [vmem:[%s509 + $0x508] sm:$0xff]
        %v1138 = vld [vmem:[%s509 + $0x510] sm:$0xff]
        %v1139 = vld [vmem:[%s509 + $0x518] sm:$0xff]
        %v1140 = vld [vmem:[%s509 + $0x520] sm:$0xff]
        %v1141 = vld [vmem:[%s509 + $0x528] sm:$0xff]
        %v1142 = vld [vmem:[%s509 + $0x530] sm:$0xff]
        %v1143 = vld [vmem:[%s509 + $0x538] sm:$0xff]
        %v1144 = vld [vmem:[%s509 + $0x540] sm:$0xff]
        %v1145 = vld [vmem:[%s509 + $0x548] sm:$0xff]
        %v1146 = vld [vmem:[%s509 + $0x550] sm:$0xff]
        %v1147 = vld [vmem:[%s509 + $0x558] sm:$0xff]
        %v1148 = vld [vmem:[%s509 + $0x560] sm:$0xff]
        %v1149 = vld [vmem:[%s509 + $0x568] sm:$0xff]
        %v1150 = vld [vmem:[%s509 + $0x570] sm:$0xff]
        %v1151 = vld [vmem:[%s509 + $0x578] sm:$0xff]
        %v1152 = vld [vmem:[%s509 + $0x580] sm:$0xff]
        %v1153 = vld [vmem:[%s509 + $0x588] sm:$0xff]
        %v1154 = vld [vmem:[%s509 + $0x590] sm:$0xff]
        %v1155 = vld [vmem:[%s509 + $0x598] sm:$0xff]
        %v1156 = vld [vmem:[%s509 + $0x5a0] sm:$0xff]
        %v1157 = vld [vmem:[%s509 + $0x5a8] sm:$0xff]
        %v1158 = vld [vmem:[%s509 + $0x5b0] sm:$0xff]
        %v1159 = vld [vmem:[%s509 + $0x5b8] sm:$0xff]
        %v1160 = vld [vmem:[%s509 + $0x5c0] sm:$0xff]
        %v1161 = vld [vmem:[%s509 + $0x5c8] sm:$0xff]
        %v1162 = vld [vmem:[%s509 + $0x5d0] sm:$0xff]
        %v1163 = vld [vmem:[%s509 + $0x5d8] sm:$0xff]
        %v1164 = vld [vmem:[%s509 + $0x5e0] sm:$0xff]
        %v1165 = vld [vmem:[%s509 + $0x5e8] sm:$0xff]
        %v1166 = vld [vmem:[%s509 + $0x5f0] sm:$0xff]
        %v1167 = vld [vmem:[%s509 + $0x5f8] sm:$0xff]
        %v1168 = vld [vmem:[%s509 + $0x600] sm:$0xff]
        %v1169 = vld [vmem:[%s509 + $0x608] sm:$0xff]
        %v1170 = vld [vmem:[%s509 + $0x610] sm:$0xff]
        %v1171 = vld [vmem:[%s509 + $0x618] sm:$0xff]
        %v1172 = vld [vmem:[%s509 + $0x620] sm:$0xff]
        %v1173 = vld [vmem:[%s509 + $0x628] sm:$0xff]
        %v1174 = vld [vmem:[%s509 + $0x630] sm:$0xff]
        %v1175 = vld [vmem:[%s509 + $0x638] sm:$0xff]
        %v1176 = vld [vmem:[%s509 + $0x640] sm:$0xff]
        %v1177 = vld [vmem:[%s509 + $0x648] sm:$0xff]
        %v1178 = vld [vmem:[%s509 + $0x650] sm:$0xff]
        %v1179 = vld [vmem:[%s509 + $0x658] sm:$0xff]
        %v1180 = vld [vmem:[%s509 + $0x660] sm:$0xff]
        %v1181 = vld [vmem:[%s509 + $0x668] sm:$0xff]
        %v1182 = vld [vmem:[%s509 + $0x670] sm:$0xff]
        %v1183 = vld [vmem:[%s509 + $0x678] sm:$0xff]
        %v1184 = vld [vmem:[%s509 + $0x680] sm:$0xff]
        %v1185 = vld [vmem:[%s509 + $0x688] sm:$0xff]
        %v1186 = vld [vmem:[%s509 + $0x690] sm:$0xff]
        %v1187 = vld [vmem:[%s509 + $0x698] sm:$0xff]
        %v1188 = vld [vmem:[%s509 + $0x6a0] sm:$0xff]
        %v1189 = vld [vmem:[%s509 + $0x6a8] sm:$0xff]
        %v1190 = vld [vmem:[%s509 + $0x6b0] sm:$0xff]
        %v1191 = vld [vmem:[%s509 + $0x6b8] sm:$0xff]
        %v1192 = vld [vmem:[%s509 + $0x6c0] sm:$0xff]
        %v1193 = vld [vmem:[%s509 + $0x6c8] sm:$0xff]
        %v1194 = vld [vmem:[%s509 + $0x6d0] sm:$0xff]
        %v1195 = vld [vmem:[%s509 + $0x6d8] sm:$0xff]
        %v1196 = vld [vmem:[%s509 + $0x6e0] sm:$0xff]
        %v1197 = vld [vmem:[%s509 + $0x6e8] sm:$0xff]
        %v1198 = vld [vmem:[%s509 + $0x6f0] sm:$0xff]
        %v1199 = vld [vmem:[%s509 + $0x6f8] sm:$0xff]
        %v1200 = vld [vmem:[%s509 + $0x700] sm:$0xff]
        %v1201 = vld [vmem:[%s509 + $0x708] sm:$0xff]
        %v1202 = vld [vmem:[%s509 + $0x710] sm:$0xff]
        %v1203 = vld [vmem:[%s509 + $0x718] sm:$0xff]
        %v1204 = vld [vmem:[%s509 + $0x720] sm:$0xff]
        %v1205 = vld [vmem:[%s509 + $0x728] sm:$0xff]
        %v1206 = vld [vmem:[%s509 + $0x730] sm:$0xff]
        %v1207 = vld [vmem:[%s509 + $0x738] sm:$0xff]
        %v1208 = vld [vmem:[%s509 + $0x740] sm:$0xff]
        %v1209 = vld [vmem:[%s509 + $0x748] sm:$0xff]
        %v1210 = vld [vmem:[%s509 + $0x750] sm:$0xff]
        %v1211 = vld [vmem:[%s509 + $0x758] sm:$0xff]
        %v1212 = vld [vmem:[%s509 + $0x760] sm:$0xff]
        %v1213 = vld [vmem:[%s509 + $0x768] sm:$0xff]
        %v1214 = vld [vmem:[%s509 + $0x770] sm:$0xff]
        %v1215 = vld [vmem:[%s509 + $0x778] sm:$0xff]
        %v1216 = vld [vmem:[%s509 + $0x780] sm:$0xff]
        %v1217 = vld [vmem:[%s509 + $0x788] sm:$0xff]
        %v1218 = vld [vmem:[%s509 + $0x790] sm:$0xff]
        %v1219 = vld [vmem:[%s509 + $0x798] sm:$0xff]
        %v1220 = vld [vmem:[%s509 + $0x7a0] sm:$0xff]
        %v1221 = vld [vmem:[%s509 + $0x7a8] sm:$0xff]
        %v1222 = vld [vmem:[%s509 + $0x7b0] sm:$0xff]
        %v1223 = vld [vmem:[%s509 + $0x7b8] sm:$0xff]
        %v1224 = vld [vmem:[%s509 + $0x7c0] sm:$0xff]
        %v1225 = vld [vmem:[%s509 + $0x7c8] sm:$0xff]
        %v1226 = vld [vmem:[%s509 + $0x7d0] sm:$0xff]
        %v1227 = vld [vmem:[%s509 + $0x7d8] sm:$0xff]
        %v1228 = vld [vmem:[%s509 + $0x7e0] sm:$0xff]
        %v1229 = vld [vmem:[%s509 + $0x7e8] sm:$0xff]
        %v1230 = vld [vmem:[%s509 + $0x7f0] sm:$0xff]
        %v1231 = vld [vmem:[%s509 + $0x7f8] sm:$0xff]
        %v1232 = vld [vmem:[%s509 + $0x800] sm:$0xff]
        %v1233 = vld [vmem:[%s509 + $0x808] sm:$0xff]
        %v1234 = vld [vmem:[%s509 + $0x810] sm:$0xff]
        %v1235 = vld [vmem:[%s509 + $0x818] sm:$0xff]
        %v1236 = vld [vmem:[%s509 + $0x820] sm:$0xff]
        %v1237 = vld [vmem:[%s509 + $0x828] sm:$0xff]
        %v1238 = vld [vmem:[%s509 + $0x830] sm:$0xff]
        %v1239 = vld [vmem:[%s509 + $0x838] sm:$0xff]
        %v1240 = vld [vmem:[%s509 + $0x840] sm:$0xff]
        %v1241 = vld [vmem:[%s509 + $0x848] sm:$0xff]
        %v1242 = vld [vmem:[%s509 + $0x850] sm:$0xff]
        %v1243 = vld [vmem:[%s509 + $0x858] sm:$0xff]
        %v1244 = vld [vmem:[%s509 + $0x860] sm:$0xff]
        %v1245 = vld [vmem:[%s509 + $0x868] sm:$0xff]
        %v1246 = vld [vmem:[%s509 + $0x870] sm:$0xff]
        %v1247 = vld [vmem:[%s509 + $0x878] sm:$0xff]
        %v1248 = vld [vmem:[%s509 + $0x880] sm:$0xff]
        %v1249 = vld [vmem:[%s509 + $0x888] sm:$0xff]
        %v1250 = vld [vmem:[%s509 + $0x890] sm:$0xff]
        %v1251 = vld [vmem:[%s509 + $0x898] sm:$0xff]
        %v1252 = vld [vmem:[%s509 + $0x8a0] sm:$0xff]
        %v1253 = vld [vmem:[%s509 + $0x8a8] sm:$0xff]
        %v1254 = vld [vmem:[%s509 + $0x8b0] sm:$0xff]
        %v1255 = vld [vmem:[%s509 + $0x8b8] sm:$0xff]
        %v1256 = vld [vmem:[%s509 + $0x8c0] sm:$0xff]
        %v1257 = vld [vmem:[%s509 + $0x8c8] sm:$0xff]
        %v1258 = vld [vmem:[%s509 + $0x8d0] sm:$0xff]
        %v1259 = vld [vmem:[%s509 + $0x8d8] sm:$0xff]
        %v1260 = vld [vmem:[%s509 + $0x8e0] sm:$0xff]
        %v1261 = vld [vmem:[%s509 + $0x8e8] sm:$0xff]
        %v1262 = vld [vmem:[%s509 + $0x8f0] sm:$0xff]
        %v1263 = vld [vmem:[%s509 + $0x8f8] sm:$0xff]
        %v1264 = vld [vmem:[%s509 + $0x900] sm:$0xff]
        %v1265 = vld [vmem:[%s509 + $0x908] sm:$0xff]
        %v1266 = vld [vmem:[%s509 + $0x910] sm:$0xff]
        %v1267 = vld [vmem:[%s509 + $0x918] sm:$0xff]
        %v1268 = vld [vmem:[%s509 + $0x920] sm:$0xff]
        %v1269 = vld [vmem:[%s509 + $0x928] sm:$0xff]
        %v1270 = vld [vmem:[%s509 + $0x930] sm:$0xff]
        %v1271 = vld [vmem:[%s509 + $0x938] sm:$0xff]
        %v1272 = vld [vmem:[%s509 + $0x940] sm:$0xff]
        %v1273 = vld [vmem:[%s509 + $0x948] sm:$0xff]
        %v1274 = vld [vmem:[%s509 + $0x950] sm:$0xff]
        %v1275 = vld [vmem:[%s509 + $0x958] sm:$0xff]
        %v1276 = vld [vmem:[%s509 + $0x960] sm:$0xff]
        %v1277 = vld [vmem:[%s509 + $0x968] sm:$0xff]
        %v1278 = vld [vmem:[%s509 + $0x970] sm:$0xff]
        %v1279 = vld [vmem:[%s509 + $0x978] sm:$0xff]
        %v1280 = vld [vmem:[%s509 + $0x980] sm:$0xff]
        %v1281 = vld [vmem:[%s509 + $0x988] sm:$0xff]
        %v1282 = vld [vmem:[%s509 + $0x990] sm:$0xff]
        %v1283 = vld [vmem:[%s509 + $0x998] sm:$0xff]
        %v1284 = vld [vmem:[%s509 + $0x9a0] sm:$0xff]
        %v1285 = vld [vmem:[%s509 + $0x9a8] sm:$0xff]
        %v1286 = vld [vmem:[%s509 + $0x9b0] sm:$0xff]
        %v1287 = vld [vmem:[%s509 + $0x9b8] sm:$0xff]
        %v1288 = vld [vmem:[%s509 + $0x9c0] sm:$0xff]
        %v1289 = vld [vmem:[%s509 + $0x9c8] sm:$0xff]
        %v1290 = vld [vmem:[%s509 + $0x9d0] sm:$0xff]
        %v1291 = vld [vmem:[%s509 + $0x9d8] sm:$0xff]
        %v1292 = vld [vmem:[%s509 + $0x9e0] sm:$0xff]
        %v1293 = vld [vmem:[%s509 + $0x9e8] sm:$0xff]
        %v1294 = vld [vmem:[%s509 + $0x9f0] sm:$0xff]
        %v1295 = vld [vmem:[%s509 + $0x9f8] sm:$0xff]
        %v1296 = vld [vmem:[%s509 + $0xa00] sm:$0xff]
        %v1297 = vld [vmem:[%s509 + $0xa08] sm:$0xff]
        %v1298 = vld [vmem:[%s509 + $0xa10] sm:$0xff]
        %v1299 = vld [vmem:[%s509 + $0xa18] sm:$0xff]
        %v1300 = vld [vmem:[%s509 + $0xa20] sm:$0xff]
        %v1301 = vld [vmem:[%s509 + $0xa28] sm:$0xff]
        %v1302 = vld [vmem:[%s509 + $0xa30] sm:$0xff]
        %v1303 = vld [vmem:[%s509 + $0xa38] sm:$0xff]
        %v1304 = vld [vmem:[%s509 + $0xa40] sm:$0xff]
        %v1305 = vld [vmem:[%s509 + $0xa48] sm:$0xff]
        %v1306 = vld [vmem:[%s509 + $0xa50] sm:$0xff]
        %v1307 = vld [vmem:[%s509 + $0xa58] sm:$0xff]
        %v1308 = vld [vmem:[%s509 + $0xa60] sm:$0xff]
        %v1309 = vld [vmem:[%s509 + $0xa68] sm:$0xff]
        %v1310 = vld [vmem:[%s509 + $0xa70] sm:$0xff]
        %v1311 = vld [vmem:[%s509 + $0xa78] sm:$0xff]
        %v1312 = vld [vmem:[%s509 + $0xa80] sm:$0xff]
        %v1313 = vld [vmem:[%s509 + $0xa88] sm:$0xff]
        %v1314 = vld [vmem:[%s509 + $0xa90] sm:$0xff]
        %v1315 = vld [vmem:[%s509 + $0xa98] sm:$0xff]
        %v1316 = vld [vmem:[%s509 + $0xaa0] sm:$0xff]
        %v1317 = vld [vmem:[%s509 + $0xaa8] sm:$0xff]
        %v1318 = vld [vmem:[%s509 + $0xab0] sm:$0xff]
        %v1319 = vld [vmem:[%s509 + $0xab8] sm:$0xff]
        %v1320 = vld [vmem:[%s509 + $0xac0] sm:$0xff]
        %v1321 = vld [vmem:[%s509 + $0xac8] sm:$0xff]
        %v1322 = vld [vmem:[%s509 + $0xad0] sm:$0xff]
        %v1323 = vld [vmem:[%s509 + $0xad8] sm:$0xff]
        %v1324 = vld [vmem:[%s509 + $0xae0] sm:$0xff]
        %v1325 = vld [vmem:[%s509 + $0xae8] sm:$0xff]
        %v1326 = vld [vmem:[%s509 + $0xaf0] sm:$0xff]
        %v1327 = vld [vmem:[%s509 + $0xaf8] sm:$0xff]
        %v1328 = vld [vmem:[%s509 + $0xb00] sm:$0xff]
        %v1329 = vld [vmem:[%s509 + $0xb08] sm:$0xff]
        %v1330 = vld [vmem:[%s509 + $0xb10] sm:$0xff]
        %v1331 = vld [vmem:[%s509 + $0xb18] sm:$0xff]
        %v1332 = vld [vmem:[%s509 + $0xb20] sm:$0xff]
        %v1333 = vld [vmem:[%s509 + $0xb28] sm:$0xff]
        %v1334 = vld [vmem:[%s509 + $0xb30] sm:$0xff]
        %v1335 = vld [vmem:[%s509 + $0xb38] sm:$0xff]
        %v1336 = vld [vmem:[%s509 + $0xb40] sm:$0xff]
        %v1337 = vld [vmem:[%s509 + $0xb48] sm:$0xff]
        %v1338 = vld [vmem:[%s509 + $0xb50] sm:$0xff]
        %v1339 = vld [vmem:[%s509 + $0xb58] sm:$0xff]
        %v1340 = vld [vmem:[%s509 + $0xb60] sm:$0xff]
        %v1341 = vld [vmem:[%s509 + $0xb68] sm:$0xff]
        %v1342 = vld [vmem:[%s509 + $0xb70] sm:$0xff]
        %v1343 = vld [vmem:[%s509 + $0xb78] sm:$0xff]
        %v1344 = vld [vmem:[%s509 + $0xb80] sm:$0xff]
        %v1345 = vld [vmem:[%s509 + $0xb88] sm:$0xff]
        %v1346 = vld [vmem:[%s509 + $0xb90] sm:$0xff]
        %v1347 = vld [vmem:[%s509 + $0xb98] sm:$0xff]
        %v1348 = vld [vmem:[%s509 + $0xba0] sm:$0xff]
        %v1349 = vld [vmem:[%s509 + $0xba8] sm:$0xff]
        %v1350 = vld [vmem:[%s509 + $0xbb0] sm:$0xff]
        %v1351 = vld [vmem:[%s509 + $0xbb8] sm:$0xff]
        %v1352 = vld [vmem:[%s509 + $0xbc0] sm:$0xff]
        %v1353 = vld [vmem:[%s509 + $0xbc8] sm:$0xff]
        %v1354 = vld [vmem:[%s509 + $0xbd0] sm:$0xff]
        %v1355 = vld [vmem:[%s509 + $0xbd8] sm:$0xff]
        %v1356 = vld [vmem:[%s509 + $0xbe0] sm:$0xff]
        %v1357 = vld [vmem:[%s509 + $0xbe8] sm:$0xff]
        %v1358 = vld [vmem:[%s509 + $0xbf0] sm:$0xff]
        %v1359 = vld [vmem:[%s509 + $0xbf8] sm:$0xff]
        %v1360 = vld [vmem:[%s509 + $0xc00] sm:$0xff]
        %v1361 = vld [vmem:[%s509 + $0xc08] sm:$0xff]
        %v1362 = vld [vmem:[%s509 + $0xc10] sm:$0xff]
        %v1363 = vld [vmem:[%s509 + $0xc18] sm:$0xff]
        %v1364 = vld [vmem:[%s509 + $0xc20] sm:$0xff]
        %v1365 = vld [vmem:[%s509 + $0xc28] sm:$0xff]
        %v1366 = vld [vmem:[%s509 + $0xc30] sm:$0xff]
        %v1367 = vld [vmem:[%s509 + $0xc38] sm:$0xff]
        %v1368 = vld [vmem:[%s509 + $0xc40] sm:$0xff]
        %v1369 = vld [vmem:[%s509 + $0xc48] sm:$0xff]
        %v1370 = vld [vmem:[%s509 + $0xc50] sm:$0xff]
        %v1371 = vld [vmem:[%s509 + $0xc58] sm:$0xff]
        %v1372 = vld [vmem:[%s509 + $0xc60] sm:$0xff]
        %v1373 = vld [vmem:[%s509 + $0xc68] sm:$0xff]
        %v1374 = vld [vmem:[%s509 + $0xc70] sm:$0xff]
        %v1375 = vld [vmem:[%s509 + $0xc78] sm:$0xff]
        %v1376 = vld [vmem:[%s509 + $0xc80] sm:$0xff]
        %v1377 = vld [vmem:[%s509 + $0xc88] sm:$0xff]
        %v1378 = vld [vmem:[%s509 + $0xc90] sm:$0xff]
        %v1379 = vld [vmem:[%s509 + $0xc98] sm:$0xff]
        %v1380 = vld [vmem:[%s509 + $0xca0] sm:$0xff]
        %v1381 = vld [vmem:[%s509 + $0xca8] sm:$0xff]
        %v1382 = vld [vmem:[%s509 + $0xcb0] sm:$0xff]
        %v1383 = vld [vmem:[%s509 + $0xcb8] sm:$0xff]
        %v1384 = vld [vmem:[%s509 + $0xcc0] sm:$0xff]
        %v1385 = vld [vmem:[%s509 + $0xcc8] sm:$0xff]
        %v1386 = vld [vmem:[%s509 + $0xcd0] sm:$0xff]
        %v1387 = vld [vmem:[%s509 + $0xcd8] sm:$0xff]
        %v1388 = vld [vmem:[%s509 + $0xce0] sm:$0xff]
        %v1389 = vld [vmem:[%s509 + $0xce8] sm:$0xff]
        %v1390 = vld [vmem:[%s509 + $0xcf0] sm:$0xff]
        %v1391 = vld [vmem:[%s509 + $0xcf8] sm:$0xff]
        %v1392 = vld [vmem:[%s509 + $0xd00] sm:$0xff]
        %v1393 = vld [vmem:[%s509 + $0xd08] sm:$0xff]
        %v1394 = vld [vmem:[%s509 + $0xd10] sm:$0xff]
        %v1395 = vld [vmem:[%s509 + $0xd18] sm:$0xff]
        %v1396 = vld [vmem:[%s509 + $0xd20] sm:$0xff]
        %v1397 = vld [vmem:[%s509 + $0xd28] sm:$0xff]
        %v1398 = vld [vmem:[%s509 + $0xd30] sm:$0xff]
        %v1399 = vld [vmem:[%s509 + $0xd38] sm:$0xff]
        %v1400 = vld [vmem:[%s509 + $0xd40] sm:$0xff]
        %v1401 = vld [vmem:[%s509 + $0xd48] sm:$0xff]
        %v1402 = vld [vmem:[%s509 + $0xd50] sm:$0xff]
        %v1403 = vld [vmem:[%s509 + $0xd58] sm:$0xff]
        %v1404 = vld [vmem:[%s509 + $0xd60] sm:$0xff]
        %v1405 = vld [vmem:[%s509 + $0xd68] sm:$0xff]
        %v1406 = vld [vmem:[%s509 + $0xd70] sm:$0xff]
        %v1407 = vld [vmem:[%s509 + $0xd78] sm:$0xff]
        %v1408 = vld [vmem:[%s509 + $0xd80] sm:$0xff]
        %v1409 = vld [vmem:[%s509 + $0xd88] sm:$0xff]
        %v1410 = vld [vmem:[%s509 + $0xd90] sm:$0xff]
        %v1411 = vld [vmem:[%s509 + $0xd98] sm:$0xff]
        %v1412 = vld [vmem:[%s509 + $0xda0] sm:$0xff]
        %v1413 = vld [vmem:[%s509 + $0xda8] sm:$0xff]
        %v1414 = vld [vmem:[%s509 + $0xdb0] sm:$0xff]
        %v1415 = vld [vmem:[%s509 + $0xdb8] sm:$0xff]
        %v1416 = vld [vmem:[%s509 + $0xdc0] sm:$0xff]
        %v1417 = vld [vmem:[%s509 + $0xdc8] sm:$0xff]
        %v1418 = vld [vmem:[%s509 + $0xdd0] sm:$0xff]
        %v1419 = vld [vmem:[%s509 + $0xdd8] sm:$0xff]
        %v1420 = vld [vmem:[%s509 + $0xde0] sm:$0xff]
        %v1421 = vld [vmem:[%s509 + $0xde8] sm:$0xff]
        %v1422 = vld [vmem:[%s509 + $0xdf0] sm:$0xff]
        %v1423 = vld [vmem:[%s509 + $0xdf8] sm:$0xff]
        %v1424 = vld [vmem:[%s509 + $0xe00] sm:$0xff]
        %v1425 = vld [vmem:[%s509 + $0xe08] sm:$0xff]
        %v1426 = vld [vmem:[%s509 + $0xe10] sm:$0xff]
        %v1427 = vld [vmem:[%s509 + $0xe18] sm:$0xff]
        %v1428 = vld [vmem:[%s509 + $0xe20] sm:$0xff]
        %v1429 = vld [vmem:[%s509 + $0xe28] sm:$0xff]
        %v1430 = vld [vmem:[%s509 + $0xe30] sm:$0xff]
        %v1431 = vld [vmem:[%s509 + $0xe38] sm:$0xff]
        %v1432 = vld [vmem:[%s509 + $0xe40] sm:$0xff]
        %v1433 = vld [vmem:[%s509 + $0xe48] sm:$0xff]
        %v1434 = vld [vmem:[%s509 + $0xe50] sm:$0xff]
        %v1435 = vld [vmem:[%s509 + $0xe58] sm:$0xff]
        %v1436 = vld [vmem:[%s509 + $0xe60] sm:$0xff]
        %v1437 = vld [vmem:[%s509 + $0xe68] sm:$0xff]
        %v1438 = vld [vmem:[%s509 + $0xe70] sm:$0xff]
        %v1439 = vld [vmem:[%s509 + $0xe78] sm:$0xff]
        %v1440 = vld [vmem:[%s509 + $0xe80] sm:$0xff]
        %v1441 = vld [vmem:[%s509 + $0xe88] sm:$0xff]
        %v1442 = vld [vmem:[%s509 + $0xe90] sm:$0xff]
        %v1443 = vld [vmem:[%s509 + $0xe98] sm:$0xff]
        %v1444 = vld [vmem:[%s509 + $0xea0] sm:$0xff]
        %v1445 = vld [vmem:[%s509 + $0xea8] sm:$0xff]
        %v1446 = vld [vmem:[%s509 + $0xeb0] sm:$0xff]
        %v1447 = vld [vmem:[%s509 + $0xeb8] sm:$0xff]
        %v1448 = vld [vmem:[%s509 + $0xec0] sm:$0xff]
        %v1449 = vld [vmem:[%s509 + $0xec8] sm:$0xff]
        %v1450 = vld [vmem:[%s509 + $0xed0] sm:$0xff]
        %v1451 = vld [vmem:[%s509 + $0xed8] sm:$0xff]
        %v1452 = vld [vmem:[%s509 + $0xee0] sm:$0xff]
        %v1453 = vld [vmem:[%s509 + $0xee8] sm:$0xff]
        %v1454 = vld [vmem:[%s509 + $0xef0] sm:$0xff]
        %v1455 = vld [vmem:[%s509 + $0xef8] sm:$0xff]
        %v1456 = vld [vmem:[%s509 + $0xf00] sm:$0xff]
        %v1457 = vld [vmem:[%s509 + $0xf08] sm:$0xff]
        %v1458 = vld [vmem:[%s509 + $0xf10] sm:$0xff]
        %v1459 = vld [vmem:[%s509 + $0xf18] sm:$0xff]
        %v1460 = vld [vmem:[%s509 + $0xf20] sm:$0xff]
        %v1461 = vld [vmem:[%s509 + $0xf28] sm:$0xff]
        %v1462 = vld [vmem:[%s509 + $0xf30] sm:$0xff]
        %v1463 = vld [vmem:[%s509 + $0xf38] sm:$0xff]
        %v1464 = vld [vmem:[%s509 + $0xf40] sm:$0xff]
        %v1465 = vld [vmem:[%s509 + $0xf48] sm:$0xff]
        %v1466 = vld [vmem:[%s509 + $0xf50] sm:$0xff]
        %v1467 = vld [vmem:[%s509 + $0xf58] sm:$0xff]
        %v1468 = vld [vmem:[%s509 + $0xf60] sm:$0xff]
        %v1469 = vld [vmem:[%s509 + $0xf68] sm:$0xff]
        %v1470 = vld [vmem:[%s509 + $0xf70] sm:$0xff]
        %v1471 = vld [vmem:[%s509 + $0xf78] sm:$0xff]
        %v1472 = vld [vmem:[%s509 + $0xf80] sm:$0xff]
        %v1473 = vld [vmem:[%s509 + $0xf88] sm:$0xff]
        %v1474 = vld [vmem:[%s509 + $0xf90] sm:$0xff]
        %v1475 = vld [vmem:[%s509 + $0xf98] sm:$0xff]
        %v1476 = vld [vmem:[%s509 + $0xfa0] sm:$0xff]
        %v1477 = vld [vmem:[%s509 + $0xfa8] sm:$0xff]
        %v1478 = vld [vmem:[%s509 + $0xfb0] sm:$0xff]
        %v1479 = vld [vmem:[%s509 + $0xfb8] sm:$0xff]
        %v1480 = vld [vmem:[%s509 + $0xfc0] sm:$0xff]
        %v1481 = vld [vmem:[%s509 + $0xfc8] sm:$0xff]
        %v1482 = vld [vmem:[%s509 + $0xfd0] sm:$0xff]
        %v1483 = vld [vmem:[%s509 + $0xfd8] sm:$0xff]
        %v1484 = vld [vmem:[%s509 + $0xfe0] sm:$0xff]
        %v1485 = vld [vmem:[%s509 + $0xfe8] sm:$0xff]
        %v1486 = vld [vmem:[%s509 + $0xff0] sm:$0xff]
        %v1487 = vld [vmem:[%s509 + $0xff8] sm:$0xff]
        %v1488 = vld [vmem:[%s519] sm:$0xff]
        %v1490 = vperm.slane %v1488, 0
        %v1491 = vperm.slane %v1488, 1
        %v1492 = vperm.slane %v1488, 2
        %v1493 = vperm.slane %v1488, 3
        %v1494 = vperm.slane %v1488, 4
        %v1495 = vperm.slane %v1488, 5
        %v1496 = vperm.slane %v1488, 6
        %v1497 = vperm.slane %v1488, 7
        %v2018 = vunpack.c.l.b16 %v976
        %v2019 = vunpack.c.h.b16 %v976
        %v2020 = vunpack.c.l.b16 %v977
        %v2021 = vunpack.c.h.b16 %v977
        %v2022 = vunpack.c.l.b16 %v978
        %v2023 = vunpack.c.h.b16 %v978
        %v2024 = vunpack.c.l.b16 %v979
        %v2025 = vunpack.c.h.b16 %v979
        %v2026 = vunpack.c.l.b16 %v980
        %v2027 = vunpack.c.h.b16 %v980
        %v2028 = vunpack.c.l.b16 %v981
        %v2029 = vunpack.c.h.b16 %v981
        %v2030 = vunpack.c.l.b16 %v982
        %v2031 = vunpack.c.h.b16 %v982
        %v2032 = vunpack.c.l.b16 %v983
        %v2033 = vunpack.c.h.b16 %v983
        %v2034 = vunpack.c.l.b16 %v984
        %v2035 = vunpack.c.h.b16 %v984
        %v2036 = vunpack.c.l.b16 %v985
        %v2037 = vunpack.c.h.b16 %v985
        %v2038 = vunpack.c.l.b16 %v986
        %v2039 = vunpack.c.h.b16 %v986
        %v2040 = vunpack.c.l.b16 %v987
        %v2041 = vunpack.c.h.b16 %v987
        %v2042 = vunpack.c.l.b16 %v988
        %v2043 = vunpack.c.h.b16 %v988
        %v2044 = vunpack.c.l.b16 %v989
        %v2045 = vunpack.c.h.b16 %v989
        %v2046 = vunpack.c.l.b16 %v990
        %v2047 = vunpack.c.h.b16 %v990
        %v2048 = vunpack.c.l.b16 %v991
        %v2049 = vunpack.c.h.b16 %v991
        %v2050 = vunpack.c.l.b16 %v992
        %v2051 = vunpack.c.h.b16 %v992
        %v2052 = vunpack.c.l.b16 %v993
        %v2053 = vunpack.c.h.b16 %v993
        %v2054 = vunpack.c.l.b16 %v994
        %v2055 = vunpack.c.h.b16 %v994
        %v2056 = vunpack.c.l.b16 %v995
        %v2057 = vunpack.c.h.b16 %v995
        %v2058 = vunpack.c.l.b16 %v996
        %v2059 = vunpack.c.h.b16 %v996
        %v2060 = vunpack.c.l.b16 %v997
        %v2061 = vunpack.c.h.b16 %v997
        %v2062 = vunpack.c.l.b16 %v998
        %v2063 = vunpack.c.h.b16 %v998
        %v2064 = vunpack.c.l.b16 %v999
        %v2065 = vunpack.c.h.b16 %v999
        %v2066 = vunpack.c.l.b16 %v1000
        %v2067 = vunpack.c.h.b16 %v1000
        %v2068 = vunpack.c.l.b16 %v1001
        %v2069 = vunpack.c.h.b16 %v1001
        %v2070 = vunpack.c.l.b16 %v1002
        %v2071 = vunpack.c.h.b16 %v1002
        %v2072 = vunpack.c.l.b16 %v1003
        %v2073 = vunpack.c.h.b16 %v1003
        %v2074 = vunpack.c.l.b16 %v1004
        %v2075 = vunpack.c.h.b16 %v1004
        %v2076 = vunpack.c.l.b16 %v1005
        %v2077 = vunpack.c.h.b16 %v1005
        %v2078 = vunpack.c.l.b16 %v1006
        %v2079 = vunpack.c.h.b16 %v1006
        %v2080 = vunpack.c.l.b16 %v1007
        %v2081 = vunpack.c.h.b16 %v1007
        %v2082 = vunpack.c.l.b16 %v1008
        %v2083 = vunpack.c.h.b16 %v1008
        %v2084 = vunpack.c.l.b16 %v1009
        %v2085 = vunpack.c.h.b16 %v1009
        %v2086 = vunpack.c.l.b16 %v1010
        %v2087 = vunpack.c.h.b16 %v1010
        %v2088 = vunpack.c.l.b16 %v1011
        %v2089 = vunpack.c.h.b16 %v1011
        %v2090 = vunpack.c.l.b16 %v1012
        %v2091 = vunpack.c.h.b16 %v1012
        %v2092 = vunpack.c.l.b16 %v1013
        %v2093 = vunpack.c.h.b16 %v1013
        %v2094 = vunpack.c.l.b16 %v1014
        %v2095 = vunpack.c.h.b16 %v1014
        %v2096 = vunpack.c.l.b16 %v1015
        %v2097 = vunpack.c.h.b16 %v1015
        %v2098 = vunpack.c.l.b16 %v1016
        %v2099 = vunpack.c.h.b16 %v1016
        %v2100 = vunpack.c.l.b16 %v1017
        %v2101 = vunpack.c.h.b16 %v1017
        %v2102 = vunpack.c.l.b16 %v1018
        %v2103 = vunpack.c.h.b16 %v1018
        %v2104 = vunpack.c.l.b16 %v1019
        %v2105 = vunpack.c.h.b16 %v1019
        %v2106 = vunpack.c.l.b16 %v1020
        %v2107 = vunpack.c.h.b16 %v1020
        %v2108 = vunpack.c.l.b16 %v1021
        %v2109 = vunpack.c.h.b16 %v1021
        %v2110 = vunpack.c.l.b16 %v1022
        %v2111 = vunpack.c.h.b16 %v1022
        %v2112 = vunpack.c.l.b16 %v1023
        %v2113 = vunpack.c.h.b16 %v1023
        %v2114 = vunpack.c.l.b16 %v1024
        %v2115 = vunpack.c.h.b16 %v1024
        %v2116 = vunpack.c.l.b16 %v1025
        %v2117 = vunpack.c.h.b16 %v1025
        %v2118 = vunpack.c.l.b16 %v1026
        %v2119 = vunpack.c.h.b16 %v1026
        %v2120 = vunpack.c.l.b16 %v1027
        %v2121 = vunpack.c.h.b16 %v1027
        %v2122 = vunpack.c.l.b16 %v1028
        %v2123 = vunpack.c.h.b16 %v1028
        %v2124 = vunpack.c.l.b16 %v1029
        %v2125 = vunpack.c.h.b16 %v1029
        %v2126 = vunpack.c.l.b16 %v1030
        %v2127 = vunpack.c.h.b16 %v1030
        %v2128 = vunpack.c.l.b16 %v1031
        %v2129 = vunpack.c.h.b16 %v1031
        %v2130 = vunpack.c.l.b16 %v1032
        %v2131 = vunpack.c.h.b16 %v1032
        %v2132 = vunpack.c.l.b16 %v1033
        %v2133 = vunpack.c.h.b16 %v1033
        %v2134 = vunpack.c.l.b16 %v1034
        %v2135 = vunpack.c.h.b16 %v1034
        %v2136 = vunpack.c.l.b16 %v1035
        %v2137 = vunpack.c.h.b16 %v1035
        %v2138 = vunpack.c.l.b16 %v1036
        %v2139 = vunpack.c.h.b16 %v1036
        %v2140 = vunpack.c.l.b16 %v1037
        %v2141 = vunpack.c.h.b16 %v1037
        %v2142 = vunpack.c.l.b16 %v1038
        %v2143 = vunpack.c.h.b16 %v1038
        %v2144 = vunpack.c.l.b16 %v1039
        %v2145 = vunpack.c.h.b16 %v1039
        %v2146 = vunpack.c.l.b16 %v1040
        %v2147 = vunpack.c.h.b16 %v1040
        %v2148 = vunpack.c.l.b16 %v1041
        %v2149 = vunpack.c.h.b16 %v1041
        %v2150 = vunpack.c.l.b16 %v1042
        %v2151 = vunpack.c.h.b16 %v1042
        %v2152 = vunpack.c.l.b16 %v1043
        %v2153 = vunpack.c.h.b16 %v1043
        %v2154 = vunpack.c.l.b16 %v1044
        %v2155 = vunpack.c.h.b16 %v1044
        %v2156 = vunpack.c.l.b16 %v1045
        %v2157 = vunpack.c.h.b16 %v1045
        %v2158 = vunpack.c.l.b16 %v1046
        %v2159 = vunpack.c.h.b16 %v1046
        %v2160 = vunpack.c.l.b16 %v1047
        %v2161 = vunpack.c.h.b16 %v1047
        %v2162 = vunpack.c.l.b16 %v1048
        %v2163 = vunpack.c.h.b16 %v1048
        %v2164 = vunpack.c.l.b16 %v1049
        %v2165 = vunpack.c.h.b16 %v1049
        %v2166 = vunpack.c.l.b16 %v1050
        %v2167 = vunpack.c.h.b16 %v1050
        %v2168 = vunpack.c.l.b16 %v1051
        %v2169 = vunpack.c.h.b16 %v1051
        %v2170 = vunpack.c.l.b16 %v1052
        %v2171 = vunpack.c.h.b16 %v1052
        %v2172 = vunpack.c.l.b16 %v1053
        %v2173 = vunpack.c.h.b16 %v1053
        %v2174 = vunpack.c.l.b16 %v1054
        %v2175 = vunpack.c.h.b16 %v1054
        %v2176 = vunpack.c.l.b16 %v1055
        %v2177 = vunpack.c.h.b16 %v1055
        %v2178 = vunpack.c.l.b16 %v1056
        %v2179 = vunpack.c.h.b16 %v1056
        %v2180 = vunpack.c.l.b16 %v1057
        %v2181 = vunpack.c.h.b16 %v1057
        %v2182 = vunpack.c.l.b16 %v1058
        %v2183 = vunpack.c.h.b16 %v1058
        %v2184 = vunpack.c.l.b16 %v1059
        %v2185 = vunpack.c.h.b16 %v1059
        %v2186 = vunpack.c.l.b16 %v1060
        %v2187 = vunpack.c.h.b16 %v1060
        %v2188 = vunpack.c.l.b16 %v1061
        %v2189 = vunpack.c.h.b16 %v1061
        %v2190 = vunpack.c.l.b16 %v1062
        %v2191 = vunpack.c.h.b16 %v1062
        %v2192 = vunpack.c.l.b16 %v1063
        %v2193 = vunpack.c.h.b16 %v1063
        %v2194 = vunpack.c.l.b16 %v1064
        %v2195 = vunpack.c.h.b16 %v1064
        %v2196 = vunpack.c.l.b16 %v1065
        %v2197 = vunpack.c.h.b16 %v1065
        %v2198 = vunpack.c.l.b16 %v1066
        %v2199 = vunpack.c.h.b16 %v1066
        %v2200 = vunpack.c.l.b16 %v1067
        %v2201 = vunpack.c.h.b16 %v1067
        %v2202 = vunpack.c.l.b16 %v1068
        %v2203 = vunpack.c.h.b16 %v1068
        %v2204 = vunpack.c.l.b16 %v1069
        %v2205 = vunpack.c.h.b16 %v1069
        %v2206 = vunpack.c.l.b16 %v1070
        %v2207 = vunpack.c.h.b16 %v1070
        %v2208 = vunpack.c.l.b16 %v1071
        %v2209 = vunpack.c.h.b16 %v1071
        %v2210 = vunpack.c.l.b16 %v1072
        %v2211 = vunpack.c.h.b16 %v1072
        %v2212 = vunpack.c.l.b16 %v1073
        %v2213 = vunpack.c.h.b16 %v1073
        %v2214 = vunpack.c.l.b16 %v1074
        %v2215 = vunpack.c.h.b16 %v1074
        %v2216 = vunpack.c.l.b16 %v1075
        %v2217 = vunpack.c.h.b16 %v1075
        %v2218 = vunpack.c.l.b16 %v1076
        %v2219 = vunpack.c.h.b16 %v1076
        %v2220 = vunpack.c.l.b16 %v1077
        %v2221 = vunpack.c.h.b16 %v1077
        %v2222 = vunpack.c.l.b16 %v1078
        %v2223 = vunpack.c.h.b16 %v1078
        %v2224 = vunpack.c.l.b16 %v1079
        %v2225 = vunpack.c.h.b16 %v1079
        %v2226 = vunpack.c.l.b16 %v1080
        %v2227 = vunpack.c.h.b16 %v1080
        %v2228 = vunpack.c.l.b16 %v1081
        %v2229 = vunpack.c.h.b16 %v1081
        %v2230 = vunpack.c.l.b16 %v1082
        %v2231 = vunpack.c.h.b16 %v1082
        %v2232 = vunpack.c.l.b16 %v1083
        %v2233 = vunpack.c.h.b16 %v1083
        %v2234 = vunpack.c.l.b16 %v1084
        %v2235 = vunpack.c.h.b16 %v1084
        %v2236 = vunpack.c.l.b16 %v1085
        %v2237 = vunpack.c.h.b16 %v1085
        %v2238 = vunpack.c.l.b16 %v1086
        %v2239 = vunpack.c.h.b16 %v1086
        %v2240 = vunpack.c.l.b16 %v1087
        %v2241 = vunpack.c.h.b16 %v1087
        %v2242 = vunpack.c.l.b16 %v1088
        %v2243 = vunpack.c.h.b16 %v1088
        %v2244 = vunpack.c.l.b16 %v1089
        %v2245 = vunpack.c.h.b16 %v1089
        %v2246 = vunpack.c.l.b16 %v1090
        %v2247 = vunpack.c.h.b16 %v1090
        %v2248 = vunpack.c.l.b16 %v1091
        %v2249 = vunpack.c.h.b16 %v1091
        %v2250 = vunpack.c.l.b16 %v1092
        %v2251 = vunpack.c.h.b16 %v1092
        %v2252 = vunpack.c.l.b16 %v1093
        %v2253 = vunpack.c.h.b16 %v1093
        %v2254 = vunpack.c.l.b16 %v1094
        %v2255 = vunpack.c.h.b16 %v1094
        %v2256 = vunpack.c.l.b16 %v1095
        %v2257 = vunpack.c.h.b16 %v1095
        %v2258 = vunpack.c.l.b16 %v1096
        %v2259 = vunpack.c.h.b16 %v1096
        %v2260 = vunpack.c.l.b16 %v1097
        %v2261 = vunpack.c.h.b16 %v1097
        %v2262 = vunpack.c.l.b16 %v1098
        %v2263 = vunpack.c.h.b16 %v1098
        %v2264 = vunpack.c.l.b16 %v1099
        %v2265 = vunpack.c.h.b16 %v1099
        %v2266 = vunpack.c.l.b16 %v1100
        %v2267 = vunpack.c.h.b16 %v1100
        %v2268 = vunpack.c.l.b16 %v1101
        %v2269 = vunpack.c.h.b16 %v1101
        %v2270 = vunpack.c.l.b16 %v1102
        %v2271 = vunpack.c.h.b16 %v1102
        %v2272 = vunpack.c.l.b16 %v1103
        %v2273 = vunpack.c.h.b16 %v1103
        %v2274 = vunpack.c.l.b16 %v1104
        %v2275 = vunpack.c.h.b16 %v1104
        %v2276 = vunpack.c.l.b16 %v1105
        %v2277 = vunpack.c.h.b16 %v1105
        %v2278 = vunpack.c.l.b16 %v1106
        %v2279 = vunpack.c.h.b16 %v1106
        %v2280 = vunpack.c.l.b16 %v1107
        %v2281 = vunpack.c.h.b16 %v1107
        %v2282 = vunpack.c.l.b16 %v1108
        %v2283 = vunpack.c.h.b16 %v1108
        %v2284 = vunpack.c.l.b16 %v1109
        %v2285 = vunpack.c.h.b16 %v1109
        %v2286 = vunpack.c.l.b16 %v1110
        %v2287 = vunpack.c.h.b16 %v1110
        %v2288 = vunpack.c.l.b16 %v1111
        %v2289 = vunpack.c.h.b16 %v1111
        %v2290 = vunpack.c.l.b16 %v1112
        %v2291 = vunpack.c.h.b16 %v1112
        %v2292 = vunpack.c.l.b16 %v1113
        %v2293 = vunpack.c.h.b16 %v1113
        %v2294 = vunpack.c.l.b16 %v1114
        %v2295 = vunpack.c.h.b16 %v1114
        %v2296 = vunpack.c.l.b16 %v1115
        %v2297 = vunpack.c.h.b16 %v1115
        %v2298 = vunpack.c.l.b16 %v1116
        %v2299 = vunpack.c.h.b16 %v1116
        %v2300 = vunpack.c.l.b16 %v1117
        %v2301 = vunpack.c.h.b16 %v1117
        %v2302 = vunpack.c.l.b16 %v1118
        %v2303 = vunpack.c.h.b16 %v1118
        %v2304 = vunpack.c.l.b16 %v1119
        %v2305 = vunpack.c.h.b16 %v1119
        %v2306 = vunpack.c.l.b16 %v1120
        %v2307 = vunpack.c.h.b16 %v1120
        %v2308 = vunpack.c.l.b16 %v1121
        %v2309 = vunpack.c.h.b16 %v1121
        %v2310 = vunpack.c.l.b16 %v1122
        %v2311 = vunpack.c.h.b16 %v1122
        %v2312 = vunpack.c.l.b16 %v1123
        %v2313 = vunpack.c.h.b16 %v1123
        %v2314 = vunpack.c.l.b16 %v1124
        %v2315 = vunpack.c.h.b16 %v1124
        %v2316 = vunpack.c.l.b16 %v1125
        %v2317 = vunpack.c.h.b16 %v1125
        %v2318 = vunpack.c.l.b16 %v1126
        %v2319 = vunpack.c.h.b16 %v1126
        %v2320 = vunpack.c.l.b16 %v1127
        %v2321 = vunpack.c.h.b16 %v1127
        %v2322 = vunpack.c.l.b16 %v1128
        %v2323 = vunpack.c.h.b16 %v1128
        %v2324 = vunpack.c.l.b16 %v1129
        %v2325 = vunpack.c.h.b16 %v1129
        %v2326 = vunpack.c.l.b16 %v1130
        %v2327 = vunpack.c.h.b16 %v1130
        %v2328 = vunpack.c.l.b16 %v1131
        %v2329 = vunpack.c.h.b16 %v1131
        %v2330 = vunpack.c.l.b16 %v1132
        %v2331 = vunpack.c.h.b16 %v1132
        %v2332 = vunpack.c.l.b16 %v1133
        %v2333 = vunpack.c.h.b16 %v1133
        %v2334 = vunpack.c.l.b16 %v1134
        %v2335 = vunpack.c.h.b16 %v1134
        %v2336 = vunpack.c.l.b16 %v1135
        %v2337 = vunpack.c.h.b16 %v1135
        %v2338 = vunpack.c.l.b16 %v1136
        %v2339 = vunpack.c.h.b16 %v1136
        %v2340 = vunpack.c.l.b16 %v1137
        %v2341 = vunpack.c.h.b16 %v1137
        %v2342 = vunpack.c.l.b16 %v1138
        %v2343 = vunpack.c.h.b16 %v1138
        %v2344 = vunpack.c.l.b16 %v1139
        %v2345 = vunpack.c.h.b16 %v1139
        %v2346 = vunpack.c.l.b16 %v1140
        %v2347 = vunpack.c.h.b16 %v1140
        %v2348 = vunpack.c.l.b16 %v1141
        %v2349 = vunpack.c.h.b16 %v1141
        %v2350 = vunpack.c.l.b16 %v1142
        %v2351 = vunpack.c.h.b16 %v1142
        %v2352 = vunpack.c.l.b16 %v1143
        %v2353 = vunpack.c.h.b16 %v1143
        %v2354 = vunpack.c.l.b16 %v1144
        %v2355 = vunpack.c.h.b16 %v1144
        %v2356 = vunpack.c.l.b16 %v1145
        %v2357 = vunpack.c.h.b16 %v1145
        %v2358 = vunpack.c.l.b16 %v1146
        %v2359 = vunpack.c.h.b16 %v1146
        %v2360 = vunpack.c.l.b16 %v1147
        %v2361 = vunpack.c.h.b16 %v1147
        %v2362 = vunpack.c.l.b16 %v1148
        %v2363 = vunpack.c.h.b16 %v1148
        %v2364 = vunpack.c.l.b16 %v1149
        %v2365 = vunpack.c.h.b16 %v1149
        %v2366 = vunpack.c.l.b16 %v1150
        %v2367 = vunpack.c.h.b16 %v1150
        %v2368 = vunpack.c.l.b16 %v1151
        %v2369 = vunpack.c.h.b16 %v1151
        %v2370 = vunpack.c.l.b16 %v1152
        %v2371 = vunpack.c.h.b16 %v1152
        %v2372 = vunpack.c.l.b16 %v1153
        %v2373 = vunpack.c.h.b16 %v1153
        %v2374 = vunpack.c.l.b16 %v1154
        %v2375 = vunpack.c.h.b16 %v1154
        %v2376 = vunpack.c.l.b16 %v1155
        %v2377 = vunpack.c.h.b16 %v1155
        %v2378 = vunpack.c.l.b16 %v1156
        %v2379 = vunpack.c.h.b16 %v1156
        %v2380 = vunpack.c.l.b16 %v1157
        %v2381 = vunpack.c.h.b16 %v1157
        %v2382 = vunpack.c.l.b16 %v1158
        %v2383 = vunpack.c.h.b16 %v1158
        %v2384 = vunpack.c.l.b16 %v1159
        %v2385 = vunpack.c.h.b16 %v1159
        %v2386 = vunpack.c.l.b16 %v1160
        %v2387 = vunpack.c.h.b16 %v1160
        %v2388 = vunpack.c.l.b16 %v1161
        %v2389 = vunpack.c.h.b16 %v1161
        %v2390 = vunpack.c.l.b16 %v1162
        %v2391 = vunpack.c.h.b16 %v1162
        %v2392 = vunpack.c.l.b16 %v1163
        %v2393 = vunpack.c.h.b16 %v1163
        %v2394 = vunpack.c.l.b16 %v1164
        %v2395 = vunpack.c.h.b16 %v1164
        %v2396 = vunpack.c.l.b16 %v1165
        %v2397 = vunpack.c.h.b16 %v1165
        %v2398 = vunpack.c.l.b16 %v1166
        %v2399 = vunpack.c.h.b16 %v1166
        %v2400 = vunpack.c.l.b16 %v1167
        %v2401 = vunpack.c.h.b16 %v1167
        %v2402 = vunpack.c.l.b16 %v1168
        %v2403 = vunpack.c.h.b16 %v1168
        %v2404 = vunpack.c.l.b16 %v1169
        %v2405 = vunpack.c.h.b16 %v1169
        %v2406 = vunpack.c.l.b16 %v1170
        %v2407 = vunpack.c.h.b16 %v1170
        %v2408 = vunpack.c.l.b16 %v1171
        %v2409 = vunpack.c.h.b16 %v1171
        %v2410 = vunpack.c.l.b16 %v1172
        %v2411 = vunpack.c.h.b16 %v1172
        %v2412 = vunpack.c.l.b16 %v1173
        %v2413 = vunpack.c.h.b16 %v1173
        %v2414 = vunpack.c.l.b16 %v1174
        %v2415 = vunpack.c.h.b16 %v1174
        %v2416 = vunpack.c.l.b16 %v1175
        %v2417 = vunpack.c.h.b16 %v1175
        %v2418 = vunpack.c.l.b16 %v1176
        %v2419 = vunpack.c.h.b16 %v1176
        %v2420 = vunpack.c.l.b16 %v1177
        %v2421 = vunpack.c.h.b16 %v1177
        %v2422 = vunpack.c.l.b16 %v1178
        %v2423 = vunpack.c.h.b16 %v1178
        %v2424 = vunpack.c.l.b16 %v1179
        %v2425 = vunpack.c.h.b16 %v1179
        %v2426 = vunpack.c.l.b16 %v1180
        %v2427 = vunpack.c.h.b16 %v1180
        %v2428 = vunpack.c.l.b16 %v1181
        %v2429 = vunpack.c.h.b16 %v1181
        %v2430 = vunpack.c.l.b16 %v1182
        %v2431 = vunpack.c.h.b16 %v1182
        %v2432 = vunpack.c.l.b16 %v1183
        %v2433 = vunpack.c.h.b16 %v1183
        %v2434 = vunpack.c.l.b16 %v1184
        %v2435 = vunpack.c.h.b16 %v1184
        %v2436 = vunpack.c.l.b16 %v1185
        %v2437 = vunpack.c.h.b16 %v1185
        %v2438 = vunpack.c.l.b16 %v1186
        %v2439 = vunpack.c.h.b16 %v1186
        %v2440 = vunpack.c.l.b16 %v1187
        %v2441 = vunpack.c.h.b16 %v1187
        %v2442 = vunpack.c.l.b16 %v1188
        %v2443 = vunpack.c.h.b16 %v1188
        %v2444 = vunpack.c.l.b16 %v1189
        %v2445 = vunpack.c.h.b16 %v1189
        %v2446 = vunpack.c.l.b16 %v1190
        %v2447 = vunpack.c.h.b16 %v1190
        %v2448 = vunpack.c.l.b16 %v1191
        %v2449 = vunpack.c.h.b16 %v1191
        %v2450 = vunpack.c.l.b16 %v1192
        %v2451 = vunpack.c.h.b16 %v1192
        %v2452 = vunpack.c.l.b16 %v1193
        %v2453 = vunpack.c.h.b16 %v1193
        %v2454 = vunpack.c.l.b16 %v1194
        %v2455 = vunpack.c.h.b16 %v1194
        %v2456 = vunpack.c.l.b16 %v1195
        %v2457 = vunpack.c.h.b16 %v1195
        %v2458 = vunpack.c.l.b16 %v1196
        %v2459 = vunpack.c.h.b16 %v1196
        %v2460 = vunpack.c.l.b16 %v1197
        %v2461 = vunpack.c.h.b16 %v1197
        %v2462 = vunpack.c.l.b16 %v1198
        %v2463 = vunpack.c.h.b16 %v1198
        %v2464 = vunpack.c.l.b16 %v1199
        %v2465 = vunpack.c.h.b16 %v1199
        %v2466 = vunpack.c.l.b16 %v1200
        %v2467 = vunpack.c.h.b16 %v1200
        %v2468 = vunpack.c.l.b16 %v1201
        %v2469 = vunpack.c.h.b16 %v1201
        %v2470 = vunpack.c.l.b16 %v1202
        %v2471 = vunpack.c.h.b16 %v1202
        %v2472 = vunpack.c.l.b16 %v1203
        %v2473 = vunpack.c.h.b16 %v1203
        %v2474 = vunpack.c.l.b16 %v1204
        %v2475 = vunpack.c.h.b16 %v1204
        %v2476 = vunpack.c.l.b16 %v1205
        %v2477 = vunpack.c.h.b16 %v1205
        %v2478 = vunpack.c.l.b16 %v1206
        %v2479 = vunpack.c.h.b16 %v1206
        %v2480 = vunpack.c.l.b16 %v1207
        %v2481 = vunpack.c.h.b16 %v1207
        %v2482 = vunpack.c.l.b16 %v1208
        %v2483 = vunpack.c.h.b16 %v1208
        %v2484 = vunpack.c.l.b16 %v1209
        %v2485 = vunpack.c.h.b16 %v1209
        %v2486 = vunpack.c.l.b16 %v1210
        %v2487 = vunpack.c.h.b16 %v1210
        %v2488 = vunpack.c.l.b16 %v1211
        %v2489 = vunpack.c.h.b16 %v1211
        %v2490 = vunpack.c.l.b16 %v1212
        %v2491 = vunpack.c.h.b16 %v1212
        %v2492 = vunpack.c.l.b16 %v1213
        %v2493 = vunpack.c.h.b16 %v1213
        %v2494 = vunpack.c.l.b16 %v1214
        %v2495 = vunpack.c.h.b16 %v1214
        %v2496 = vunpack.c.l.b16 %v1215
        %v2497 = vunpack.c.h.b16 %v1215
        %v2498 = vunpack.c.l.b16 %v1216
        %v2499 = vunpack.c.h.b16 %v1216
        %v2500 = vunpack.c.l.b16 %v1217
        %v2501 = vunpack.c.h.b16 %v1217
        %v2502 = vunpack.c.l.b16 %v1218
        %v2503 = vunpack.c.h.b16 %v1218
        %v2504 = vunpack.c.l.b16 %v1219
        %v2505 = vunpack.c.h.b16 %v1219
        %v2506 = vunpack.c.l.b16 %v1220
        %v2507 = vunpack.c.h.b16 %v1220
        %v2508 = vunpack.c.l.b16 %v1221
        %v2509 = vunpack.c.h.b16 %v1221
        %v2510 = vunpack.c.l.b16 %v1222
        %v2511 = vunpack.c.h.b16 %v1222
        %v2512 = vunpack.c.l.b16 %v1223
        %v2513 = vunpack.c.h.b16 %v1223
        %v2514 = vunpack.c.l.b16 %v1224
        %v2515 = vunpack.c.h.b16 %v1224
        %v2516 = vunpack.c.l.b16 %v1225
        %v2517 = vunpack.c.h.b16 %v1225
        %v2518 = vunpack.c.l.b16 %v1226
        %v2519 = vunpack.c.h.b16 %v1226
        %v2520 = vunpack.c.l.b16 %v1227
        %v2521 = vunpack.c.h.b16 %v1227
        %v2522 = vunpack.c.l.b16 %v1228
        %v2523 = vunpack.c.h.b16 %v1228
        %v2524 = vunpack.c.l.b16 %v1229
        %v2525 = vunpack.c.h.b16 %v1229
        %v2526 = vunpack.c.l.b16 %v1230
        %v2527 = vunpack.c.h.b16 %v1230
        %v2528 = vunpack.c.l.b16 %v1231
        %v2529 = vunpack.c.h.b16 %v1231
        %v2530 = vunpack.c.l.b16 %v1232
        %v2531 = vunpack.c.h.b16 %v1232
        %v2532 = vunpack.c.l.b16 %v1233
        %v2533 = vunpack.c.h.b16 %v1233
        %v2534 = vunpack.c.l.b16 %v1234
        %v2535 = vunpack.c.h.b16 %v1234
        %v2536 = vunpack.c.l.b16 %v1235
        %v2537 = vunpack.c.h.b16 %v1235
        %v2538 = vunpack.c.l.b16 %v1236
        %v2539 = vunpack.c.h.b16 %v1236
        %v2540 = vunpack.c.l.b16 %v1237
        %v2541 = vunpack.c.h.b16 %v1237
        %v2542 = vunpack.c.l.b16 %v1238
        %v2543 = vunpack.c.h.b16 %v1238
        %v2544 = vunpack.c.l.b16 %v1239
        %v2545 = vunpack.c.h.b16 %v1239
        %v2546 = vunpack.c.l.b16 %v1240
        %v2547 = vunpack.c.h.b16 %v1240
        %v2548 = vunpack.c.l.b16 %v1241
        %v2549 = vunpack.c.h.b16 %v1241
        %v2550 = vunpack.c.l.b16 %v1242
        %v2551 = vunpack.c.h.b16 %v1242
        %v2552 = vunpack.c.l.b16 %v1243
        %v2553 = vunpack.c.h.b16 %v1243
        %v2554 = vunpack.c.l.b16 %v1244
        %v2555 = vunpack.c.h.b16 %v1244
        %v2556 = vunpack.c.l.b16 %v1245
        %v2557 = vunpack.c.h.b16 %v1245
        %v2558 = vunpack.c.l.b16 %v1246
        %v2559 = vunpack.c.h.b16 %v1246
        %v2560 = vunpack.c.l.b16 %v1247
        %v2561 = vunpack.c.h.b16 %v1247
        %v2562 = vunpack.c.l.b16 %v1248
        %v2563 = vunpack.c.h.b16 %v1248
        %v2564 = vunpack.c.l.b16 %v1249
        %v2565 = vunpack.c.h.b16 %v1249
        %v2566 = vunpack.c.l.b16 %v1250
        %v2567 = vunpack.c.h.b16 %v1250
        %v2568 = vunpack.c.l.b16 %v1251
        %v2569 = vunpack.c.h.b16 %v1251
        %v2570 = vunpack.c.l.b16 %v1252
        %v2571 = vunpack.c.h.b16 %v1252
        %v2572 = vunpack.c.l.b16 %v1253
        %v2573 = vunpack.c.h.b16 %v1253
        %v2574 = vunpack.c.l.b16 %v1254
        %v2575 = vunpack.c.h.b16 %v1254
        %v2576 = vunpack.c.l.b16 %v1255
        %v2577 = vunpack.c.h.b16 %v1255
        %v2578 = vunpack.c.l.b16 %v1256
        %v2579 = vunpack.c.h.b16 %v1256
        %v2580 = vunpack.c.l.b16 %v1257
        %v2581 = vunpack.c.h.b16 %v1257
        %v2582 = vunpack.c.l.b16 %v1258
        %v2583 = vunpack.c.h.b16 %v1258
        %v2584 = vunpack.c.l.b16 %v1259
        %v2585 = vunpack.c.h.b16 %v1259
        %v2586 = vunpack.c.l.b16 %v1260
        %v2587 = vunpack.c.h.b16 %v1260
        %v2588 = vunpack.c.l.b16 %v1261
        %v2589 = vunpack.c.h.b16 %v1261
        %v2590 = vunpack.c.l.b16 %v1262
        %v2591 = vunpack.c.h.b16 %v1262
        %v2592 = vunpack.c.l.b16 %v1263
        %v2593 = vunpack.c.h.b16 %v1263
        %v2594 = vunpack.c.l.b16 %v1264
        %v2595 = vunpack.c.h.b16 %v1264
        %v2596 = vunpack.c.l.b16 %v1265
        %v2597 = vunpack.c.h.b16 %v1265
        %v2598 = vunpack.c.l.b16 %v1266
        %v2599 = vunpack.c.h.b16 %v1266
        %v2600 = vunpack.c.l.b16 %v1267
        %v2601 = vunpack.c.h.b16 %v1267
        %v2602 = vunpack.c.l.b16 %v1268
        %v2603 = vunpack.c.h.b16 %v1268
        %v2604 = vunpack.c.l.b16 %v1269
        %v2605 = vunpack.c.h.b16 %v1269
        %v2606 = vunpack.c.l.b16 %v1270
        %v2607 = vunpack.c.h.b16 %v1270
        %v2608 = vunpack.c.l.b16 %v1271
        %v2609 = vunpack.c.h.b16 %v1271
        %v2610 = vunpack.c.l.b16 %v1272
        %v2611 = vunpack.c.h.b16 %v1272
        %v2612 = vunpack.c.l.b16 %v1273
        %v2613 = vunpack.c.h.b16 %v1273
        %v2614 = vunpack.c.l.b16 %v1274
        %v2615 = vunpack.c.h.b16 %v1274
        %v2616 = vunpack.c.l.b16 %v1275
        %v2617 = vunpack.c.h.b16 %v1275
        %v2618 = vunpack.c.l.b16 %v1276
        %v2619 = vunpack.c.h.b16 %v1276
        %v2620 = vunpack.c.l.b16 %v1277
        %v2621 = vunpack.c.h.b16 %v1277
        %v2622 = vunpack.c.l.b16 %v1278
        %v2623 = vunpack.c.h.b16 %v1278
        %v2624 = vunpack.c.l.b16 %v1279
        %v2625 = vunpack.c.h.b16 %v1279
        %v2626 = vunpack.c.l.b16 %v1280
        %v2627 = vunpack.c.h.b16 %v1280
        %v2628 = vunpack.c.l.b16 %v1281
        %v2629 = vunpack.c.h.b16 %v1281
        %v2630 = vunpack.c.l.b16 %v1282
        %v2631 = vunpack.c.h.b16 %v1282
        %v2632 = vunpack.c.l.b16 %v1283
        %v2633 = vunpack.c.h.b16 %v1283
        %v2634 = vunpack.c.l.b16 %v1284
        %v2635 = vunpack.c.h.b16 %v1284
        %v2636 = vunpack.c.l.b16 %v1285
        %v2637 = vunpack.c.h.b16 %v1285
        %v2638 = vunpack.c.l.b16 %v1286
        %v2639 = vunpack.c.h.b16 %v1286
        %v2640 = vunpack.c.l.b16 %v1287
        %v2641 = vunpack.c.h.b16 %v1287
        %v2642 = vunpack.c.l.b16 %v1288
        %v2643 = vunpack.c.h.b16 %v1288
        %v2644 = vunpack.c.l.b16 %v1289
        %v2645 = vunpack.c.h.b16 %v1289
        %v2646 = vunpack.c.l.b16 %v1290
        %v2647 = vunpack.c.h.b16 %v1290
        %v2648 = vunpack.c.l.b16 %v1291
        %v2649 = vunpack.c.h.b16 %v1291
        %v2650 = vunpack.c.l.b16 %v1292
        %v2651 = vunpack.c.h.b16 %v1292
        %v2652 = vunpack.c.l.b16 %v1293
        %v2653 = vunpack.c.h.b16 %v1293
        %v2654 = vunpack.c.l.b16 %v1294
        %v2655 = vunpack.c.h.b16 %v1294
        %v2656 = vunpack.c.l.b16 %v1295
        %v2657 = vunpack.c.h.b16 %v1295
        %v2658 = vunpack.c.l.b16 %v1296
        %v2659 = vunpack.c.h.b16 %v1296
        %v2660 = vunpack.c.l.b16 %v1297
        %v2661 = vunpack.c.h.b16 %v1297
        %v2662 = vunpack.c.l.b16 %v1298
        %v2663 = vunpack.c.h.b16 %v1298
        %v2664 = vunpack.c.l.b16 %v1299
        %v2665 = vunpack.c.h.b16 %v1299
        %v2666 = vunpack.c.l.b16 %v1300
        %v2667 = vunpack.c.h.b16 %v1300
        %v2668 = vunpack.c.l.b16 %v1301
        %v2669 = vunpack.c.h.b16 %v1301
        %v2670 = vunpack.c.l.b16 %v1302
        %v2671 = vunpack.c.h.b16 %v1302
        %v2672 = vunpack.c.l.b16 %v1303
        %v2673 = vunpack.c.h.b16 %v1303
        %v2674 = vunpack.c.l.b16 %v1304
        %v2675 = vunpack.c.h.b16 %v1304
        %v2676 = vunpack.c.l.b16 %v1305
        %v2677 = vunpack.c.h.b16 %v1305
        %v2678 = vunpack.c.l.b16 %v1306
        %v2679 = vunpack.c.h.b16 %v1306
        %v2680 = vunpack.c.l.b16 %v1307
        %v2681 = vunpack.c.h.b16 %v1307
        %v2682 = vunpack.c.l.b16 %v1308
        %v2683 = vunpack.c.h.b16 %v1308
        %v2684 = vunpack.c.l.b16 %v1309
        %v2685 = vunpack.c.h.b16 %v1309
        %v2686 = vunpack.c.l.b16 %v1310
        %v2687 = vunpack.c.h.b16 %v1310
        %v2688 = vunpack.c.l.b16 %v1311
        %v2689 = vunpack.c.h.b16 %v1311
        %v2690 = vunpack.c.l.b16 %v1312
        %v2691 = vunpack.c.h.b16 %v1312
        %v2692 = vunpack.c.l.b16 %v1313
        %v2693 = vunpack.c.h.b16 %v1313
        %v2694 = vunpack.c.l.b16 %v1314
        %v2695 = vunpack.c.h.b16 %v1314
        %v2696 = vunpack.c.l.b16 %v1315
        %v2697 = vunpack.c.h.b16 %v1315
        %v2698 = vunpack.c.l.b16 %v1316
        %v2699 = vunpack.c.h.b16 %v1316
        %v2700 = vunpack.c.l.b16 %v1317
        %v2701 = vunpack.c.h.b16 %v1317
        %v2702 = vunpack.c.l.b16 %v1318
        %v2703 = vunpack.c.h.b16 %v1318
        %v2704 = vunpack.c.l.b16 %v1319
        %v2705 = vunpack.c.h.b16 %v1319
        %v2706 = vunpack.c.l.b16 %v1320
        %v2707 = vunpack.c.h.b16 %v1320
        %v2708 = vunpack.c.l.b16 %v1321
        %v2709 = vunpack.c.h.b16 %v1321
        %v2710 = vunpack.c.l.b16 %v1322
        %v2711 = vunpack.c.h.b16 %v1322
        %v2712 = vunpack.c.l.b16 %v1323
        %v2713 = vunpack.c.h.b16 %v1323
        %v2714 = vunpack.c.l.b16 %v1324
        %v2715 = vunpack.c.h.b16 %v1324
        %v2716 = vunpack.c.l.b16 %v1325
        %v2717 = vunpack.c.h.b16 %v1325
        %v2718 = vunpack.c.l.b16 %v1326
        %v2719 = vunpack.c.h.b16 %v1326
        %v2720 = vunpack.c.l.b16 %v1327
        %v2721 = vunpack.c.h.b16 %v1327
        %v2722 = vunpack.c.l.b16 %v1328
        %v2723 = vunpack.c.h.b16 %v1328
        %v2724 = vunpack.c.l.b16 %v1329
        %v2725 = vunpack.c.h.b16 %v1329
        %v2726 = vunpack.c.l.b16 %v1330
        %v2727 = vunpack.c.h.b16 %v1330
        %v2728 = vunpack.c.l.b16 %v1331
        %v2729 = vunpack.c.h.b16 %v1331
        %v2730 = vunpack.c.l.b16 %v1332
        %v2731 = vunpack.c.h.b16 %v1332
        %v2732 = vunpack.c.l.b16 %v1333
        %v2733 = vunpack.c.h.b16 %v1333
        %v2734 = vunpack.c.l.b16 %v1334
        %v2735 = vunpack.c.h.b16 %v1334
        %v2736 = vunpack.c.l.b16 %v1335
        %v2737 = vunpack.c.h.b16 %v1335
        %v2738 = vunpack.c.l.b16 %v1336
        %v2739 = vunpack.c.h.b16 %v1336
        %v2740 = vunpack.c.l.b16 %v1337
        %v2741 = vunpack.c.h.b16 %v1337
        %v2742 = vunpack.c.l.b16 %v1338
        %v2743 = vunpack.c.h.b16 %v1338
        %v2744 = vunpack.c.l.b16 %v1339
        %v2745 = vunpack.c.h.b16 %v1339
        %v2746 = vunpack.c.l.b16 %v1340
        %v2747 = vunpack.c.h.b16 %v1340
        %v2748 = vunpack.c.l.b16 %v1341
        %v2749 = vunpack.c.h.b16 %v1341
        %v2750 = vunpack.c.l.b16 %v1342
        %v2751 = vunpack.c.h.b16 %v1342
        %v2752 = vunpack.c.l.b16 %v1343
        %v2753 = vunpack.c.h.b16 %v1343
        %v2754 = vunpack.c.l.b16 %v1344
        %v2755 = vunpack.c.h.b16 %v1344
        %v2756 = vunpack.c.l.b16 %v1345
        %v2757 = vunpack.c.h.b16 %v1345
        %v2758 = vunpack.c.l.b16 %v1346
        %v2759 = vunpack.c.h.b16 %v1346
        %v2760 = vunpack.c.l.b16 %v1347
        %v2761 = vunpack.c.h.b16 %v1347
        %v2762 = vunpack.c.l.b16 %v1348
        %v2763 = vunpack.c.h.b16 %v1348
        %v2764 = vunpack.c.l.b16 %v1349
        %v2765 = vunpack.c.h.b16 %v1349
        %v2766 = vunpack.c.l.b16 %v1350
        %v2767 = vunpack.c.h.b16 %v1350
        %v2768 = vunpack.c.l.b16 %v1351
        %v2769 = vunpack.c.h.b16 %v1351
        %v2770 = vunpack.c.l.b16 %v1352
        %v2771 = vunpack.c.h.b16 %v1352
        %v2772 = vunpack.c.l.b16 %v1353
        %v2773 = vunpack.c.h.b16 %v1353
        %v2774 = vunpack.c.l.b16 %v1354
        %v2775 = vunpack.c.h.b16 %v1354
        %v2776 = vunpack.c.l.b16 %v1355
        %v2777 = vunpack.c.h.b16 %v1355
        %v2778 = vunpack.c.l.b16 %v1356
        %v2779 = vunpack.c.h.b16 %v1356
        %v2780 = vunpack.c.l.b16 %v1357
        %v2781 = vunpack.c.h.b16 %v1357
        %v2782 = vunpack.c.l.b16 %v1358
        %v2783 = vunpack.c.h.b16 %v1358
        %v2784 = vunpack.c.l.b16 %v1359
        %v2785 = vunpack.c.h.b16 %v1359
        %v2786 = vunpack.c.l.b16 %v1360
        %v2787 = vunpack.c.h.b16 %v1360
        %v2788 = vunpack.c.l.b16 %v1361
        %v2789 = vunpack.c.h.b16 %v1361
        %v2790 = vunpack.c.l.b16 %v1362
        %v2791 = vunpack.c.h.b16 %v1362
        %v2792 = vunpack.c.l.b16 %v1363
        %v2793 = vunpack.c.h.b16 %v1363
        %v2794 = vunpack.c.l.b16 %v1364
        %v2795 = vunpack.c.h.b16 %v1364
        %v2796 = vunpack.c.l.b16 %v1365
        %v2797 = vunpack.c.h.b16 %v1365
        %v2798 = vunpack.c.l.b16 %v1366
        %v2799 = vunpack.c.h.b16 %v1366
        %v2800 = vunpack.c.l.b16 %v1367
        %v2801 = vunpack.c.h.b16 %v1367
        %v2802 = vunpack.c.l.b16 %v1368
        %v2803 = vunpack.c.h.b16 %v1368
        %v2804 = vunpack.c.l.b16 %v1369
        %v2805 = vunpack.c.h.b16 %v1369
        %v2806 = vunpack.c.l.b16 %v1370
        %v2807 = vunpack.c.h.b16 %v1370
        %v2808 = vunpack.c.l.b16 %v1371
        %v2809 = vunpack.c.h.b16 %v1371
        %v2810 = vunpack.c.l.b16 %v1372
        %v2811 = vunpack.c.h.b16 %v1372
        %v2812 = vunpack.c.l.b16 %v1373
        %v2813 = vunpack.c.h.b16 %v1373
        %v2814 = vunpack.c.l.b16 %v1374
        %v2815 = vunpack.c.h.b16 %v1374
        %v2816 = vunpack.c.l.b16 %v1375
        %v2817 = vunpack.c.h.b16 %v1375
        %v2818 = vunpack.c.l.b16 %v1376
        %v2819 = vunpack.c.h.b16 %v1376
        %v2820 = vunpack.c.l.b16 %v1377
        %v2821 = vunpack.c.h.b16 %v1377
        %v2822 = vunpack.c.l.b16 %v1378
        %v2823 = vunpack.c.h.b16 %v1378
        %v2824 = vunpack.c.l.b16 %v1379
        %v2825 = vunpack.c.h.b16 %v1379
        %v2826 = vunpack.c.l.b16 %v1380
        %v2827 = vunpack.c.h.b16 %v1380
        %v2828 = vunpack.c.l.b16 %v1381
        %v2829 = vunpack.c.h.b16 %v1381
        %v2830 = vunpack.c.l.b16 %v1382
        %v2831 = vunpack.c.h.b16 %v1382
        %v2832 = vunpack.c.l.b16 %v1383
        %v2833 = vunpack.c.h.b16 %v1383
        %v2834 = vunpack.c.l.b16 %v1384
        %v2835 = vunpack.c.h.b16 %v1384
        %v2836 = vunpack.c.l.b16 %v1385
        %v2837 = vunpack.c.h.b16 %v1385
        %v2838 = vunpack.c.l.b16 %v1386
        %v2839 = vunpack.c.h.b16 %v1386
        %v2840 = vunpack.c.l.b16 %v1387
        %v2841 = vunpack.c.h.b16 %v1387
        %v2842 = vunpack.c.l.b16 %v1388
        %v2843 = vunpack.c.h.b16 %v1388
        %v2844 = vunpack.c.l.b16 %v1389
        %v2845 = vunpack.c.h.b16 %v1389
        %v2846 = vunpack.c.l.b16 %v1390
        %v2847 = vunpack.c.h.b16 %v1390
        %v2848 = vunpack.c.l.b16 %v1391
        %v2849 = vunpack.c.h.b16 %v1391
        %v2850 = vunpack.c.l.b16 %v1392
        %v2851 = vunpack.c.h.b16 %v1392
        %v2852 = vunpack.c.l.b16 %v1393
        %v2853 = vunpack.c.h.b16 %v1393
        %v2854 = vunpack.c.l.b16 %v1394
        %v2855 = vunpack.c.h.b16 %v1394
        %v2856 = vunpack.c.l.b16 %v1395
        %v2857 = vunpack.c.h.b16 %v1395
        %v2858 = vunpack.c.l.b16 %v1396
        %v2859 = vunpack.c.h.b16 %v1396
        %v2860 = vunpack.c.l.b16 %v1397
        %v2861 = vunpack.c.h.b16 %v1397
        %v2862 = vunpack.c.l.b16 %v1398
        %v2863 = vunpack.c.h.b16 %v1398
        %v2864 = vunpack.c.l.b16 %v1399
        %v2865 = vunpack.c.h.b16 %v1399
        %v2866 = vunpack.c.l.b16 %v1400
        %v2867 = vunpack.c.h.b16 %v1400
        %v2868 = vunpack.c.l.b16 %v1401
        %v2869 = vunpack.c.h.b16 %v1401
        %v2870 = vunpack.c.l.b16 %v1402
        %v2871 = vunpack.c.h.b16 %v1402
        %v2872 = vunpack.c.l.b16 %v1403
        %v2873 = vunpack.c.h.b16 %v1403
        %v2874 = vunpack.c.l.b16 %v1404
        %v2875 = vunpack.c.h.b16 %v1404
        %v2876 = vunpack.c.l.b16 %v1405
        %v2877 = vunpack.c.h.b16 %v1405
        %v2878 = vunpack.c.l.b16 %v1406
        %v2879 = vunpack.c.h.b16 %v1406
        %v2880 = vunpack.c.l.b16 %v1407
        %v2881 = vunpack.c.h.b16 %v1407
        %v2882 = vunpack.c.l.b16 %v1408
        %v2883 = vunpack.c.h.b16 %v1408
        %v2884 = vunpack.c.l.b16 %v1409
        %v2885 = vunpack.c.h.b16 %v1409
        %v2886 = vunpack.c.l.b16 %v1410
        %v2887 = vunpack.c.h.b16 %v1410
        %v2888 = vunpack.c.l.b16 %v1411
        %v2889 = vunpack.c.h.b16 %v1411
        %v2890 = vunpack.c.l.b16 %v1412
        %v2891 = vunpack.c.h.b16 %v1412
        %v2892 = vunpack.c.l.b16 %v1413
        %v2893 = vunpack.c.h.b16 %v1413
        %v2894 = vunpack.c.l.b16 %v1414
        %v2895 = vunpack.c.h.b16 %v1414
        %v2896 = vunpack.c.l.b16 %v1415
        %v2897 = vunpack.c.h.b16 %v1415
        %v2898 = vunpack.c.l.b16 %v1416
        %v2899 = vunpack.c.h.b16 %v1416
        %v2900 = vunpack.c.l.b16 %v1417
        %v2901 = vunpack.c.h.b16 %v1417
        %v2902 = vunpack.c.l.b16 %v1418
        %v2903 = vunpack.c.h.b16 %v1418
        %v2904 = vunpack.c.l.b16 %v1419
        %v2905 = vunpack.c.h.b16 %v1419
        %v2906 = vunpack.c.l.b16 %v1420
        %v2907 = vunpack.c.h.b16 %v1420
        %v2908 = vunpack.c.l.b16 %v1421
        %v2909 = vunpack.c.h.b16 %v1421
        %v2910 = vunpack.c.l.b16 %v1422
        %v2911 = vunpack.c.h.b16 %v1422
        %v2912 = vunpack.c.l.b16 %v1423
        %v2913 = vunpack.c.h.b16 %v1423
        %v2914 = vunpack.c.l.b16 %v1424
        %v2915 = vunpack.c.h.b16 %v1424
        %v2916 = vunpack.c.l.b16 %v1425
        %v2917 = vunpack.c.h.b16 %v1425
        %v2918 = vunpack.c.l.b16 %v1426
        %v2919 = vunpack.c.h.b16 %v1426
        %v2920 = vunpack.c.l.b16 %v1427
        %v2921 = vunpack.c.h.b16 %v1427
        %v2922 = vunpack.c.l.b16 %v1428
        %v2923 = vunpack.c.h.b16 %v1428
        %v2924 = vunpack.c.l.b16 %v1429
        %v2925 = vunpack.c.h.b16 %v1429
        %v2926 = vunpack.c.l.b16 %v1430
        %v2927 = vunpack.c.h.b16 %v1430
        %v2928 = vunpack.c.l.b16 %v1431
        %v2929 = vunpack.c.h.b16 %v1431
        %v2930 = vunpack.c.l.b16 %v1432
        %v2931 = vunpack.c.h.b16 %v1432
        %v2932 = vunpack.c.l.b16 %v1433
        %v2933 = vunpack.c.h.b16 %v1433
        %v2934 = vunpack.c.l.b16 %v1434
        %v2935 = vunpack.c.h.b16 %v1434
        %v2936 = vunpack.c.l.b16 %v1435
        %v2937 = vunpack.c.h.b16 %v1435
        %v2938 = vunpack.c.l.b16 %v1436
        %v2939 = vunpack.c.h.b16 %v1436
        %v2940 = vunpack.c.l.b16 %v1437
        %v2941 = vunpack.c.h.b16 %v1437
        %v2942 = vunpack.c.l.b16 %v1438
        %v2943 = vunpack.c.h.b16 %v1438
        %v2944 = vunpack.c.l.b16 %v1439
        %v2945 = vunpack.c.h.b16 %v1439
        %v2946 = vunpack.c.l.b16 %v1440
        %v2947 = vunpack.c.h.b16 %v1440
        %v2948 = vunpack.c.l.b16 %v1441
        %v2949 = vunpack.c.h.b16 %v1441
        %v2950 = vunpack.c.l.b16 %v1442
        %v2951 = vunpack.c.h.b16 %v1442
        %v2952 = vunpack.c.l.b16 %v1443
        %v2953 = vunpack.c.h.b16 %v1443
        %v2954 = vunpack.c.l.b16 %v1444
        %v2955 = vunpack.c.h.b16 %v1444
        %v2956 = vunpack.c.l.b16 %v1445
        %v2957 = vunpack.c.h.b16 %v1445
        %v2958 = vunpack.c.l.b16 %v1446
        %v2959 = vunpack.c.h.b16 %v1446
        %v2960 = vunpack.c.l.b16 %v1447
        %v2961 = vunpack.c.h.b16 %v1447
        %v2962 = vunpack.c.l.b16 %v1448
        %v2963 = vunpack.c.h.b16 %v1448
        %v2964 = vunpack.c.l.b16 %v1449
        %v2965 = vunpack.c.h.b16 %v1449
        %v2966 = vunpack.c.l.b16 %v1450
        %v2967 = vunpack.c.h.b16 %v1450
        %v2968 = vunpack.c.l.b16 %v1451
        %v2969 = vunpack.c.h.b16 %v1451
        %v2970 = vunpack.c.l.b16 %v1452
        %v2971 = vunpack.c.h.b16 %v1452
        %v2972 = vunpack.c.l.b16 %v1453
        %v2973 = vunpack.c.h.b16 %v1453
        %v2974 = vunpack.c.l.b16 %v1454
        %v2975 = vunpack.c.h.b16 %v1454
        %v2976 = vunpack.c.l.b16 %v1455
        %v2977 = vunpack.c.h.b16 %v1455
        %v2978 = vunpack.c.l.b16 %v1456
        %v2979 = vunpack.c.h.b16 %v1456
        %v2980 = vunpack.c.l.b16 %v1457
        %v2981 = vunpack.c.h.b16 %v1457
        %v2982 = vunpack.c.l.b16 %v1458
        %v2983 = vunpack.c.h.b16 %v1458
        %v2984 = vunpack.c.l.b16 %v1459
        %v2985 = vunpack.c.h.b16 %v1459
        %v2986 = vunpack.c.l.b16 %v1460
        %v2987 = vunpack.c.h.b16 %v1460
        %v2988 = vunpack.c.l.b16 %v1461
        %v2989 = vunpack.c.h.b16 %v1461
        %v2990 = vunpack.c.l.b16 %v1462
        %v2991 = vunpack.c.h.b16 %v1462
        %v2992 = vunpack.c.l.b16 %v1463
        %v2993 = vunpack.c.h.b16 %v1463
        %v2994 = vunpack.c.l.b16 %v1464
        %v2995 = vunpack.c.h.b16 %v1464
        %v2996 = vunpack.c.l.b16 %v1465
        %v2997 = vunpack.c.h.b16 %v1465
        %v2998 = vunpack.c.l.b16 %v1466
        %v2999 = vunpack.c.h.b16 %v1466
        %v3000 = vunpack.c.l.b16 %v1467
        %v3001 = vunpack.c.h.b16 %v1467
        %v3002 = vunpack.c.l.b16 %v1468
        %v3003 = vunpack.c.h.b16 %v1468
        %v3004 = vunpack.c.l.b16 %v1469
        %v3005 = vunpack.c.h.b16 %v1469
        %v3006 = vunpack.c.l.b16 %v1470
        %v3007 = vunpack.c.h.b16 %v1470
        %v3008 = vunpack.c.l.b16 %v1471
        %v3009 = vunpack.c.h.b16 %v1471
        %v3010 = vunpack.c.l.b16 %v1472
        %v3011 = vunpack.c.h.b16 %v1472
        %v3012 = vunpack.c.l.b16 %v1473
        %v3013 = vunpack.c.h.b16 %v1473
        %v3014 = vunpack.c.l.b16 %v1474
        %v3015 = vunpack.c.h.b16 %v1474
        %v3016 = vunpack.c.l.b16 %v1475
        %v3017 = vunpack.c.h.b16 %v1475
        %v3018 = vunpack.c.l.b16 %v1476
        %v3019 = vunpack.c.h.b16 %v1476
        %v3020 = vunpack.c.l.b16 %v1477
        %v3021 = vunpack.c.h.b16 %v1477
        %v3022 = vunpack.c.l.b16 %v1478
        %v3023 = vunpack.c.h.b16 %v1478
        %v3024 = vunpack.c.l.b16 %v1479
        %v3025 = vunpack.c.h.b16 %v1479
        %v3026 = vunpack.c.l.b16 %v1480
        %v3027 = vunpack.c.h.b16 %v1480
        %v3028 = vunpack.c.l.b16 %v1481
        %v3029 = vunpack.c.h.b16 %v1481
        %v3030 = vunpack.c.l.b16 %v1482
        %v3031 = vunpack.c.h.b16 %v1482
        %v3032 = vunpack.c.l.b16 %v1483
        %v3033 = vunpack.c.h.b16 %v1483
        %v3034 = vunpack.c.l.b16 %v1484
        %v3035 = vunpack.c.h.b16 %v1484
        %v3036 = vunpack.c.l.b16 %v1485
        %v3037 = vunpack.c.h.b16 %v1485
        %v3038 = vunpack.c.l.b16 %v1486
        %v3039 = vunpack.c.h.b16 %v1486
        %v3040 = vunpack.c.l.b16 %v1487
        %v3041 = vunpack.c.h.b16 %v1487
        %v3042 = vpack.c.b16 %v2026, %v2018
        %v3043 = vpack.c.b16 %v2027, %v2019
        %v3044 = vpack.c.b16 %v2028, %v2020
        %v3045 = vpack.c.b16 %v2029, %v2021
        %v3046 = vpack.c.b16 %v2030, %v2022
        %v3047 = vpack.c.b16 %v2031, %v2023
        %v3048 = vpack.c.b16 %v2032, %v2024
        %v3049 = vpack.c.b16 %v2033, %v2025
        %v3050 = vpack.c.b16 %v2042, %v2034
        %v3051 = vpack.c.b16 %v2043, %v2035
        %v3052 = vpack.c.b16 %v2044, %v2036
        %v3053 = vpack.c.b16 %v2045, %v2037
        %v3054 = vpack.c.b16 %v2046, %v2038
        %v3055 = vpack.c.b16 %v2047, %v2039
        %v3056 = vpack.c.b16 %v2048, %v2040
        %v3057 = vpack.c.b16 %v2049, %v2041
        %v3058 = vpack.c.b16 %v2058, %v2050
        %v3059 = vpack.c.b16 %v2059, %v2051
        %v3060 = vpack.c.b16 %v2060, %v2052
        %v3061 = vpack.c.b16 %v2061, %v2053
        %v3062 = vpack.c.b16 %v2062, %v2054
        %v3063 = vpack.c.b16 %v2063, %v2055
        %v3064 = vpack.c.b16 %v2064, %v2056
        %v3065 = vpack.c.b16 %v2065, %v2057
        %v3066 = vpack.c.b16 %v2074, %v2066
        %v3067 = vpack.c.b16 %v2075, %v2067
        %v3068 = vpack.c.b16 %v2076, %v2068
        %v3069 = vpack.c.b16 %v2077, %v2069
        %v3070 = vpack.c.b16 %v2078, %v2070
        %v3071 = vpack.c.b16 %v2079, %v2071
        %v3072 = vpack.c.b16 %v2080, %v2072
        %v3073 = vpack.c.b16 %v2081, %v2073
        %v3074 = vpack.c.b16 %v2090, %v2082
        %v3075 = vpack.c.b16 %v2091, %v2083
        %v3076 = vpack.c.b16 %v2092, %v2084
        %v3077 = vpack.c.b16 %v2093, %v2085
        %v3078 = vpack.c.b16 %v2094, %v2086
        %v3079 = vpack.c.b16 %v2095, %v2087
        %v3080 = vpack.c.b16 %v2096, %v2088
        %v3081 = vpack.c.b16 %v2097, %v2089
        %v3082 = vpack.c.b16 %v2106, %v2098
        %v3083 = vpack.c.b16 %v2107, %v2099
        %v3084 = vpack.c.b16 %v2108, %v2100
        %v3085 = vpack.c.b16 %v2109, %v2101
        %v3086 = vpack.c.b16 %v2110, %v2102
        %v3087 = vpack.c.b16 %v2111, %v2103
        %v3088 = vpack.c.b16 %v2112, %v2104
        %v3089 = vpack.c.b16 %v2113, %v2105
        %v3090 = vpack.c.b16 %v2122, %v2114
        %v3091 = vpack.c.b16 %v2123, %v2115
        %v3092 = vpack.c.b16 %v2124, %v2116
        %v3093 = vpack.c.b16 %v2125, %v2117
        %v3094 = vpack.c.b16 %v2126, %v2118
        %v3095 = vpack.c.b16 %v2127, %v2119
        %v3096 = vpack.c.b16 %v2128, %v2120
        %v3097 = vpack.c.b16 %v2129, %v2121
        %v3098 = vpack.c.b16 %v2138, %v2130
        %v3099 = vpack.c.b16 %v2139, %v2131
        %v3100 = vpack.c.b16 %v2140, %v2132
        %v3101 = vpack.c.b16 %v2141, %v2133
        %v3102 = vpack.c.b16 %v2142, %v2134
        %v3103 = vpack.c.b16 %v2143, %v2135
        %v3104 = vpack.c.b16 %v2144, %v2136
        %v3105 = vpack.c.b16 %v2145, %v2137
        %v3106 = vpack.c.b16 %v2154, %v2146
        %v3107 = vpack.c.b16 %v2155, %v2147
        %v3108 = vpack.c.b16 %v2156, %v2148
        %v3109 = vpack.c.b16 %v2157, %v2149
        %v3110 = vpack.c.b16 %v2158, %v2150
        %v3111 = vpack.c.b16 %v2159, %v2151
        %v3112 = vpack.c.b16 %v2160, %v2152
        %v3113 = vpack.c.b16 %v2161, %v2153
        %v3114 = vpack.c.b16 %v2170, %v2162
        %v3115 = vpack.c.b16 %v2171, %v2163
        %v3116 = vpack.c.b16 %v2172, %v2164
        %v3117 = vpack.c.b16 %v2173, %v2165
        %v3118 = vpack.c.b16 %v2174, %v2166
        %v3119 = vpack.c.b16 %v2175, %v2167
        %v3120 = vpack.c.b16 %v2176, %v2168
        %v3121 = vpack.c.b16 %v2177, %v2169
        %v3122 = vpack.c.b16 %v2186, %v2178
        %v3123 = vpack.c.b16 %v2187, %v2179
        %v3124 = vpack.c.b16 %v2188, %v2180
        %v3125 = vpack.c.b16 %v2189, %v2181
        %v3126 = vpack.c.b16 %v2190, %v2182
        %v3127 = vpack.c.b16 %v2191, %v2183
        %v3128 = vpack.c.b16 %v2192, %v2184
        %v3129 = vpack.c.b16 %v2193, %v2185
        %v3130 = vpack.c.b16 %v2202, %v2194
        %v3131 = vpack.c.b16 %v2203, %v2195
        %v3132 = vpack.c.b16 %v2204, %v2196
        %v3133 = vpack.c.b16 %v2205, %v2197
        %v3134 = vpack.c.b16 %v2206, %v2198
        %v3135 = vpack.c.b16 %v2207, %v2199
        %v3136 = vpack.c.b16 %v2208, %v2200
        %v3137 = vpack.c.b16 %v2209, %v2201
        %v3138 = vpack.c.b16 %v2218, %v2210
        %v3139 = vpack.c.b16 %v2219, %v2211
        %v3140 = vpack.c.b16 %v2220, %v2212
        %v3141 = vpack.c.b16 %v2221, %v2213
        %v3142 = vpack.c.b16 %v2222, %v2214
        %v3143 = vpack.c.b16 %v2223, %v2215
        %v3144 = vpack.c.b16 %v2224, %v2216
        %v3145 = vpack.c.b16 %v2225, %v2217
        %v3146 = vpack.c.b16 %v2234, %v2226
        %v3147 = vpack.c.b16 %v2235, %v2227
        %v3148 = vpack.c.b16 %v2236, %v2228
        %v3149 = vpack.c.b16 %v2237, %v2229
        %v3150 = vpack.c.b16 %v2238, %v2230
        %v3151 = vpack.c.b16 %v2239, %v2231
        %v3152 = vpack.c.b16 %v2240, %v2232
        %v3153 = vpack.c.b16 %v2241, %v2233
        %v3154 = vpack.c.b16 %v2250, %v2242
        %v3155 = vpack.c.b16 %v2251, %v2243
        %v3156 = vpack.c.b16 %v2252, %v2244
        %v3157 = vpack.c.b16 %v2253, %v2245
        %v3158 = vpack.c.b16 %v2254, %v2246
        %v3159 = vpack.c.b16 %v2255, %v2247
        %v3160 = vpack.c.b16 %v2256, %v2248
        %v3161 = vpack.c.b16 %v2257, %v2249
        %v3162 = vpack.c.b16 %v2266, %v2258
        %v3163 = vpack.c.b16 %v2267, %v2259
        %v3164 = vpack.c.b16 %v2268, %v2260
        %v3165 = vpack.c.b16 %v2269, %v2261
        %v3166 = vpack.c.b16 %v2270, %v2262
        %v3167 = vpack.c.b16 %v2271, %v2263
        %v3168 = vpack.c.b16 %v2272, %v2264
        %v3169 = vpack.c.b16 %v2273, %v2265
        %v3170 = vpack.c.b16 %v2282, %v2274
        %v3171 = vpack.c.b16 %v2283, %v2275
        %v3172 = vpack.c.b16 %v2284, %v2276
        %v3173 = vpack.c.b16 %v2285, %v2277
        %v3174 = vpack.c.b16 %v2286, %v2278
        %v3175 = vpack.c.b16 %v2287, %v2279
        %v3176 = vpack.c.b16 %v2288, %v2280
        %v3177 = vpack.c.b16 %v2289, %v2281
        %v3178 = vpack.c.b16 %v2298, %v2290
        %v3179 = vpack.c.b16 %v2299, %v2291
        %v3180 = vpack.c.b16 %v2300, %v2292
        %v3181 = vpack.c.b16 %v2301, %v2293
        %v3182 = vpack.c.b16 %v2302, %v2294
        %v3183 = vpack.c.b16 %v2303, %v2295
        %v3184 = vpack.c.b16 %v2304, %v2296
        %v3185 = vpack.c.b16 %v2305, %v2297
        %v3186 = vpack.c.b16 %v2314, %v2306
        %v3187 = vpack.c.b16 %v2315, %v2307
        %v3188 = vpack.c.b16 %v2316, %v2308
        %v3189 = vpack.c.b16 %v2317, %v2309
        %v3190 = vpack.c.b16 %v2318, %v2310
        %v3191 = vpack.c.b16 %v2319, %v2311
        %v3192 = vpack.c.b16 %v2320, %v2312
        %v3193 = vpack.c.b16 %v2321, %v2313
        %v3194 = vpack.c.b16 %v2330, %v2322
        %v3195 = vpack.c.b16 %v2331, %v2323
        %v3196 = vpack.c.b16 %v2332, %v2324
        %v3197 = vpack.c.b16 %v2333, %v2325
        %v3198 = vpack.c.b16 %v2334, %v2326
        %v3199 = vpack.c.b16 %v2335, %v2327
        %v3200 = vpack.c.b16 %v2336, %v2328
        %v3201 = vpack.c.b16 %v2337, %v2329
        %v3202 = vpack.c.b16 %v2346, %v2338
        %v3203 = vpack.c.b16 %v2347, %v2339
        %v3204 = vpack.c.b16 %v2348, %v2340
        %v3205 = vpack.c.b16 %v2349, %v2341
        %v3206 = vpack.c.b16 %v2350, %v2342
        %v3207 = vpack.c.b16 %v2351, %v2343
        %v3208 = vpack.c.b16 %v2352, %v2344
        %v3209 = vpack.c.b16 %v2353, %v2345
        %v3210 = vpack.c.b16 %v2362, %v2354
        %v3211 = vpack.c.b16 %v2363, %v2355
        %v3212 = vpack.c.b16 %v2364, %v2356
        %v3213 = vpack.c.b16 %v2365, %v2357
        %v3214 = vpack.c.b16 %v2366, %v2358
        %v3215 = vpack.c.b16 %v2367, %v2359
        %v3216 = vpack.c.b16 %v2368, %v2360
        %v3217 = vpack.c.b16 %v2369, %v2361
        %v3218 = vpack.c.b16 %v2378, %v2370
        %v3219 = vpack.c.b16 %v2379, %v2371
        %v3220 = vpack.c.b16 %v2380, %v2372
        %v3221 = vpack.c.b16 %v2381, %v2373
        %v3222 = vpack.c.b16 %v2382, %v2374
        %v3223 = vpack.c.b16 %v2383, %v2375
        %v3224 = vpack.c.b16 %v2384, %v2376
        %v3225 = vpack.c.b16 %v2385, %v2377
        %v3226 = vpack.c.b16 %v2394, %v2386
        %v3227 = vpack.c.b16 %v2395, %v2387
        %v3228 = vpack.c.b16 %v2396, %v2388
        %v3229 = vpack.c.b16 %v2397, %v2389
        %v3230 = vpack.c.b16 %v2398, %v2390
        %v3231 = vpack.c.b16 %v2399, %v2391
        %v3232 = vpack.c.b16 %v2400, %v2392
        %v3233 = vpack.c.b16 %v2401, %v2393
        %v3234 = vpack.c.b16 %v2410, %v2402
        %v3235 = vpack.c.b16 %v2411, %v2403
        %v3236 = vpack.c.b16 %v2412, %v2404
        %v3237 = vpack.c.b16 %v2413, %v2405
        %v3238 = vpack.c.b16 %v2414, %v2406
        %v3239 = vpack.c.b16 %v2415, %v2407
        %v3240 = vpack.c.b16 %v2416, %v2408
        %v3241 = vpack.c.b16 %v2417, %v2409
        %v3242 = vpack.c.b16 %v2426, %v2418
        %v3243 = vpack.c.b16 %v2427, %v2419
        %v3244 = vpack.c.b16 %v2428, %v2420
        %v3245 = vpack.c.b16 %v2429, %v2421
        %v3246 = vpack.c.b16 %v2430, %v2422
        %v3247 = vpack.c.b16 %v2431, %v2423
        %v3248 = vpack.c.b16 %v2432, %v2424
        %v3249 = vpack.c.b16 %v2433, %v2425
        %v3250 = vpack.c.b16 %v2442, %v2434
        %v3251 = vpack.c.b16 %v2443, %v2435
        %v3252 = vpack.c.b16 %v2444, %v2436
        %v3253 = vpack.c.b16 %v2445, %v2437
        %v3254 = vpack.c.b16 %v2446, %v2438
        %v3255 = vpack.c.b16 %v2447, %v2439
        %v3256 = vpack.c.b16 %v2448, %v2440
        %v3257 = vpack.c.b16 %v2449, %v2441
        %v3258 = vpack.c.b16 %v2458, %v2450
        %v3259 = vpack.c.b16 %v2459, %v2451
        %v3260 = vpack.c.b16 %v2460, %v2452
        %v3261 = vpack.c.b16 %v2461, %v2453
        %v3262 = vpack.c.b16 %v2462, %v2454
        %v3263 = vpack.c.b16 %v2463, %v2455
        %v3264 = vpack.c.b16 %v2464, %v2456
        %v3265 = vpack.c.b16 %v2465, %v2457
        %v3266 = vpack.c.b16 %v2474, %v2466
        %v3267 = vpack.c.b16 %v2475, %v2467
        %v3268 = vpack.c.b16 %v2476, %v2468
        %v3269 = vpack.c.b16 %v2477, %v2469
        %v3270 = vpack.c.b16 %v2478, %v2470
        %v3271 = vpack.c.b16 %v2479, %v2471
        %v3272 = vpack.c.b16 %v2480, %v2472
        %v3273 = vpack.c.b16 %v2481, %v2473
        %v3274 = vpack.c.b16 %v2490, %v2482
        %v3275 = vpack.c.b16 %v2491, %v2483
        %v3276 = vpack.c.b16 %v2492, %v2484
        %v3277 = vpack.c.b16 %v2493, %v2485
        %v3278 = vpack.c.b16 %v2494, %v2486
        %v3279 = vpack.c.b16 %v2495, %v2487
        %v3280 = vpack.c.b16 %v2496, %v2488
        %v3281 = vpack.c.b16 %v2497, %v2489
        %v3282 = vpack.c.b16 %v2506, %v2498
        %v3283 = vpack.c.b16 %v2507, %v2499
        %v3284 = vpack.c.b16 %v2508, %v2500
        %v3285 = vpack.c.b16 %v2509, %v2501
        %v3286 = vpack.c.b16 %v2510, %v2502
        %v3287 = vpack.c.b16 %v2511, %v2503
        %v3288 = vpack.c.b16 %v2512, %v2504
        %v3289 = vpack.c.b16 %v2513, %v2505
        %v3290 = vpack.c.b16 %v2522, %v2514
        %v3291 = vpack.c.b16 %v2523, %v2515
        %v3292 = vpack.c.b16 %v2524, %v2516
        %v3293 = vpack.c.b16 %v2525, %v2517
        %v3294 = vpack.c.b16 %v2526, %v2518
        %v3295 = vpack.c.b16 %v2527, %v2519
        %v3296 = vpack.c.b16 %v2528, %v2520
        %v3297 = vpack.c.b16 %v2529, %v2521
        %v3298 = vpack.c.b16 %v2538, %v2530
        %v3299 = vpack.c.b16 %v2539, %v2531
        %v3300 = vpack.c.b16 %v2540, %v2532
        %v3301 = vpack.c.b16 %v2541, %v2533
        %v3302 = vpack.c.b16 %v2542, %v2534
        %v3303 = vpack.c.b16 %v2543, %v2535
        %v3304 = vpack.c.b16 %v2544, %v2536
        %v3305 = vpack.c.b16 %v2545, %v2537
        %v3306 = vpack.c.b16 %v2554, %v2546
        %v3307 = vpack.c.b16 %v2555, %v2547
        %v3308 = vpack.c.b16 %v2556, %v2548
        %v3309 = vpack.c.b16 %v2557, %v2549
        %v3310 = vpack.c.b16 %v2558, %v2550
        %v3311 = vpack.c.b16 %v2559, %v2551
        %v3312 = vpack.c.b16 %v2560, %v2552
        %v3313 = vpack.c.b16 %v2561, %v2553
        %v3314 = vpack.c.b16 %v2570, %v2562
        %v3315 = vpack.c.b16 %v2571, %v2563
        %v3316 = vpack.c.b16 %v2572, %v2564
        %v3317 = vpack.c.b16 %v2573, %v2565
        %v3318 = vpack.c.b16 %v2574, %v2566
        %v3319 = vpack.c.b16 %v2575, %v2567
        %v3320 = vpack.c.b16 %v2576, %v2568
        %v3321 = vpack.c.b16 %v2577, %v2569
        %v3322 = vpack.c.b16 %v2586, %v2578
        %v3323 = vpack.c.b16 %v2587, %v2579
        %v3324 = vpack.c.b16 %v2588, %v2580
        %v3325 = vpack.c.b16 %v2589, %v2581
        %v3326 = vpack.c.b16 %v2590, %v2582
        %v3327 = vpack.c.b16 %v2591, %v2583
        %v3328 = vpack.c.b16 %v2592, %v2584
        %v3329 = vpack.c.b16 %v2593, %v2585
        %v3330 = vpack.c.b16 %v2602, %v2594
        %v3331 = vpack.c.b16 %v2603, %v2595
        %v3332 = vpack.c.b16 %v2604, %v2596
        %v3333 = vpack.c.b16 %v2605, %v2597
        %v3334 = vpack.c.b16 %v2606, %v2598
        %v3335 = vpack.c.b16 %v2607, %v2599
        %v3336 = vpack.c.b16 %v2608, %v2600
        %v3337 = vpack.c.b16 %v2609, %v2601
        %v3338 = vpack.c.b16 %v2618, %v2610
        %v3339 = vpack.c.b16 %v2619, %v2611
        %v3340 = vpack.c.b16 %v2620, %v2612
        %v3341 = vpack.c.b16 %v2621, %v2613
        %v3342 = vpack.c.b16 %v2622, %v2614
        %v3343 = vpack.c.b16 %v2623, %v2615
        %v3344 = vpack.c.b16 %v2624, %v2616
        %v3345 = vpack.c.b16 %v2625, %v2617
        %v3346 = vpack.c.b16 %v2634, %v2626
        %v3347 = vpack.c.b16 %v2635, %v2627
        %v3348 = vpack.c.b16 %v2636, %v2628
        %v3349 = vpack.c.b16 %v2637, %v2629
        %v3350 = vpack.c.b16 %v2638, %v2630
        %v3351 = vpack.c.b16 %v2639, %v2631
        %v3352 = vpack.c.b16 %v2640, %v2632
        %v3353 = vpack.c.b16 %v2641, %v2633
        %v3354 = vpack.c.b16 %v2650, %v2642
        %v3355 = vpack.c.b16 %v2651, %v2643
        %v3356 = vpack.c.b16 %v2652, %v2644
        %v3357 = vpack.c.b16 %v2653, %v2645
        %v3358 = vpack.c.b16 %v2654, %v2646
        %v3359 = vpack.c.b16 %v2655, %v2647
        %v3360 = vpack.c.b16 %v2656, %v2648
        %v3361 = vpack.c.b16 %v2657, %v2649
        %v3362 = vpack.c.b16 %v2666, %v2658
        %v3363 = vpack.c.b16 %v2667, %v2659
        %v3364 = vpack.c.b16 %v2668, %v2660
        %v3365 = vpack.c.b16 %v2669, %v2661
        %v3366 = vpack.c.b16 %v2670, %v2662
        %v3367 = vpack.c.b16 %v2671, %v2663
        %v3368 = vpack.c.b16 %v2672, %v2664
        %v3369 = vpack.c.b16 %v2673, %v2665
        %v3370 = vpack.c.b16 %v2682, %v2674
        %v3371 = vpack.c.b16 %v2683, %v2675
        %v3372 = vpack.c.b16 %v2684, %v2676
        %v3373 = vpack.c.b16 %v2685, %v2677
        %v3374 = vpack.c.b16 %v2686, %v2678
        %v3375 = vpack.c.b16 %v2687, %v2679
        %v3376 = vpack.c.b16 %v2688, %v2680
        %v3377 = vpack.c.b16 %v2689, %v2681
        %v3378 = vpack.c.b16 %v2698, %v2690
        %v3379 = vpack.c.b16 %v2699, %v2691
        %v3380 = vpack.c.b16 %v2700, %v2692
        %v3381 = vpack.c.b16 %v2701, %v2693
        %v3382 = vpack.c.b16 %v2702, %v2694
        %v3383 = vpack.c.b16 %v2703, %v2695
        %v3384 = vpack.c.b16 %v2704, %v2696
        %v3385 = vpack.c.b16 %v2705, %v2697
        %v3386 = vpack.c.b16 %v2714, %v2706
        %v3387 = vpack.c.b16 %v2715, %v2707
        %v3388 = vpack.c.b16 %v2716, %v2708
        %v3389 = vpack.c.b16 %v2717, %v2709
        %v3390 = vpack.c.b16 %v2718, %v2710
        %v3391 = vpack.c.b16 %v2719, %v2711
        %v3392 = vpack.c.b16 %v2720, %v2712
        %v3393 = vpack.c.b16 %v2721, %v2713
        %v3394 = vpack.c.b16 %v2730, %v2722
        %v3395 = vpack.c.b16 %v2731, %v2723
        %v3396 = vpack.c.b16 %v2732, %v2724
        %v3397 = vpack.c.b16 %v2733, %v2725
        %v3398 = vpack.c.b16 %v2734, %v2726
        %v3399 = vpack.c.b16 %v2735, %v2727
        %v3400 = vpack.c.b16 %v2736, %v2728
        %v3401 = vpack.c.b16 %v2737, %v2729
        %v3402 = vpack.c.b16 %v2746, %v2738
        %v3403 = vpack.c.b16 %v2747, %v2739
        %v3404 = vpack.c.b16 %v2748, %v2740
        %v3405 = vpack.c.b16 %v2749, %v2741
        %v3406 = vpack.c.b16 %v2750, %v2742
        %v3407 = vpack.c.b16 %v2751, %v2743
        %v3408 = vpack.c.b16 %v2752, %v2744
        %v3409 = vpack.c.b16 %v2753, %v2745
        %v3410 = vpack.c.b16 %v2762, %v2754
        %v3411 = vpack.c.b16 %v2763, %v2755
        %v3412 = vpack.c.b16 %v2764, %v2756
        %v3413 = vpack.c.b16 %v2765, %v2757
        %v3414 = vpack.c.b16 %v2766, %v2758
        %v3415 = vpack.c.b16 %v2767, %v2759
        %v3416 = vpack.c.b16 %v2768, %v2760
        %v3417 = vpack.c.b16 %v2769, %v2761
        %v3418 = vpack.c.b16 %v2778, %v2770
        %v3419 = vpack.c.b16 %v2779, %v2771
        %v3420 = vpack.c.b16 %v2780, %v2772
        %v3421 = vpack.c.b16 %v2781, %v2773
        %v3422 = vpack.c.b16 %v2782, %v2774
        %v3423 = vpack.c.b16 %v2783, %v2775
        %v3424 = vpack.c.b16 %v2784, %v2776
        %v3425 = vpack.c.b16 %v2785, %v2777
        %v3426 = vpack.c.b16 %v2794, %v2786
        %v3427 = vpack.c.b16 %v2795, %v2787
        %v3428 = vpack.c.b16 %v2796, %v2788
        %v3429 = vpack.c.b16 %v2797, %v2789
        %v3430 = vpack.c.b16 %v2798, %v2790
        %v3431 = vpack.c.b16 %v2799, %v2791
        %v3432 = vpack.c.b16 %v2800, %v2792
        %v3433 = vpack.c.b16 %v2801, %v2793
        %v3434 = vpack.c.b16 %v2810, %v2802
        %v3435 = vpack.c.b16 %v2811, %v2803
        %v3436 = vpack.c.b16 %v2812, %v2804
        %v3437 = vpack.c.b16 %v2813, %v2805
        %v3438 = vpack.c.b16 %v2814, %v2806
        %v3439 = vpack.c.b16 %v2815, %v2807
        %v3440 = vpack.c.b16 %v2816, %v2808
        %v3441 = vpack.c.b16 %v2817, %v2809
        %v3442 = vpack.c.b16 %v2826, %v2818
        %v3443 = vpack.c.b16 %v2827, %v2819
        %v3444 = vpack.c.b16 %v2828, %v2820
        %v3445 = vpack.c.b16 %v2829, %v2821
        %v3446 = vpack.c.b16 %v2830, %v2822
        %v3447 = vpack.c.b16 %v2831, %v2823
        %v3448 = vpack.c.b16 %v2832, %v2824
        %v3449 = vpack.c.b16 %v2833, %v2825
        %v3450 = vpack.c.b16 %v2842, %v2834
        %v3451 = vpack.c.b16 %v2843, %v2835
        %v3452 = vpack.c.b16 %v2844, %v2836
        %v3453 = vpack.c.b16 %v2845, %v2837
        %v3454 = vpack.c.b16 %v2846, %v2838
        %v3455 = vpack.c.b16 %v2847, %v2839
        %v3456 = vpack.c.b16 %v2848, %v2840
        %v3457 = vpack.c.b16 %v2849, %v2841
        %v3458 = vpack.c.b16 %v2858, %v2850
        %v3459 = vpack.c.b16 %v2859, %v2851
        %v3460 = vpack.c.b16 %v2860, %v2852
        %v3461 = vpack.c.b16 %v2861, %v2853
        %v3462 = vpack.c.b16 %v2862, %v2854
        %v3463 = vpack.c.b16 %v2863, %v2855
        %v3464 = vpack.c.b16 %v2864, %v2856
        %v3465 = vpack.c.b16 %v2865, %v2857
        %v3466 = vpack.c.b16 %v2874, %v2866
        %v3467 = vpack.c.b16 %v2875, %v2867
        %v3468 = vpack.c.b16 %v2876, %v2868
        %v3469 = vpack.c.b16 %v2877, %v2869
        %v3470 = vpack.c.b16 %v2878, %v2870
        %v3471 = vpack.c.b16 %v2879, %v2871
        %v3472 = vpack.c.b16 %v2880, %v2872
        %v3473 = vpack.c.b16 %v2881, %v2873
        %v3474 = vpack.c.b16 %v2890, %v2882
        %v3475 = vpack.c.b16 %v2891, %v2883
        %v3476 = vpack.c.b16 %v2892, %v2884
        %v3477 = vpack.c.b16 %v2893, %v2885
        %v3478 = vpack.c.b16 %v2894, %v2886
        %v3479 = vpack.c.b16 %v2895, %v2887
        %v3480 = vpack.c.b16 %v2896, %v2888
        %v3481 = vpack.c.b16 %v2897, %v2889
        %v3482 = vpack.c.b16 %v2906, %v2898
        %v3483 = vpack.c.b16 %v2907, %v2899
        %v3484 = vpack.c.b16 %v2908, %v2900
        %v3485 = vpack.c.b16 %v2909, %v2901
        %v3486 = vpack.c.b16 %v2910, %v2902
        %v3487 = vpack.c.b16 %v2911, %v2903
        %v3488 = vpack.c.b16 %v2912, %v2904
        %v3489 = vpack.c.b16 %v2913, %v2905
        %v3490 = vpack.c.b16 %v2922, %v2914
        %v3491 = vpack.c.b16 %v2923, %v2915
        %v3492 = vpack.c.b16 %v2924, %v2916
        %v3493 = vpack.c.b16 %v2925, %v2917
        %v3494 = vpack.c.b16 %v2926, %v2918
        %v3495 = vpack.c.b16 %v2927, %v2919
        %v3496 = vpack.c.b16 %v2928, %v2920
        %v3497 = vpack.c.b16 %v2929, %v2921
        %v3498 = vpack.c.b16 %v2938, %v2930
        %v3499 = vpack.c.b16 %v2939, %v2931
        %v3500 = vpack.c.b16 %v2940, %v2932
        %v3501 = vpack.c.b16 %v2941, %v2933
        %v3502 = vpack.c.b16 %v2942, %v2934
        %v3503 = vpack.c.b16 %v2943, %v2935
        %v3504 = vpack.c.b16 %v2944, %v2936
        %v3505 = vpack.c.b16 %v2945, %v2937
        %v3506 = vpack.c.b16 %v2954, %v2946
        %v3507 = vpack.c.b16 %v2955, %v2947
        %v3508 = vpack.c.b16 %v2956, %v2948
        %v3509 = vpack.c.b16 %v2957, %v2949
        %v3510 = vpack.c.b16 %v2958, %v2950
        %v3511 = vpack.c.b16 %v2959, %v2951
        %v3512 = vpack.c.b16 %v2960, %v2952
        %v3513 = vpack.c.b16 %v2961, %v2953
        %v3514 = vpack.c.b16 %v2970, %v2962
        %v3515 = vpack.c.b16 %v2971, %v2963
        %v3516 = vpack.c.b16 %v2972, %v2964
        %v3517 = vpack.c.b16 %v2973, %v2965
        %v3518 = vpack.c.b16 %v2974, %v2966
        %v3519 = vpack.c.b16 %v2975, %v2967
        %v3520 = vpack.c.b16 %v2976, %v2968
        %v3521 = vpack.c.b16 %v2977, %v2969
        %v3522 = vpack.c.b16 %v2986, %v2978
        %v3523 = vpack.c.b16 %v2987, %v2979
        %v3524 = vpack.c.b16 %v2988, %v2980
        %v3525 = vpack.c.b16 %v2989, %v2981
        %v3526 = vpack.c.b16 %v2990, %v2982
        %v3527 = vpack.c.b16 %v2991, %v2983
        %v3528 = vpack.c.b16 %v2992, %v2984
        %v3529 = vpack.c.b16 %v2993, %v2985
        %v3530 = vpack.c.b16 %v3002, %v2994
        %v3531 = vpack.c.b16 %v3003, %v2995
        %v3532 = vpack.c.b16 %v3004, %v2996
        %v3533 = vpack.c.b16 %v3005, %v2997
        %v3534 = vpack.c.b16 %v3006, %v2998
        %v3535 = vpack.c.b16 %v3007, %v2999
        %v3536 = vpack.c.b16 %v3008, %v3000
        %v3537 = vpack.c.b16 %v3009, %v3001
        %v3538 = vpack.c.b16 %v3018, %v3010
        %v3539 = vpack.c.b16 %v3019, %v3011
        %v3540 = vpack.c.b16 %v3020, %v3012
        %v3541 = vpack.c.b16 %v3021, %v3013
        %v3542 = vpack.c.b16 %v3022, %v3014
        %v3543 = vpack.c.b16 %v3023, %v3015
        %v3544 = vpack.c.b16 %v3024, %v3016
        %v3545 = vpack.c.b16 %v3025, %v3017
        %v3546 = vpack.c.b16 %v3034, %v3026
        %v3547 = vpack.c.b16 %v3035, %v3027
        %v3548 = vpack.c.b16 %v3036, %v3028
        %v3549 = vpack.c.b16 %v3037, %v3029
        %v3550 = vpack.c.b16 %v3038, %v3030
        %v3551 = vpack.c.b16 %v3039, %v3031
        %v3552 = vpack.c.b16 %v3040, %v3032
        %v3553 = vpack.c.b16 %v3041, %v3033
        %4066 = vmatpush.bf16.msra.mxu0 %v3098
        %4067 = vmatpush.bf16.msra.mxu0 %v3090
        %4068 = vmatpush.bf16.msra.mxu0 %v3082
        %4069 = vmatpush.bf16.msra.mxu0 %v3074
        %4070 = vmatpush.bf16.msra.mxu0 %v3066
        %4071 = vmatpush.bf16.msra.mxu0 %v3058
        %4072 = vmatpush.bf16.msra.mxu0 %v3050
        %4073 = vmatpush.bf16.msra.mxu0 %v3042
        %4074 = vmatmul.bf16.gmra.mxu0 %v968
        %v4075 = vpop.f32.mrf.mxu0
        %v4076 = vadd.f32 %v1490, %v4075
        %v4077 = vpop.f32.mrf.mxu0
        %4078 = vdwg.mxu0
        %4079 = vmatpush.bf16.msra.mxu0 %v3162
        %4080 = vmatpush.bf16.msra.mxu0 %v3154
        %4081 = vmatpush.bf16.msra.mxu0 %v3146
        %4082 = vmatpush.bf16.msra.mxu0 %v3138
        %4083 = vmatpush.bf16.msra.mxu0 %v3130
        %4084 = vmatpush.bf16.msra.mxu0 %v3122
        %4085 = vmatpush.bf16.msra.mxu0 %v3114
        %4086 = vmatpush.bf16.msra.mxu0 %v3106
        %4087 = vmatmul.bf16.gmra.mxu0 %v969
        %v4088 = vpop.f32.mrf.mxu0
        %v4089 = vadd.f32 %v4076, %v4088
        %v4090 = vpop.f32.mrf.mxu0
        %4091 = vdwg.mxu0
        %4092 = vmatpush.bf16.msra.mxu0 %v3226
        %4093 = vmatpush.bf16.msra.mxu0 %v3218
        %4094 = vmatpush.bf16.msra.mxu0 %v3210
        %4095 = vmatpush.bf16.msra.mxu0 %v3202
        %4096 = vmatpush.bf16.msra.mxu0 %v3194
        %4097 = vmatpush.bf16.msra.mxu0 %v3186
        %4098 = vmatpush.bf16.msra.mxu0 %v3178
        %4099 = vmatpush.bf16.msra.mxu0 %v3170
        %4100 = vmatmul.bf16.gmra.mxu0 %v970
        %v4101 = vpop.f32.mrf.mxu0
        %v4102 = vadd.f32 %v4089, %v4101
        %v4103 = vpop.f32.mrf.mxu0
        %4104 = vdwg.mxu0
        %4105 = vmatpush.bf16.msra.mxu0 %v3290
        %4106 = vmatpush.bf16.msra.mxu0 %v3282
        %4107 = vmatpush.bf16.msra.mxu0 %v3274
        %4108 = vmatpush.bf16.msra.mxu0 %v3266
        %4109 = vmatpush.bf16.msra.mxu0 %v3258
        %4110 = vmatpush.bf16.msra.mxu0 %v3250
        %4111 = vmatpush.bf16.msra.mxu0 %v3242
        %4112 = vmatpush.bf16.msra.mxu0 %v3234
        %4113 = vmatmul.bf16.gmra.mxu0 %v971
        %v4114 = vpop.f32.mrf.mxu0
        %v4115 = vadd.f32 %v4102, %v4114
        %v4116 = vpop.f32.mrf.mxu0
        %4117 = vdwg.mxu0
        %4118 = vmatpush.bf16.msra.mxu0 %v3354
        %4119 = vmatpush.bf16.msra.mxu0 %v3346
        %4120 = vmatpush.bf16.msra.mxu0 %v3338
        %4121 = vmatpush.bf16.msra.mxu0 %v3330
        %4122 = vmatpush.bf16.msra.mxu0 %v3322
        %4123 = vmatpush.bf16.msra.mxu0 %v3314
        %4124 = vmatpush.bf16.msra.mxu0 %v3306
        %4125 = vmatpush.bf16.msra.mxu0 %v3298
        %4126 = vmatmul.bf16.gmra.mxu0 %v972
        %v4127 = vpop.f32.mrf.mxu0
        %v4128 = vadd.f32 %v4115, %v4127
        %v4129 = vpop.f32.mrf.mxu0
        %4130 = vdwg.mxu0
        %4131 = vmatpush.bf16.msra.mxu0 %v3418
        %4132 = vmatpush.bf16.msra.mxu0 %v3410
        %4133 = vmatpush.bf16.msra.mxu0 %v3402
        %4134 = vmatpush.bf16.msra.mxu0 %v3394
        %4135 = vmatpush.bf16.msra.mxu0 %v3386
        %4136 = vmatpush.bf16.msra.mxu0 %v3378
        %4137 = vmatpush.bf16.msra.mxu0 %v3370
        %4138 = vmatpush.bf16.msra.mxu0 %v3362
        %4139 = vmatmul.bf16.gmra.mxu0 %v973
        %v4140 = vpop.f32.mrf.mxu0
        %v4141 = vadd.f32 %v4128, %v4140
        %v4142 = vpop.f32.mrf.mxu0
        %4143 = vdwg.mxu0
        %4144 = vmatpush.bf16.msra.mxu0 %v3482
        %4145 = vmatpush.bf16.msra.mxu0 %v3474
        %4146 = vmatpush.bf16.msra.mxu0 %v3466
        %4147 = vmatpush.bf16.msra.mxu0 %v3458
        %4148 = vmatpush.bf16.msra.mxu0 %v3450
        %4149 = vmatpush.bf16.msra.mxu0 %v3442
        %4150 = vmatpush.bf16.msra.mxu0 %v3434
        %4151 = vmatpush.bf16.msra.mxu0 %v3426
        %4152 = vmatmul.bf16.gmra.mxu0 %v974
        %v4153 = vpop.f32.mrf.mxu0
        %v4154 = vadd.f32 %v4141, %v4153
        %v4155 = vpop.f32.mrf.mxu0
        %4156 = vdwg.mxu0
        %4157 = vmatpush.bf16.msra.mxu0 %v3546
        %4158 = vmatpush.bf16.msra.mxu0 %v3538
        %4159 = vmatpush.bf16.msra.mxu0 %v3530
        %4160 = vmatpush.bf16.msra.mxu0 %v3522
        %4161 = vmatpush.bf16.msra.mxu0 %v3514
        %4162 = vmatpush.bf16.msra.mxu0 %v3506
        %4163 = vmatpush.bf16.msra.mxu0 %v3498
        %4164 = vmatpush.bf16.msra.mxu0 %v3490
        %4165 = vmatmul.bf16.gmra.mxu0 %v975
        %v4166 = vpop.f32.mrf.mxu0
        %v4167 = vadd.f32 %v4154, %v4166
        %v4168 = vpop.f32.mrf.mxu0
        %4169 = vdwg.mxu0
        %4170 = vmatpush.bf16.msra.mxu0 %v3099
        %4171 = vmatpush.bf16.msra.mxu0 %v3091
        %4172 = vmatpush.bf16.msra.mxu0 %v3083
        %4173 = vmatpush.bf16.msra.mxu0 %v3075
        %4174 = vmatpush.bf16.msra.mxu0 %v3067
        %4175 = vmatpush.bf16.msra.mxu0 %v3059
        %4176 = vmatpush.bf16.msra.mxu0 %v3051
        %4177 = vmatpush.bf16.msra.mxu0 %v3043
        %4178 = vmatmul.bf16.gmra.mxu0 %v968
        %v4179 = vpop.f32.mrf.mxu0
        %v4180 = vadd.f32 %v1491, %v4179
        %v4181 = vpop.f32.mrf.mxu0
        %4182 = vdwg.mxu0
        %4183 = vmatpush.bf16.msra.mxu0 %v3163
        %4184 = vmatpush.bf16.msra.mxu0 %v3155
        %4185 = vmatpush.bf16.msra.mxu0 %v3147
        %4186 = vmatpush.bf16.msra.mxu0 %v3139
        %4187 = vmatpush.bf16.msra.mxu0 %v3131
        %4188 = vmatpush.bf16.msra.mxu0 %v3123
        %4189 = vmatpush.bf16.msra.mxu0 %v3115
        %4190 = vmatpush.bf16.msra.mxu0 %v3107
        %4191 = vmatmul.bf16.gmra.mxu0 %v969
        %v4192 = vpop.f32.mrf.mxu0
        %v4193 = vadd.f32 %v4180, %v4192
        %v4194 = vpop.f32.mrf.mxu0
        %4195 = vdwg.mxu0
        %4196 = vmatpush.bf16.msra.mxu0 %v3227
        %4197 = vmatpush.bf16.msra.mxu0 %v3219
        %4198 = vmatpush.bf16.msra.mxu0 %v3211
        %4199 = vmatpush.bf16.msra.mxu0 %v3203
        %4200 = vmatpush.bf16.msra.mxu0 %v3195
        %4201 = vmatpush.bf16.msra.mxu0 %v3187
        %4202 = vmatpush.bf16.msra.mxu0 %v3179
        %4203 = vmatpush.bf16.msra.mxu0 %v3171
        %4204 = vmatmul.bf16.gmra.mxu0 %v970
        %v4205 = vpop.f32.mrf.mxu0
        %v4206 = vadd.f32 %v4193, %v4205
        %v4207 = vpop.f32.mrf.mxu0
        %4208 = vdwg.mxu0
        %4209 = vmatpush.bf16.msra.mxu0 %v3291
        %4210 = vmatpush.bf16.msra.mxu0 %v3283
        %4211 = vmatpush.bf16.msra.mxu0 %v3275
        %4212 = vmatpush.bf16.msra.mxu0 %v3267
        %4213 = vmatpush.bf16.msra.mxu0 %v3259
        %4214 = vmatpush.bf16.msra.mxu0 %v3251
        %4215 = vmatpush.bf16.msra.mxu0 %v3243
        %4216 = vmatpush.bf16.msra.mxu0 %v3235
        %4217 = vmatmul.bf16.gmra.mxu0 %v971
        %v4218 = vpop.f32.mrf.mxu0
        %v4219 = vadd.f32 %v4206, %v4218
        %v4220 = vpop.f32.mrf.mxu0
        %4221 = vdwg.mxu0
        %4222 = vmatpush.bf16.msra.mxu0 %v3355
        %4223 = vmatpush.bf16.msra.mxu0 %v3347
        %4224 = vmatpush.bf16.msra.mxu0 %v3339
        %4225 = vmatpush.bf16.msra.mxu0 %v3331
        %4226 = vmatpush.bf16.msra.mxu0 %v3323
        %4227 = vmatpush.bf16.msra.mxu0 %v3315
        %4228 = vmatpush.bf16.msra.mxu0 %v3307
        %4229 = vmatpush.bf16.msra.mxu0 %v3299
        %4230 = vmatmul.bf16.gmra.mxu0 %v972
        %v4231 = vpop.f32.mrf.mxu0
        %v4232 = vadd.f32 %v4219, %v4231
        %v4233 = vpop.f32.mrf.mxu0
        %4234 = vdwg.mxu0
        %4235 = vmatpush.bf16.msra.mxu0 %v3419
        %4236 = vmatpush.bf16.msra.mxu0 %v3411
        %4237 = vmatpush.bf16.msra.mxu0 %v3403
        %4238 = vmatpush.bf16.msra.mxu0 %v3395
        %4239 = vmatpush.bf16.msra.mxu0 %v3387
        %4240 = vmatpush.bf16.msra.mxu0 %v3379
        %4241 = vmatpush.bf16.msra.mxu0 %v3371
        %4242 = vmatpush.bf16.msra.mxu0 %v3363
        %4243 = vmatmul.bf16.gmra.mxu0 %v973
        %v4244 = vpop.f32.mrf.mxu0
        %v4245 = vadd.f32 %v4232, %v4244
        %v4246 = vpop.f32.mrf.mxu0
        %4247 = vdwg.mxu0
        %4248 = vmatpush.bf16.msra.mxu0 %v3483
        %4249 = vmatpush.bf16.msra.mxu0 %v3475
        %4250 = vmatpush.bf16.msra.mxu0 %v3467
        %4251 = vmatpush.bf16.msra.mxu0 %v3459
        %4252 = vmatpush.bf16.msra.mxu0 %v3451
        %4253 = vmatpush.bf16.msra.mxu0 %v3443
        %4254 = vmatpush.bf16.msra.mxu0 %v3435
        %4255 = vmatpush.bf16.msra.mxu0 %v3427
        %4256 = vmatmul.bf16.gmra.mxu0 %v974
        %v4257 = vpop.f32.mrf.mxu0
        %v4258 = vadd.f32 %v4245, %v4257
        %v4259 = vpop.f32.mrf.mxu0
        %4260 = vdwg.mxu0
        %4261 = vmatpush.bf16.msra.mxu0 %v3547
        %4262 = vmatpush.bf16.msra.mxu0 %v3539
        %4263 = vmatpush.bf16.msra.mxu0 %v3531
        %4264 = vmatpush.bf16.msra.mxu0 %v3523
        %4265 = vmatpush.bf16.msra.mxu0 %v3515
        %4266 = vmatpush.bf16.msra.mxu0 %v3507
        %4267 = vmatpush.bf16.msra.mxu0 %v3499
        %4268 = vmatpush.bf16.msra.mxu0 %v3491
        %4269 = vmatmul.bf16.gmra.mxu0 %v975
        %v4270 = vpop.f32.mrf.mxu0
        %v4271 = vadd.f32 %v4258, %v4270
        %v4272 = vpop.f32.mrf.mxu0
        %4273 = vdwg.mxu0
        %4274 = vmatpush.bf16.msra.mxu0 %v3100
        %4275 = vmatpush.bf16.msra.mxu0 %v3092
        %4276 = vmatpush.bf16.msra.mxu0 %v3084
        %4277 = vmatpush.bf16.msra.mxu0 %v3076
        %4278 = vmatpush.bf16.msra.mxu0 %v3068
        %4279 = vmatpush.bf16.msra.mxu0 %v3060
        %4280 = vmatpush.bf16.msra.mxu0 %v3052
        %4281 = vmatpush.bf16.msra.mxu0 %v3044
        %4282 = vmatmul.bf16.gmra.mxu0 %v968
        %v4283 = vpop.f32.mrf.mxu0
        %v4284 = vadd.f32 %v1492, %v4283
        %v4285 = vpop.f32.mrf.mxu0
        %4286 = vdwg.mxu0
        %4287 = vmatpush.bf16.msra.mxu0 %v3164
        %4288 = vmatpush.bf16.msra.mxu0 %v3156
        %4289 = vmatpush.bf16.msra.mxu0 %v3148
        %4290 = vmatpush.bf16.msra.mxu0 %v3140
        %4291 = vmatpush.bf16.msra.mxu0 %v3132
        %4292 = vmatpush.bf16.msra.mxu0 %v3124
        %4293 = vmatpush.bf16.msra.mxu0 %v3116
        %4294 = vmatpush.bf16.msra.mxu0 %v3108
        %4295 = vmatmul.bf16.gmra.mxu0 %v969
        %v4296 = vpop.f32.mrf.mxu0
        %v4297 = vadd.f32 %v4284, %v4296
        %v4298 = vpop.f32.mrf.mxu0
        %4299 = vdwg.mxu0
        %4300 = vmatpush.bf16.msra.mxu0 %v3228
        %4301 = vmatpush.bf16.msra.mxu0 %v3220
        %4302 = vmatpush.bf16.msra.mxu0 %v3212
        %4303 = vmatpush.bf16.msra.mxu0 %v3204
        %4304 = vmatpush.bf16.msra.mxu0 %v3196
        %4305 = vmatpush.bf16.msra.mxu0 %v3188
        %4306 = vmatpush.bf16.msra.mxu0 %v3180
        %4307 = vmatpush.bf16.msra.mxu0 %v3172
        %4308 = vmatmul.bf16.gmra.mxu0 %v970
        %v4309 = vpop.f32.mrf.mxu0
        %v4310 = vadd.f32 %v4297, %v4309
        %v4311 = vpop.f32.mrf.mxu0
        %4312 = vdwg.mxu0
        %4313 = vmatpush.bf16.msra.mxu0 %v3292
        %4314 = vmatpush.bf16.msra.mxu0 %v3284
        %4315 = vmatpush.bf16.msra.mxu0 %v3276
        %4316 = vmatpush.bf16.msra.mxu0 %v3268
        %4317 = vmatpush.bf16.msra.mxu0 %v3260
        %4318 = vmatpush.bf16.msra.mxu0 %v3252
        %4319 = vmatpush.bf16.msra.mxu0 %v3244
        %4320 = vmatpush.bf16.msra.mxu0 %v3236
        %4321 = vmatmul.bf16.gmra.mxu0 %v971
        %v4322 = vpop.f32.mrf.mxu0
        %v4323 = vadd.f32 %v4310, %v4322
        %v4324 = vpop.f32.mrf.mxu0
        %4325 = vdwg.mxu0
        %4326 = vmatpush.bf16.msra.mxu0 %v3356
        %4327 = vmatpush.bf16.msra.mxu0 %v3348
        %4328 = vmatpush.bf16.msra.mxu0 %v3340
        %4329 = vmatpush.bf16.msra.mxu0 %v3332
        %4330 = vmatpush.bf16.msra.mxu0 %v3324
        %4331 = vmatpush.bf16.msra.mxu0 %v3316
        %4332 = vmatpush.bf16.msra.mxu0 %v3308
        %4333 = vmatpush.bf16.msra.mxu0 %v3300
        %4334 = vmatmul.bf16.gmra.mxu0 %v972
        %v4335 = vpop.f32.mrf.mxu0
        %v4336 = vadd.f32 %v4323, %v4335
        %v4337 = vpop.f32.mrf.mxu0
        %4338 = vdwg.mxu0
        %4339 = vmatpush.bf16.msra.mxu0 %v3420
        %4340 = vmatpush.bf16.msra.mxu0 %v3412
        %4341 = vmatpush.bf16.msra.mxu0 %v3404
        %4342 = vmatpush.bf16.msra.mxu0 %v3396
        %4343 = vmatpush.bf16.msra.mxu0 %v3388
        %4344 = vmatpush.bf16.msra.mxu0 %v3380
        %4345 = vmatpush.bf16.msra.mxu0 %v3372
        %4346 = vmatpush.bf16.msra.mxu0 %v3364
        %4347 = vmatmul.bf16.gmra.mxu0 %v973
        %v4348 = vpop.f32.mrf.mxu0
        %v4349 = vadd.f32 %v4336, %v4348
        %v4350 = vpop.f32.mrf.mxu0
        %4351 = vdwg.mxu0
        %4352 = vmatpush.bf16.msra.mxu0 %v3484
        %4353 = vmatpush.bf16.msra.mxu0 %v3476
        %4354 = vmatpush.bf16.msra.mxu0 %v3468
        %4355 = vmatpush.bf16.msra.mxu0 %v3460
        %4356 = vmatpush.bf16.msra.mxu0 %v3452
        %4357 = vmatpush.bf16.msra.mxu0 %v3444
        %4358 = vmatpush.bf16.msra.mxu0 %v3436
        %4359 = vmatpush.bf16.msra.mxu0 %v3428
        %4360 = vmatmul.bf16.gmra.mxu0 %v974
        %v4361 = vpop.f32.mrf.mxu0
        %v4362 = vadd.f32 %v4349, %v4361
        %v4363 = vpop.f32.mrf.mxu0
        %4364 = vdwg.mxu0
        %4365 = vmatpush.bf16.msra.mxu0 %v3548
        %4366 = vmatpush.bf16.msra.mxu0 %v3540
        %4367 = vmatpush.bf16.msra.mxu0 %v3532
        %4368 = vmatpush.bf16.msra.mxu0 %v3524
        %4369 = vmatpush.bf16.msra.mxu0 %v3516
        %4370 = vmatpush.bf16.msra.mxu0 %v3508
        %4371 = vmatpush.bf16.msra.mxu0 %v3500
        %4372 = vmatpush.bf16.msra.mxu0 %v3492
        %4373 = vmatmul.bf16.gmra.mxu0 %v975
        %v4374 = vpop.f32.mrf.mxu0
        %v4375 = vadd.f32 %v4362, %v4374
        %v4376 = vpop.f32.mrf.mxu0
        %4377 = vdwg.mxu0
        %4378 = vmatpush.bf16.msra.mxu0 %v3101
        %4379 = vmatpush.bf16.msra.mxu0 %v3093
        %4380 = vmatpush.bf16.msra.mxu0 %v3085
        %4381 = vmatpush.bf16.msra.mxu0 %v3077
        %4382 = vmatpush.bf16.msra.mxu0 %v3069
        %4383 = vmatpush.bf16.msra.mxu0 %v3061
        %4384 = vmatpush.bf16.msra.mxu0 %v3053
        %4385 = vmatpush.bf16.msra.mxu0 %v3045
        %4386 = vmatmul.bf16.gmra.mxu0 %v968
        %v4387 = vpop.f32.mrf.mxu0
        %v4388 = vadd.f32 %v1493, %v4387
        %v4389 = vpop.f32.mrf.mxu0
        %4390 = vdwg.mxu0
        %4391 = vmatpush.bf16.msra.mxu0 %v3165
        %4392 = vmatpush.bf16.msra.mxu0 %v3157
        %4393 = vmatpush.bf16.msra.mxu0 %v3149
        %4394 = vmatpush.bf16.msra.mxu0 %v3141
        %4395 = vmatpush.bf16.msra.mxu0 %v3133
        %4396 = vmatpush.bf16.msra.mxu0 %v3125
        %4397 = vmatpush.bf16.msra.mxu0 %v3117
        %4398 = vmatpush.bf16.msra.mxu0 %v3109
        %4399 = vmatmul.bf16.gmra.mxu0 %v969
        %v4400 = vpop.f32.mrf.mxu0
        %v4401 = vadd.f32 %v4388, %v4400
        %v4402 = vpop.f32.mrf.mxu0
        %4403 = vdwg.mxu0
        %4404 = vmatpush.bf16.msra.mxu0 %v3229
        %4405 = vmatpush.bf16.msra.mxu0 %v3221
        %4406 = vmatpush.bf16.msra.mxu0 %v3213
        %4407 = vmatpush.bf16.msra.mxu0 %v3205
        %4408 = vmatpush.bf16.msra.mxu0 %v3197
        %4409 = vmatpush.bf16.msra.mxu0 %v3189
        %4410 = vmatpush.bf16.msra.mxu0 %v3181
        %4411 = vmatpush.bf16.msra.mxu0 %v3173
        %4412 = vmatmul.bf16.gmra.mxu0 %v970
        %v4413 = vpop.f32.mrf.mxu0
        %v4414 = vadd.f32 %v4401, %v4413
        %v4415 = vpop.f32.mrf.mxu0
        %4416 = vdwg.mxu0
        %4417 = vmatpush.bf16.msra.mxu0 %v3293
        %4418 = vmatpush.bf16.msra.mxu0 %v3285
        %4419 = vmatpush.bf16.msra.mxu0 %v3277
        %4420 = vmatpush.bf16.msra.mxu0 %v3269
        %4421 = vmatpush.bf16.msra.mxu0 %v3261
        %4422 = vmatpush.bf16.msra.mxu0 %v3253
        %4423 = vmatpush.bf16.msra.mxu0 %v3245
        %4424 = vmatpush.bf16.msra.mxu0 %v3237
        %4425 = vmatmul.bf16.gmra.mxu0 %v971
        %v4426 = vpop.f32.mrf.mxu0
        %v4427 = vadd.f32 %v4414, %v4426
        %v4428 = vpop.f32.mrf.mxu0
        %4429 = vdwg.mxu0
        %4430 = vmatpush.bf16.msra.mxu0 %v3357
        %4431 = vmatpush.bf16.msra.mxu0 %v3349
        %4432 = vmatpush.bf16.msra.mxu0 %v3341
        %4433 = vmatpush.bf16.msra.mxu0 %v3333
        %4434 = vmatpush.bf16.msra.mxu0 %v3325
        %4435 = vmatpush.bf16.msra.mxu0 %v3317
        %4436 = vmatpush.bf16.msra.mxu0 %v3309
        %4437 = vmatpush.bf16.msra.mxu0 %v3301
        %4438 = vmatmul.bf16.gmra.mxu0 %v972
        %v4439 = vpop.f32.mrf.mxu0
        %v4440 = vadd.f32 %v4427, %v4439
        %v4441 = vpop.f32.mrf.mxu0
        %4442 = vdwg.mxu0
        %4443 = vmatpush.bf16.msra.mxu0 %v3421
        %4444 = vmatpush.bf16.msra.mxu0 %v3413
        %4445 = vmatpush.bf16.msra.mxu0 %v3405
        %4446 = vmatpush.bf16.msra.mxu0 %v3397
        %4447 = vmatpush.bf16.msra.mxu0 %v3389
        %4448 = vmatpush.bf16.msra.mxu0 %v3381
        %4449 = vmatpush.bf16.msra.mxu0 %v3373
        %4450 = vmatpush.bf16.msra.mxu0 %v3365
        %4451 = vmatmul.bf16.gmra.mxu0 %v973
        %v4452 = vpop.f32.mrf.mxu0
        %v4453 = vadd.f32 %v4440, %v4452
        %v4454 = vpop.f32.mrf.mxu0
        %4455 = vdwg.mxu0
        %4456 = vmatpush.bf16.msra.mxu0 %v3485
        %4457 = vmatpush.bf16.msra.mxu0 %v3477
        %4458 = vmatpush.bf16.msra.mxu0 %v3469
        %4459 = vmatpush.bf16.msra.mxu0 %v3461
        %4460 = vmatpush.bf16.msra.mxu0 %v3453
        %4461 = vmatpush.bf16.msra.mxu0 %v3445
        %4462 = vmatpush.bf16.msra.mxu0 %v3437
        %4463 = vmatpush.bf16.msra.mxu0 %v3429
        %4464 = vmatmul.bf16.gmra.mxu0 %v974
        %v4465 = vpop.f32.mrf.mxu0
        %v4466 = vadd.f32 %v4453, %v4465
        %v4467 = vpop.f32.mrf.mxu0
        %4468 = vdwg.mxu0
        %4469 = vmatpush.bf16.msra.mxu0 %v3549
        %4470 = vmatpush.bf16.msra.mxu0 %v3541
        %4471 = vmatpush.bf16.msra.mxu0 %v3533
        %4472 = vmatpush.bf16.msra.mxu0 %v3525
        %4473 = vmatpush.bf16.msra.mxu0 %v3517
        %4474 = vmatpush.bf16.msra.mxu0 %v3509
        %4475 = vmatpush.bf16.msra.mxu0 %v3501
        %4476 = vmatpush.bf16.msra.mxu0 %v3493
        %4477 = vmatmul.bf16.gmra.mxu0 %v975
        %v4478 = vpop.f32.mrf.mxu0
        %v4479 = vadd.f32 %v4466, %v4478
        %v4480 = vpop.f32.mrf.mxu0
        %4481 = vdwg.mxu0
        %4482 = vmatpush.bf16.msra.mxu0 %v3102
        %4483 = vmatpush.bf16.msra.mxu0 %v3094
        %4484 = vmatpush.bf16.msra.mxu0 %v3086
        %4485 = vmatpush.bf16.msra.mxu0 %v3078
        %4486 = vmatpush.bf16.msra.mxu0 %v3070
        %4487 = vmatpush.bf16.msra.mxu0 %v3062
        %4488 = vmatpush.bf16.msra.mxu0 %v3054
        %4489 = vmatpush.bf16.msra.mxu0 %v3046
        %4490 = vmatmul.bf16.gmra.mxu0 %v968
        %v4491 = vpop.f32.mrf.mxu0
        %v4492 = vadd.f32 %v1494, %v4491
        %v4493 = vpop.f32.mrf.mxu0
        %4494 = vdwg.mxu0
        %4495 = vmatpush.bf16.msra.mxu0 %v3166
        %4496 = vmatpush.bf16.msra.mxu0 %v3158
        %4497 = vmatpush.bf16.msra.mxu0 %v3150
        %4498 = vmatpush.bf16.msra.mxu0 %v3142
        %4499 = vmatpush.bf16.msra.mxu0 %v3134
        %4500 = vmatpush.bf16.msra.mxu0 %v3126
        %4501 = vmatpush.bf16.msra.mxu0 %v3118
        %4502 = vmatpush.bf16.msra.mxu0 %v3110
        %4503 = vmatmul.bf16.gmra.mxu0 %v969
        %v4504 = vpop.f32.mrf.mxu0
        %v4505 = vadd.f32 %v4492, %v4504
        %v4506 = vpop.f32.mrf.mxu0
        %4507 = vdwg.mxu0
        %4508 = vmatpush.bf16.msra.mxu0 %v3230
        %4509 = vmatpush.bf16.msra.mxu0 %v3222
        %4510 = vmatpush.bf16.msra.mxu0 %v3214
        %4511 = vmatpush.bf16.msra.mxu0 %v3206
        %4512 = vmatpush.bf16.msra.mxu0 %v3198
        %4513 = vmatpush.bf16.msra.mxu0 %v3190
        %4514 = vmatpush.bf16.msra.mxu0 %v3182
        %4515 = vmatpush.bf16.msra.mxu0 %v3174
        %4516 = vmatmul.bf16.gmra.mxu0 %v970
        %v4517 = vpop.f32.mrf.mxu0
        %v4518 = vadd.f32 %v4505, %v4517
        %v4519 = vpop.f32.mrf.mxu0
        %4520 = vdwg.mxu0
        %4521 = vmatpush.bf16.msra.mxu0 %v3294
        %4522 = vmatpush.bf16.msra.mxu0 %v3286
        %4523 = vmatpush.bf16.msra.mxu0 %v3278
        %4524 = vmatpush.bf16.msra.mxu0 %v3270
        %4525 = vmatpush.bf16.msra.mxu0 %v3262
        %4526 = vmatpush.bf16.msra.mxu0 %v3254
        %4527 = vmatpush.bf16.msra.mxu0 %v3246
        %4528 = vmatpush.bf16.msra.mxu0 %v3238
        %4529 = vmatmul.bf16.gmra.mxu0 %v971
        %v4530 = vpop.f32.mrf.mxu0
        %v4531 = vadd.f32 %v4518, %v4530
        %v4532 = vpop.f32.mrf.mxu0
        %4533 = vdwg.mxu0
        %4534 = vmatpush.bf16.msra.mxu0 %v3358
        %4535 = vmatpush.bf16.msra.mxu0 %v3350
        %4536 = vmatpush.bf16.msra.mxu0 %v3342
        %4537 = vmatpush.bf16.msra.mxu0 %v3334
        %4538 = vmatpush.bf16.msra.mxu0 %v3326
        %4539 = vmatpush.bf16.msra.mxu0 %v3318
        %4540 = vmatpush.bf16.msra.mxu0 %v3310
        %4541 = vmatpush.bf16.msra.mxu0 %v3302
        %4542 = vmatmul.bf16.gmra.mxu0 %v972
        %v4543 = vpop.f32.mrf.mxu0
        %v4544 = vadd.f32 %v4531, %v4543
        %v4545 = vpop.f32.mrf.mxu0
        %4546 = vdwg.mxu0
        %4547 = vmatpush.bf16.msra.mxu0 %v3422
        %4548 = vmatpush.bf16.msra.mxu0 %v3414
        %4549 = vmatpush.bf16.msra.mxu0 %v3406
        %4550 = vmatpush.bf16.msra.mxu0 %v3398
        %4551 = vmatpush.bf16.msra.mxu0 %v3390
        %4552 = vmatpush.bf16.msra.mxu0 %v3382
        %4553 = vmatpush.bf16.msra.mxu0 %v3374
        %4554 = vmatpush.bf16.msra.mxu0 %v3366
        %4555 = vmatmul.bf16.gmra.mxu0 %v973
        %v4556 = vpop.f32.mrf.mxu0
        %v4557 = vadd.f32 %v4544, %v4556
        %v4558 = vpop.f32.mrf.mxu0
        %4559 = vdwg.mxu0
        %4560 = vmatpush.bf16.msra.mxu0 %v3486
        %4561 = vmatpush.bf16.msra.mxu0 %v3478
        %4562 = vmatpush.bf16.msra.mxu0 %v3470
        %4563 = vmatpush.bf16.msra.mxu0 %v3462
        %4564 = vmatpush.bf16.msra.mxu0 %v3454
        %4565 = vmatpush.bf16.msra.mxu0 %v3446
        %4566 = vmatpush.bf16.msra.mxu0 %v3438
        %4567 = vmatpush.bf16.msra.mxu0 %v3430
        %4568 = vmatmul.bf16.gmra.mxu0 %v974
        %v4569 = vpop.f32.mrf.mxu0
        %v4570 = vadd.f32 %v4557, %v4569
        %v4571 = vpop.f32.mrf.mxu0
        %4572 = vdwg.mxu0
        %4573 = vmatpush.bf16.msra.mxu0 %v3550
        %4574 = vmatpush.bf16.msra.mxu0 %v3542
        %4575 = vmatpush.bf16.msra.mxu0 %v3534
        %4576 = vmatpush.bf16.msra.mxu0 %v3526
        %4577 = vmatpush.bf16.msra.mxu0 %v3518
        %4578 = vmatpush.bf16.msra.mxu0 %v3510
        %4579 = vmatpush.bf16.msra.mxu0 %v3502
        %4580 = vmatpush.bf16.msra.mxu0 %v3494
        %4581 = vmatmul.bf16.gmra.mxu0 %v975
        %v4582 = vpop.f32.mrf.mxu0
        %v4583 = vadd.f32 %v4570, %v4582
        %v4584 = vpop.f32.mrf.mxu0
        %4585 = vdwg.mxu0
        %4586 = vmatpush.bf16.msra.mxu0 %v3103
        %4587 = vmatpush.bf16.msra.mxu0 %v3095
        %4588 = vmatpush.bf16.msra.mxu0 %v3087
        %4589 = vmatpush.bf16.msra.mxu0 %v3079
        %4590 = vmatpush.bf16.msra.mxu0 %v3071
        %4591 = vmatpush.bf16.msra.mxu0 %v3063
        %4592 = vmatpush.bf16.msra.mxu0 %v3055
        %4593 = vmatpush.bf16.msra.mxu0 %v3047
        %4594 = vmatmul.bf16.gmra.mxu0 %v968
        %v4595 = vpop.f32.mrf.mxu0
        %v4596 = vadd.f32 %v1495, %v4595
        %v4597 = vpop.f32.mrf.mxu0
        %4598 = vdwg.mxu0
        %4599 = vmatpush.bf16.msra.mxu0 %v3167
        %4600 = vmatpush.bf16.msra.mxu0 %v3159
        %4601 = vmatpush.bf16.msra.mxu0 %v3151
        %4602 = vmatpush.bf16.msra.mxu0 %v3143
        %4603 = vmatpush.bf16.msra.mxu0 %v3135
        %4604 = vmatpush.bf16.msra.mxu0 %v3127
        %4605 = vmatpush.bf16.msra.mxu0 %v3119
        %4606 = vmatpush.bf16.msra.mxu0 %v3111
        %4607 = vmatmul.bf16.gmra.mxu0 %v969
        %v4608 = vpop.f32.mrf.mxu0
        %v4609 = vadd.f32 %v4596, %v4608
        %v4610 = vpop.f32.mrf.mxu0
        %4611 = vdwg.mxu0
        %4612 = vmatpush.bf16.msra.mxu0 %v3231
        %4613 = vmatpush.bf16.msra.mxu0 %v3223
        %4614 = vmatpush.bf16.msra.mxu0 %v3215
        %4615 = vmatpush.bf16.msra.mxu0 %v3207
        %4616 = vmatpush.bf16.msra.mxu0 %v3199
        %4617 = vmatpush.bf16.msra.mxu0 %v3191
        %4618 = vmatpush.bf16.msra.mxu0 %v3183
        %4619 = vmatpush.bf16.msra.mxu0 %v3175
        %4620 = vmatmul.bf16.gmra.mxu0 %v970
        %v4621 = vpop.f32.mrf.mxu0
        %v4622 = vadd.f32 %v4609, %v4621
        %v4623 = vpop.f32.mrf.mxu0
        %4624 = vdwg.mxu0
        %4625 = vmatpush.bf16.msra.mxu0 %v3295
        %4626 = vmatpush.bf16.msra.mxu0 %v3287
        %4627 = vmatpush.bf16.msra.mxu0 %v3279
        %4628 = vmatpush.bf16.msra.mxu0 %v3271
        %4629 = vmatpush.bf16.msra.mxu0 %v3263
        %4630 = vmatpush.bf16.msra.mxu0 %v3255
        %4631 = vmatpush.bf16.msra.mxu0 %v3247
        %4632 = vmatpush.bf16.msra.mxu0 %v3239
        %4633 = vmatmul.bf16.gmra.mxu0 %v971
        %v4634 = vpop.f32.mrf.mxu0
        %v4635 = vadd.f32 %v4622, %v4634
        %v4636 = vpop.f32.mrf.mxu0
        %4637 = vdwg.mxu0
        %4638 = vmatpush.bf16.msra.mxu0 %v3359
        %4639 = vmatpush.bf16.msra.mxu0 %v3351
        %4640 = vmatpush.bf16.msra.mxu0 %v3343
        %4641 = vmatpush.bf16.msra.mxu0 %v3335
        %4642 = vmatpush.bf16.msra.mxu0 %v3327
        %4643 = vmatpush.bf16.msra.mxu0 %v3319
        %4644 = vmatpush.bf16.msra.mxu0 %v3311
        %4645 = vmatpush.bf16.msra.mxu0 %v3303
        %4646 = vmatmul.bf16.gmra.mxu0 %v972
        %v4647 = vpop.f32.mrf.mxu0
        %v4648 = vadd.f32 %v4635, %v4647
        %v4649 = vpop.f32.mrf.mxu0
        %4650 = vdwg.mxu0
        %4651 = vmatpush.bf16.msra.mxu0 %v3423
        %4652 = vmatpush.bf16.msra.mxu0 %v3415
        %4653 = vmatpush.bf16.msra.mxu0 %v3407
        %4654 = vmatpush.bf16.msra.mxu0 %v3399
        %4655 = vmatpush.bf16.msra.mxu0 %v3391
        %4656 = vmatpush.bf16.msra.mxu0 %v3383
        %4657 = vmatpush.bf16.msra.mxu0 %v3375
        %4658 = vmatpush.bf16.msra.mxu0 %v3367
        %4659 = vmatmul.bf16.gmra.mxu0 %v973
        %v4660 = vpop.f32.mrf.mxu0
        %v4661 = vadd.f32 %v4648, %v4660
        %v4662 = vpop.f32.mrf.mxu0
        %4663 = vdwg.mxu0
        %4664 = vmatpush.bf16.msra.mxu0 %v3487
        %4665 = vmatpush.bf16.msra.mxu0 %v3479
        %4666 = vmatpush.bf16.msra.mxu0 %v3471
        %4667 = vmatpush.bf16.msra.mxu0 %v3463
        %4668 = vmatpush.bf16.msra.mxu0 %v3455
        %4669 = vmatpush.bf16.msra.mxu0 %v3447
        %4670 = vmatpush.bf16.msra.mxu0 %v3439
        %4671 = vmatpush.bf16.msra.mxu0 %v3431
        %4672 = vmatmul.bf16.gmra.mxu0 %v974
        %v4673 = vpop.f32.mrf.mxu0
        %v4674 = vadd.f32 %v4661, %v4673
        %v4675 = vpop.f32.mrf.mxu0
        %4676 = vdwg.mxu0
        %4677 = vmatpush.bf16.msra.mxu0 %v3551
        %4678 = vmatpush.bf16.msra.mxu0 %v3543
        %4679 = vmatpush.bf16.msra.mxu0 %v3535
        %4680 = vmatpush.bf16.msra.mxu0 %v3527
        %4681 = vmatpush.bf16.msra.mxu0 %v3519
        %4682 = vmatpush.bf16.msra.mxu0 %v3511
        %4683 = vmatpush.bf16.msra.mxu0 %v3503
        %4684 = vmatpush.bf16.msra.mxu0 %v3495
        %4685 = vmatmul.bf16.gmra.mxu0 %v975
        %v4686 = vpop.f32.mrf.mxu0
        %v4687 = vadd.f32 %v4674, %v4686
        %v4688 = vpop.f32.mrf.mxu0
        %4689 = vdwg.mxu0
        %4690 = vmatpush.bf16.msra.mxu0 %v3104
        %4691 = vmatpush.bf16.msra.mxu0 %v3096
        %4692 = vmatpush.bf16.msra.mxu0 %v3088
        %4693 = vmatpush.bf16.msra.mxu0 %v3080
        %4694 = vmatpush.bf16.msra.mxu0 %v3072
        %4695 = vmatpush.bf16.msra.mxu0 %v3064
        %4696 = vmatpush.bf16.msra.mxu0 %v3056
        %4697 = vmatpush.bf16.msra.mxu0 %v3048
        %4698 = vmatmul.bf16.gmra.mxu0 %v968
        %v4699 = vpop.f32.mrf.mxu0
        %v4700 = vadd.f32 %v1496, %v4699
        %v4701 = vpop.f32.mrf.mxu0
        %4702 = vdwg.mxu0
        %4703 = vmatpush.bf16.msra.mxu0 %v3168
        %4704 = vmatpush.bf16.msra.mxu0 %v3160
        %4705 = vmatpush.bf16.msra.mxu0 %v3152
        %4706 = vmatpush.bf16.msra.mxu0 %v3144
        %4707 = vmatpush.bf16.msra.mxu0 %v3136
        %4708 = vmatpush.bf16.msra.mxu0 %v3128
        %4709 = vmatpush.bf16.msra.mxu0 %v3120
        %4710 = vmatpush.bf16.msra.mxu0 %v3112
        %4711 = vmatmul.bf16.gmra.mxu0 %v969
        %v4712 = vpop.f32.mrf.mxu0
        %v4713 = vadd.f32 %v4700, %v4712
        %v4714 = vpop.f32.mrf.mxu0
        %4715 = vdwg.mxu0
        %4716 = vmatpush.bf16.msra.mxu0 %v3232
        %4717 = vmatpush.bf16.msra.mxu0 %v3224
        %4718 = vmatpush.bf16.msra.mxu0 %v3216
        %4719 = vmatpush.bf16.msra.mxu0 %v3208
        %4720 = vmatpush.bf16.msra.mxu0 %v3200
        %4721 = vmatpush.bf16.msra.mxu0 %v3192
        %4722 = vmatpush.bf16.msra.mxu0 %v3184
        %4723 = vmatpush.bf16.msra.mxu0 %v3176
        %4724 = vmatmul.bf16.gmra.mxu0 %v970
        %v4725 = vpop.f32.mrf.mxu0
        %v4726 = vadd.f32 %v4713, %v4725
        %v4727 = vpop.f32.mrf.mxu0
        %4728 = vdwg.mxu0
        %4729 = vmatpush.bf16.msra.mxu0 %v3296
        %4730 = vmatpush.bf16.msra.mxu0 %v3288
        %4731 = vmatpush.bf16.msra.mxu0 %v3280
        %4732 = vmatpush.bf16.msra.mxu0 %v3272
        %4733 = vmatpush.bf16.msra.mxu0 %v3264
        %4734 = vmatpush.bf16.msra.mxu0 %v3256
        %4735 = vmatpush.bf16.msra.mxu0 %v3248
        %4736 = vmatpush.bf16.msra.mxu0 %v3240
        %4737 = vmatmul.bf16.gmra.mxu0 %v971
        %v4738 = vpop.f32.mrf.mxu0
        %v4739 = vadd.f32 %v4726, %v4738
        %v4740 = vpop.f32.mrf.mxu0
        %4741 = vdwg.mxu0
        %4742 = vmatpush.bf16.msra.mxu0 %v3360
        %4743 = vmatpush.bf16.msra.mxu0 %v3352
        %4744 = vmatpush.bf16.msra.mxu0 %v3344
        %4745 = vmatpush.bf16.msra.mxu0 %v3336
        %4746 = vmatpush.bf16.msra.mxu0 %v3328
        %4747 = vmatpush.bf16.msra.mxu0 %v3320
        %4748 = vmatpush.bf16.msra.mxu0 %v3312
        %4749 = vmatpush.bf16.msra.mxu0 %v3304
        %4750 = vmatmul.bf16.gmra.mxu0 %v972
        %v4751 = vpop.f32.mrf.mxu0
        %v4752 = vadd.f32 %v4739, %v4751
        %v4753 = vpop.f32.mrf.mxu0
        %4754 = vdwg.mxu0
        %4755 = vmatpush.bf16.msra.mxu0 %v3424
        %4756 = vmatpush.bf16.msra.mxu0 %v3416
        %4757 = vmatpush.bf16.msra.mxu0 %v3408
        %4758 = vmatpush.bf16.msra.mxu0 %v3400
        %4759 = vmatpush.bf16.msra.mxu0 %v3392
        %4760 = vmatpush.bf16.msra.mxu0 %v3384
        %4761 = vmatpush.bf16.msra.mxu0 %v3376
        %4762 = vmatpush.bf16.msra.mxu0 %v3368
        %4763 = vmatmul.bf16.gmra.mxu0 %v973
        %v4764 = vpop.f32.mrf.mxu0
        %v4765 = vadd.f32 %v4752, %v4764
        %v4766 = vpop.f32.mrf.mxu0
        %4767 = vdwg.mxu0
        %4768 = vmatpush.bf16.msra.mxu0 %v3488
        %4769 = vmatpush.bf16.msra.mxu0 %v3480
        %4770 = vmatpush.bf16.msra.mxu0 %v3472
        %4771 = vmatpush.bf16.msra.mxu0 %v3464
        %4772 = vmatpush.bf16.msra.mxu0 %v3456
        %4773 = vmatpush.bf16.msra.mxu0 %v3448
        %4774 = vmatpush.bf16.msra.mxu0 %v3440
        %4775 = vmatpush.bf16.msra.mxu0 %v3432
        %4776 = vmatmul.bf16.gmra.mxu0 %v974
        %v4777 = vpop.f32.mrf.mxu0
        %v4778 = vadd.f32 %v4765, %v4777
        %v4779 = vpop.f32.mrf.mxu0
        %4780 = vdwg.mxu0
        %4781 = vmatpush.bf16.msra.mxu0 %v3552
        %4782 = vmatpush.bf16.msra.mxu0 %v3544
        %4783 = vmatpush.bf16.msra.mxu0 %v3536
        %4784 = vmatpush.bf16.msra.mxu0 %v3528
        %4785 = vmatpush.bf16.msra.mxu0 %v3520
        %4786 = vmatpush.bf16.msra.mxu0 %v3512
        %4787 = vmatpush.bf16.msra.mxu0 %v3504
        %4788 = vmatpush.bf16.msra.mxu0 %v3496
        %4789 = vmatmul.bf16.gmra.mxu0 %v975
        %v4790 = vpop.f32.mrf.mxu0
        %v4791 = vadd.f32 %v4778, %v4790
        %v4792 = vpop.f32.mrf.mxu0
        %4793 = vdwg.mxu0
        %4794 = vmatpush.bf16.msra.mxu0 %v3105
        %4795 = vmatpush.bf16.msra.mxu0 %v3097
        %4796 = vmatpush.bf16.msra.mxu0 %v3089
        %4797 = vmatpush.bf16.msra.mxu0 %v3081
        %4798 = vmatpush.bf16.msra.mxu0 %v3073
        %4799 = vmatpush.bf16.msra.mxu0 %v3065
        %4800 = vmatpush.bf16.msra.mxu0 %v3057
        %4801 = vmatpush.bf16.msra.mxu0 %v3049
        %4802 = vmatmul.bf16.gmra.mxu0 %v968
        %v4803 = vpop.f32.mrf.mxu0
        %v4804 = vadd.f32 %v1497, %v4803
        %v4805 = vpop.f32.mrf.mxu0
        %4806 = vdwg.mxu0
        %4807 = vmatpush.bf16.msra.mxu0 %v3169
        %4808 = vmatpush.bf16.msra.mxu0 %v3161
        %4809 = vmatpush.bf16.msra.mxu0 %v3153
        %4810 = vmatpush.bf16.msra.mxu0 %v3145
        %4811 = vmatpush.bf16.msra.mxu0 %v3137
        %4812 = vmatpush.bf16.msra.mxu0 %v3129
        %4813 = vmatpush.bf16.msra.mxu0 %v3121
        %4814 = vmatpush.bf16.msra.mxu0 %v3113
        %4815 = vmatmul.bf16.gmra.mxu0 %v969
        %v4816 = vpop.f32.mrf.mxu0
        %v4817 = vadd.f32 %v4804, %v4816
        %v4818 = vpop.f32.mrf.mxu0
        %4819 = vdwg.mxu0
        %4820 = vmatpush.bf16.msra.mxu0 %v3233
        %4821 = vmatpush.bf16.msra.mxu0 %v3225
        %4822 = vmatpush.bf16.msra.mxu0 %v3217
        %4823 = vmatpush.bf16.msra.mxu0 %v3209
        %4824 = vmatpush.bf16.msra.mxu0 %v3201
        %4825 = vmatpush.bf16.msra.mxu0 %v3193
        %4826 = vmatpush.bf16.msra.mxu0 %v3185
        %4827 = vmatpush.bf16.msra.mxu0 %v3177
        %4828 = vmatmul.bf16.gmra.mxu0 %v970
        %v4829 = vpop.f32.mrf.mxu0
        %v4830 = vadd.f32 %v4817, %v4829
        %v4831 = vpop.f32.mrf.mxu0
        %4832 = vdwg.mxu0
        %4833 = vmatpush.bf16.msra.mxu0 %v3297
        %4834 = vmatpush.bf16.msra.mxu0 %v3289
        %4835 = vmatpush.bf16.msra.mxu0 %v3281
        %4836 = vmatpush.bf16.msra.mxu0 %v3273
        %4837 = vmatpush.bf16.msra.mxu0 %v3265
        %4838 = vmatpush.bf16.msra.mxu0 %v3257
        %4839 = vmatpush.bf16.msra.mxu0 %v3249
        %4840 = vmatpush.bf16.msra.mxu0 %v3241
        %4841 = vmatmul.bf16.gmra.mxu0 %v971
        %v4842 = vpop.f32.mrf.mxu0
        %v4843 = vadd.f32 %v4830, %v4842
        %v4844 = vpop.f32.mrf.mxu0
        %4845 = vdwg.mxu0
        %4846 = vmatpush.bf16.msra.mxu0 %v3361
        %4847 = vmatpush.bf16.msra.mxu0 %v3353
        %4848 = vmatpush.bf16.msra.mxu0 %v3345
        %4849 = vmatpush.bf16.msra.mxu0 %v3337
        %4850 = vmatpush.bf16.msra.mxu0 %v3329
        %4851 = vmatpush.bf16.msra.mxu0 %v3321
        %4852 = vmatpush.bf16.msra.mxu0 %v3313
        %4853 = vmatpush.bf16.msra.mxu0 %v3305
        %4854 = vmatmul.bf16.gmra.mxu0 %v972
        %v4855 = vpop.f32.mrf.mxu0
        %v4856 = vadd.f32 %v4843, %v4855
        %v4857 = vpop.f32.mrf.mxu0
        %4858 = vdwg.mxu0
        %4859 = vmatpush.bf16.msra.mxu0 %v3425
        %4860 = vmatpush.bf16.msra.mxu0 %v3417
        %4861 = vmatpush.bf16.msra.mxu0 %v3409
        %4862 = vmatpush.bf16.msra.mxu0 %v3401
        %4863 = vmatpush.bf16.msra.mxu0 %v3393
        %4864 = vmatpush.bf16.msra.mxu0 %v3385
        %4865 = vmatpush.bf16.msra.mxu0 %v3377
        %4866 = vmatpush.bf16.msra.mxu0 %v3369
        %4867 = vmatmul.bf16.gmra.mxu0 %v973
        %v4868 = vpop.f32.mrf.mxu0
        %v4869 = vadd.f32 %v4856, %v4868
        %v4870 = vpop.f32.mrf.mxu0
        %4871 = vdwg.mxu0
        %4872 = vmatpush.bf16.msra.mxu0 %v3489
        %4873 = vmatpush.bf16.msra.mxu0 %v3481
        %4874 = vmatpush.bf16.msra.mxu0 %v3473
        %4875 = vmatpush.bf16.msra.mxu0 %v3465
        %4876 = vmatpush.bf16.msra.mxu0 %v3457
        %4877 = vmatpush.bf16.msra.mxu0 %v3449
        %4878 = vmatpush.bf16.msra.mxu0 %v3441
        %4879 = vmatpush.bf16.msra.mxu0 %v3433
        %4880 = vmatmul.bf16.gmra.mxu0 %v974
        %v4881 = vpop.f32.mrf.mxu0
        %v4882 = vadd.f32 %v4869, %v4881
        %v4883 = vpop.f32.mrf.mxu0
        %4884 = vdwg.mxu0
        %4885 = vmatpush.bf16.msra.mxu0 %v3553
        %4886 = vmatpush.bf16.msra.mxu0 %v3545
        %4887 = vmatpush.bf16.msra.mxu0 %v3537
        %4888 = vmatpush.bf16.msra.mxu0 %v3529
        %4889 = vmatpush.bf16.msra.mxu0 %v3521
        %4890 = vmatpush.bf16.msra.mxu0 %v3513
        %4891 = vmatpush.bf16.msra.mxu0 %v3505
        %4892 = vmatpush.bf16.msra.mxu0 %v3497
        %4893 = vmatmul.bf16.gmra.mxu0 %v975
        %v4894 = vpop.f32.mrf.mxu0
        %v4895 = vadd.f32 %v4882, %v4894
        %v4896 = vpop.f32.mrf.mxu0
        %4897 = vdwg.mxu0
        %v4898 = vmax.f32 %v4167, 0.0
        %v4899 = vmax.f32 %v4271, 0.0
        %v4900 = vmax.f32 %v4375, 0.0
        %v4901 = vmax.f32 %v4479, 0.0
        %v4902 = vmax.f32 %v4583, 0.0
        %v4903 = vmax.f32 %v4687, 0.0
        %v4904 = vmax.f32 %v4791, 0.0
        %v4905 = vmax.f32 %v4895, 0.0
        %v4906 = vpack.c.bf16 %v4898, %v4898
        %v4907 = vpack.c.bf16 %v4899, %v4899
        %v4908 = vpack.c.bf16 %v4900, %v4900
        %v4909 = vpack.c.bf16 %v4901, %v4901
        %v4910 = vpack.c.bf16 %v4902, %v4902
        %v4911 = vpack.c.bf16 %v4903, %v4903
        %v4912 = vpack.c.bf16 %v4904, %v4904
        %v4913 = vpack.c.bf16 %v4905, %v4905
        %v4914 = vld [vmem:[%s529] sm:$0xff]
        %v4915 = vld [vmem:[%s529 + $0x8] sm:$0xff]
        %v4916 = vld [vmem:[%s529 + $0x10] sm:$0xff]
        %v4917 = vld [vmem:[%s529 + $0x18] sm:$0xff]
        %v4918 = vld [vmem:[%s529 + $0x20] sm:$0xff]
        %v4919 = vld [vmem:[%s529 + $0x28] sm:$0xff]
        %v4920 = vld [vmem:[%s529 + $0x30] sm:$0xff]
        %v4921 = vld [vmem:[%s529 + $0x38] sm:$0xff]
        %v4922 = vld [vmem:[%s529 + $0x40] sm:$0xff]
        %v4923 = vld [vmem:[%s529 + $0x48] sm:$0xff]
        %v4924 = vld [vmem:[%s529 + $0x50] sm:$0xff]
        %v4925 = vld [vmem:[%s529 + $0x58] sm:$0xff]
        %v4926 = vld [vmem:[%s529 + $0x60] sm:$0xff]
        %v4927 = vld [vmem:[%s529 + $0x68] sm:$0xff]
        %v4928 = vld [vmem:[%s529 + $0x70] sm:$0xff]
        %v4929 = vld [vmem:[%s529 + $0x78] sm:$0xff]
        %v4930 = vld [vmem:[%s529 + $0x80] sm:$0xff]
        %v4931 = vld [vmem:[%s529 + $0x88] sm:$0xff]
        %v4932 = vld [vmem:[%s529 + $0x90] sm:$0xff]
        %v4933 = vld [vmem:[%s529 + $0x98] sm:$0xff]
        %v4934 = vld [vmem:[%s529 + $0xa0] sm:$0xff]
        %v4935 = vld [vmem:[%s529 + $0xa8] sm:$0xff]
        %v4936 = vld [vmem:[%s529 + $0xb0] sm:$0xff]
        %v4937 = vld [vmem:[%s529 + $0xb8] sm:$0xff]
        %v4938 = vld [vmem:[%s529 + $0xc0] sm:$0xff]
        %v4939 = vld [vmem:[%s529 + $0xc8] sm:$0xff]
        %v4940 = vld [vmem:[%s529 + $0xd0] sm:$0xff]
        %v4941 = vld [vmem:[%s529 + $0xd8] sm:$0xff]
        %v4942 = vld [vmem:[%s529 + $0xe0] sm:$0xff]
        %v4943 = vld [vmem:[%s529 + $0xe8] sm:$0xff]
        %v4944 = vld [vmem:[%s529 + $0xf0] sm:$0xff]
        %v4945 = vld [vmem:[%s529 + $0xf8] sm:$0xff]
        %v4946 = vld [vmem:[%s529 + $0x100] sm:$0xff]
        %v4947 = vld [vmem:[%s529 + $0x108] sm:$0xff]
        %v4948 = vld [vmem:[%s529 + $0x110] sm:$0xff]
        %v4949 = vld [vmem:[%s529 + $0x118] sm:$0xff]
        %v4950 = vld [vmem:[%s529 + $0x120] sm:$0xff]
        %v4951 = vld [vmem:[%s529 + $0x128] sm:$0xff]
        %v4952 = vld [vmem:[%s529 + $0x130] sm:$0xff]
        %v4953 = vld [vmem:[%s529 + $0x138] sm:$0xff]
        %v4954 = vld [vmem:[%s529 + $0x140] sm:$0xff]
        %v4955 = vld [vmem:[%s529 + $0x148] sm:$0xff]
        %v4956 = vld [vmem:[%s529 + $0x150] sm:$0xff]
        %v4957 = vld [vmem:[%s529 + $0x158] sm:$0xff]
        %v4958 = vld [vmem:[%s529 + $0x160] sm:$0xff]
        %v4959 = vld [vmem:[%s529 + $0x168] sm:$0xff]
        %v4960 = vld [vmem:[%s529 + $0x170] sm:$0xff]
        %v4961 = vld [vmem:[%s529 + $0x178] sm:$0xff]
        %v4962 = vld [vmem:[%s529 + $0x180] sm:$0xff]
        %v4963 = vld [vmem:[%s529 + $0x188] sm:$0xff]
        %v4964 = vld [vmem:[%s529 + $0x190] sm:$0xff]
        %v4965 = vld [vmem:[%s529 + $0x198] sm:$0xff]
        %v4966 = vld [vmem:[%s529 + $0x1a0] sm:$0xff]
        %v4967 = vld [vmem:[%s529 + $0x1a8] sm:$0xff]
        %v4968 = vld [vmem:[%s529 + $0x1b0] sm:$0xff]
        %v4969 = vld [vmem:[%s529 + $0x1b8] sm:$0xff]
        %v4970 = vld [vmem:[%s529 + $0x1c0] sm:$0xff]
        %v4971 = vld [vmem:[%s529 + $0x1c8] sm:$0xff]
        %v4972 = vld [vmem:[%s529 + $0x1d0] sm:$0xff]
        %v4973 = vld [vmem:[%s529 + $0x1d8] sm:$0xff]
        %v4974 = vld [vmem:[%s529 + $0x1e0] sm:$0xff]
        %v4975 = vld [vmem:[%s529 + $0x1e8] sm:$0xff]
        %v4976 = vld [vmem:[%s529 + $0x1f0] sm:$0xff]
        %v4977 = vld [vmem:[%s529 + $0x1f8] sm:$0xff]
        %v4978 = vld [vmem:[%s529 + $0x200] sm:$0xff]
        %v4979 = vld [vmem:[%s529 + $0x208] sm:$0xff]
        %v4980 = vld [vmem:[%s529 + $0x210] sm:$0xff]
        %v4981 = vld [vmem:[%s529 + $0x218] sm:$0xff]
        %v4982 = vld [vmem:[%s529 + $0x220] sm:$0xff]
        %v4983 = vld [vmem:[%s529 + $0x228] sm:$0xff]
        %v4984 = vld [vmem:[%s529 + $0x230] sm:$0xff]
        %v4985 = vld [vmem:[%s529 + $0x238] sm:$0xff]
        %v4986 = vld [vmem:[%s529 + $0x240] sm:$0xff]
        %v4987 = vld [vmem:[%s529 + $0x248] sm:$0xff]
        %v4988 = vld [vmem:[%s529 + $0x250] sm:$0xff]
        %v4989 = vld [vmem:[%s529 + $0x258] sm:$0xff]
        %v4990 = vld [vmem:[%s529 + $0x260] sm:$0xff]
        %v4991 = vld [vmem:[%s529 + $0x268] sm:$0xff]
        %v4992 = vld [vmem:[%s529 + $0x270] sm:$0xff]
        %v4993 = vld [vmem:[%s529 + $0x278] sm:$0xff]
        %v4994 = vld [vmem:[%s529 + $0x280] sm:$0xff]
        %v4995 = vld [vmem:[%s529 + $0x288] sm:$0xff]
        %v4996 = vld [vmem:[%s529 + $0x290] sm:$0xff]
        %v4997 = vld [vmem:[%s529 + $0x298] sm:$0xff]
        %v4998 = vld [vmem:[%s529 + $0x2a0] sm:$0xff]
        %v4999 = vld [vmem:[%s529 + $0x2a8] sm:$0xff]
        %v5000 = vld [vmem:[%s529 + $0x2b0] sm:$0xff]
        %v5001 = vld [vmem:[%s529 + $0x2b8] sm:$0xff]
        %v5002 = vld [vmem:[%s529 + $0x2c0] sm:$0xff]
        %v5003 = vld [vmem:[%s529 + $0x2c8] sm:$0xff]
        %v5004 = vld [vmem:[%s529 + $0x2d0] sm:$0xff]
        %v5005 = vld [vmem:[%s529 + $0x2d8] sm:$0xff]
        %v5006 = vld [vmem:[%s529 + $0x2e0] sm:$0xff]
        %v5007 = vld [vmem:[%s529 + $0x2e8] sm:$0xff]
        %v5008 = vld [vmem:[%s529 + $0x2f0] sm:$0xff]
        %v5009 = vld [vmem:[%s529 + $0x2f8] sm:$0xff]
        %v5010 = vld [vmem:[%s529 + $0x300] sm:$0xff]
        %v5011 = vld [vmem:[%s529 + $0x308] sm:$0xff]
        %v5012 = vld [vmem:[%s529 + $0x310] sm:$0xff]
        %v5013 = vld [vmem:[%s529 + $0x318] sm:$0xff]
        %v5014 = vld [vmem:[%s529 + $0x320] sm:$0xff]
        %v5015 = vld [vmem:[%s529 + $0x328] sm:$0xff]
        %v5016 = vld [vmem:[%s529 + $0x330] sm:$0xff]
        %v5017 = vld [vmem:[%s529 + $0x338] sm:$0xff]
        %v5018 = vld [vmem:[%s529 + $0x340] sm:$0xff]
        %v5019 = vld [vmem:[%s529 + $0x348] sm:$0xff]
        %v5020 = vld [vmem:[%s529 + $0x350] sm:$0xff]
        %v5021 = vld [vmem:[%s529 + $0x358] sm:$0xff]
        %v5022 = vld [vmem:[%s529 + $0x360] sm:$0xff]
        %v5023 = vld [vmem:[%s529 + $0x368] sm:$0xff]
        %v5024 = vld [vmem:[%s529 + $0x370] sm:$0xff]
        %v5025 = vld [vmem:[%s529 + $0x378] sm:$0xff]
        %v5026 = vld [vmem:[%s529 + $0x380] sm:$0xff]
        %v5027 = vld [vmem:[%s529 + $0x388] sm:$0xff]
        %v5028 = vld [vmem:[%s529 + $0x390] sm:$0xff]
        %v5029 = vld [vmem:[%s529 + $0x398] sm:$0xff]
        %v5030 = vld [vmem:[%s529 + $0x3a0] sm:$0xff]
        %v5031 = vld [vmem:[%s529 + $0x3a8] sm:$0xff]
        %v5032 = vld [vmem:[%s529 + $0x3b0] sm:$0xff]
        %v5033 = vld [vmem:[%s529 + $0x3b8] sm:$0xff]
        %v5034 = vld [vmem:[%s529 + $0x3c0] sm:$0xff]
        %v5035 = vld [vmem:[%s529 + $0x3c8] sm:$0xff]
        %v5036 = vld [vmem:[%s529 + $0x3d0] sm:$0xff]
        %v5037 = vld [vmem:[%s529 + $0x3d8] sm:$0xff]
        %v5038 = vld [vmem:[%s529 + $0x3e0] sm:$0xff]
        %v5039 = vld [vmem:[%s529 + $0x3e8] sm:$0xff]
        %v5040 = vld [vmem:[%s529 + $0x3f0] sm:$0xff]
        %v5041 = vld [vmem:[%s529 + $0x3f8] sm:$0xff]
        %v5042 = vld [vmem:[%s529 + $0x400] sm:$0xff]
        %v5043 = vld [vmem:[%s529 + $0x408] sm:$0xff]
        %v5044 = vld [vmem:[%s529 + $0x410] sm:$0xff]
        %v5045 = vld [vmem:[%s529 + $0x418] sm:$0xff]
        %v5046 = vld [vmem:[%s529 + $0x420] sm:$0xff]
        %v5047 = vld [vmem:[%s529 + $0x428] sm:$0xff]
        %v5048 = vld [vmem:[%s529 + $0x430] sm:$0xff]
        %v5049 = vld [vmem:[%s529 + $0x438] sm:$0xff]
        %v5050 = vld [vmem:[%s529 + $0x440] sm:$0xff]
        %v5051 = vld [vmem:[%s529 + $0x448] sm:$0xff]
        %v5052 = vld [vmem:[%s529 + $0x450] sm:$0xff]
        %v5053 = vld [vmem:[%s529 + $0x458] sm:$0xff]
        %v5054 = vld [vmem:[%s529 + $0x460] sm:$0xff]
        %v5055 = vld [vmem:[%s529 + $0x468] sm:$0xff]
        %v5056 = vld [vmem:[%s529 + $0x470] sm:$0xff]
        %v5057 = vld [vmem:[%s529 + $0x478] sm:$0xff]
        %v5058 = vld [vmem:[%s529 + $0x480] sm:$0xff]
        %v5059 = vld [vmem:[%s529 + $0x488] sm:$0xff]
        %v5060 = vld [vmem:[%s529 + $0x490] sm:$0xff]
        %v5061 = vld [vmem:[%s529 + $0x498] sm:$0xff]
        %v5062 = vld [vmem:[%s529 + $0x4a0] sm:$0xff]
        %v5063 = vld [vmem:[%s529 + $0x4a8] sm:$0xff]
        %v5064 = vld [vmem:[%s529 + $0x4b0] sm:$0xff]
        %v5065 = vld [vmem:[%s529 + $0x4b8] sm:$0xff]
        %v5066 = vld [vmem:[%s529 + $0x4c0] sm:$0xff]
        %v5067 = vld [vmem:[%s529 + $0x4c8] sm:$0xff]
        %v5068 = vld [vmem:[%s529 + $0x4d0] sm:$0xff]
        %v5069 = vld [vmem:[%s529 + $0x4d8] sm:$0xff]
        %v5070 = vld [vmem:[%s529 + $0x4e0] sm:$0xff]
        %v5071 = vld [vmem:[%s529 + $0x4e8] sm:$0xff]
        %v5072 = vld [vmem:[%s529 + $0x4f0] sm:$0xff]
        %v5073 = vld [vmem:[%s529 + $0x4f8] sm:$0xff]
        %v5074 = vld [vmem:[%s529 + $0x500] sm:$0xff]
        %v5075 = vld [vmem:[%s529 + $0x508] sm:$0xff]
        %v5076 = vld [vmem:[%s529 + $0x510] sm:$0xff]
        %v5077 = vld [vmem:[%s529 + $0x518] sm:$0xff]
        %v5078 = vld [vmem:[%s529 + $0x520] sm:$0xff]
        %v5079 = vld [vmem:[%s529 + $0x528] sm:$0xff]
        %v5080 = vld [vmem:[%s529 + $0x530] sm:$0xff]
        %v5081 = vld [vmem:[%s529 + $0x538] sm:$0xff]
        %v5082 = vld [vmem:[%s529 + $0x540] sm:$0xff]
        %v5083 = vld [vmem:[%s529 + $0x548] sm:$0xff]
        %v5084 = vld [vmem:[%s529 + $0x550] sm:$0xff]
        %v5085 = vld [vmem:[%s529 + $0x558] sm:$0xff]
        %v5086 = vld [vmem:[%s529 + $0x560] sm:$0xff]
        %v5087 = vld [vmem:[%s529 + $0x568] sm:$0xff]
        %v5088 = vld [vmem:[%s529 + $0x570] sm:$0xff]
        %v5089 = vld [vmem:[%s529 + $0x578] sm:$0xff]
        %v5090 = vld [vmem:[%s529 + $0x580] sm:$0xff]
        %v5091 = vld [vmem:[%s529 + $0x588] sm:$0xff]
        %v5092 = vld [vmem:[%s529 + $0x590] sm:$0xff]
        %v5093 = vld [vmem:[%s529 + $0x598] sm:$0xff]
        %v5094 = vld [vmem:[%s529 + $0x5a0] sm:$0xff]
        %v5095 = vld [vmem:[%s529 + $0x5a8] sm:$0xff]
        %v5096 = vld [vmem:[%s529 + $0x5b0] sm:$0xff]
        %v5097 = vld [vmem:[%s529 + $0x5b8] sm:$0xff]
        %v5098 = vld [vmem:[%s529 + $0x5c0] sm:$0xff]
        %v5099 = vld [vmem:[%s529 + $0x5c8] sm:$0xff]
        %v5100 = vld [vmem:[%s529 + $0x5d0] sm:$0xff]
        %v5101 = vld [vmem:[%s529 + $0x5d8] sm:$0xff]
        %v5102 = vld [vmem:[%s529 + $0x5e0] sm:$0xff]
        %v5103 = vld [vmem:[%s529 + $0x5e8] sm:$0xff]
        %v5104 = vld [vmem:[%s529 + $0x5f0] sm:$0xff]
        %v5105 = vld [vmem:[%s529 + $0x5f8] sm:$0xff]
        %v5106 = vld [vmem:[%s529 + $0x600] sm:$0xff]
        %v5107 = vld [vmem:[%s529 + $0x608] sm:$0xff]
        %v5108 = vld [vmem:[%s529 + $0x610] sm:$0xff]
        %v5109 = vld [vmem:[%s529 + $0x618] sm:$0xff]
        %v5110 = vld [vmem:[%s529 + $0x620] sm:$0xff]
        %v5111 = vld [vmem:[%s529 + $0x628] sm:$0xff]
        %v5112 = vld [vmem:[%s529 + $0x630] sm:$0xff]
        %v5113 = vld [vmem:[%s529 + $0x638] sm:$0xff]
        %v5114 = vld [vmem:[%s529 + $0x640] sm:$0xff]
        %v5115 = vld [vmem:[%s529 + $0x648] sm:$0xff]
        %v5116 = vld [vmem:[%s529 + $0x650] sm:$0xff]
        %v5117 = vld [vmem:[%s529 + $0x658] sm:$0xff]
        %v5118 = vld [vmem:[%s529 + $0x660] sm:$0xff]
        %v5119 = vld [vmem:[%s529 + $0x668] sm:$0xff]
        %v5120 = vld [vmem:[%s529 + $0x670] sm:$0xff]
        %v5121 = vld [vmem:[%s529 + $0x678] sm:$0xff]
        %v5122 = vld [vmem:[%s529 + $0x680] sm:$0xff]
        %v5123 = vld [vmem:[%s529 + $0x688] sm:$0xff]
        %v5124 = vld [vmem:[%s529 + $0x690] sm:$0xff]
        %v5125 = vld [vmem:[%s529 + $0x698] sm:$0xff]
        %v5126 = vld [vmem:[%s529 + $0x6a0] sm:$0xff]
        %v5127 = vld [vmem:[%s529 + $0x6a8] sm:$0xff]
        %v5128 = vld [vmem:[%s529 + $0x6b0] sm:$0xff]
        %v5129 = vld [vmem:[%s529 + $0x6b8] sm:$0xff]
        %v5130 = vld [vmem:[%s529 + $0x6c0] sm:$0xff]
        %v5131 = vld [vmem:[%s529 + $0x6c8] sm:$0xff]
        %v5132 = vld [vmem:[%s529 + $0x6d0] sm:$0xff]
        %v5133 = vld [vmem:[%s529 + $0x6d8] sm:$0xff]
        %v5134 = vld [vmem:[%s529 + $0x6e0] sm:$0xff]
        %v5135 = vld [vmem:[%s529 + $0x6e8] sm:$0xff]
        %v5136 = vld [vmem:[%s529 + $0x6f0] sm:$0xff]
        %v5137 = vld [vmem:[%s529 + $0x6f8] sm:$0xff]
        %v5138 = vld [vmem:[%s529 + $0x700] sm:$0xff]
        %v5139 = vld [vmem:[%s529 + $0x708] sm:$0xff]
        %v5140 = vld [vmem:[%s529 + $0x710] sm:$0xff]
        %v5141 = vld [vmem:[%s529 + $0x718] sm:$0xff]
        %v5142 = vld [vmem:[%s529 + $0x720] sm:$0xff]
        %v5143 = vld [vmem:[%s529 + $0x728] sm:$0xff]
        %v5144 = vld [vmem:[%s529 + $0x730] sm:$0xff]
        %v5145 = vld [vmem:[%s529 + $0x738] sm:$0xff]
        %v5146 = vld [vmem:[%s529 + $0x740] sm:$0xff]
        %v5147 = vld [vmem:[%s529 + $0x748] sm:$0xff]
        %v5148 = vld [vmem:[%s529 + $0x750] sm:$0xff]
        %v5149 = vld [vmem:[%s529 + $0x758] sm:$0xff]
        %v5150 = vld [vmem:[%s529 + $0x760] sm:$0xff]
        %v5151 = vld [vmem:[%s529 + $0x768] sm:$0xff]
        %v5152 = vld [vmem:[%s529 + $0x770] sm:$0xff]
        %v5153 = vld [vmem:[%s529 + $0x778] sm:$0xff]
        %v5154 = vld [vmem:[%s529 + $0x780] sm:$0xff]
        %v5155 = vld [vmem:[%s529 + $0x788] sm:$0xff]
        %v5156 = vld [vmem:[%s529 + $0x790] sm:$0xff]
        %v5157 = vld [vmem:[%s529 + $0x798] sm:$0xff]
        %v5158 = vld [vmem:[%s529 + $0x7a0] sm:$0xff]
        %v5159 = vld [vmem:[%s529 + $0x7a8] sm:$0xff]
        %v5160 = vld [vmem:[%s529 + $0x7b0] sm:$0xff]
        %v5161 = vld [vmem:[%s529 + $0x7b8] sm:$0xff]
        %v5162 = vld [vmem:[%s529 + $0x7c0] sm:$0xff]
        %v5163 = vld [vmem:[%s529 + $0x7c8] sm:$0xff]
        %v5164 = vld [vmem:[%s529 + $0x7d0] sm:$0xff]
        %v5165 = vld [vmem:[%s529 + $0x7d8] sm:$0xff]
        %v5166 = vld [vmem:[%s529 + $0x7e0] sm:$0xff]
        %v5167 = vld [vmem:[%s529 + $0x7e8] sm:$0xff]
        %v5168 = vld [vmem:[%s529 + $0x7f0] sm:$0xff]
        %v5169 = vld [vmem:[%s529 + $0x7f8] sm:$0xff]
        %v5170 = vld [vmem:[%s529 + $0x800] sm:$0xff]
        %v5171 = vld [vmem:[%s529 + $0x808] sm:$0xff]
        %v5172 = vld [vmem:[%s529 + $0x810] sm:$0xff]
        %v5173 = vld [vmem:[%s529 + $0x818] sm:$0xff]
        %v5174 = vld [vmem:[%s529 + $0x820] sm:$0xff]
        %v5175 = vld [vmem:[%s529 + $0x828] sm:$0xff]
        %v5176 = vld [vmem:[%s529 + $0x830] sm:$0xff]
        %v5177 = vld [vmem:[%s529 + $0x838] sm:$0xff]
        %v5178 = vld [vmem:[%s529 + $0x840] sm:$0xff]
        %v5179 = vld [vmem:[%s529 + $0x848] sm:$0xff]
        %v5180 = vld [vmem:[%s529 + $0x850] sm:$0xff]
        %v5181 = vld [vmem:[%s529 + $0x858] sm:$0xff]
        %v5182 = vld [vmem:[%s529 + $0x860] sm:$0xff]
        %v5183 = vld [vmem:[%s529 + $0x868] sm:$0xff]
        %v5184 = vld [vmem:[%s529 + $0x870] sm:$0xff]
        %v5185 = vld [vmem:[%s529 + $0x878] sm:$0xff]
        %v5186 = vld [vmem:[%s529 + $0x880] sm:$0xff]
        %v5187 = vld [vmem:[%s529 + $0x888] sm:$0xff]
        %v5188 = vld [vmem:[%s529 + $0x890] sm:$0xff]
        %v5189 = vld [vmem:[%s529 + $0x898] sm:$0xff]
        %v5190 = vld [vmem:[%s529 + $0x8a0] sm:$0xff]
        %v5191 = vld [vmem:[%s529 + $0x8a8] sm:$0xff]
        %v5192 = vld [vmem:[%s529 + $0x8b0] sm:$0xff]
        %v5193 = vld [vmem:[%s529 + $0x8b8] sm:$0xff]
        %v5194 = vld [vmem:[%s529 + $0x8c0] sm:$0xff]
        %v5195 = vld [vmem:[%s529 + $0x8c8] sm:$0xff]
        %v5196 = vld [vmem:[%s529 + $0x8d0] sm:$0xff]
        %v5197 = vld [vmem:[%s529 + $0x8d8] sm:$0xff]
        %v5198 = vld [vmem:[%s529 + $0x8e0] sm:$0xff]
        %v5199 = vld [vmem:[%s529 + $0x8e8] sm:$0xff]
        %v5200 = vld [vmem:[%s529 + $0x8f0] sm:$0xff]
        %v5201 = vld [vmem:[%s529 + $0x8f8] sm:$0xff]
        %v5202 = vld [vmem:[%s529 + $0x900] sm:$0xff]
        %v5203 = vld [vmem:[%s529 + $0x908] sm:$0xff]
        %v5204 = vld [vmem:[%s529 + $0x910] sm:$0xff]
        %v5205 = vld [vmem:[%s529 + $0x918] sm:$0xff]
        %v5206 = vld [vmem:[%s529 + $0x920] sm:$0xff]
        %v5207 = vld [vmem:[%s529 + $0x928] sm:$0xff]
        %v5208 = vld [vmem:[%s529 + $0x930] sm:$0xff]
        %v5209 = vld [vmem:[%s529 + $0x938] sm:$0xff]
        %v5210 = vld [vmem:[%s529 + $0x940] sm:$0xff]
        %v5211 = vld [vmem:[%s529 + $0x948] sm:$0xff]
        %v5212 = vld [vmem:[%s529 + $0x950] sm:$0xff]
        %v5213 = vld [vmem:[%s529 + $0x958] sm:$0xff]
        %v5214 = vld [vmem:[%s529 + $0x960] sm:$0xff]
        %v5215 = vld [vmem:[%s529 + $0x968] sm:$0xff]
        %v5216 = vld [vmem:[%s529 + $0x970] sm:$0xff]
        %v5217 = vld [vmem:[%s529 + $0x978] sm:$0xff]
        %v5218 = vld [vmem:[%s529 + $0x980] sm:$0xff]
        %v5219 = vld [vmem:[%s529 + $0x988] sm:$0xff]
        %v5220 = vld [vmem:[%s529 + $0x990] sm:$0xff]
        %v5221 = vld [vmem:[%s529 + $0x998] sm:$0xff]
        %v5222 = vld [vmem:[%s529 + $0x9a0] sm:$0xff]
        %v5223 = vld [vmem:[%s529 + $0x9a8] sm:$0xff]
        %v5224 = vld [vmem:[%s529 + $0x9b0] sm:$0xff]
        %v5225 = vld [vmem:[%s529 + $0x9b8] sm:$0xff]
        %v5226 = vld [vmem:[%s529 + $0x9c0] sm:$0xff]
        %v5227 = vld [vmem:[%s529 + $0x9c8] sm:$0xff]
        %v5228 = vld [vmem:[%s529 + $0x9d0] sm:$0xff]
        %v5229 = vld [vmem:[%s529 + $0x9d8] sm:$0xff]
        %v5230 = vld [vmem:[%s529 + $0x9e0] sm:$0xff]
        %v5231 = vld [vmem:[%s529 + $0x9e8] sm:$0xff]
        %v5232 = vld [vmem:[%s529 + $0x9f0] sm:$0xff]
        %v5233 = vld [vmem:[%s529 + $0x9f8] sm:$0xff]
        %v5234 = vld [vmem:[%s529 + $0xa00] sm:$0xff]
        %v5235 = vld [vmem:[%s529 + $0xa08] sm:$0xff]
        %v5236 = vld [vmem:[%s529 + $0xa10] sm:$0xff]
        %v5237 = vld [vmem:[%s529 + $0xa18] sm:$0xff]
        %v5238 = vld [vmem:[%s529 + $0xa20] sm:$0xff]
        %v5239 = vld [vmem:[%s529 + $0xa28] sm:$0xff]
        %v5240 = vld [vmem:[%s529 + $0xa30] sm:$0xff]
        %v5241 = vld [vmem:[%s529 + $0xa38] sm:$0xff]
        %v5242 = vld [vmem:[%s529 + $0xa40] sm:$0xff]
        %v5243 = vld [vmem:[%s529 + $0xa48] sm:$0xff]
        %v5244 = vld [vmem:[%s529 + $0xa50] sm:$0xff]
        %v5245 = vld [vmem:[%s529 + $0xa58] sm:$0xff]
        %v5246 = vld [vmem:[%s529 + $0xa60] sm:$0xff]
        %v5247 = vld [vmem:[%s529 + $0xa68] sm:$0xff]
        %v5248 = vld [vmem:[%s529 + $0xa70] sm:$0xff]
        %v5249 = vld [vmem:[%s529 + $0xa78] sm:$0xff]
        %v5250 = vld [vmem:[%s529 + $0xa80] sm:$0xff]
        %v5251 = vld [vmem:[%s529 + $0xa88] sm:$0xff]
        %v5252 = vld [vmem:[%s529 + $0xa90] sm:$0xff]
        %v5253 = vld [vmem:[%s529 + $0xa98] sm:$0xff]
        %v5254 = vld [vmem:[%s529 + $0xaa0] sm:$0xff]
        %v5255 = vld [vmem:[%s529 + $0xaa8] sm:$0xff]
        %v5256 = vld [vmem:[%s529 + $0xab0] sm:$0xff]
        %v5257 = vld [vmem:[%s529 + $0xab8] sm:$0xff]
        %v5258 = vld [vmem:[%s529 + $0xac0] sm:$0xff]
        %v5259 = vld [vmem:[%s529 + $0xac8] sm:$0xff]
        %v5260 = vld [vmem:[%s529 + $0xad0] sm:$0xff]
        %v5261 = vld [vmem:[%s529 + $0xad8] sm:$0xff]
        %v5262 = vld [vmem:[%s529 + $0xae0] sm:$0xff]
        %v5263 = vld [vmem:[%s529 + $0xae8] sm:$0xff]
        %v5264 = vld [vmem:[%s529 + $0xaf0] sm:$0xff]
        %v5265 = vld [vmem:[%s529 + $0xaf8] sm:$0xff]
        %v5266 = vld [vmem:[%s529 + $0xb00] sm:$0xff]
        %v5267 = vld [vmem:[%s529 + $0xb08] sm:$0xff]
        %v5268 = vld [vmem:[%s529 + $0xb10] sm:$0xff]
        %v5269 = vld [vmem:[%s529 + $0xb18] sm:$0xff]
        %v5270 = vld [vmem:[%s529 + $0xb20] sm:$0xff]
        %v5271 = vld [vmem:[%s529 + $0xb28] sm:$0xff]
        %v5272 = vld [vmem:[%s529 + $0xb30] sm:$0xff]
        %v5273 = vld [vmem:[%s529 + $0xb38] sm:$0xff]
        %v5274 = vld [vmem:[%s529 + $0xb40] sm:$0xff]
        %v5275 = vld [vmem:[%s529 + $0xb48] sm:$0xff]
        %v5276 = vld [vmem:[%s529 + $0xb50] sm:$0xff]
        %v5277 = vld [vmem:[%s529 + $0xb58] sm:$0xff]
        %v5278 = vld [vmem:[%s529 + $0xb60] sm:$0xff]
        %v5279 = vld [vmem:[%s529 + $0xb68] sm:$0xff]
        %v5280 = vld [vmem:[%s529 + $0xb70] sm:$0xff]
        %v5281 = vld [vmem:[%s529 + $0xb78] sm:$0xff]
        %v5282 = vld [vmem:[%s529 + $0xb80] sm:$0xff]
        %v5283 = vld [vmem:[%s529 + $0xb88] sm:$0xff]
        %v5284 = vld [vmem:[%s529 + $0xb90] sm:$0xff]
        %v5285 = vld [vmem:[%s529 + $0xb98] sm:$0xff]
        %v5286 = vld [vmem:[%s529 + $0xba0] sm:$0xff]
        %v5287 = vld [vmem:[%s529 + $0xba8] sm:$0xff]
        %v5288 = vld [vmem:[%s529 + $0xbb0] sm:$0xff]
        %v5289 = vld [vmem:[%s529 + $0xbb8] sm:$0xff]
        %v5290 = vld [vmem:[%s529 + $0xbc0] sm:$0xff]
        %v5291 = vld [vmem:[%s529 + $0xbc8] sm:$0xff]
        %v5292 = vld [vmem:[%s529 + $0xbd0] sm:$0xff]
        %v5293 = vld [vmem:[%s529 + $0xbd8] sm:$0xff]
        %v5294 = vld [vmem:[%s529 + $0xbe0] sm:$0xff]
        %v5295 = vld [vmem:[%s529 + $0xbe8] sm:$0xff]
        %v5296 = vld [vmem:[%s529 + $0xbf0] sm:$0xff]
        %v5297 = vld [vmem:[%s529 + $0xbf8] sm:$0xff]
        %v5298 = vld [vmem:[%s529 + $0xc00] sm:$0xff]
        %v5299 = vld [vmem:[%s529 + $0xc08] sm:$0xff]
        %v5300 = vld [vmem:[%s529 + $0xc10] sm:$0xff]
        %v5301 = vld [vmem:[%s529 + $0xc18] sm:$0xff]
        %v5302 = vld [vmem:[%s529 + $0xc20] sm:$0xff]
        %v5303 = vld [vmem:[%s529 + $0xc28] sm:$0xff]
        %v5304 = vld [vmem:[%s529 + $0xc30] sm:$0xff]
        %v5305 = vld [vmem:[%s529 + $0xc38] sm:$0xff]
        %v5306 = vld [vmem:[%s529 + $0xc40] sm:$0xff]
        %v5307 = vld [vmem:[%s529 + $0xc48] sm:$0xff]
        %v5308 = vld [vmem:[%s529 + $0xc50] sm:$0xff]
        %v5309 = vld [vmem:[%s529 + $0xc58] sm:$0xff]
        %v5310 = vld [vmem:[%s529 + $0xc60] sm:$0xff]
        %v5311 = vld [vmem:[%s529 + $0xc68] sm:$0xff]
        %v5312 = vld [vmem:[%s529 + $0xc70] sm:$0xff]
        %v5313 = vld [vmem:[%s529 + $0xc78] sm:$0xff]
        %v5314 = vld [vmem:[%s529 + $0xc80] sm:$0xff]
        %v5315 = vld [vmem:[%s529 + $0xc88] sm:$0xff]
        %v5316 = vld [vmem:[%s529 + $0xc90] sm:$0xff]
        %v5317 = vld [vmem:[%s529 + $0xc98] sm:$0xff]
        %v5318 = vld [vmem:[%s529 + $0xca0] sm:$0xff]
        %v5319 = vld [vmem:[%s529 + $0xca8] sm:$0xff]
        %v5320 = vld [vmem:[%s529 + $0xcb0] sm:$0xff]
        %v5321 = vld [vmem:[%s529 + $0xcb8] sm:$0xff]
        %v5322 = vld [vmem:[%s529 + $0xcc0] sm:$0xff]
        %v5323 = vld [vmem:[%s529 + $0xcc8] sm:$0xff]
        %v5324 = vld [vmem:[%s529 + $0xcd0] sm:$0xff]
        %v5325 = vld [vmem:[%s529 + $0xcd8] sm:$0xff]
        %v5326 = vld [vmem:[%s529 + $0xce0] sm:$0xff]
        %v5327 = vld [vmem:[%s529 + $0xce8] sm:$0xff]
        %v5328 = vld [vmem:[%s529 + $0xcf0] sm:$0xff]
        %v5329 = vld [vmem:[%s529 + $0xcf8] sm:$0xff]
        %v5330 = vld [vmem:[%s529 + $0xd00] sm:$0xff]
        %v5331 = vld [vmem:[%s529 + $0xd08] sm:$0xff]
        %v5332 = vld [vmem:[%s529 + $0xd10] sm:$0xff]
        %v5333 = vld [vmem:[%s529 + $0xd18] sm:$0xff]
        %v5334 = vld [vmem:[%s529 + $0xd20] sm:$0xff]
        %v5335 = vld [vmem:[%s529 + $0xd28] sm:$0xff]
        %v5336 = vld [vmem:[%s529 + $0xd30] sm:$0xff]
        %v5337 = vld [vmem:[%s529 + $0xd38] sm:$0xff]
        %v5338 = vld [vmem:[%s529 + $0xd40] sm:$0xff]
        %v5339 = vld [vmem:[%s529 + $0xd48] sm:$0xff]
        %v5340 = vld [vmem:[%s529 + $0xd50] sm:$0xff]
        %v5341 = vld [vmem:[%s529 + $0xd58] sm:$0xff]
        %v5342 = vld [vmem:[%s529 + $0xd60] sm:$0xff]
        %v5343 = vld [vmem:[%s529 + $0xd68] sm:$0xff]
        %v5344 = vld [vmem:[%s529 + $0xd70] sm:$0xff]
        %v5345 = vld [vmem:[%s529 + $0xd78] sm:$0xff]
        %v5346 = vld [vmem:[%s529 + $0xd80] sm:$0xff]
        %v5347 = vld [vmem:[%s529 + $0xd88] sm:$0xff]
        %v5348 = vld [vmem:[%s529 + $0xd90] sm:$0xff]
        %v5349 = vld [vmem:[%s529 + $0xd98] sm:$0xff]
        %v5350 = vld [vmem:[%s529 + $0xda0] sm:$0xff]
        %v5351 = vld [vmem:[%s529 + $0xda8] sm:$0xff]
        %v5352 = vld [vmem:[%s529 + $0xdb0] sm:$0xff]
        %v5353 = vld [vmem:[%s529 + $0xdb8] sm:$0xff]
        %v5354 = vld [vmem:[%s529 + $0xdc0] sm:$0xff]
        %v5355 = vld [vmem:[%s529 + $0xdc8] sm:$0xff]
        %v5356 = vld [vmem:[%s529 + $0xdd0] sm:$0xff]
        %v5357 = vld [vmem:[%s529 + $0xdd8] sm:$0xff]
        %v5358 = vld [vmem:[%s529 + $0xde0] sm:$0xff]
        %v5359 = vld [vmem:[%s529 + $0xde8] sm:$0xff]
        %v5360 = vld [vmem:[%s529 + $0xdf0] sm:$0xff]
        %v5361 = vld [vmem:[%s529 + $0xdf8] sm:$0xff]
        %v5362 = vld [vmem:[%s529 + $0xe00] sm:$0xff]
        %v5363 = vld [vmem:[%s529 + $0xe08] sm:$0xff]
        %v5364 = vld [vmem:[%s529 + $0xe10] sm:$0xff]
        %v5365 = vld [vmem:[%s529 + $0xe18] sm:$0xff]
        %v5366 = vld [vmem:[%s529 + $0xe20] sm:$0xff]
        %v5367 = vld [vmem:[%s529 + $0xe28] sm:$0xff]
        %v5368 = vld [vmem:[%s529 + $0xe30] sm:$0xff]
        %v5369 = vld [vmem:[%s529 + $0xe38] sm:$0xff]
        %v5370 = vld [vmem:[%s529 + $0xe40] sm:$0xff]
        %v5371 = vld [vmem:[%s529 + $0xe48] sm:$0xff]
        %v5372 = vld [vmem:[%s529 + $0xe50] sm:$0xff]
        %v5373 = vld [vmem:[%s529 + $0xe58] sm:$0xff]
        %v5374 = vld [vmem:[%s529 + $0xe60] sm:$0xff]
        %v5375 = vld [vmem:[%s529 + $0xe68] sm:$0xff]
        %v5376 = vld [vmem:[%s529 + $0xe70] sm:$0xff]
        %v5377 = vld [vmem:[%s529 + $0xe78] sm:$0xff]
        %v5378 = vld [vmem:[%s529 + $0xe80] sm:$0xff]
        %v5379 = vld [vmem:[%s529 + $0xe88] sm:$0xff]
        %v5380 = vld [vmem:[%s529 + $0xe90] sm:$0xff]
        %v5381 = vld [vmem:[%s529 + $0xe98] sm:$0xff]
        %v5382 = vld [vmem:[%s529 + $0xea0] sm:$0xff]
        %v5383 = vld [vmem:[%s529 + $0xea8] sm:$0xff]
        %v5384 = vld [vmem:[%s529 + $0xeb0] sm:$0xff]
        %v5385 = vld [vmem:[%s529 + $0xeb8] sm:$0xff]
        %v5386 = vld [vmem:[%s529 + $0xec0] sm:$0xff]
        %v5387 = vld [vmem:[%s529 + $0xec8] sm:$0xff]
        %v5388 = vld [vmem:[%s529 + $0xed0] sm:$0xff]
        %v5389 = vld [vmem:[%s529 + $0xed8] sm:$0xff]
        %v5390 = vld [vmem:[%s529 + $0xee0] sm:$0xff]
        %v5391 = vld [vmem:[%s529 + $0xee8] sm:$0xff]
        %v5392 = vld [vmem:[%s529 + $0xef0] sm:$0xff]
        %v5393 = vld [vmem:[%s529 + $0xef8] sm:$0xff]
        %v5394 = vld [vmem:[%s529 + $0xf00] sm:$0xff]
        %v5395 = vld [vmem:[%s529 + $0xf08] sm:$0xff]
        %v5396 = vld [vmem:[%s529 + $0xf10] sm:$0xff]
        %v5397 = vld [vmem:[%s529 + $0xf18] sm:$0xff]
        %v5398 = vld [vmem:[%s529 + $0xf20] sm:$0xff]
        %v5399 = vld [vmem:[%s529 + $0xf28] sm:$0xff]
        %v5400 = vld [vmem:[%s529 + $0xf30] sm:$0xff]
        %v5401 = vld [vmem:[%s529 + $0xf38] sm:$0xff]
        %v5402 = vld [vmem:[%s529 + $0xf40] sm:$0xff]
        %v5403 = vld [vmem:[%s529 + $0xf48] sm:$0xff]
        %v5404 = vld [vmem:[%s529 + $0xf50] sm:$0xff]
        %v5405 = vld [vmem:[%s529 + $0xf58] sm:$0xff]
        %v5406 = vld [vmem:[%s529 + $0xf60] sm:$0xff]
        %v5407 = vld [vmem:[%s529 + $0xf68] sm:$0xff]
        %v5408 = vld [vmem:[%s529 + $0xf70] sm:$0xff]
        %v5409 = vld [vmem:[%s529 + $0xf78] sm:$0xff]
        %v5410 = vld [vmem:[%s529 + $0xf80] sm:$0xff]
        %v5411 = vld [vmem:[%s529 + $0xf88] sm:$0xff]
        %v5412 = vld [vmem:[%s529 + $0xf90] sm:$0xff]
        %v5413 = vld [vmem:[%s529 + $0xf98] sm:$0xff]
        %v5414 = vld [vmem:[%s529 + $0xfa0] sm:$0xff]
        %v5415 = vld [vmem:[%s529 + $0xfa8] sm:$0xff]
        %v5416 = vld [vmem:[%s529 + $0xfb0] sm:$0xff]
        %v5417 = vld [vmem:[%s529 + $0xfb8] sm:$0xff]
        %v5418 = vld [vmem:[%s529 + $0xfc0] sm:$0xff]
        %v5419 = vld [vmem:[%s529 + $0xfc8] sm:$0xff]
        %v5420 = vld [vmem:[%s529 + $0xfd0] sm:$0xff]
        %v5421 = vld [vmem:[%s529 + $0xfd8] sm:$0xff]
        %v5422 = vld [vmem:[%s529 + $0xfe0] sm:$0xff]
        %v5423 = vld [vmem:[%s529 + $0xfe8] sm:$0xff]
        %v5424 = vld [vmem:[%s529 + $0xff0] sm:$0xff]
        %v5425 = vld [vmem:[%s529 + $0xff8] sm:$0xff]
        %v5426 = vld [vmem:[%s539] sm:$0xff]
        %v5428 = vperm.slane %v5426, 0
        %v5429 = vperm.slane %v5426, 1
        %v5430 = vperm.slane %v5426, 2
        %v5431 = vperm.slane %v5426, 3
        %v5432 = vperm.slane %v5426, 4
        %v5433 = vperm.slane %v5426, 5
        %v5434 = vperm.slane %v5426, 6
        %v5435 = vperm.slane %v5426, 7
        %v5956 = vunpack.c.l.b16 %v4914
        %v5957 = vunpack.c.h.b16 %v4914
        %v5958 = vunpack.c.l.b16 %v4915
        %v5959 = vunpack.c.h.b16 %v4915
        %v5960 = vunpack.c.l.b16 %v4916
        %v5961 = vunpack.c.h.b16 %v4916
        %v5962 = vunpack.c.l.b16 %v4917
        %v5963 = vunpack.c.h.b16 %v4917
        %v5964 = vunpack.c.l.b16 %v4918
        %v5965 = vunpack.c.h.b16 %v4918
        %v5966 = vunpack.c.l.b16 %v4919
        %v5967 = vunpack.c.h.b16 %v4919
        %v5968 = vunpack.c.l.b16 %v4920
        %v5969 = vunpack.c.h.b16 %v4920
        %v5970 = vunpack.c.l.b16 %v4921
        %v5971 = vunpack.c.h.b16 %v4921
        %v5972 = vunpack.c.l.b16 %v4922
        %v5973 = vunpack.c.h.b16 %v4922
        %v5974 = vunpack.c.l.b16 %v4923
        %v5975 = vunpack.c.h.b16 %v4923
        %v5976 = vunpack.c.l.b16 %v4924
        %v5977 = vunpack.c.h.b16 %v4924
        %v5978 = vunpack.c.l.b16 %v4925
        %v5979 = vunpack.c.h.b16 %v4925
        %v5980 = vunpack.c.l.b16 %v4926
        %v5981 = vunpack.c.h.b16 %v4926
        %v5982 = vunpack.c.l.b16 %v4927
        %v5983 = vunpack.c.h.b16 %v4927
        %v5984 = vunpack.c.l.b16 %v4928
        %v5985 = vunpack.c.h.b16 %v4928
        %v5986 = vunpack.c.l.b16 %v4929
        %v5987 = vunpack.c.h.b16 %v4929
        %v5988 = vunpack.c.l.b16 %v4930
        %v5989 = vunpack.c.h.b16 %v4930
        %v5990 = vunpack.c.l.b16 %v4931
        %v5991 = vunpack.c.h.b16 %v4931
        %v5992 = vunpack.c.l.b16 %v4932
        %v5993 = vunpack.c.h.b16 %v4932
        %v5994 = vunpack.c.l.b16 %v4933
        %v5995 = vunpack.c.h.b16 %v4933
        %v5996 = vunpack.c.l.b16 %v4934
        %v5997 = vunpack.c.h.b16 %v4934
        %v5998 = vunpack.c.l.b16 %v4935
        %v5999 = vunpack.c.h.b16 %v4935
        %v6000 = vunpack.c.l.b16 %v4936
        %v6001 = vunpack.c.h.b16 %v4936
        %v6002 = vunpack.c.l.b16 %v4937
        %v6003 = vunpack.c.h.b16 %v4937
        %v6004 = vunpack.c.l.b16 %v4938
        %v6005 = vunpack.c.h.b16 %v4938
        %v6006 = vunpack.c.l.b16 %v4939
        %v6007 = vunpack.c.h.b16 %v4939
        %v6008 = vunpack.c.l.b16 %v4940
        %v6009 = vunpack.c.h.b16 %v4940
        %v6010 = vunpack.c.l.b16 %v4941
        %v6011 = vunpack.c.h.b16 %v4941
        %v6012 = vunpack.c.l.b16 %v4942
        %v6013 = vunpack.c.h.b16 %v4942
        %v6014 = vunpack.c.l.b16 %v4943
        %v6015 = vunpack.c.h.b16 %v4943
        %v6016 = vunpack.c.l.b16 %v4944
        %v6017 = vunpack.c.h.b16 %v4944
        %v6018 = vunpack.c.l.b16 %v4945
        %v6019 = vunpack.c.h.b16 %v4945
        %v6020 = vunpack.c.l.b16 %v4946
        %v6021 = vunpack.c.h.b16 %v4946
        %v6022 = vunpack.c.l.b16 %v4947
        %v6023 = vunpack.c.h.b16 %v4947
        %v6024 = vunpack.c.l.b16 %v4948
        %v6025 = vunpack.c.h.b16 %v4948
        %v6026 = vunpack.c.l.b16 %v4949
        %v6027 = vunpack.c.h.b16 %v4949
        %v6028 = vunpack.c.l.b16 %v4950
        %v6029 = vunpack.c.h.b16 %v4950
        %v6030 = vunpack.c.l.b16 %v4951
        %v6031 = vunpack.c.h.b16 %v4951
        %v6032 = vunpack.c.l.b16 %v4952
        %v6033 = vunpack.c.h.b16 %v4952
        %v6034 = vunpack.c.l.b16 %v4953
        %v6035 = vunpack.c.h.b16 %v4953
        %v6036 = vunpack.c.l.b16 %v4954
        %v6037 = vunpack.c.h.b16 %v4954
        %v6038 = vunpack.c.l.b16 %v4955
        %v6039 = vunpack.c.h.b16 %v4955
        %v6040 = vunpack.c.l.b16 %v4956
        %v6041 = vunpack.c.h.b16 %v4956
        %v6042 = vunpack.c.l.b16 %v4957
        %v6043 = vunpack.c.h.b16 %v4957
        %v6044 = vunpack.c.l.b16 %v4958
        %v6045 = vunpack.c.h.b16 %v4958
        %v6046 = vunpack.c.l.b16 %v4959
        %v6047 = vunpack.c.h.b16 %v4959
        %v6048 = vunpack.c.l.b16 %v4960
        %v6049 = vunpack.c.h.b16 %v4960
        %v6050 = vunpack.c.l.b16 %v4961
        %v6051 = vunpack.c.h.b16 %v4961
        %v6052 = vunpack.c.l.b16 %v4962
        %v6053 = vunpack.c.h.b16 %v4962
        %v6054 = vunpack.c.l.b16 %v4963
        %v6055 = vunpack.c.h.b16 %v4963
        %v6056 = vunpack.c.l.b16 %v4964
        %v6057 = vunpack.c.h.b16 %v4964
        %v6058 = vunpack.c.l.b16 %v4965
        %v6059 = vunpack.c.h.b16 %v4965
        %v6060 = vunpack.c.l.b16 %v4966
        %v6061 = vunpack.c.h.b16 %v4966
        %v6062 = vunpack.c.l.b16 %v4967
        %v6063 = vunpack.c.h.b16 %v4967
        %v6064 = vunpack.c.l.b16 %v4968
        %v6065 = vunpack.c.h.b16 %v4968
        %v6066 = vunpack.c.l.b16 %v4969
        %v6067 = vunpack.c.h.b16 %v4969
        %v6068 = vunpack.c.l.b16 %v4970
        %v6069 = vunpack.c.h.b16 %v4970
        %v6070 = vunpack.c.l.b16 %v4971
        %v6071 = vunpack.c.h.b16 %v4971
        %v6072 = vunpack.c.l.b16 %v4972
        %v6073 = vunpack.c.h.b16 %v4972
        %v6074 = vunpack.c.l.b16 %v4973
        %v6075 = vunpack.c.h.b16 %v4973
        %v6076 = vunpack.c.l.b16 %v4974
        %v6077 = vunpack.c.h.b16 %v4974
        %v6078 = vunpack.c.l.b16 %v4975
        %v6079 = vunpack.c.h.b16 %v4975
        %v6080 = vunpack.c.l.b16 %v4976
        %v6081 = vunpack.c.h.b16 %v4976
        %v6082 = vunpack.c.l.b16 %v4977
        %v6083 = vunpack.c.h.b16 %v4977
        %v6084 = vunpack.c.l.b16 %v4978
        %v6085 = vunpack.c.h.b16 %v4978
        %v6086 = vunpack.c.l.b16 %v4979
        %v6087 = vunpack.c.h.b16 %v4979
        %v6088 = vunpack.c.l.b16 %v4980
        %v6089 = vunpack.c.h.b16 %v4980
        %v6090 = vunpack.c.l.b16 %v4981
        %v6091 = vunpack.c.h.b16 %v4981
        %v6092 = vunpack.c.l.b16 %v4982
        %v6093 = vunpack.c.h.b16 %v4982
        %v6094 = vunpack.c.l.b16 %v4983
        %v6095 = vunpack.c.h.b16 %v4983
        %v6096 = vunpack.c.l.b16 %v4984
        %v6097 = vunpack.c.h.b16 %v4984
        %v6098 = vunpack.c.l.b16 %v4985
        %v6099 = vunpack.c.h.b16 %v4985
        %v6100 = vunpack.c.l.b16 %v4986
        %v6101 = vunpack.c.h.b16 %v4986
        %v6102 = vunpack.c.l.b16 %v4987
        %v6103 = vunpack.c.h.b16 %v4987
        %v6104 = vunpack.c.l.b16 %v4988
        %v6105 = vunpack.c.h.b16 %v4988
        %v6106 = vunpack.c.l.b16 %v4989
        %v6107 = vunpack.c.h.b16 %v4989
        %v6108 = vunpack.c.l.b16 %v4990
        %v6109 = vunpack.c.h.b16 %v4990
        %v6110 = vunpack.c.l.b16 %v4991
        %v6111 = vunpack.c.h.b16 %v4991
        %v6112 = vunpack.c.l.b16 %v4992
        %v6113 = vunpack.c.h.b16 %v4992
        %v6114 = vunpack.c.l.b16 %v4993
        %v6115 = vunpack.c.h.b16 %v4993
        %v6116 = vunpack.c.l.b16 %v4994
        %v6117 = vunpack.c.h.b16 %v4994
        %v6118 = vunpack.c.l.b16 %v4995
        %v6119 = vunpack.c.h.b16 %v4995
        %v6120 = vunpack.c.l.b16 %v4996
        %v6121 = vunpack.c.h.b16 %v4996
        %v6122 = vunpack.c.l.b16 %v4997
        %v6123 = vunpack.c.h.b16 %v4997
        %v6124 = vunpack.c.l.b16 %v4998
        %v6125 = vunpack.c.h.b16 %v4998
        %v6126 = vunpack.c.l.b16 %v4999
        %v6127 = vunpack.c.h.b16 %v4999
        %v6128 = vunpack.c.l.b16 %v5000
        %v6129 = vunpack.c.h.b16 %v5000
        %v6130 = vunpack.c.l.b16 %v5001
        %v6131 = vunpack.c.h.b16 %v5001
        %v6132 = vunpack.c.l.b16 %v5002
        %v6133 = vunpack.c.h.b16 %v5002
        %v6134 = vunpack.c.l.b16 %v5003
        %v6135 = vunpack.c.h.b16 %v5003
        %v6136 = vunpack.c.l.b16 %v5004
        %v6137 = vunpack.c.h.b16 %v5004
        %v6138 = vunpack.c.l.b16 %v5005
        %v6139 = vunpack.c.h.b16 %v5005
        %v6140 = vunpack.c.l.b16 %v5006
        %v6141 = vunpack.c.h.b16 %v5006
        %v6142 = vunpack.c.l.b16 %v5007
        %v6143 = vunpack.c.h.b16 %v5007
        %v6144 = vunpack.c.l.b16 %v5008
        %v6145 = vunpack.c.h.b16 %v5008
        %v6146 = vunpack.c.l.b16 %v5009
        %v6147 = vunpack.c.h.b16 %v5009
        %v6148 = vunpack.c.l.b16 %v5010
        %v6149 = vunpack.c.h.b16 %v5010
        %v6150 = vunpack.c.l.b16 %v5011
        %v6151 = vunpack.c.h.b16 %v5011
        %v6152 = vunpack.c.l.b16 %v5012
        %v6153 = vunpack.c.h.b16 %v5012
        %v6154 = vunpack.c.l.b16 %v5013
        %v6155 = vunpack.c.h.b16 %v5013
        %v6156 = vunpack.c.l.b16 %v5014
        %v6157 = vunpack.c.h.b16 %v5014
        %v6158 = vunpack.c.l.b16 %v5015
        %v6159 = vunpack.c.h.b16 %v5015
        %v6160 = vunpack.c.l.b16 %v5016
        %v6161 = vunpack.c.h.b16 %v5016
        %v6162 = vunpack.c.l.b16 %v5017
        %v6163 = vunpack.c.h.b16 %v5017
        %v6164 = vunpack.c.l.b16 %v5018
        %v6165 = vunpack.c.h.b16 %v5018
        %v6166 = vunpack.c.l.b16 %v5019
        %v6167 = vunpack.c.h.b16 %v5019
        %v6168 = vunpack.c.l.b16 %v5020
        %v6169 = vunpack.c.h.b16 %v5020
        %v6170 = vunpack.c.l.b16 %v5021
        %v6171 = vunpack.c.h.b16 %v5021
        %v6172 = vunpack.c.l.b16 %v5022
        %v6173 = vunpack.c.h.b16 %v5022
        %v6174 = vunpack.c.l.b16 %v5023
        %v6175 = vunpack.c.h.b16 %v5023
        %v6176 = vunpack.c.l.b16 %v5024
        %v6177 = vunpack.c.h.b16 %v5024
        %v6178 = vunpack.c.l.b16 %v5025
        %v6179 = vunpack.c.h.b16 %v5025
        %v6180 = vunpack.c.l.b16 %v5026
        %v6181 = vunpack.c.h.b16 %v5026
        %v6182 = vunpack.c.l.b16 %v5027
        %v6183 = vunpack.c.h.b16 %v5027
        %v6184 = vunpack.c.l.b16 %v5028
        %v6185 = vunpack.c.h.b16 %v5028
        %v6186 = vunpack.c.l.b16 %v5029
        %v6187 = vunpack.c.h.b16 %v5029
        %v6188 = vunpack.c.l.b16 %v5030
        %v6189 = vunpack.c.h.b16 %v5030
        %v6190 = vunpack.c.l.b16 %v5031
        %v6191 = vunpack.c.h.b16 %v5031
        %v6192 = vunpack.c.l.b16 %v5032
        %v6193 = vunpack.c.h.b16 %v5032
        %v6194 = vunpack.c.l.b16 %v5033
        %v6195 = vunpack.c.h.b16 %v5033
        %v6196 = vunpack.c.l.b16 %v5034
        %v6197 = vunpack.c.h.b16 %v5034
        %v6198 = vunpack.c.l.b16 %v5035
        %v6199 = vunpack.c.h.b16 %v5035
        %v6200 = vunpack.c.l.b16 %v5036
        %v6201 = vunpack.c.h.b16 %v5036
        %v6202 = vunpack.c.l.b16 %v5037
        %v6203 = vunpack.c.h.b16 %v5037
        %v6204 = vunpack.c.l.b16 %v5038
        %v6205 = vunpack.c.h.b16 %v5038
        %v6206 = vunpack.c.l.b16 %v5039
        %v6207 = vunpack.c.h.b16 %v5039
        %v6208 = vunpack.c.l.b16 %v5040
        %v6209 = vunpack.c.h.b16 %v5040
        %v6210 = vunpack.c.l.b16 %v5041
        %v6211 = vunpack.c.h.b16 %v5041
        %v6212 = vunpack.c.l.b16 %v5042
        %v6213 = vunpack.c.h.b16 %v5042
        %v6214 = vunpack.c.l.b16 %v5043
        %v6215 = vunpack.c.h.b16 %v5043
        %v6216 = vunpack.c.l.b16 %v5044
        %v6217 = vunpack.c.h.b16 %v5044
        %v6218 = vunpack.c.l.b16 %v5045
        %v6219 = vunpack.c.h.b16 %v5045
        %v6220 = vunpack.c.l.b16 %v5046
        %v6221 = vunpack.c.h.b16 %v5046
        %v6222 = vunpack.c.l.b16 %v5047
        %v6223 = vunpack.c.h.b16 %v5047
        %v6224 = vunpack.c.l.b16 %v5048
        %v6225 = vunpack.c.h.b16 %v5048
        %v6226 = vunpack.c.l.b16 %v5049
        %v6227 = vunpack.c.h.b16 %v5049
        %v6228 = vunpack.c.l.b16 %v5050
        %v6229 = vunpack.c.h.b16 %v5050
        %v6230 = vunpack.c.l.b16 %v5051
        %v6231 = vunpack.c.h.b16 %v5051
        %v6232 = vunpack.c.l.b16 %v5052
        %v6233 = vunpack.c.h.b16 %v5052
        %v6234 = vunpack.c.l.b16 %v5053
        %v6235 = vunpack.c.h.b16 %v5053
        %v6236 = vunpack.c.l.b16 %v5054
        %v6237 = vunpack.c.h.b16 %v5054
        %v6238 = vunpack.c.l.b16 %v5055
        %v6239 = vunpack.c.h.b16 %v5055
        %v6240 = vunpack.c.l.b16 %v5056
        %v6241 = vunpack.c.h.b16 %v5056
        %v6242 = vunpack.c.l.b16 %v5057
        %v6243 = vunpack.c.h.b16 %v5057
        %v6244 = vunpack.c.l.b16 %v5058
        %v6245 = vunpack.c.h.b16 %v5058
        %v6246 = vunpack.c.l.b16 %v5059
        %v6247 = vunpack.c.h.b16 %v5059
        %v6248 = vunpack.c.l.b16 %v5060
        %v6249 = vunpack.c.h.b16 %v5060
        %v6250 = vunpack.c.l.b16 %v5061
        %v6251 = vunpack.c.h.b16 %v5061
        %v6252 = vunpack.c.l.b16 %v5062
        %v6253 = vunpack.c.h.b16 %v5062
        %v6254 = vunpack.c.l.b16 %v5063
        %v6255 = vunpack.c.h.b16 %v5063
        %v6256 = vunpack.c.l.b16 %v5064
        %v6257 = vunpack.c.h.b16 %v5064
        %v6258 = vunpack.c.l.b16 %v5065
        %v6259 = vunpack.c.h.b16 %v5065
        %v6260 = vunpack.c.l.b16 %v5066
        %v6261 = vunpack.c.h.b16 %v5066
        %v6262 = vunpack.c.l.b16 %v5067
        %v6263 = vunpack.c.h.b16 %v5067
        %v6264 = vunpack.c.l.b16 %v5068
        %v6265 = vunpack.c.h.b16 %v5068
        %v6266 = vunpack.c.l.b16 %v5069
        %v6267 = vunpack.c.h.b16 %v5069
        %v6268 = vunpack.c.l.b16 %v5070
        %v6269 = vunpack.c.h.b16 %v5070
        %v6270 = vunpack.c.l.b16 %v5071
        %v6271 = vunpack.c.h.b16 %v5071
        %v6272 = vunpack.c.l.b16 %v5072
        %v6273 = vunpack.c.h.b16 %v5072
        %v6274 = vunpack.c.l.b16 %v5073
        %v6275 = vunpack.c.h.b16 %v5073
        %v6276 = vunpack.c.l.b16 %v5074
        %v6277 = vunpack.c.h.b16 %v5074
        %v6278 = vunpack.c.l.b16 %v5075
        %v6279 = vunpack.c.h.b16 %v5075
        %v6280 = vunpack.c.l.b16 %v5076
        %v6281 = vunpack.c.h.b16 %v5076
        %v6282 = vunpack.c.l.b16 %v5077
        %v6283 = vunpack.c.h.b16 %v5077
        %v6284 = vunpack.c.l.b16 %v5078
        %v6285 = vunpack.c.h.b16 %v5078
        %v6286 = vunpack.c.l.b16 %v5079
        %v6287 = vunpack.c.h.b16 %v5079
        %v6288 = vunpack.c.l.b16 %v5080
        %v6289 = vunpack.c.h.b16 %v5080
        %v6290 = vunpack.c.l.b16 %v5081
        %v6291 = vunpack.c.h.b16 %v5081
        %v6292 = vunpack.c.l.b16 %v5082
        %v6293 = vunpack.c.h.b16 %v5082
        %v6294 = vunpack.c.l.b16 %v5083
        %v6295 = vunpack.c.h.b16 %v5083
        %v6296 = vunpack.c.l.b16 %v5084
        %v6297 = vunpack.c.h.b16 %v5084
        %v6298 = vunpack.c.l.b16 %v5085
        %v6299 = vunpack.c.h.b16 %v5085
        %v6300 = vunpack.c.l.b16 %v5086
        %v6301 = vunpack.c.h.b16 %v5086
        %v6302 = vunpack.c.l.b16 %v5087
        %v6303 = vunpack.c.h.b16 %v5087
        %v6304 = vunpack.c.l.b16 %v5088
        %v6305 = vunpack.c.h.b16 %v5088
        %v6306 = vunpack.c.l.b16 %v5089
        %v6307 = vunpack.c.h.b16 %v5089
        %v6308 = vunpack.c.l.b16 %v5090
        %v6309 = vunpack.c.h.b16 %v5090
        %v6310 = vunpack.c.l.b16 %v5091
        %v6311 = vunpack.c.h.b16 %v5091
        %v6312 = vunpack.c.l.b16 %v5092
        %v6313 = vunpack.c.h.b16 %v5092
        %v6314 = vunpack.c.l.b16 %v5093
        %v6315 = vunpack.c.h.b16 %v5093
        %v6316 = vunpack.c.l.b16 %v5094
        %v6317 = vunpack.c.h.b16 %v5094
        %v6318 = vunpack.c.l.b16 %v5095
        %v6319 = vunpack.c.h.b16 %v5095
        %v6320 = vunpack.c.l.b16 %v5096
        %v6321 = vunpack.c.h.b16 %v5096
        %v6322 = vunpack.c.l.b16 %v5097
        %v6323 = vunpack.c.h.b16 %v5097
        %v6324 = vunpack.c.l.b16 %v5098
        %v6325 = vunpack.c.h.b16 %v5098
        %v6326 = vunpack.c.l.b16 %v5099
        %v6327 = vunpack.c.h.b16 %v5099
        %v6328 = vunpack.c.l.b16 %v5100
        %v6329 = vunpack.c.h.b16 %v5100
        %v6330 = vunpack.c.l.b16 %v5101
        %v6331 = vunpack.c.h.b16 %v5101
        %v6332 = vunpack.c.l.b16 %v5102
        %v6333 = vunpack.c.h.b16 %v5102
        %v6334 = vunpack.c.l.b16 %v5103
        %v6335 = vunpack.c.h.b16 %v5103
        %v6336 = vunpack.c.l.b16 %v5104
        %v6337 = vunpack.c.h.b16 %v5104
        %v6338 = vunpack.c.l.b16 %v5105
        %v6339 = vunpack.c.h.b16 %v5105
        %v6340 = vunpack.c.l.b16 %v5106
        %v6341 = vunpack.c.h.b16 %v5106
        %v6342 = vunpack.c.l.b16 %v5107
        %v6343 = vunpack.c.h.b16 %v5107
        %v6344 = vunpack.c.l.b16 %v5108
        %v6345 = vunpack.c.h.b16 %v5108
        %v6346 = vunpack.c.l.b16 %v5109
        %v6347 = vunpack.c.h.b16 %v5109
        %v6348 = vunpack.c.l.b16 %v5110
        %v6349 = vunpack.c.h.b16 %v5110
        %v6350 = vunpack.c.l.b16 %v5111
        %v6351 = vunpack.c.h.b16 %v5111
        %v6352 = vunpack.c.l.b16 %v5112
        %v6353 = vunpack.c.h.b16 %v5112
        %v6354 = vunpack.c.l.b16 %v5113
        %v6355 = vunpack.c.h.b16 %v5113
        %v6356 = vunpack.c.l.b16 %v5114
        %v6357 = vunpack.c.h.b16 %v5114
        %v6358 = vunpack.c.l.b16 %v5115
        %v6359 = vunpack.c.h.b16 %v5115
        %v6360 = vunpack.c.l.b16 %v5116
        %v6361 = vunpack.c.h.b16 %v5116
        %v6362 = vunpack.c.l.b16 %v5117
        %v6363 = vunpack.c.h.b16 %v5117
        %v6364 = vunpack.c.l.b16 %v5118
        %v6365 = vunpack.c.h.b16 %v5118
        %v6366 = vunpack.c.l.b16 %v5119
        %v6367 = vunpack.c.h.b16 %v5119
        %v6368 = vunpack.c.l.b16 %v5120
        %v6369 = vunpack.c.h.b16 %v5120
        %v6370 = vunpack.c.l.b16 %v5121
        %v6371 = vunpack.c.h.b16 %v5121
        %v6372 = vunpack.c.l.b16 %v5122
        %v6373 = vunpack.c.h.b16 %v5122
        %v6374 = vunpack.c.l.b16 %v5123
        %v6375 = vunpack.c.h.b16 %v5123
        %v6376 = vunpack.c.l.b16 %v5124
        %v6377 = vunpack.c.h.b16 %v5124
        %v6378 = vunpack.c.l.b16 %v5125
        %v6379 = vunpack.c.h.b16 %v5125
        %v6380 = vunpack.c.l.b16 %v5126
        %v6381 = vunpack.c.h.b16 %v5126
        %v6382 = vunpack.c.l.b16 %v5127
        %v6383 = vunpack.c.h.b16 %v5127
        %v6384 = vunpack.c.l.b16 %v5128
        %v6385 = vunpack.c.h.b16 %v5128
        %v6386 = vunpack.c.l.b16 %v5129
        %v6387 = vunpack.c.h.b16 %v5129
        %v6388 = vunpack.c.l.b16 %v5130
        %v6389 = vunpack.c.h.b16 %v5130
        %v6390 = vunpack.c.l.b16 %v5131
        %v6391 = vunpack.c.h.b16 %v5131
        %v6392 = vunpack.c.l.b16 %v5132
        %v6393 = vunpack.c.h.b16 %v5132
        %v6394 = vunpack.c.l.b16 %v5133
        %v6395 = vunpack.c.h.b16 %v5133
        %v6396 = vunpack.c.l.b16 %v5134
        %v6397 = vunpack.c.h.b16 %v5134
        %v6398 = vunpack.c.l.b16 %v5135
        %v6399 = vunpack.c.h.b16 %v5135
        %v6400 = vunpack.c.l.b16 %v5136
        %v6401 = vunpack.c.h.b16 %v5136
        %v6402 = vunpack.c.l.b16 %v5137
        %v6403 = vunpack.c.h.b16 %v5137
        %v6404 = vunpack.c.l.b16 %v5138
        %v6405 = vunpack.c.h.b16 %v5138
        %v6406 = vunpack.c.l.b16 %v5139
        %v6407 = vunpack.c.h.b16 %v5139
        %v6408 = vunpack.c.l.b16 %v5140
        %v6409 = vunpack.c.h.b16 %v5140
        %v6410 = vunpack.c.l.b16 %v5141
        %v6411 = vunpack.c.h.b16 %v5141
        %v6412 = vunpack.c.l.b16 %v5142
        %v6413 = vunpack.c.h.b16 %v5142
        %v6414 = vunpack.c.l.b16 %v5143
        %v6415 = vunpack.c.h.b16 %v5143
        %v6416 = vunpack.c.l.b16 %v5144
        %v6417 = vunpack.c.h.b16 %v5144
        %v6418 = vunpack.c.l.b16 %v5145
        %v6419 = vunpack.c.h.b16 %v5145
        %v6420 = vunpack.c.l.b16 %v5146
        %v6421 = vunpack.c.h.b16 %v5146
        %v6422 = vunpack.c.l.b16 %v5147
        %v6423 = vunpack.c.h.b16 %v5147
        %v6424 = vunpack.c.l.b16 %v5148
        %v6425 = vunpack.c.h.b16 %v5148
        %v6426 = vunpack.c.l.b16 %v5149
        %v6427 = vunpack.c.h.b16 %v5149
        %v6428 = vunpack.c.l.b16 %v5150
        %v6429 = vunpack.c.h.b16 %v5150
        %v6430 = vunpack.c.l.b16 %v5151
        %v6431 = vunpack.c.h.b16 %v5151
        %v6432 = vunpack.c.l.b16 %v5152
        %v6433 = vunpack.c.h.b16 %v5152
        %v6434 = vunpack.c.l.b16 %v5153
        %v6435 = vunpack.c.h.b16 %v5153
        %v6436 = vunpack.c.l.b16 %v5154
        %v6437 = vunpack.c.h.b16 %v5154
        %v6438 = vunpack.c.l.b16 %v5155
        %v6439 = vunpack.c.h.b16 %v5155
        %v6440 = vunpack.c.l.b16 %v5156
        %v6441 = vunpack.c.h.b16 %v5156
        %v6442 = vunpack.c.l.b16 %v5157
        %v6443 = vunpack.c.h.b16 %v5157
        %v6444 = vunpack.c.l.b16 %v5158
        %v6445 = vunpack.c.h.b16 %v5158
        %v6446 = vunpack.c.l.b16 %v5159
        %v6447 = vunpack.c.h.b16 %v5159
        %v6448 = vunpack.c.l.b16 %v5160
        %v6449 = vunpack.c.h.b16 %v5160
        %v6450 = vunpack.c.l.b16 %v5161
        %v6451 = vunpack.c.h.b16 %v5161
        %v6452 = vunpack.c.l.b16 %v5162
        %v6453 = vunpack.c.h.b16 %v5162
        %v6454 = vunpack.c.l.b16 %v5163
        %v6455 = vunpack.c.h.b16 %v5163
        %v6456 = vunpack.c.l.b16 %v5164
        %v6457 = vunpack.c.h.b16 %v5164
        %v6458 = vunpack.c.l.b16 %v5165
        %v6459 = vunpack.c.h.b16 %v5165
        %v6460 = vunpack.c.l.b16 %v5166
        %v6461 = vunpack.c.h.b16 %v5166
        %v6462 = vunpack.c.l.b16 %v5167
        %v6463 = vunpack.c.h.b16 %v5167
        %v6464 = vunpack.c.l.b16 %v5168
        %v6465 = vunpack.c.h.b16 %v5168
        %v6466 = vunpack.c.l.b16 %v5169
        %v6467 = vunpack.c.h.b16 %v5169
        %v6468 = vunpack.c.l.b16 %v5170
        %v6469 = vunpack.c.h.b16 %v5170
        %v6470 = vunpack.c.l.b16 %v5171
        %v6471 = vunpack.c.h.b16 %v5171
        %v6472 = vunpack.c.l.b16 %v5172
        %v6473 = vunpack.c.h.b16 %v5172
        %v6474 = vunpack.c.l.b16 %v5173
        %v6475 = vunpack.c.h.b16 %v5173
        %v6476 = vunpack.c.l.b16 %v5174
        %v6477 = vunpack.c.h.b16 %v5174
        %v6478 = vunpack.c.l.b16 %v5175
        %v6479 = vunpack.c.h.b16 %v5175
        %v6480 = vunpack.c.l.b16 %v5176
        %v6481 = vunpack.c.h.b16 %v5176
        %v6482 = vunpack.c.l.b16 %v5177
        %v6483 = vunpack.c.h.b16 %v5177
        %v6484 = vunpack.c.l.b16 %v5178
        %v6485 = vunpack.c.h.b16 %v5178
        %v6486 = vunpack.c.l.b16 %v5179
        %v6487 = vunpack.c.h.b16 %v5179
        %v6488 = vunpack.c.l.b16 %v5180
        %v6489 = vunpack.c.h.b16 %v5180
        %v6490 = vunpack.c.l.b16 %v5181
        %v6491 = vunpack.c.h.b16 %v5181
        %v6492 = vunpack.c.l.b16 %v5182
        %v6493 = vunpack.c.h.b16 %v5182
        %v6494 = vunpack.c.l.b16 %v5183
        %v6495 = vunpack.c.h.b16 %v5183
        %v6496 = vunpack.c.l.b16 %v5184
        %v6497 = vunpack.c.h.b16 %v5184
        %v6498 = vunpack.c.l.b16 %v5185
        %v6499 = vunpack.c.h.b16 %v5185
        %v6500 = vunpack.c.l.b16 %v5186
        %v6501 = vunpack.c.h.b16 %v5186
        %v6502 = vunpack.c.l.b16 %v5187
        %v6503 = vunpack.c.h.b16 %v5187
        %v6504 = vunpack.c.l.b16 %v5188
        %v6505 = vunpack.c.h.b16 %v5188
        %v6506 = vunpack.c.l.b16 %v5189
        %v6507 = vunpack.c.h.b16 %v5189
        %v6508 = vunpack.c.l.b16 %v5190
        %v6509 = vunpack.c.h.b16 %v5190
        %v6510 = vunpack.c.l.b16 %v5191
        %v6511 = vunpack.c.h.b16 %v5191
        %v6512 = vunpack.c.l.b16 %v5192
        %v6513 = vunpack.c.h.b16 %v5192
        %v6514 = vunpack.c.l.b16 %v5193
        %v6515 = vunpack.c.h.b16 %v5193
        %v6516 = vunpack.c.l.b16 %v5194
        %v6517 = vunpack.c.h.b16 %v5194
        %v6518 = vunpack.c.l.b16 %v5195
        %v6519 = vunpack.c.h.b16 %v5195
        %v6520 = vunpack.c.l.b16 %v5196
        %v6521 = vunpack.c.h.b16 %v5196
        %v6522 = vunpack.c.l.b16 %v5197
        %v6523 = vunpack.c.h.b16 %v5197
        %v6524 = vunpack.c.l.b16 %v5198
        %v6525 = vunpack.c.h.b16 %v5198
        %v6526 = vunpack.c.l.b16 %v5199
        %v6527 = vunpack.c.h.b16 %v5199
        %v6528 = vunpack.c.l.b16 %v5200
        %v6529 = vunpack.c.h.b16 %v5200
        %v6530 = vunpack.c.l.b16 %v5201
        %v6531 = vunpack.c.h.b16 %v5201
        %v6532 = vunpack.c.l.b16 %v5202
        %v6533 = vunpack.c.h.b16 %v5202
        %v6534 = vunpack.c.l.b16 %v5203
        %v6535 = vunpack.c.h.b16 %v5203
        %v6536 = vunpack.c.l.b16 %v5204
        %v6537 = vunpack.c.h.b16 %v5204
        %v6538 = vunpack.c.l.b16 %v5205
        %v6539 = vunpack.c.h.b16 %v5205
        %v6540 = vunpack.c.l.b16 %v5206
        %v6541 = vunpack.c.h.b16 %v5206
        %v6542 = vunpack.c.l.b16 %v5207
        %v6543 = vunpack.c.h.b16 %v5207
        %v6544 = vunpack.c.l.b16 %v5208
        %v6545 = vunpack.c.h.b16 %v5208
        %v6546 = vunpack.c.l.b16 %v5209
        %v6547 = vunpack.c.h.b16 %v5209
        %v6548 = vunpack.c.l.b16 %v5210
        %v6549 = vunpack.c.h.b16 %v5210
        %v6550 = vunpack.c.l.b16 %v5211
        %v6551 = vunpack.c.h.b16 %v5211
        %v6552 = vunpack.c.l.b16 %v5212
        %v6553 = vunpack.c.h.b16 %v5212
        %v6554 = vunpack.c.l.b16 %v5213
        %v6555 = vunpack.c.h.b16 %v5213
        %v6556 = vunpack.c.l.b16 %v5214
        %v6557 = vunpack.c.h.b16 %v5214
        %v6558 = vunpack.c.l.b16 %v5215
        %v6559 = vunpack.c.h.b16 %v5215
        %v6560 = vunpack.c.l.b16 %v5216
        %v6561 = vunpack.c.h.b16 %v5216
        %v6562 = vunpack.c.l.b16 %v5217
        %v6563 = vunpack.c.h.b16 %v5217
        %v6564 = vunpack.c.l.b16 %v5218
        %v6565 = vunpack.c.h.b16 %v5218
        %v6566 = vunpack.c.l.b16 %v5219
        %v6567 = vunpack.c.h.b16 %v5219
        %v6568 = vunpack.c.l.b16 %v5220
        %v6569 = vunpack.c.h.b16 %v5220
        %v6570 = vunpack.c.l.b16 %v5221
        %v6571 = vunpack.c.h.b16 %v5221
        %v6572 = vunpack.c.l.b16 %v5222
        %v6573 = vunpack.c.h.b16 %v5222
        %v6574 = vunpack.c.l.b16 %v5223
        %v6575 = vunpack.c.h.b16 %v5223
        %v6576 = vunpack.c.l.b16 %v5224
        %v6577 = vunpack.c.h.b16 %v5224
        %v6578 = vunpack.c.l.b16 %v5225
        %v6579 = vunpack.c.h.b16 %v5225
        %v6580 = vunpack.c.l.b16 %v5226
        %v6581 = vunpack.c.h.b16 %v5226
        %v6582 = vunpack.c.l.b16 %v5227
        %v6583 = vunpack.c.h.b16 %v5227
        %v6584 = vunpack.c.l.b16 %v5228
        %v6585 = vunpack.c.h.b16 %v5228
        %v6586 = vunpack.c.l.b16 %v5229
        %v6587 = vunpack.c.h.b16 %v5229
        %v6588 = vunpack.c.l.b16 %v5230
        %v6589 = vunpack.c.h.b16 %v5230
        %v6590 = vunpack.c.l.b16 %v5231
        %v6591 = vunpack.c.h.b16 %v5231
        %v6592 = vunpack.c.l.b16 %v5232
        %v6593 = vunpack.c.h.b16 %v5232
        %v6594 = vunpack.c.l.b16 %v5233
        %v6595 = vunpack.c.h.b16 %v5233
        %v6596 = vunpack.c.l.b16 %v5234
        %v6597 = vunpack.c.h.b16 %v5234
        %v6598 = vunpack.c.l.b16 %v5235
        %v6599 = vunpack.c.h.b16 %v5235
        %v6600 = vunpack.c.l.b16 %v5236
        %v6601 = vunpack.c.h.b16 %v5236
        %v6602 = vunpack.c.l.b16 %v5237
        %v6603 = vunpack.c.h.b16 %v5237
        %v6604 = vunpack.c.l.b16 %v5238
        %v6605 = vunpack.c.h.b16 %v5238
        %v6606 = vunpack.c.l.b16 %v5239
        %v6607 = vunpack.c.h.b16 %v5239
        %v6608 = vunpack.c.l.b16 %v5240
        %v6609 = vunpack.c.h.b16 %v5240
        %v6610 = vunpack.c.l.b16 %v5241
        %v6611 = vunpack.c.h.b16 %v5241
        %v6612 = vunpack.c.l.b16 %v5242
        %v6613 = vunpack.c.h.b16 %v5242
        %v6614 = vunpack.c.l.b16 %v5243
        %v6615 = vunpack.c.h.b16 %v5243
        %v6616 = vunpack.c.l.b16 %v5244
        %v6617 = vunpack.c.h.b16 %v5244
        %v6618 = vunpack.c.l.b16 %v5245
        %v6619 = vunpack.c.h.b16 %v5245
        %v6620 = vunpack.c.l.b16 %v5246
        %v6621 = vunpack.c.h.b16 %v5246
        %v6622 = vunpack.c.l.b16 %v5247
        %v6623 = vunpack.c.h.b16 %v5247
        %v6624 = vunpack.c.l.b16 %v5248
        %v6625 = vunpack.c.h.b16 %v5248
        %v6626 = vunpack.c.l.b16 %v5249
        %v6627 = vunpack.c.h.b16 %v5249
        %v6628 = vunpack.c.l.b16 %v5250
        %v6629 = vunpack.c.h.b16 %v5250
        %v6630 = vunpack.c.l.b16 %v5251
        %v6631 = vunpack.c.h.b16 %v5251
        %v6632 = vunpack.c.l.b16 %v5252
        %v6633 = vunpack.c.h.b16 %v5252
        %v6634 = vunpack.c.l.b16 %v5253
        %v6635 = vunpack.c.h.b16 %v5253
        %v6636 = vunpack.c.l.b16 %v5254
        %v6637 = vunpack.c.h.b16 %v5254
        %v6638 = vunpack.c.l.b16 %v5255
        %v6639 = vunpack.c.h.b16 %v5255
        %v6640 = vunpack.c.l.b16 %v5256
        %v6641 = vunpack.c.h.b16 %v5256
        %v6642 = vunpack.c.l.b16 %v5257
        %v6643 = vunpack.c.h.b16 %v5257
        %v6644 = vunpack.c.l.b16 %v5258
        %v6645 = vunpack.c.h.b16 %v5258
        %v6646 = vunpack.c.l.b16 %v5259
        %v6647 = vunpack.c.h.b16 %v5259
        %v6648 = vunpack.c.l.b16 %v5260
        %v6649 = vunpack.c.h.b16 %v5260
        %v6650 = vunpack.c.l.b16 %v5261
        %v6651 = vunpack.c.h.b16 %v5261
        %v6652 = vunpack.c.l.b16 %v5262
        %v6653 = vunpack.c.h.b16 %v5262
        %v6654 = vunpack.c.l.b16 %v5263
        %v6655 = vunpack.c.h.b16 %v5263
        %v6656 = vunpack.c.l.b16 %v5264
        %v6657 = vunpack.c.h.b16 %v5264
        %v6658 = vunpack.c.l.b16 %v5265
        %v6659 = vunpack.c.h.b16 %v5265
        %v6660 = vunpack.c.l.b16 %v5266
        %v6661 = vunpack.c.h.b16 %v5266
        %v6662 = vunpack.c.l.b16 %v5267
        %v6663 = vunpack.c.h.b16 %v5267
        %v6664 = vunpack.c.l.b16 %v5268
        %v6665 = vunpack.c.h.b16 %v5268
        %v6666 = vunpack.c.l.b16 %v5269
        %v6667 = vunpack.c.h.b16 %v5269
        %v6668 = vunpack.c.l.b16 %v5270
        %v6669 = vunpack.c.h.b16 %v5270
        %v6670 = vunpack.c.l.b16 %v5271
        %v6671 = vunpack.c.h.b16 %v5271
        %v6672 = vunpack.c.l.b16 %v5272
        %v6673 = vunpack.c.h.b16 %v5272
        %v6674 = vunpack.c.l.b16 %v5273
        %v6675 = vunpack.c.h.b16 %v5273
        %v6676 = vunpack.c.l.b16 %v5274
        %v6677 = vunpack.c.h.b16 %v5274
        %v6678 = vunpack.c.l.b16 %v5275
        %v6679 = vunpack.c.h.b16 %v5275
        %v6680 = vunpack.c.l.b16 %v5276
        %v6681 = vunpack.c.h.b16 %v5276
        %v6682 = vunpack.c.l.b16 %v5277
        %v6683 = vunpack.c.h.b16 %v5277
        %v6684 = vunpack.c.l.b16 %v5278
        %v6685 = vunpack.c.h.b16 %v5278
        %v6686 = vunpack.c.l.b16 %v5279
        %v6687 = vunpack.c.h.b16 %v5279
        %v6688 = vunpack.c.l.b16 %v5280
        %v6689 = vunpack.c.h.b16 %v5280
        %v6690 = vunpack.c.l.b16 %v5281
        %v6691 = vunpack.c.h.b16 %v5281
        %v6692 = vunpack.c.l.b16 %v5282
        %v6693 = vunpack.c.h.b16 %v5282
        %v6694 = vunpack.c.l.b16 %v5283
        %v6695 = vunpack.c.h.b16 %v5283
        %v6696 = vunpack.c.l.b16 %v5284
        %v6697 = vunpack.c.h.b16 %v5284
        %v6698 = vunpack.c.l.b16 %v5285
        %v6699 = vunpack.c.h.b16 %v5285
        %v6700 = vunpack.c.l.b16 %v5286
        %v6701 = vunpack.c.h.b16 %v5286
        %v6702 = vunpack.c.l.b16 %v5287
        %v6703 = vunpack.c.h.b16 %v5287
        %v6704 = vunpack.c.l.b16 %v5288
        %v6705 = vunpack.c.h.b16 %v5288
        %v6706 = vunpack.c.l.b16 %v5289
        %v6707 = vunpack.c.h.b16 %v5289
        %v6708 = vunpack.c.l.b16 %v5290
        %v6709 = vunpack.c.h.b16 %v5290
        %v6710 = vunpack.c.l.b16 %v5291
        %v6711 = vunpack.c.h.b16 %v5291
        %v6712 = vunpack.c.l.b16 %v5292
        %v6713 = vunpack.c.h.b16 %v5292
        %v6714 = vunpack.c.l.b16 %v5293
        %v6715 = vunpack.c.h.b16 %v5293
        %v6716 = vunpack.c.l.b16 %v5294
        %v6717 = vunpack.c.h.b16 %v5294
        %v6718 = vunpack.c.l.b16 %v5295
        %v6719 = vunpack.c.h.b16 %v5295
        %v6720 = vunpack.c.l.b16 %v5296
        %v6721 = vunpack.c.h.b16 %v5296
        %v6722 = vunpack.c.l.b16 %v5297
        %v6723 = vunpack.c.h.b16 %v5297
        %v6724 = vunpack.c.l.b16 %v5298
        %v6725 = vunpack.c.h.b16 %v5298
        %v6726 = vunpack.c.l.b16 %v5299
        %v6727 = vunpack.c.h.b16 %v5299
        %v6728 = vunpack.c.l.b16 %v5300
        %v6729 = vunpack.c.h.b16 %v5300
        %v6730 = vunpack.c.l.b16 %v5301
        %v6731 = vunpack.c.h.b16 %v5301
        %v6732 = vunpack.c.l.b16 %v5302
        %v6733 = vunpack.c.h.b16 %v5302
        %v6734 = vunpack.c.l.b16 %v5303
        %v6735 = vunpack.c.h.b16 %v5303
        %v6736 = vunpack.c.l.b16 %v5304
        %v6737 = vunpack.c.h.b16 %v5304
        %v6738 = vunpack.c.l.b16 %v5305
        %v6739 = vunpack.c.h.b16 %v5305
        %v6740 = vunpack.c.l.b16 %v5306
        %v6741 = vunpack.c.h.b16 %v5306
        %v6742 = vunpack.c.l.b16 %v5307
        %v6743 = vunpack.c.h.b16 %v5307
        %v6744 = vunpack.c.l.b16 %v5308
        %v6745 = vunpack.c.h.b16 %v5308
        %v6746 = vunpack.c.l.b16 %v5309
        %v6747 = vunpack.c.h.b16 %v5309
        %v6748 = vunpack.c.l.b16 %v5310
        %v6749 = vunpack.c.h.b16 %v5310
        %v6750 = vunpack.c.l.b16 %v5311
        %v6751 = vunpack.c.h.b16 %v5311
        %v6752 = vunpack.c.l.b16 %v5312
        %v6753 = vunpack.c.h.b16 %v5312
        %v6754 = vunpack.c.l.b16 %v5313
        %v6755 = vunpack.c.h.b16 %v5313
        %v6756 = vunpack.c.l.b16 %v5314
        %v6757 = vunpack.c.h.b16 %v5314
        %v6758 = vunpack.c.l.b16 %v5315
        %v6759 = vunpack.c.h.b16 %v5315
        %v6760 = vunpack.c.l.b16 %v5316
        %v6761 = vunpack.c.h.b16 %v5316
        %v6762 = vunpack.c.l.b16 %v5317
        %v6763 = vunpack.c.h.b16 %v5317
        %v6764 = vunpack.c.l.b16 %v5318
        %v6765 = vunpack.c.h.b16 %v5318
        %v6766 = vunpack.c.l.b16 %v5319
        %v6767 = vunpack.c.h.b16 %v5319
        %v6768 = vunpack.c.l.b16 %v5320
        %v6769 = vunpack.c.h.b16 %v5320
        %v6770 = vunpack.c.l.b16 %v5321
        %v6771 = vunpack.c.h.b16 %v5321
        %v6772 = vunpack.c.l.b16 %v5322
        %v6773 = vunpack.c.h.b16 %v5322
        %v6774 = vunpack.c.l.b16 %v5323
        %v6775 = vunpack.c.h.b16 %v5323
        %v6776 = vunpack.c.l.b16 %v5324
        %v6777 = vunpack.c.h.b16 %v5324
        %v6778 = vunpack.c.l.b16 %v5325
        %v6779 = vunpack.c.h.b16 %v5325
        %v6780 = vunpack.c.l.b16 %v5326
        %v6781 = vunpack.c.h.b16 %v5326
        %v6782 = vunpack.c.l.b16 %v5327
        %v6783 = vunpack.c.h.b16 %v5327
        %v6784 = vunpack.c.l.b16 %v5328
        %v6785 = vunpack.c.h.b16 %v5328
        %v6786 = vunpack.c.l.b16 %v5329
        %v6787 = vunpack.c.h.b16 %v5329
        %v6788 = vunpack.c.l.b16 %v5330
        %v6789 = vunpack.c.h.b16 %v5330
        %v6790 = vunpack.c.l.b16 %v5331
        %v6791 = vunpack.c.h.b16 %v5331
        %v6792 = vunpack.c.l.b16 %v5332
        %v6793 = vunpack.c.h.b16 %v5332
        %v6794 = vunpack.c.l.b16 %v5333
        %v6795 = vunpack.c.h.b16 %v5333
        %v6796 = vunpack.c.l.b16 %v5334
        %v6797 = vunpack.c.h.b16 %v5334
        %v6798 = vunpack.c.l.b16 %v5335
        %v6799 = vunpack.c.h.b16 %v5335
        %v6800 = vunpack.c.l.b16 %v5336
        %v6801 = vunpack.c.h.b16 %v5336
        %v6802 = vunpack.c.l.b16 %v5337
        %v6803 = vunpack.c.h.b16 %v5337
        %v6804 = vunpack.c.l.b16 %v5338
        %v6805 = vunpack.c.h.b16 %v5338
        %v6806 = vunpack.c.l.b16 %v5339
        %v6807 = vunpack.c.h.b16 %v5339
        %v6808 = vunpack.c.l.b16 %v5340
        %v6809 = vunpack.c.h.b16 %v5340
        %v6810 = vunpack.c.l.b16 %v5341
        %v6811 = vunpack.c.h.b16 %v5341
        %v6812 = vunpack.c.l.b16 %v5342
        %v6813 = vunpack.c.h.b16 %v5342
        %v6814 = vunpack.c.l.b16 %v5343
        %v6815 = vunpack.c.h.b16 %v5343
        %v6816 = vunpack.c.l.b16 %v5344
        %v6817 = vunpack.c.h.b16 %v5344
        %v6818 = vunpack.c.l.b16 %v5345
        %v6819 = vunpack.c.h.b16 %v5345
        %v6820 = vunpack.c.l.b16 %v5346
        %v6821 = vunpack.c.h.b16 %v5346
        %v6822 = vunpack.c.l.b16 %v5347
        %v6823 = vunpack.c.h.b16 %v5347
        %v6824 = vunpack.c.l.b16 %v5348
        %v6825 = vunpack.c.h.b16 %v5348
        %v6826 = vunpack.c.l.b16 %v5349
        %v6827 = vunpack.c.h.b16 %v5349
        %v6828 = vunpack.c.l.b16 %v5350
        %v6829 = vunpack.c.h.b16 %v5350
        %v6830 = vunpack.c.l.b16 %v5351
        %v6831 = vunpack.c.h.b16 %v5351
        %v6832 = vunpack.c.l.b16 %v5352
        %v6833 = vunpack.c.h.b16 %v5352
        %v6834 = vunpack.c.l.b16 %v5353
        %v6835 = vunpack.c.h.b16 %v5353
        %v6836 = vunpack.c.l.b16 %v5354
        %v6837 = vunpack.c.h.b16 %v5354
        %v6838 = vunpack.c.l.b16 %v5355
        %v6839 = vunpack.c.h.b16 %v5355
        %v6840 = vunpack.c.l.b16 %v5356
        %v6841 = vunpack.c.h.b16 %v5356
        %v6842 = vunpack.c.l.b16 %v5357
        %v6843 = vunpack.c.h.b16 %v5357
        %v6844 = vunpack.c.l.b16 %v5358
        %v6845 = vunpack.c.h.b16 %v5358
        %v6846 = vunpack.c.l.b16 %v5359
        %v6847 = vunpack.c.h.b16 %v5359
        %v6848 = vunpack.c.l.b16 %v5360
        %v6849 = vunpack.c.h.b16 %v5360
        %v6850 = vunpack.c.l.b16 %v5361
        %v6851 = vunpack.c.h.b16 %v5361
        %v6852 = vunpack.c.l.b16 %v5362
        %v6853 = vunpack.c.h.b16 %v5362
        %v6854 = vunpack.c.l.b16 %v5363
        %v6855 = vunpack.c.h.b16 %v5363
        %v6856 = vunpack.c.l.b16 %v5364
        %v6857 = vunpack.c.h.b16 %v5364
        %v6858 = vunpack.c.l.b16 %v5365
        %v6859 = vunpack.c.h.b16 %v5365
        %v6860 = vunpack.c.l.b16 %v5366
        %v6861 = vunpack.c.h.b16 %v5366
        %v6862 = vunpack.c.l.b16 %v5367
        %v6863 = vunpack.c.h.b16 %v5367
        %v6864 = vunpack.c.l.b16 %v5368
        %v6865 = vunpack.c.h.b16 %v5368
        %v6866 = vunpack.c.l.b16 %v5369
        %v6867 = vunpack.c.h.b16 %v5369
        %v6868 = vunpack.c.l.b16 %v5370
        %v6869 = vunpack.c.h.b16 %v5370
        %v6870 = vunpack.c.l.b16 %v5371
        %v6871 = vunpack.c.h.b16 %v5371
        %v6872 = vunpack.c.l.b16 %v5372
        %v6873 = vunpack.c.h.b16 %v5372
        %v6874 = vunpack.c.l.b16 %v5373
        %v6875 = vunpack.c.h.b16 %v5373
        %v6876 = vunpack.c.l.b16 %v5374
        %v6877 = vunpack.c.h.b16 %v5374
        %v6878 = vunpack.c.l.b16 %v5375
        %v6879 = vunpack.c.h.b16 %v5375
        %v6880 = vunpack.c.l.b16 %v5376
        %v6881 = vunpack.c.h.b16 %v5376
        %v6882 = vunpack.c.l.b16 %v5377
        %v6883 = vunpack.c.h.b16 %v5377
        %v6884 = vunpack.c.l.b16 %v5378
        %v6885 = vunpack.c.h.b16 %v5378
        %v6886 = vunpack.c.l.b16 %v5379
        %v6887 = vunpack.c.h.b16 %v5379
        %v6888 = vunpack.c.l.b16 %v5380
        %v6889 = vunpack.c.h.b16 %v5380
        %v6890 = vunpack.c.l.b16 %v5381
        %v6891 = vunpack.c.h.b16 %v5381
        %v6892 = vunpack.c.l.b16 %v5382
        %v6893 = vunpack.c.h.b16 %v5382
        %v6894 = vunpack.c.l.b16 %v5383
        %v6895 = vunpack.c.h.b16 %v5383
        %v6896 = vunpack.c.l.b16 %v5384
        %v6897 = vunpack.c.h.b16 %v5384
        %v6898 = vunpack.c.l.b16 %v5385
        %v6899 = vunpack.c.h.b16 %v5385
        %v6900 = vunpack.c.l.b16 %v5386
        %v6901 = vunpack.c.h.b16 %v5386
        %v6902 = vunpack.c.l.b16 %v5387
        %v6903 = vunpack.c.h.b16 %v5387
        %v6904 = vunpack.c.l.b16 %v5388
        %v6905 = vunpack.c.h.b16 %v5388
        %v6906 = vunpack.c.l.b16 %v5389
        %v6907 = vunpack.c.h.b16 %v5389
        %v6908 = vunpack.c.l.b16 %v5390
        %v6909 = vunpack.c.h.b16 %v5390
        %v6910 = vunpack.c.l.b16 %v5391
        %v6911 = vunpack.c.h.b16 %v5391
        %v6912 = vunpack.c.l.b16 %v5392
        %v6913 = vunpack.c.h.b16 %v5392
        %v6914 = vunpack.c.l.b16 %v5393
        %v6915 = vunpack.c.h.b16 %v5393
        %v6916 = vunpack.c.l.b16 %v5394
        %v6917 = vunpack.c.h.b16 %v5394
        %v6918 = vunpack.c.l.b16 %v5395
        %v6919 = vunpack.c.h.b16 %v5395
        %v6920 = vunpack.c.l.b16 %v5396
        %v6921 = vunpack.c.h.b16 %v5396
        %v6922 = vunpack.c.l.b16 %v5397
        %v6923 = vunpack.c.h.b16 %v5397
        %v6924 = vunpack.c.l.b16 %v5398
        %v6925 = vunpack.c.h.b16 %v5398
        %v6926 = vunpack.c.l.b16 %v5399
        %v6927 = vunpack.c.h.b16 %v5399
        %v6928 = vunpack.c.l.b16 %v5400
        %v6929 = vunpack.c.h.b16 %v5400
        %v6930 = vunpack.c.l.b16 %v5401
        %v6931 = vunpack.c.h.b16 %v5401
        %v6932 = vunpack.c.l.b16 %v5402
        %v6933 = vunpack.c.h.b16 %v5402
        %v6934 = vunpack.c.l.b16 %v5403
        %v6935 = vunpack.c.h.b16 %v5403
        %v6936 = vunpack.c.l.b16 %v5404
        %v6937 = vunpack.c.h.b16 %v5404
        %v6938 = vunpack.c.l.b16 %v5405
        %v6939 = vunpack.c.h.b16 %v5405
        %v6940 = vunpack.c.l.b16 %v5406
        %v6941 = vunpack.c.h.b16 %v5406
        %v6942 = vunpack.c.l.b16 %v5407
        %v6943 = vunpack.c.h.b16 %v5407
        %v6944 = vunpack.c.l.b16 %v5408
        %v6945 = vunpack.c.h.b16 %v5408
        %v6946 = vunpack.c.l.b16 %v5409
        %v6947 = vunpack.c.h.b16 %v5409
        %v6948 = vunpack.c.l.b16 %v5410
        %v6949 = vunpack.c.h.b16 %v5410
        %v6950 = vunpack.c.l.b16 %v5411
        %v6951 = vunpack.c.h.b16 %v5411
        %v6952 = vunpack.c.l.b16 %v5412
        %v6953 = vunpack.c.h.b16 %v5412
        %v6954 = vunpack.c.l.b16 %v5413
        %v6955 = vunpack.c.h.b16 %v5413
        %v6956 = vunpack.c.l.b16 %v5414
        %v6957 = vunpack.c.h.b16 %v5414
        %v6958 = vunpack.c.l.b16 %v5415
        %v6959 = vunpack.c.h.b16 %v5415
        %v6960 = vunpack.c.l.b16 %v5416
        %v6961 = vunpack.c.h.b16 %v5416
        %v6962 = vunpack.c.l.b16 %v5417
        %v6963 = vunpack.c.h.b16 %v5417
        %v6964 = vunpack.c.l.b16 %v5418
        %v6965 = vunpack.c.h.b16 %v5418
        %v6966 = vunpack.c.l.b16 %v5419
        %v6967 = vunpack.c.h.b16 %v5419
        %v6968 = vunpack.c.l.b16 %v5420
        %v6969 = vunpack.c.h.b16 %v5420
        %v6970 = vunpack.c.l.b16 %v5421
        %v6971 = vunpack.c.h.b16 %v5421
        %v6972 = vunpack.c.l.b16 %v5422
        %v6973 = vunpack.c.h.b16 %v5422
        %v6974 = vunpack.c.l.b16 %v5423
        %v6975 = vunpack.c.h.b16 %v5423
        %v6976 = vunpack.c.l.b16 %v5424
        %v6977 = vunpack.c.h.b16 %v5424
        %v6978 = vunpack.c.l.b16 %v5425
        %v6979 = vunpack.c.h.b16 %v5425
        %v6980 = vpack.c.b16 %v5964, %v5956
        %v6981 = vpack.c.b16 %v5965, %v5957
        %v6982 = vpack.c.b16 %v5966, %v5958
        %v6983 = vpack.c.b16 %v5967, %v5959
        %v6984 = vpack.c.b16 %v5968, %v5960
        %v6985 = vpack.c.b16 %v5969, %v5961
        %v6986 = vpack.c.b16 %v5970, %v5962
        %v6987 = vpack.c.b16 %v5971, %v5963
        %v6988 = vpack.c.b16 %v5980, %v5972
        %v6989 = vpack.c.b16 %v5981, %v5973
        %v6990 = vpack.c.b16 %v5982, %v5974
        %v6991 = vpack.c.b16 %v5983, %v5975
        %v6992 = vpack.c.b16 %v5984, %v5976
        %v6993 = vpack.c.b16 %v5985, %v5977
        %v6994 = vpack.c.b16 %v5986, %v5978
        %v6995 = vpack.c.b16 %v5987, %v5979
        %v6996 = vpack.c.b16 %v5996, %v5988
        %v6997 = vpack.c.b16 %v5997, %v5989
        %v6998 = vpack.c.b16 %v5998, %v5990
        %v6999 = vpack.c.b16 %v5999, %v5991
        %v7000 = vpack.c.b16 %v6000, %v5992
        %v7001 = vpack.c.b16 %v6001, %v5993
        %v7002 = vpack.c.b16 %v6002, %v5994
        %v7003 = vpack.c.b16 %v6003, %v5995
        %v7004 = vpack.c.b16 %v6012, %v6004
        %v7005 = vpack.c.b16 %v6013, %v6005
        %v7006 = vpack.c.b16 %v6014, %v6006
        %v7007 = vpack.c.b16 %v6015, %v6007
        %v7008 = vpack.c.b16 %v6016, %v6008
        %v7009 = vpack.c.b16 %v6017, %v6009
        %v7010 = vpack.c.b16 %v6018, %v6010
        %v7011 = vpack.c.b16 %v6019, %v6011
        %v7012 = vpack.c.b16 %v6028, %v6020
        %v7013 = vpack.c.b16 %v6029, %v6021
        %v7014 = vpack.c.b16 %v6030, %v6022
        %v7015 = vpack.c.b16 %v6031, %v6023
        %v7016 = vpack.c.b16 %v6032, %v6024
        %v7017 = vpack.c.b16 %v6033, %v6025
        %v7018 = vpack.c.b16 %v6034, %v6026
        %v7019 = vpack.c.b16 %v6035, %v6027
        %v7020 = vpack.c.b16 %v6044, %v6036
        %v7021 = vpack.c.b16 %v6045, %v6037
        %v7022 = vpack.c.b16 %v6046, %v6038
        %v7023 = vpack.c.b16 %v6047, %v6039
        %v7024 = vpack.c.b16 %v6048, %v6040
        %v7025 = vpack.c.b16 %v6049, %v6041
        %v7026 = vpack.c.b16 %v6050, %v6042
        %v7027 = vpack.c.b16 %v6051, %v6043
        %v7028 = vpack.c.b16 %v6060, %v6052
        %v7029 = vpack.c.b16 %v6061, %v6053
        %v7030 = vpack.c.b16 %v6062, %v6054
        %v7031 = vpack.c.b16 %v6063, %v6055
        %v7032 = vpack.c.b16 %v6064, %v6056
        %v7033 = vpack.c.b16 %v6065, %v6057
        %v7034 = vpack.c.b16 %v6066, %v6058
        %v7035 = vpack.c.b16 %v6067, %v6059
        %v7036 = vpack.c.b16 %v6076, %v6068
        %v7037 = vpack.c.b16 %v6077, %v6069
        %v7038 = vpack.c.b16 %v6078, %v6070
        %v7039 = vpack.c.b16 %v6079, %v6071
        %v7040 = vpack.c.b16 %v6080, %v6072
        %v7041 = vpack.c.b16 %v6081, %v6073
        %v7042 = vpack.c.b16 %v6082, %v6074
        %v7043 = vpack.c.b16 %v6083, %v6075
        %v7044 = vpack.c.b16 %v6092, %v6084
        %v7045 = vpack.c.b16 %v6093, %v6085
        %v7046 = vpack.c.b16 %v6094, %v6086
        %v7047 = vpack.c.b16 %v6095, %v6087
        %v7048 = vpack.c.b16 %v6096, %v6088
        %v7049 = vpack.c.b16 %v6097, %v6089
        %v7050 = vpack.c.b16 %v6098, %v6090
        %v7051 = vpack.c.b16 %v6099, %v6091
        %v7052 = vpack.c.b16 %v6108, %v6100
        %v7053 = vpack.c.b16 %v6109, %v6101
        %v7054 = vpack.c.b16 %v6110, %v6102
        %v7055 = vpack.c.b16 %v6111, %v6103
        %v7056 = vpack.c.b16 %v6112, %v6104
        %v7057 = vpack.c.b16 %v6113, %v6105
        %v7058 = vpack.c.b16 %v6114, %v6106
        %v7059 = vpack.c.b16 %v6115, %v6107
        %v7060 = vpack.c.b16 %v6124, %v6116
        %v7061 = vpack.c.b16 %v6125, %v6117
        %v7062 = vpack.c.b16 %v6126, %v6118
        %v7063 = vpack.c.b16 %v6127, %v6119
        %v7064 = vpack.c.b16 %v6128, %v6120
        %v7065 = vpack.c.b16 %v6129, %v6121
        %v7066 = vpack.c.b16 %v6130, %v6122
        %v7067 = vpack.c.b16 %v6131, %v6123
        %v7068 = vpack.c.b16 %v6140, %v6132
        %v7069 = vpack.c.b16 %v6141, %v6133
        %v7070 = vpack.c.b16 %v6142, %v6134
        %v7071 = vpack.c.b16 %v6143, %v6135
        %v7072 = vpack.c.b16 %v6144, %v6136
        %v7073 = vpack.c.b16 %v6145, %v6137
        %v7074 = vpack.c.b16 %v6146, %v6138
        %v7075 = vpack.c.b16 %v6147, %v6139
        %v7076 = vpack.c.b16 %v6156, %v6148
        %v7077 = vpack.c.b16 %v6157, %v6149
        %v7078 = vpack.c.b16 %v6158, %v6150
        %v7079 = vpack.c.b16 %v6159, %v6151
        %v7080 = vpack.c.b16 %v6160, %v6152
        %v7081 = vpack.c.b16 %v6161, %v6153
        %v7082 = vpack.c.b16 %v6162, %v6154
        %v7083 = vpack.c.b16 %v6163, %v6155
        %v7084 = vpack.c.b16 %v6172, %v6164
        %v7085 = vpack.c.b16 %v6173, %v6165
        %v7086 = vpack.c.b16 %v6174, %v6166
        %v7087 = vpack.c.b16 %v6175, %v6167
        %v7088 = vpack.c.b16 %v6176, %v6168
        %v7089 = vpack.c.b16 %v6177, %v6169
        %v7090 = vpack.c.b16 %v6178, %v6170
        %v7091 = vpack.c.b16 %v6179, %v6171
        %v7092 = vpack.c.b16 %v6188, %v6180
        %v7093 = vpack.c.b16 %v6189, %v6181
        %v7094 = vpack.c.b16 %v6190, %v6182
        %v7095 = vpack.c.b16 %v6191, %v6183
        %v7096 = vpack.c.b16 %v6192, %v6184
        %v7097 = vpack.c.b16 %v6193, %v6185
        %v7098 = vpack.c.b16 %v6194, %v6186
        %v7099 = vpack.c.b16 %v6195, %v6187
        %v7100 = vpack.c.b16 %v6204, %v6196
        %v7101 = vpack.c.b16 %v6205, %v6197
        %v7102 = vpack.c.b16 %v6206, %v6198
        %v7103 = vpack.c.b16 %v6207, %v6199
        %v7104 = vpack.c.b16 %v6208, %v6200
        %v7105 = vpack.c.b16 %v6209, %v6201
        %v7106 = vpack.c.b16 %v6210, %v6202
        %v7107 = vpack.c.b16 %v6211, %v6203
        %v7108 = vpack.c.b16 %v6220, %v6212
        %v7109 = vpack.c.b16 %v6221, %v6213
        %v7110 = vpack.c.b16 %v6222, %v6214
        %v7111 = vpack.c.b16 %v6223, %v6215
        %v7112 = vpack.c.b16 %v6224, %v6216
        %v7113 = vpack.c.b16 %v6225, %v6217
        %v7114 = vpack.c.b16 %v6226, %v6218
        %v7115 = vpack.c.b16 %v6227, %v6219
        %v7116 = vpack.c.b16 %v6236, %v6228
        %v7117 = vpack.c.b16 %v6237, %v6229
        %v7118 = vpack.c.b16 %v6238, %v6230
        %v7119 = vpack.c.b16 %v6239, %v6231
        %v7120 = vpack.c.b16 %v6240, %v6232
        %v7121 = vpack.c.b16 %v6241, %v6233
        %v7122 = vpack.c.b16 %v6242, %v6234
        %v7123 = vpack.c.b16 %v6243, %v6235
        %v7124 = vpack.c.b16 %v6252, %v6244
        %v7125 = vpack.c.b16 %v6253, %v6245
        %v7126 = vpack.c.b16 %v6254, %v6246
        %v7127 = vpack.c.b16 %v6255, %v6247
        %v7128 = vpack.c.b16 %v6256, %v6248
        %v7129 = vpack.c.b16 %v6257, %v6249
        %v7130 = vpack.c.b16 %v6258, %v6250
        %v7131 = vpack.c.b16 %v6259, %v6251
        %v7132 = vpack.c.b16 %v6268, %v6260
        %v7133 = vpack.c.b16 %v6269, %v6261
        %v7134 = vpack.c.b16 %v6270, %v6262
        %v7135 = vpack.c.b16 %v6271, %v6263
        %v7136 = vpack.c.b16 %v6272, %v6264
        %v7137 = vpack.c.b16 %v6273, %v6265
        %v7138 = vpack.c.b16 %v6274, %v6266
        %v7139 = vpack.c.b16 %v6275, %v6267
        %v7140 = vpack.c.b16 %v6284, %v6276
        %v7141 = vpack.c.b16 %v6285, %v6277
        %v7142 = vpack.c.b16 %v6286, %v6278
        %v7143 = vpack.c.b16 %v6287, %v6279
        %v7144 = vpack.c.b16 %v6288, %v6280
        %v7145 = vpack.c.b16 %v6289, %v6281
        %v7146 = vpack.c.b16 %v6290, %v6282
        %v7147 = vpack.c.b16 %v6291, %v6283
        %v7148 = vpack.c.b16 %v6300, %v6292
        %v7149 = vpack.c.b16 %v6301, %v6293
        %v7150 = vpack.c.b16 %v6302, %v6294
        %v7151 = vpack.c.b16 %v6303, %v6295
        %v7152 = vpack.c.b16 %v6304, %v6296
        %v7153 = vpack.c.b16 %v6305, %v6297
        %v7154 = vpack.c.b16 %v6306, %v6298
        %v7155 = vpack.c.b16 %v6307, %v6299
        %v7156 = vpack.c.b16 %v6316, %v6308
        %v7157 = vpack.c.b16 %v6317, %v6309
        %v7158 = vpack.c.b16 %v6318, %v6310
        %v7159 = vpack.c.b16 %v6319, %v6311
        %v7160 = vpack.c.b16 %v6320, %v6312
        %v7161 = vpack.c.b16 %v6321, %v6313
        %v7162 = vpack.c.b16 %v6322, %v6314
        %v7163 = vpack.c.b16 %v6323, %v6315
        %v7164 = vpack.c.b16 %v6332, %v6324
        %v7165 = vpack.c.b16 %v6333, %v6325
        %v7166 = vpack.c.b16 %v6334, %v6326
        %v7167 = vpack.c.b16 %v6335, %v6327
        %v7168 = vpack.c.b16 %v6336, %v6328
        %v7169 = vpack.c.b16 %v6337, %v6329
        %v7170 = vpack.c.b16 %v6338, %v6330
        %v7171 = vpack.c.b16 %v6339, %v6331
        %v7172 = vpack.c.b16 %v6348, %v6340
        %v7173 = vpack.c.b16 %v6349, %v6341
        %v7174 = vpack.c.b16 %v6350, %v6342
        %v7175 = vpack.c.b16 %v6351, %v6343
        %v7176 = vpack.c.b16 %v6352, %v6344
        %v7177 = vpack.c.b16 %v6353, %v6345
        %v7178 = vpack.c.b16 %v6354, %v6346
        %v7179 = vpack.c.b16 %v6355, %v6347
        %v7180 = vpack.c.b16 %v6364, %v6356
        %v7181 = vpack.c.b16 %v6365, %v6357
        %v7182 = vpack.c.b16 %v6366, %v6358
        %v7183 = vpack.c.b16 %v6367, %v6359
        %v7184 = vpack.c.b16 %v6368, %v6360
        %v7185 = vpack.c.b16 %v6369, %v6361
        %v7186 = vpack.c.b16 %v6370, %v6362
        %v7187 = vpack.c.b16 %v6371, %v6363
        %v7188 = vpack.c.b16 %v6380, %v6372
        %v7189 = vpack.c.b16 %v6381, %v6373
        %v7190 = vpack.c.b16 %v6382, %v6374
        %v7191 = vpack.c.b16 %v6383, %v6375
        %v7192 = vpack.c.b16 %v6384, %v6376
        %v7193 = vpack.c.b16 %v6385, %v6377
        %v7194 = vpack.c.b16 %v6386, %v6378
        %v7195 = vpack.c.b16 %v6387, %v6379
        %v7196 = vpack.c.b16 %v6396, %v6388
        %v7197 = vpack.c.b16 %v6397, %v6389
        %v7198 = vpack.c.b16 %v6398, %v6390
        %v7199 = vpack.c.b16 %v6399, %v6391
        %v7200 = vpack.c.b16 %v6400, %v6392
        %v7201 = vpack.c.b16 %v6401, %v6393
        %v7202 = vpack.c.b16 %v6402, %v6394
        %v7203 = vpack.c.b16 %v6403, %v6395
        %v7204 = vpack.c.b16 %v6412, %v6404
        %v7205 = vpack.c.b16 %v6413, %v6405
        %v7206 = vpack.c.b16 %v6414, %v6406
        %v7207 = vpack.c.b16 %v6415, %v6407
        %v7208 = vpack.c.b16 %v6416, %v6408
        %v7209 = vpack.c.b16 %v6417, %v6409
        %v7210 = vpack.c.b16 %v6418, %v6410
        %v7211 = vpack.c.b16 %v6419, %v6411
        %v7212 = vpack.c.b16 %v6428, %v6420
        %v7213 = vpack.c.b16 %v6429, %v6421
        %v7214 = vpack.c.b16 %v6430, %v6422
        %v7215 = vpack.c.b16 %v6431, %v6423
        %v7216 = vpack.c.b16 %v6432, %v6424
        %v7217 = vpack.c.b16 %v6433, %v6425
        %v7218 = vpack.c.b16 %v6434, %v6426
        %v7219 = vpack.c.b16 %v6435, %v6427
        %v7220 = vpack.c.b16 %v6444, %v6436
        %v7221 = vpack.c.b16 %v6445, %v6437
        %v7222 = vpack.c.b16 %v6446, %v6438
        %v7223 = vpack.c.b16 %v6447, %v6439
        %v7224 = vpack.c.b16 %v6448, %v6440
        %v7225 = vpack.c.b16 %v6449, %v6441
        %v7226 = vpack.c.b16 %v6450, %v6442
        %v7227 = vpack.c.b16 %v6451, %v6443
        %v7228 = vpack.c.b16 %v6460, %v6452
        %v7229 = vpack.c.b16 %v6461, %v6453
        %v7230 = vpack.c.b16 %v6462, %v6454
        %v7231 = vpack.c.b16 %v6463, %v6455
        %v7232 = vpack.c.b16 %v6464, %v6456
        %v7233 = vpack.c.b16 %v6465, %v6457
        %v7234 = vpack.c.b16 %v6466, %v6458
        %v7235 = vpack.c.b16 %v6467, %v6459
        %v7236 = vpack.c.b16 %v6476, %v6468
        %v7237 = vpack.c.b16 %v6477, %v6469
        %v7238 = vpack.c.b16 %v6478, %v6470
        %v7239 = vpack.c.b16 %v6479, %v6471
        %v7240 = vpack.c.b16 %v6480, %v6472
        %v7241 = vpack.c.b16 %v6481, %v6473
        %v7242 = vpack.c.b16 %v6482, %v6474
        %v7243 = vpack.c.b16 %v6483, %v6475
        %v7244 = vpack.c.b16 %v6492, %v6484
        %v7245 = vpack.c.b16 %v6493, %v6485
        %v7246 = vpack.c.b16 %v6494, %v6486
        %v7247 = vpack.c.b16 %v6495, %v6487
        %v7248 = vpack.c.b16 %v6496, %v6488
        %v7249 = vpack.c.b16 %v6497, %v6489
        %v7250 = vpack.c.b16 %v6498, %v6490
        %v7251 = vpack.c.b16 %v6499, %v6491
        %v7252 = vpack.c.b16 %v6508, %v6500
        %v7253 = vpack.c.b16 %v6509, %v6501
        %v7254 = vpack.c.b16 %v6510, %v6502
        %v7255 = vpack.c.b16 %v6511, %v6503
        %v7256 = vpack.c.b16 %v6512, %v6504
        %v7257 = vpack.c.b16 %v6513, %v6505
        %v7258 = vpack.c.b16 %v6514, %v6506
        %v7259 = vpack.c.b16 %v6515, %v6507
        %v7260 = vpack.c.b16 %v6524, %v6516
        %v7261 = vpack.c.b16 %v6525, %v6517
        %v7262 = vpack.c.b16 %v6526, %v6518
        %v7263 = vpack.c.b16 %v6527, %v6519
        %v7264 = vpack.c.b16 %v6528, %v6520
        %v7265 = vpack.c.b16 %v6529, %v6521
        %v7266 = vpack.c.b16 %v6530, %v6522
        %v7267 = vpack.c.b16 %v6531, %v6523
        %v7268 = vpack.c.b16 %v6540, %v6532
        %v7269 = vpack.c.b16 %v6541, %v6533
        %v7270 = vpack.c.b16 %v6542, %v6534
        %v7271 = vpack.c.b16 %v6543, %v6535
        %v7272 = vpack.c.b16 %v6544, %v6536
        %v7273 = vpack.c.b16 %v6545, %v6537
        %v7274 = vpack.c.b16 %v6546, %v6538
        %v7275 = vpack.c.b16 %v6547, %v6539
        %v7276 = vpack.c.b16 %v6556, %v6548
        %v7277 = vpack.c.b16 %v6557, %v6549
        %v7278 = vpack.c.b16 %v6558, %v6550
        %v7279 = vpack.c.b16 %v6559, %v6551
        %v7280 = vpack.c.b16 %v6560, %v6552
        %v7281 = vpack.c.b16 %v6561, %v6553
        %v7282 = vpack.c.b16 %v6562, %v6554
        %v7283 = vpack.c.b16 %v6563, %v6555
        %v7284 = vpack.c.b16 %v6572, %v6564
        %v7285 = vpack.c.b16 %v6573, %v6565
        %v7286 = vpack.c.b16 %v6574, %v6566
        %v7287 = vpack.c.b16 %v6575, %v6567
        %v7288 = vpack.c.b16 %v6576, %v6568
        %v7289 = vpack.c.b16 %v6577, %v6569
        %v7290 = vpack.c.b16 %v6578, %v6570
        %v7291 = vpack.c.b16 %v6579, %v6571
        %v7292 = vpack.c.b16 %v6588, %v6580
        %v7293 = vpack.c.b16 %v6589, %v6581
        %v7294 = vpack.c.b16 %v6590, %v6582
        %v7295 = vpack.c.b16 %v6591, %v6583
        %v7296 = vpack.c.b16 %v6592, %v6584
        %v7297 = vpack.c.b16 %v6593, %v6585
        %v7298 = vpack.c.b16 %v6594, %v6586
        %v7299 = vpack.c.b16 %v6595, %v6587
        %v7300 = vpack.c.b16 %v6604, %v6596
        %v7301 = vpack.c.b16 %v6605, %v6597
        %v7302 = vpack.c.b16 %v6606, %v6598
        %v7303 = vpack.c.b16 %v6607, %v6599
        %v7304 = vpack.c.b16 %v6608, %v6600
        %v7305 = vpack.c.b16 %v6609, %v6601
        %v7306 = vpack.c.b16 %v6610, %v6602
        %v7307 = vpack.c.b16 %v6611, %v6603
        %v7308 = vpack.c.b16 %v6620, %v6612
        %v7309 = vpack.c.b16 %v6621, %v6613
        %v7310 = vpack.c.b16 %v6622, %v6614
        %v7311 = vpack.c.b16 %v6623, %v6615
        %v7312 = vpack.c.b16 %v6624, %v6616
        %v7313 = vpack.c.b16 %v6625, %v6617
        %v7314 = vpack.c.b16 %v6626, %v6618
        %v7315 = vpack.c.b16 %v6627, %v6619
        %v7316 = vpack.c.b16 %v6636, %v6628
        %v7317 = vpack.c.b16 %v6637, %v6629
        %v7318 = vpack.c.b16 %v6638, %v6630
        %v7319 = vpack.c.b16 %v6639, %v6631
        %v7320 = vpack.c.b16 %v6640, %v6632
        %v7321 = vpack.c.b16 %v6641, %v6633
        %v7322 = vpack.c.b16 %v6642, %v6634
        %v7323 = vpack.c.b16 %v6643, %v6635
        %v7324 = vpack.c.b16 %v6652, %v6644
        %v7325 = vpack.c.b16 %v6653, %v6645
        %v7326 = vpack.c.b16 %v6654, %v6646
        %v7327 = vpack.c.b16 %v6655, %v6647
        %v7328 = vpack.c.b16 %v6656, %v6648
        %v7329 = vpack.c.b16 %v6657, %v6649
        %v7330 = vpack.c.b16 %v6658, %v6650
        %v7331 = vpack.c.b16 %v6659, %v6651
        %v7332 = vpack.c.b16 %v6668, %v6660
        %v7333 = vpack.c.b16 %v6669, %v6661
        %v7334 = vpack.c.b16 %v6670, %v6662
        %v7335 = vpack.c.b16 %v6671, %v6663
        %v7336 = vpack.c.b16 %v6672, %v6664
        %v7337 = vpack.c.b16 %v6673, %v6665
        %v7338 = vpack.c.b16 %v6674, %v6666
        %v7339 = vpack.c.b16 %v6675, %v6667
        %v7340 = vpack.c.b16 %v6684, %v6676
        %v7341 = vpack.c.b16 %v6685, %v6677
        %v7342 = vpack.c.b16 %v6686, %v6678
        %v7343 = vpack.c.b16 %v6687, %v6679
        %v7344 = vpack.c.b16 %v6688, %v6680
        %v7345 = vpack.c.b16 %v6689, %v6681
        %v7346 = vpack.c.b16 %v6690, %v6682
        %v7347 = vpack.c.b16 %v6691, %v6683
        %v7348 = vpack.c.b16 %v6700, %v6692
        %v7349 = vpack.c.b16 %v6701, %v6693
        %v7350 = vpack.c.b16 %v6702, %v6694
        %v7351 = vpack.c.b16 %v6703, %v6695
        %v7352 = vpack.c.b16 %v6704, %v6696
        %v7353 = vpack.c.b16 %v6705, %v6697
        %v7354 = vpack.c.b16 %v6706, %v6698
        %v7355 = vpack.c.b16 %v6707, %v6699
        %v7356 = vpack.c.b16 %v6716, %v6708
        %v7357 = vpack.c.b16 %v6717, %v6709
        %v7358 = vpack.c.b16 %v6718, %v6710
        %v7359 = vpack.c.b16 %v6719, %v6711
        %v7360 = vpack.c.b16 %v6720, %v6712
        %v7361 = vpack.c.b16 %v6721, %v6713
        %v7362 = vpack.c.b16 %v6722, %v6714
        %v7363 = vpack.c.b16 %v6723, %v6715
        %v7364 = vpack.c.b16 %v6732, %v6724
        %v7365 = vpack.c.b16 %v6733, %v6725
        %v7366 = vpack.c.b16 %v6734, %v6726
        %v7367 = vpack.c.b16 %v6735, %v6727
        %v7368 = vpack.c.b16 %v6736, %v6728
        %v7369 = vpack.c.b16 %v6737, %v6729
        %v7370 = vpack.c.b16 %v6738, %v6730
        %v7371 = vpack.c.b16 %v6739, %v6731
        %v7372 = vpack.c.b16 %v6748, %v6740
        %v7373 = vpack.c.b16 %v6749, %v6741
        %v7374 = vpack.c.b16 %v6750, %v6742
        %v7375 = vpack.c.b16 %v6751, %v6743
        %v7376 = vpack.c.b16 %v6752, %v6744
        %v7377 = vpack.c.b16 %v6753, %v6745
        %v7378 = vpack.c.b16 %v6754, %v6746
        %v7379 = vpack.c.b16 %v6755, %v6747
        %v7380 = vpack.c.b16 %v6764, %v6756
        %v7381 = vpack.c.b16 %v6765, %v6757
        %v7382 = vpack.c.b16 %v6766, %v6758
        %v7383 = vpack.c.b16 %v6767, %v6759
        %v7384 = vpack.c.b16 %v6768, %v6760
        %v7385 = vpack.c.b16 %v6769, %v6761
        %v7386 = vpack.c.b16 %v6770, %v6762
        %v7387 = vpack.c.b16 %v6771, %v6763
        %v7388 = vpack.c.b16 %v6780, %v6772
        %v7389 = vpack.c.b16 %v6781, %v6773
        %v7390 = vpack.c.b16 %v6782, %v6774
        %v7391 = vpack.c.b16 %v6783, %v6775
        %v7392 = vpack.c.b16 %v6784, %v6776
        %v7393 = vpack.c.b16 %v6785, %v6777
        %v7394 = vpack.c.b16 %v6786, %v6778
        %v7395 = vpack.c.b16 %v6787, %v6779
        %v7396 = vpack.c.b16 %v6796, %v6788
        %v7397 = vpack.c.b16 %v6797, %v6789
        %v7398 = vpack.c.b16 %v6798, %v6790
        %v7399 = vpack.c.b16 %v6799, %v6791
        %v7400 = vpack.c.b16 %v6800, %v6792
        %v7401 = vpack.c.b16 %v6801, %v6793
        %v7402 = vpack.c.b16 %v6802, %v6794
        %v7403 = vpack.c.b16 %v6803, %v6795
        %v7404 = vpack.c.b16 %v6812, %v6804
        %v7405 = vpack.c.b16 %v6813, %v6805
        %v7406 = vpack.c.b16 %v6814, %v6806
        %v7407 = vpack.c.b16 %v6815, %v6807
        %v7408 = vpack.c.b16 %v6816, %v6808
        %v7409 = vpack.c.b16 %v6817, %v6809
        %v7410 = vpack.c.b16 %v6818, %v6810
        %v7411 = vpack.c.b16 %v6819, %v6811
        %v7412 = vpack.c.b16 %v6828, %v6820
        %v7413 = vpack.c.b16 %v6829, %v6821
        %v7414 = vpack.c.b16 %v6830, %v6822
        %v7415 = vpack.c.b16 %v6831, %v6823
        %v7416 = vpack.c.b16 %v6832, %v6824
        %v7417 = vpack.c.b16 %v6833, %v6825
        %v7418 = vpack.c.b16 %v6834, %v6826
        %v7419 = vpack.c.b16 %v6835, %v6827
        %v7420 = vpack.c.b16 %v6844, %v6836
        %v7421 = vpack.c.b16 %v6845, %v6837
        %v7422 = vpack.c.b16 %v6846, %v6838
        %v7423 = vpack.c.b16 %v6847, %v6839
        %v7424 = vpack.c.b16 %v6848, %v6840
        %v7425 = vpack.c.b16 %v6849, %v6841
        %v7426 = vpack.c.b16 %v6850, %v6842
        %v7427 = vpack.c.b16 %v6851, %v6843
        %v7428 = vpack.c.b16 %v6860, %v6852
        %v7429 = vpack.c.b16 %v6861, %v6853
        %v7430 = vpack.c.b16 %v6862, %v6854
        %v7431 = vpack.c.b16 %v6863, %v6855
        %v7432 = vpack.c.b16 %v6864, %v6856
        %v7433 = vpack.c.b16 %v6865, %v6857
        %v7434 = vpack.c.b16 %v6866, %v6858
        %v7435 = vpack.c.b16 %v6867, %v6859
        %v7436 = vpack.c.b16 %v6876, %v6868
        %v7437 = vpack.c.b16 %v6877, %v6869
        %v7438 = vpack.c.b16 %v6878, %v6870
        %v7439 = vpack.c.b16 %v6879, %v6871
        %v7440 = vpack.c.b16 %v6880, %v6872
        %v7441 = vpack.c.b16 %v6881, %v6873
        %v7442 = vpack.c.b16 %v6882, %v6874
        %v7443 = vpack.c.b16 %v6883, %v6875
        %v7444 = vpack.c.b16 %v6892, %v6884
        %v7445 = vpack.c.b16 %v6893, %v6885
        %v7446 = vpack.c.b16 %v6894, %v6886
        %v7447 = vpack.c.b16 %v6895, %v6887
        %v7448 = vpack.c.b16 %v6896, %v6888
        %v7449 = vpack.c.b16 %v6897, %v6889
        %v7450 = vpack.c.b16 %v6898, %v6890
        %v7451 = vpack.c.b16 %v6899, %v6891
        %v7452 = vpack.c.b16 %v6908, %v6900
        %v7453 = vpack.c.b16 %v6909, %v6901
        %v7454 = vpack.c.b16 %v6910, %v6902
        %v7455 = vpack.c.b16 %v6911, %v6903
        %v7456 = vpack.c.b16 %v6912, %v6904
        %v7457 = vpack.c.b16 %v6913, %v6905
        %v7458 = vpack.c.b16 %v6914, %v6906
        %v7459 = vpack.c.b16 %v6915, %v6907
        %v7460 = vpack.c.b16 %v6924, %v6916
        %v7461 = vpack.c.b16 %v6925, %v6917
        %v7462 = vpack.c.b16 %v6926, %v6918
        %v7463 = vpack.c.b16 %v6927, %v6919
        %v7464 = vpack.c.b16 %v6928, %v6920
        %v7465 = vpack.c.b16 %v6929, %v6921
        %v7466 = vpack.c.b16 %v6930, %v6922
        %v7467 = vpack.c.b16 %v6931, %v6923
        %v7468 = vpack.c.b16 %v6940, %v6932
        %v7469 = vpack.c.b16 %v6941, %v6933
        %v7470 = vpack.c.b16 %v6942, %v6934
        %v7471 = vpack.c.b16 %v6943, %v6935
        %v7472 = vpack.c.b16 %v6944, %v6936
        %v7473 = vpack.c.b16 %v6945, %v6937
        %v7474 = vpack.c.b16 %v6946, %v6938
        %v7475 = vpack.c.b16 %v6947, %v6939
        %v7476 = vpack.c.b16 %v6956, %v6948
        %v7477 = vpack.c.b16 %v6957, %v6949
        %v7478 = vpack.c.b16 %v6958, %v6950
        %v7479 = vpack.c.b16 %v6959, %v6951
        %v7480 = vpack.c.b16 %v6960, %v6952
        %v7481 = vpack.c.b16 %v6961, %v6953
        %v7482 = vpack.c.b16 %v6962, %v6954
        %v7483 = vpack.c.b16 %v6963, %v6955
        %v7484 = vpack.c.b16 %v6972, %v6964
        %v7485 = vpack.c.b16 %v6973, %v6965
        %v7486 = vpack.c.b16 %v6974, %v6966
        %v7487 = vpack.c.b16 %v6975, %v6967
        %v7488 = vpack.c.b16 %v6976, %v6968
        %v7489 = vpack.c.b16 %v6977, %v6969
        %v7490 = vpack.c.b16 %v6978, %v6970
        %v7491 = vpack.c.b16 %v6979, %v6971
        %8004 = vmatpush.bf16.msra.mxu0 %v7036
        %8005 = vmatpush.bf16.msra.mxu0 %v7028
        %8006 = vmatpush.bf16.msra.mxu0 %v7020
        %8007 = vmatpush.bf16.msra.mxu0 %v7012
        %8008 = vmatpush.bf16.msra.mxu0 %v7004
        %8009 = vmatpush.bf16.msra.mxu0 %v6996
        %8010 = vmatpush.bf16.msra.mxu0 %v6988
        %8011 = vmatpush.bf16.msra.mxu0 %v6980
        %8012 = vmatmul.bf16.gmra.mxu0 %v4906
        %v8013 = vpop.f32.mrf.mxu0
        %v8014 = vadd.f32 %v5428, %v8013
        %v8015 = vpop.f32.mrf.mxu0
        %8016 = vdwg.mxu0
        %8017 = vmatpush.bf16.msra.mxu0 %v7100
        %8018 = vmatpush.bf16.msra.mxu0 %v7092
        %8019 = vmatpush.bf16.msra.mxu0 %v7084
        %8020 = vmatpush.bf16.msra.mxu0 %v7076
        %8021 = vmatpush.bf16.msra.mxu0 %v7068
        %8022 = vmatpush.bf16.msra.mxu0 %v7060
        %8023 = vmatpush.bf16.msra.mxu0 %v7052
        %8024 = vmatpush.bf16.msra.mxu0 %v7044
        %8025 = vmatmul.bf16.gmra.mxu0 %v4907
        %v8026 = vpop.f32.mrf.mxu0
        %v8027 = vadd.f32 %v8014, %v8026
        %v8028 = vpop.f32.mrf.mxu0
        %8029 = vdwg.mxu0
        %8030 = vmatpush.bf16.msra.mxu0 %v7164
        %8031 = vmatpush.bf16.msra.mxu0 %v7156
        %8032 = vmatpush.bf16.msra.mxu0 %v7148
        %8033 = vmatpush.bf16.msra.mxu0 %v7140
        %8034 = vmatpush.bf16.msra.mxu0 %v7132
        %8035 = vmatpush.bf16.msra.mxu0 %v7124
        %8036 = vmatpush.bf16.msra.mxu0 %v7116
        %8037 = vmatpush.bf16.msra.mxu0 %v7108
        %8038 = vmatmul.bf16.gmra.mxu0 %v4908
        %v8039 = vpop.f32.mrf.mxu0
        %v8040 = vadd.f32 %v8027, %v8039
        %v8041 = vpop.f32.mrf.mxu0
        %8042 = vdwg.mxu0
        %8043 = vmatpush.bf16.msra.mxu0 %v7228
        %8044 = vmatpush.bf16.msra.mxu0 %v7220
        %8045 = vmatpush.bf16.msra.mxu0 %v7212
        %8046 = vmatpush.bf16.msra.mxu0 %v7204
        %8047 = vmatpush.bf16.msra.mxu0 %v7196
        %8048 = vmatpush.bf16.msra.mxu0 %v7188
        %8049 = vmatpush.bf16.msra.mxu0 %v7180
        %8050 = vmatpush.bf16.msra.mxu0 %v7172
        %8051 = vmatmul.bf16.gmra.mxu0 %v4909
        %v8052 = vpop.f32.mrf.mxu0
        %v8053 = vadd.f32 %v8040, %v8052
        %v8054 = vpop.f32.mrf.mxu0
        %8055 = vdwg.mxu0
        %8056 = vmatpush.bf16.msra.mxu0 %v7292
        %8057 = vmatpush.bf16.msra.mxu0 %v7284
        %8058 = vmatpush.bf16.msra.mxu0 %v7276
        %8059 = vmatpush.bf16.msra.mxu0 %v7268
        %8060 = vmatpush.bf16.msra.mxu0 %v7260
        %8061 = vmatpush.bf16.msra.mxu0 %v7252
        %8062 = vmatpush.bf16.msra.mxu0 %v7244
        %8063 = vmatpush.bf16.msra.mxu0 %v7236
        %8064 = vmatmul.bf16.gmra.mxu0 %v4910
        %v8065 = vpop.f32.mrf.mxu0
        %v8066 = vadd.f32 %v8053, %v8065
        %v8067 = vpop.f32.mrf.mxu0
        %8068 = vdwg.mxu0
        %8069 = vmatpush.bf16.msra.mxu0 %v7356
        %8070 = vmatpush.bf16.msra.mxu0 %v7348
        %8071 = vmatpush.bf16.msra.mxu0 %v7340
        %8072 = vmatpush.bf16.msra.mxu0 %v7332
        %8073 = vmatpush.bf16.msra.mxu0 %v7324
        %8074 = vmatpush.bf16.msra.mxu0 %v7316
        %8075 = vmatpush.bf16.msra.mxu0 %v7308
        %8076 = vmatpush.bf16.msra.mxu0 %v7300
        %8077 = vmatmul.bf16.gmra.mxu0 %v4911
        %v8078 = vpop.f32.mrf.mxu0
        %v8079 = vadd.f32 %v8066, %v8078
        %v8080 = vpop.f32.mrf.mxu0
        %8081 = vdwg.mxu0
        %8082 = vmatpush.bf16.msra.mxu0 %v7420
        %8083 = vmatpush.bf16.msra.mxu0 %v7412
        %8084 = vmatpush.bf16.msra.mxu0 %v7404
        %8085 = vmatpush.bf16.msra.mxu0 %v7396
        %8086 = vmatpush.bf16.msra.mxu0 %v7388
        %8087 = vmatpush.bf16.msra.mxu0 %v7380
        %8088 = vmatpush.bf16.msra.mxu0 %v7372
        %8089 = vmatpush.bf16.msra.mxu0 %v7364
        %8090 = vmatmul.bf16.gmra.mxu0 %v4912
        %v8091 = vpop.f32.mrf.mxu0
        %v8092 = vadd.f32 %v8079, %v8091
        %v8093 = vpop.f32.mrf.mxu0
        %8094 = vdwg.mxu0
        %8095 = vmatpush.bf16.msra.mxu0 %v7484
        %8096 = vmatpush.bf16.msra.mxu0 %v7476
        %8097 = vmatpush.bf16.msra.mxu0 %v7468
        %8098 = vmatpush.bf16.msra.mxu0 %v7460
        %8099 = vmatpush.bf16.msra.mxu0 %v7452
        %8100 = vmatpush.bf16.msra.mxu0 %v7444
        %8101 = vmatpush.bf16.msra.mxu0 %v7436
        %8102 = vmatpush.bf16.msra.mxu0 %v7428
        %8103 = vmatmul.bf16.gmra.mxu0 %v4913
        %v8104 = vpop.f32.mrf.mxu0
        %v8105 = vadd.f32 %v8092, %v8104
        %v8106 = vpop.f32.mrf.mxu0
        %8107 = vdwg.mxu0
        %8108 = vmatpush.bf16.msra.mxu0 %v7037
        %8109 = vmatpush.bf16.msra.mxu0 %v7029
        %8110 = vmatpush.bf16.msra.mxu0 %v7021
        %8111 = vmatpush.bf16.msra.mxu0 %v7013
        %8112 = vmatpush.bf16.msra.mxu0 %v7005
        %8113 = vmatpush.bf16.msra.mxu0 %v6997
        %8114 = vmatpush.bf16.msra.mxu0 %v6989
        %8115 = vmatpush.bf16.msra.mxu0 %v6981
        %8116 = vmatmul.bf16.gmra.mxu0 %v4906
        %v8117 = vpop.f32.mrf.mxu0
        %v8118 = vadd.f32 %v5429, %v8117
        %v8119 = vpop.f32.mrf.mxu0
        %8120 = vdwg.mxu0
        %8121 = vmatpush.bf16.msra.mxu0 %v7101
        %8122 = vmatpush.bf16.msra.mxu0 %v7093
        %8123 = vmatpush.bf16.msra.mxu0 %v7085
        %8124 = vmatpush.bf16.msra.mxu0 %v7077
        %8125 = vmatpush.bf16.msra.mxu0 %v7069
        %8126 = vmatpush.bf16.msra.mxu0 %v7061
        %8127 = vmatpush.bf16.msra.mxu0 %v7053
        %8128 = vmatpush.bf16.msra.mxu0 %v7045
        %8129 = vmatmul.bf16.gmra.mxu0 %v4907
        %v8130 = vpop.f32.mrf.mxu0
        %v8131 = vadd.f32 %v8118, %v8130
        %v8132 = vpop.f32.mrf.mxu0
        %8133 = vdwg.mxu0
        %8134 = vmatpush.bf16.msra.mxu0 %v7165
        %8135 = vmatpush.bf16.msra.mxu0 %v7157
        %8136 = vmatpush.bf16.msra.mxu0 %v7149
        %8137 = vmatpush.bf16.msra.mxu0 %v7141
        %8138 = vmatpush.bf16.msra.mxu0 %v7133
        %8139 = vmatpush.bf16.msra.mxu0 %v7125
        %8140 = vmatpush.bf16.msra.mxu0 %v7117
        %8141 = vmatpush.bf16.msra.mxu0 %v7109
        %8142 = vmatmul.bf16.gmra.mxu0 %v4908
        %v8143 = vpop.f32.mrf.mxu0
        %v8144 = vadd.f32 %v8131, %v8143
        %v8145 = vpop.f32.mrf.mxu0
        %8146 = vdwg.mxu0
        %8147 = vmatpush.bf16.msra.mxu0 %v7229
        %8148 = vmatpush.bf16.msra.mxu0 %v7221
        %8149 = vmatpush.bf16.msra.mxu0 %v7213
        %8150 = vmatpush.bf16.msra.mxu0 %v7205
        %8151 = vmatpush.bf16.msra.mxu0 %v7197
        %8152 = vmatpush.bf16.msra.mxu0 %v7189
        %8153 = vmatpush.bf16.msra.mxu0 %v7181
        %8154 = vmatpush.bf16.msra.mxu0 %v7173
        %8155 = vmatmul.bf16.gmra.mxu0 %v4909
        %v8156 = vpop.f32.mrf.mxu0
        %v8157 = vadd.f32 %v8144, %v8156
        %v8158 = vpop.f32.mrf.mxu0
        %8159 = vdwg.mxu0
        %8160 = vmatpush.bf16.msra.mxu0 %v7293
        %8161 = vmatpush.bf16.msra.mxu0 %v7285
        %8162 = vmatpush.bf16.msra.mxu0 %v7277
        %8163 = vmatpush.bf16.msra.mxu0 %v7269
        %8164 = vmatpush.bf16.msra.mxu0 %v7261
        %8165 = vmatpush.bf16.msra.mxu0 %v7253
        %8166 = vmatpush.bf16.msra.mxu0 %v7245
        %8167 = vmatpush.bf16.msra.mxu0 %v7237
        %8168 = vmatmul.bf16.gmra.mxu0 %v4910
        %v8169 = vpop.f32.mrf.mxu0
        %v8170 = vadd.f32 %v8157, %v8169
        %v8171 = vpop.f32.mrf.mxu0
        %8172 = vdwg.mxu0
        %8173 = vmatpush.bf16.msra.mxu0 %v7357
        %8174 = vmatpush.bf16.msra.mxu0 %v7349
        %8175 = vmatpush.bf16.msra.mxu0 %v7341
        %8176 = vmatpush.bf16.msra.mxu0 %v7333
        %8177 = vmatpush.bf16.msra.mxu0 %v7325
        %8178 = vmatpush.bf16.msra.mxu0 %v7317
        %8179 = vmatpush.bf16.msra.mxu0 %v7309
        %8180 = vmatpush.bf16.msra.mxu0 %v7301
        %8181 = vmatmul.bf16.gmra.mxu0 %v4911
        %v8182 = vpop.f32.mrf.mxu0
        %v8183 = vadd.f32 %v8170, %v8182
        %v8184 = vpop.f32.mrf.mxu0
        %8185 = vdwg.mxu0
        %8186 = vmatpush.bf16.msra.mxu0 %v7421
        %8187 = vmatpush.bf16.msra.mxu0 %v7413
        %8188 = vmatpush.bf16.msra.mxu0 %v7405
        %8189 = vmatpush.bf16.msra.mxu0 %v7397
        %8190 = vmatpush.bf16.msra.mxu0 %v7389
        %8191 = vmatpush.bf16.msra.mxu0 %v7381
        %8192 = vmatpush.bf16.msra.mxu0 %v7373
        %8193 = vmatpush.bf16.msra.mxu0 %v7365
        %8194 = vmatmul.bf16.gmra.mxu0 %v4912
        %v8195 = vpop.f32.mrf.mxu0
        %v8196 = vadd.f32 %v8183, %v8195
        %v8197 = vpop.f32.mrf.mxu0
        %8198 = vdwg.mxu0
        %8199 = vmatpush.bf16.msra.mxu0 %v7485
        %8200 = vmatpush.bf16.msra.mxu0 %v7477
        %8201 = vmatpush.bf16.msra.mxu0 %v7469
        %8202 = vmatpush.bf16.msra.mxu0 %v7461
        %8203 = vmatpush.bf16.msra.mxu0 %v7453
        %8204 = vmatpush.bf16.msra.mxu0 %v7445
        %8205 = vmatpush.bf16.msra.mxu0 %v7437
        %8206 = vmatpush.bf16.msra.mxu0 %v7429
        %8207 = vmatmul.bf16.gmra.mxu0 %v4913
        %v8208 = vpop.f32.mrf.mxu0
        %v8209 = vadd.f32 %v8196, %v8208
        %v8210 = vpop.f32.mrf.mxu0
        %8211 = vdwg.mxu0
        %8212 = vmatpush.bf16.msra.mxu0 %v7038
        %8213 = vmatpush.bf16.msra.mxu0 %v7030
        %8214 = vmatpush.bf16.msra.mxu0 %v7022
        %8215 = vmatpush.bf16.msra.mxu0 %v7014
        %8216 = vmatpush.bf16.msra.mxu0 %v7006
        %8217 = vmatpush.bf16.msra.mxu0 %v6998
        %8218 = vmatpush.bf16.msra.mxu0 %v6990
        %8219 = vmatpush.bf16.msra.mxu0 %v6982
        %8220 = vmatmul.bf16.gmra.mxu0 %v4906
        %v8221 = vpop.f32.mrf.mxu0
        %v8222 = vadd.f32 %v5430, %v8221
        %v8223 = vpop.f32.mrf.mxu0
        %8224 = vdwg.mxu0
        %8225 = vmatpush.bf16.msra.mxu0 %v7102
        %8226 = vmatpush.bf16.msra.mxu0 %v7094
        %8227 = vmatpush.bf16.msra.mxu0 %v7086
        %8228 = vmatpush.bf16.msra.mxu0 %v7078
        %8229 = vmatpush.bf16.msra.mxu0 %v7070
        %8230 = vmatpush.bf16.msra.mxu0 %v7062
        %8231 = vmatpush.bf16.msra.mxu0 %v7054
        %8232 = vmatpush.bf16.msra.mxu0 %v7046
        %8233 = vmatmul.bf16.gmra.mxu0 %v4907
        %v8234 = vpop.f32.mrf.mxu0
        %v8235 = vadd.f32 %v8222, %v8234
        %v8236 = vpop.f32.mrf.mxu0
        %8237 = vdwg.mxu0
        %8238 = vmatpush.bf16.msra.mxu0 %v7166
        %8239 = vmatpush.bf16.msra.mxu0 %v7158
        %8240 = vmatpush.bf16.msra.mxu0 %v7150
        %8241 = vmatpush.bf16.msra.mxu0 %v7142
        %8242 = vmatpush.bf16.msra.mxu0 %v7134
        %8243 = vmatpush.bf16.msra.mxu0 %v7126
        %8244 = vmatpush.bf16.msra.mxu0 %v7118
        %8245 = vmatpush.bf16.msra.mxu0 %v7110
        %8246 = vmatmul.bf16.gmra.mxu0 %v4908
        %v8247 = vpop.f32.mrf.mxu0
        %v8248 = vadd.f32 %v8235, %v8247
        %v8249 = vpop.f32.mrf.mxu0
        %8250 = vdwg.mxu0
        %8251 = vmatpush.bf16.msra.mxu0 %v7230
        %8252 = vmatpush.bf16.msra.mxu0 %v7222
        %8253 = vmatpush.bf16.msra.mxu0 %v7214
        %8254 = vmatpush.bf16.msra.mxu0 %v7206
        %8255 = vmatpush.bf16.msra.mxu0 %v7198
        %8256 = vmatpush.bf16.msra.mxu0 %v7190
        %8257 = vmatpush.bf16.msra.mxu0 %v7182
        %8258 = vmatpush.bf16.msra.mxu0 %v7174
        %8259 = vmatmul.bf16.gmra.mxu0 %v4909
        %v8260 = vpop.f32.mrf.mxu0
        %v8261 = vadd.f32 %v8248, %v8260
        %v8262 = vpop.f32.mrf.mxu0
        %8263 = vdwg.mxu0
        %8264 = vmatpush.bf16.msra.mxu0 %v7294
        %8265 = vmatpush.bf16.msra.mxu0 %v7286
        %8266 = vmatpush.bf16.msra.mxu0 %v7278
        %8267 = vmatpush.bf16.msra.mxu0 %v7270
        %8268 = vmatpush.bf16.msra.mxu0 %v7262
        %8269 = vmatpush.bf16.msra.mxu0 %v7254
        %8270 = vmatpush.bf16.msra.mxu0 %v7246
        %8271 = vmatpush.bf16.msra.mxu0 %v7238
        %8272 = vmatmul.bf16.gmra.mxu0 %v4910
        %v8273 = vpop.f32.mrf.mxu0
        %v8274 = vadd.f32 %v8261, %v8273
        %v8275 = vpop.f32.mrf.mxu0
        %8276 = vdwg.mxu0
        %8277 = vmatpush.bf16.msra.mxu0 %v7358
        %8278 = vmatpush.bf16.msra.mxu0 %v7350
        %8279 = vmatpush.bf16.msra.mxu0 %v7342
        %8280 = vmatpush.bf16.msra.mxu0 %v7334
        %8281 = vmatpush.bf16.msra.mxu0 %v7326
        %8282 = vmatpush.bf16.msra.mxu0 %v7318
        %8283 = vmatpush.bf16.msra.mxu0 %v7310
        %8284 = vmatpush.bf16.msra.mxu0 %v7302
        %8285 = vmatmul.bf16.gmra.mxu0 %v4911
        %v8286 = vpop.f32.mrf.mxu0
        %v8287 = vadd.f32 %v8274, %v8286
        %v8288 = vpop.f32.mrf.mxu0
        %8289 = vdwg.mxu0
        %8290 = vmatpush.bf16.msra.mxu0 %v7422
        %8291 = vmatpush.bf16.msra.mxu0 %v7414
        %8292 = vmatpush.bf16.msra.mxu0 %v7406
        %8293 = vmatpush.bf16.msra.mxu0 %v7398
        %8294 = vmatpush.bf16.msra.mxu0 %v7390
        %8295 = vmatpush.bf16.msra.mxu0 %v7382
        %8296 = vmatpush.bf16.msra.mxu0 %v7374
        %8297 = vmatpush.bf16.msra.mxu0 %v7366
        %8298 = vmatmul.bf16.gmra.mxu0 %v4912
        %v8299 = vpop.f32.mrf.mxu0
        %v8300 = vadd.f32 %v8287, %v8299
        %v8301 = vpop.f32.mrf.mxu0
        %8302 = vdwg.mxu0
        %8303 = vmatpush.bf16.msra.mxu0 %v7486
        %8304 = vmatpush.bf16.msra.mxu0 %v7478
        %8305 = vmatpush.bf16.msra.mxu0 %v7470
        %8306 = vmatpush.bf16.msra.mxu0 %v7462
        %8307 = vmatpush.bf16.msra.mxu0 %v7454
        %8308 = vmatpush.bf16.msra.mxu0 %v7446
        %8309 = vmatpush.bf16.msra.mxu0 %v7438
        %8310 = vmatpush.bf16.msra.mxu0 %v7430
        %8311 = vmatmul.bf16.gmra.mxu0 %v4913
        %v8312 = vpop.f32.mrf.mxu0
        %v8313 = vadd.f32 %v8300, %v8312
        %v8314 = vpop.f32.mrf.mxu0
        %8315 = vdwg.mxu0
        %8316 = vmatpush.bf16.msra.mxu0 %v7039
        %8317 = vmatpush.bf16.msra.mxu0 %v7031
        %8318 = vmatpush.bf16.msra.mxu0 %v7023
        %8319 = vmatpush.bf16.msra.mxu0 %v7015
        %8320 = vmatpush.bf16.msra.mxu0 %v7007
        %8321 = vmatpush.bf16.msra.mxu0 %v6999
        %8322 = vmatpush.bf16.msra.mxu0 %v6991
        %8323 = vmatpush.bf16.msra.mxu0 %v6983
        %8324 = vmatmul.bf16.gmra.mxu0 %v4906
        %v8325 = vpop.f32.mrf.mxu0
        %v8326 = vadd.f32 %v5431, %v8325
        %v8327 = vpop.f32.mrf.mxu0
        %8328 = vdwg.mxu0
        %8329 = vmatpush.bf16.msra.mxu0 %v7103
        %8330 = vmatpush.bf16.msra.mxu0 %v7095
        %8331 = vmatpush.bf16.msra.mxu0 %v7087
        %8332 = vmatpush.bf16.msra.mxu0 %v7079
        %8333 = vmatpush.bf16.msra.mxu0 %v7071
        %8334 = vmatpush.bf16.msra.mxu0 %v7063
        %8335 = vmatpush.bf16.msra.mxu0 %v7055
        %8336 = vmatpush.bf16.msra.mxu0 %v7047
        %8337 = vmatmul.bf16.gmra.mxu0 %v4907
        %v8338 = vpop.f32.mrf.mxu0
        %v8339 = vadd.f32 %v8326, %v8338
        %v8340 = vpop.f32.mrf.mxu0
        %8341 = vdwg.mxu0
        %8342 = vmatpush.bf16.msra.mxu0 %v7167
        %8343 = vmatpush.bf16.msra.mxu0 %v7159
        %8344 = vmatpush.bf16.msra.mxu0 %v7151
        %8345 = vmatpush.bf16.msra.mxu0 %v7143
        %8346 = vmatpush.bf16.msra.mxu0 %v7135
        %8347 = vmatpush.bf16.msra.mxu0 %v7127
        %8348 = vmatpush.bf16.msra.mxu0 %v7119
        %8349 = vmatpush.bf16.msra.mxu0 %v7111
        %8350 = vmatmul.bf16.gmra.mxu0 %v4908
        %v8351 = vpop.f32.mrf.mxu0
        %v8352 = vadd.f32 %v8339, %v8351
        %v8353 = vpop.f32.mrf.mxu0
        %8354 = vdwg.mxu0
        %8355 = vmatpush.bf16.msra.mxu0 %v7231
        %8356 = vmatpush.bf16.msra.mxu0 %v7223
        %8357 = vmatpush.bf16.msra.mxu0 %v7215
        %8358 = vmatpush.bf16.msra.mxu0 %v7207
        %8359 = vmatpush.bf16.msra.mxu0 %v7199
        %8360 = vmatpush.bf16.msra.mxu0 %v7191
        %8361 = vmatpush.bf16.msra.mxu0 %v7183
        %8362 = vmatpush.bf16.msra.mxu0 %v7175
        %8363 = vmatmul.bf16.gmra.mxu0 %v4909
        %v8364 = vpop.f32.mrf.mxu0
        %v8365 = vadd.f32 %v8352, %v8364
        %v8366 = vpop.f32.mrf.mxu0
        %8367 = vdwg.mxu0
        %8368 = vmatpush.bf16.msra.mxu0 %v7295
        %8369 = vmatpush.bf16.msra.mxu0 %v7287
        %8370 = vmatpush.bf16.msra.mxu0 %v7279
        %8371 = vmatpush.bf16.msra.mxu0 %v7271
        %8372 = vmatpush.bf16.msra.mxu0 %v7263
        %8373 = vmatpush.bf16.msra.mxu0 %v7255
        %8374 = vmatpush.bf16.msra.mxu0 %v7247
        %8375 = vmatpush.bf16.msra.mxu0 %v7239
        %8376 = vmatmul.bf16.gmra.mxu0 %v4910
        %v8377 = vpop.f32.mrf.mxu0
        %v8378 = vadd.f32 %v8365, %v8377
        %v8379 = vpop.f32.mrf.mxu0
        %8380 = vdwg.mxu0
        %8381 = vmatpush.bf16.msra.mxu0 %v7359
        %8382 = vmatpush.bf16.msra.mxu0 %v7351
        %8383 = vmatpush.bf16.msra.mxu0 %v7343
        %8384 = vmatpush.bf16.msra.mxu0 %v7335
        %8385 = vmatpush.bf16.msra.mxu0 %v7327
        %8386 = vmatpush.bf16.msra.mxu0 %v7319
        %8387 = vmatpush.bf16.msra.mxu0 %v7311
        %8388 = vmatpush.bf16.msra.mxu0 %v7303
        %8389 = vmatmul.bf16.gmra.mxu0 %v4911
        %v8390 = vpop.f32.mrf.mxu0
        %v8391 = vadd.f32 %v8378, %v8390
        %v8392 = vpop.f32.mrf.mxu0
        %8393 = vdwg.mxu0
        %8394 = vmatpush.bf16.msra.mxu0 %v7423
        %8395 = vmatpush.bf16.msra.mxu0 %v7415
        %8396 = vmatpush.bf16.msra.mxu0 %v7407
        %8397 = vmatpush.bf16.msra.mxu0 %v7399
        %8398 = vmatpush.bf16.msra.mxu0 %v7391
        %8399 = vmatpush.bf16.msra.mxu0 %v7383
        %8400 = vmatpush.bf16.msra.mxu0 %v7375
        %8401 = vmatpush.bf16.msra.mxu0 %v7367
        %8402 = vmatmul.bf16.gmra.mxu0 %v4912
        %v8403 = vpop.f32.mrf.mxu0
        %v8404 = vadd.f32 %v8391, %v8403
        %v8405 = vpop.f32.mrf.mxu0
        %8406 = vdwg.mxu0
        %8407 = vmatpush.bf16.msra.mxu0 %v7487
        %8408 = vmatpush.bf16.msra.mxu0 %v7479
        %8409 = vmatpush.bf16.msra.mxu0 %v7471
        %8410 = vmatpush.bf16.msra.mxu0 %v7463
        %8411 = vmatpush.bf16.msra.mxu0 %v7455
        %8412 = vmatpush.bf16.msra.mxu0 %v7447
        %8413 = vmatpush.bf16.msra.mxu0 %v7439
        %8414 = vmatpush.bf16.msra.mxu0 %v7431
        %8415 = vmatmul.bf16.gmra.mxu0 %v4913
        %v8416 = vpop.f32.mrf.mxu0
        %v8417 = vadd.f32 %v8404, %v8416
        %v8418 = vpop.f32.mrf.mxu0
        %8419 = vdwg.mxu0
        %8420 = vmatpush.bf16.msra.mxu0 %v7040
        %8421 = vmatpush.bf16.msra.mxu0 %v7032
        %8422 = vmatpush.bf16.msra.mxu0 %v7024
        %8423 = vmatpush.bf16.msra.mxu0 %v7016
        %8424 = vmatpush.bf16.msra.mxu0 %v7008
        %8425 = vmatpush.bf16.msra.mxu0 %v7000
        %8426 = vmatpush.bf16.msra.mxu0 %v6992
        %8427 = vmatpush.bf16.msra.mxu0 %v6984
        %8428 = vmatmul.bf16.gmra.mxu0 %v4906
        %v8429 = vpop.f32.mrf.mxu0
        %v8430 = vadd.f32 %v5432, %v8429
        %v8431 = vpop.f32.mrf.mxu0
        %8432 = vdwg.mxu0
        %8433 = vmatpush.bf16.msra.mxu0 %v7104
        %8434 = vmatpush.bf16.msra.mxu0 %v7096
        %8435 = vmatpush.bf16.msra.mxu0 %v7088
        %8436 = vmatpush.bf16.msra.mxu0 %v7080
        %8437 = vmatpush.bf16.msra.mxu0 %v7072
        %8438 = vmatpush.bf16.msra.mxu0 %v7064
        %8439 = vmatpush.bf16.msra.mxu0 %v7056
        %8440 = vmatpush.bf16.msra.mxu0 %v7048
        %8441 = vmatmul.bf16.gmra.mxu0 %v4907
        %v8442 = vpop.f32.mrf.mxu0
        %v8443 = vadd.f32 %v8430, %v8442
        %v8444 = vpop.f32.mrf.mxu0
        %8445 = vdwg.mxu0
        %8446 = vmatpush.bf16.msra.mxu0 %v7168
        %8447 = vmatpush.bf16.msra.mxu0 %v7160
        %8448 = vmatpush.bf16.msra.mxu0 %v7152
        %8449 = vmatpush.bf16.msra.mxu0 %v7144
        %8450 = vmatpush.bf16.msra.mxu0 %v7136
        %8451 = vmatpush.bf16.msra.mxu0 %v7128
        %8452 = vmatpush.bf16.msra.mxu0 %v7120
        %8453 = vmatpush.bf16.msra.mxu0 %v7112
        %8454 = vmatmul.bf16.gmra.mxu0 %v4908
        %v8455 = vpop.f32.mrf.mxu0
        %v8456 = vadd.f32 %v8443, %v8455
        %v8457 = vpop.f32.mrf.mxu0
        %8458 = vdwg.mxu0
        %8459 = vmatpush.bf16.msra.mxu0 %v7232
        %8460 = vmatpush.bf16.msra.mxu0 %v7224
        %8461 = vmatpush.bf16.msra.mxu0 %v7216
        %8462 = vmatpush.bf16.msra.mxu0 %v7208
        %8463 = vmatpush.bf16.msra.mxu0 %v7200
        %8464 = vmatpush.bf16.msra.mxu0 %v7192
        %8465 = vmatpush.bf16.msra.mxu0 %v7184
        %8466 = vmatpush.bf16.msra.mxu0 %v7176
        %8467 = vmatmul.bf16.gmra.mxu0 %v4909
        %v8468 = vpop.f32.mrf.mxu0
        %v8469 = vadd.f32 %v8456, %v8468
        %v8470 = vpop.f32.mrf.mxu0
        %8471 = vdwg.mxu0
        %8472 = vmatpush.bf16.msra.mxu0 %v7296
        %8473 = vmatpush.bf16.msra.mxu0 %v7288
        %8474 = vmatpush.bf16.msra.mxu0 %v7280
        %8475 = vmatpush.bf16.msra.mxu0 %v7272
        %8476 = vmatpush.bf16.msra.mxu0 %v7264
        %8477 = vmatpush.bf16.msra.mxu0 %v7256
        %8478 = vmatpush.bf16.msra.mxu0 %v7248
        %8479 = vmatpush.bf16.msra.mxu0 %v7240
        %8480 = vmatmul.bf16.gmra.mxu0 %v4910
        %v8481 = vpop.f32.mrf.mxu0
        %v8482 = vadd.f32 %v8469, %v8481
        %v8483 = vpop.f32.mrf.mxu0
        %8484 = vdwg.mxu0
        %8485 = vmatpush.bf16.msra.mxu0 %v7360
        %8486 = vmatpush.bf16.msra.mxu0 %v7352
        %8487 = vmatpush.bf16.msra.mxu0 %v7344
        %8488 = vmatpush.bf16.msra.mxu0 %v7336
        %8489 = vmatpush.bf16.msra.mxu0 %v7328
        %8490 = vmatpush.bf16.msra.mxu0 %v7320
        %8491 = vmatpush.bf16.msra.mxu0 %v7312
        %8492 = vmatpush.bf16.msra.mxu0 %v7304
        %8493 = vmatmul.bf16.gmra.mxu0 %v4911
        %v8494 = vpop.f32.mrf.mxu0
        %v8495 = vadd.f32 %v8482, %v8494
        %v8496 = vpop.f32.mrf.mxu0
        %8497 = vdwg.mxu0
        %8498 = vmatpush.bf16.msra.mxu0 %v7424
        %8499 = vmatpush.bf16.msra.mxu0 %v7416
        %8500 = vmatpush.bf16.msra.mxu0 %v7408
        %8501 = vmatpush.bf16.msra.mxu0 %v7400
        %8502 = vmatpush.bf16.msra.mxu0 %v7392
        %8503 = vmatpush.bf16.msra.mxu0 %v7384
        %8504 = vmatpush.bf16.msra.mxu0 %v7376
        %8505 = vmatpush.bf16.msra.mxu0 %v7368
        %8506 = vmatmul.bf16.gmra.mxu0 %v4912
        %v8507 = vpop.f32.mrf.mxu0
        %v8508 = vadd.f32 %v8495, %v8507
        %v8509 = vpop.f32.mrf.mxu0
        %8510 = vdwg.mxu0
        %8511 = vmatpush.bf16.msra.mxu0 %v7488
        %8512 = vmatpush.bf16.msra.mxu0 %v7480
        %8513 = vmatpush.bf16.msra.mxu0 %v7472
        %8514 = vmatpush.bf16.msra.mxu0 %v7464
        %8515 = vmatpush.bf16.msra.mxu0 %v7456
        %8516 = vmatpush.bf16.msra.mxu0 %v7448
        %8517 = vmatpush.bf16.msra.mxu0 %v7440
        %8518 = vmatpush.bf16.msra.mxu0 %v7432
        %8519 = vmatmul.bf16.gmra.mxu0 %v4913
        %v8520 = vpop.f32.mrf.mxu0
        %v8521 = vadd.f32 %v8508, %v8520
        %v8522 = vpop.f32.mrf.mxu0
        %8523 = vdwg.mxu0
        %8524 = vmatpush.bf16.msra.mxu0 %v7041
        %8525 = vmatpush.bf16.msra.mxu0 %v7033
        %8526 = vmatpush.bf16.msra.mxu0 %v7025
        %8527 = vmatpush.bf16.msra.mxu0 %v7017
        %8528 = vmatpush.bf16.msra.mxu0 %v7009
        %8529 = vmatpush.bf16.msra.mxu0 %v7001
        %8530 = vmatpush.bf16.msra.mxu0 %v6993
        %8531 = vmatpush.bf16.msra.mxu0 %v6985
        %8532 = vmatmul.bf16.gmra.mxu0 %v4906
        %v8533 = vpop.f32.mrf.mxu0
        %v8534 = vadd.f32 %v5433, %v8533
        %v8535 = vpop.f32.mrf.mxu0
        %8536 = vdwg.mxu0
        %8537 = vmatpush.bf16.msra.mxu0 %v7105
        %8538 = vmatpush.bf16.msra.mxu0 %v7097
        %8539 = vmatpush.bf16.msra.mxu0 %v7089
        %8540 = vmatpush.bf16.msra.mxu0 %v7081
        %8541 = vmatpush.bf16.msra.mxu0 %v7073
        %8542 = vmatpush.bf16.msra.mxu0 %v7065
        %8543 = vmatpush.bf16.msra.mxu0 %v7057
        %8544 = vmatpush.bf16.msra.mxu0 %v7049
        %8545 = vmatmul.bf16.gmra.mxu0 %v4907
        %v8546 = vpop.f32.mrf.mxu0
        %v8547 = vadd.f32 %v8534, %v8546
        %v8548 = vpop.f32.mrf.mxu0
        %8549 = vdwg.mxu0
        %8550 = vmatpush.bf16.msra.mxu0 %v7169
        %8551 = vmatpush.bf16.msra.mxu0 %v7161
        %8552 = vmatpush.bf16.msra.mxu0 %v7153
        %8553 = vmatpush.bf16.msra.mxu0 %v7145
        %8554 = vmatpush.bf16.msra.mxu0 %v7137
        %8555 = vmatpush.bf16.msra.mxu0 %v7129
        %8556 = vmatpush.bf16.msra.mxu0 %v7121
        %8557 = vmatpush.bf16.msra.mxu0 %v7113
        %8558 = vmatmul.bf16.gmra.mxu0 %v4908
        %v8559 = vpop.f32.mrf.mxu0
        %v8560 = vadd.f32 %v8547, %v8559
        %v8561 = vpop.f32.mrf.mxu0
        %8562 = vdwg.mxu0
        %8563 = vmatpush.bf16.msra.mxu0 %v7233
        %8564 = vmatpush.bf16.msra.mxu0 %v7225
        %8565 = vmatpush.bf16.msra.mxu0 %v7217
        %8566 = vmatpush.bf16.msra.mxu0 %v7209
        %8567 = vmatpush.bf16.msra.mxu0 %v7201
        %8568 = vmatpush.bf16.msra.mxu0 %v7193
        %8569 = vmatpush.bf16.msra.mxu0 %v7185
        %8570 = vmatpush.bf16.msra.mxu0 %v7177
        %8571 = vmatmul.bf16.gmra.mxu0 %v4909
        %v8572 = vpop.f32.mrf.mxu0
        %v8573 = vadd.f32 %v8560, %v8572
        %v8574 = vpop.f32.mrf.mxu0
        %8575 = vdwg.mxu0
        %8576 = vmatpush.bf16.msra.mxu0 %v7297
        %8577 = vmatpush.bf16.msra.mxu0 %v7289
        %8578 = vmatpush.bf16.msra.mxu0 %v7281
        %8579 = vmatpush.bf16.msra.mxu0 %v7273
        %8580 = vmatpush.bf16.msra.mxu0 %v7265
        %8581 = vmatpush.bf16.msra.mxu0 %v7257
        %8582 = vmatpush.bf16.msra.mxu0 %v7249
        %8583 = vmatpush.bf16.msra.mxu0 %v7241
        %8584 = vmatmul.bf16.gmra.mxu0 %v4910
        %v8585 = vpop.f32.mrf.mxu0
        %v8586 = vadd.f32 %v8573, %v8585
        %v8587 = vpop.f32.mrf.mxu0
        %8588 = vdwg.mxu0
        %8589 = vmatpush.bf16.msra.mxu0 %v7361
        %8590 = vmatpush.bf16.msra.mxu0 %v7353
        %8591 = vmatpush.bf16.msra.mxu0 %v7345
        %8592 = vmatpush.bf16.msra.mxu0 %v7337
        %8593 = vmatpush.bf16.msra.mxu0 %v7329
        %8594 = vmatpush.bf16.msra.mxu0 %v7321
        %8595 = vmatpush.bf16.msra.mxu0 %v7313
        %8596 = vmatpush.bf16.msra.mxu0 %v7305
        %8597 = vmatmul.bf16.gmra.mxu0 %v4911
        %v8598 = vpop.f32.mrf.mxu0
        %v8599 = vadd.f32 %v8586, %v8598
        %v8600 = vpop.f32.mrf.mxu0
        %8601 = vdwg.mxu0
        %8602 = vmatpush.bf16.msra.mxu0 %v7425
        %8603 = vmatpush.bf16.msra.mxu0 %v7417
        %8604 = vmatpush.bf16.msra.mxu0 %v7409
        %8605 = vmatpush.bf16.msra.mxu0 %v7401
        %8606 = vmatpush.bf16.msra.mxu0 %v7393
        %8607 = vmatpush.bf16.msra.mxu0 %v7385
        %8608 = vmatpush.bf16.msra.mxu0 %v7377
        %8609 = vmatpush.bf16.msra.mxu0 %v7369
        %8610 = vmatmul.bf16.gmra.mxu0 %v4912
        %v8611 = vpop.f32.mrf.mxu0
        %v8612 = vadd.f32 %v8599, %v8611
        %v8613 = vpop.f32.mrf.mxu0
        %8614 = vdwg.mxu0
        %8615 = vmatpush.bf16.msra.mxu0 %v7489
        %8616 = vmatpush.bf16.msra.mxu0 %v7481
        %8617 = vmatpush.bf16.msra.mxu0 %v7473
        %8618 = vmatpush.bf16.msra.mxu0 %v7465
        %8619 = vmatpush.bf16.msra.mxu0 %v7457
        %8620 = vmatpush.bf16.msra.mxu0 %v7449
        %8621 = vmatpush.bf16.msra.mxu0 %v7441
        %8622 = vmatpush.bf16.msra.mxu0 %v7433
        %8623 = vmatmul.bf16.gmra.mxu0 %v4913
        %v8624 = vpop.f32.mrf.mxu0
        %v8625 = vadd.f32 %v8612, %v8624
        %v8626 = vpop.f32.mrf.mxu0
        %8627 = vdwg.mxu0
        %8628 = vmatpush.bf16.msra.mxu0 %v7042
        %8629 = vmatpush.bf16.msra.mxu0 %v7034
        %8630 = vmatpush.bf16.msra.mxu0 %v7026
        %8631 = vmatpush.bf16.msra.mxu0 %v7018
        %8632 = vmatpush.bf16.msra.mxu0 %v7010
        %8633 = vmatpush.bf16.msra.mxu0 %v7002
        %8634 = vmatpush.bf16.msra.mxu0 %v6994
        %8635 = vmatpush.bf16.msra.mxu0 %v6986
        %8636 = vmatmul.bf16.gmra.mxu0 %v4906
        %v8637 = vpop.f32.mrf.mxu0
        %v8638 = vadd.f32 %v5434, %v8637
        %v8639 = vpop.f32.mrf.mxu0
        %8640 = vdwg.mxu0
        %8641 = vmatpush.bf16.msra.mxu0 %v7106
        %8642 = vmatpush.bf16.msra.mxu0 %v7098
        %8643 = vmatpush.bf16.msra.mxu0 %v7090
        %8644 = vmatpush.bf16.msra.mxu0 %v7082
        %8645 = vmatpush.bf16.msra.mxu0 %v7074
        %8646 = vmatpush.bf16.msra.mxu0 %v7066
        %8647 = vmatpush.bf16.msra.mxu0 %v7058
        %8648 = vmatpush.bf16.msra.mxu0 %v7050
        %8649 = vmatmul.bf16.gmra.mxu0 %v4907
        %v8650 = vpop.f32.mrf.mxu0
        %v8651 = vadd.f32 %v8638, %v8650
        %v8652 = vpop.f32.mrf.mxu0
        %8653 = vdwg.mxu0
        %8654 = vmatpush.bf16.msra.mxu0 %v7170
        %8655 = vmatpush.bf16.msra.mxu0 %v7162
        %8656 = vmatpush.bf16.msra.mxu0 %v7154
        %8657 = vmatpush.bf16.msra.mxu0 %v7146
        %8658 = vmatpush.bf16.msra.mxu0 %v7138
        %8659 = vmatpush.bf16.msra.mxu0 %v7130
        %8660 = vmatpush.bf16.msra.mxu0 %v7122
        %8661 = vmatpush.bf16.msra.mxu0 %v7114
        %8662 = vmatmul.bf16.gmra.mxu0 %v4908
        %v8663 = vpop.f32.mrf.mxu0
        %v8664 = vadd.f32 %v8651, %v8663
        %v8665 = vpop.f32.mrf.mxu0
        %8666 = vdwg.mxu0
        %8667 = vmatpush.bf16.msra.mxu0 %v7234
        %8668 = vmatpush.bf16.msra.mxu0 %v7226
        %8669 = vmatpush.bf16.msra.mxu0 %v7218
        %8670 = vmatpush.bf16.msra.mxu0 %v7210
        %8671 = vmatpush.bf16.msra.mxu0 %v7202
        %8672 = vmatpush.bf16.msra.mxu0 %v7194
        %8673 = vmatpush.bf16.msra.mxu0 %v7186
        %8674 = vmatpush.bf16.msra.mxu0 %v7178
        %8675 = vmatmul.bf16.gmra.mxu0 %v4909
        %v8676 = vpop.f32.mrf.mxu0
        %v8677 = vadd.f32 %v8664, %v8676
        %v8678 = vpop.f32.mrf.mxu0
        %8679 = vdwg.mxu0
        %8680 = vmatpush.bf16.msra.mxu0 %v7298
        %8681 = vmatpush.bf16.msra.mxu0 %v7290
        %8682 = vmatpush.bf16.msra.mxu0 %v7282
        %8683 = vmatpush.bf16.msra.mxu0 %v7274
        %8684 = vmatpush.bf16.msra.mxu0 %v7266
        %8685 = vmatpush.bf16.msra.mxu0 %v7258
        %8686 = vmatpush.bf16.msra.mxu0 %v7250
        %8687 = vmatpush.bf16.msra.mxu0 %v7242
        %8688 = vmatmul.bf16.gmra.mxu0 %v4910
        %v8689 = vpop.f32.mrf.mxu0
        %v8690 = vadd.f32 %v8677, %v8689
        %v8691 = vpop.f32.mrf.mxu0
        %8692 = vdwg.mxu0
        %8693 = vmatpush.bf16.msra.mxu0 %v7362
        %8694 = vmatpush.bf16.msra.mxu0 %v7354
        %8695 = vmatpush.bf16.msra.mxu0 %v7346
        %8696 = vmatpush.bf16.msra.mxu0 %v7338
        %8697 = vmatpush.bf16.msra.mxu0 %v7330
        %8698 = vmatpush.bf16.msra.mxu0 %v7322
        %8699 = vmatpush.bf16.msra.mxu0 %v7314
        %8700 = vmatpush.bf16.msra.mxu0 %v7306
        %8701 = vmatmul.bf16.gmra.mxu0 %v4911
        %v8702 = vpop.f32.mrf.mxu0
        %v8703 = vadd.f32 %v8690, %v8702
        %v8704 = vpop.f32.mrf.mxu0
        %8705 = vdwg.mxu0
        %8706 = vmatpush.bf16.msra.mxu0 %v7426
        %8707 = vmatpush.bf16.msra.mxu0 %v7418
        %8708 = vmatpush.bf16.msra.mxu0 %v7410
        %8709 = vmatpush.bf16.msra.mxu0 %v7402
        %8710 = vmatpush.bf16.msra.mxu0 %v7394
        %8711 = vmatpush.bf16.msra.mxu0 %v7386
        %8712 = vmatpush.bf16.msra.mxu0 %v7378
        %8713 = vmatpush.bf16.msra.mxu0 %v7370
        %8714 = vmatmul.bf16.gmra.mxu0 %v4912
        %v8715 = vpop.f32.mrf.mxu0
        %v8716 = vadd.f32 %v8703, %v8715
        %v8717 = vpop.f32.mrf.mxu0
        %8718 = vdwg.mxu0
        %8719 = vmatpush.bf16.msra.mxu0 %v7490
        %8720 = vmatpush.bf16.msra.mxu0 %v7482
        %8721 = vmatpush.bf16.msra.mxu0 %v7474
        %8722 = vmatpush.bf16.msra.mxu0 %v7466
        %8723 = vmatpush.bf16.msra.mxu0 %v7458
        %8724 = vmatpush.bf16.msra.mxu0 %v7450
        %8725 = vmatpush.bf16.msra.mxu0 %v7442
        %8726 = vmatpush.bf16.msra.mxu0 %v7434
        %8727 = vmatmul.bf16.gmra.mxu0 %v4913
        %v8728 = vpop.f32.mrf.mxu0
        %v8729 = vadd.f32 %v8716, %v8728
        %v8730 = vpop.f32.mrf.mxu0
        %8731 = vdwg.mxu0
        %8732 = vmatpush.bf16.msra.mxu0 %v7043
        %8733 = vmatpush.bf16.msra.mxu0 %v7035
        %8734 = vmatpush.bf16.msra.mxu0 %v7027
        %8735 = vmatpush.bf16.msra.mxu0 %v7019
        %8736 = vmatpush.bf16.msra.mxu0 %v7011
        %8737 = vmatpush.bf16.msra.mxu0 %v7003
        %8738 = vmatpush.bf16.msra.mxu0 %v6995
        %8739 = vmatpush.bf16.msra.mxu0 %v6987
        %8740 = vmatmul.bf16.gmra.mxu0 %v4906
        %v8741 = vpop.f32.mrf.mxu0
        %v8742 = vadd.f32 %v5435, %v8741
        %v8743 = vpop.f32.mrf.mxu0
        %8744 = vdwg.mxu0
        %8745 = vmatpush.bf16.msra.mxu0 %v7107
        %8746 = vmatpush.bf16.msra.mxu0 %v7099
        %8747 = vmatpush.bf16.msra.mxu0 %v7091
        %8748 = vmatpush.bf16.msra.mxu0 %v7083
        %8749 = vmatpush.bf16.msra.mxu0 %v7075
        %8750 = vmatpush.bf16.msra.mxu0 %v7067
        %8751 = vmatpush.bf16.msra.mxu0 %v7059
        %8752 = vmatpush.bf16.msra.mxu0 %v7051
        %8753 = vmatmul.bf16.gmra.mxu0 %v4907
        %v8754 = vpop.f32.mrf.mxu0
        %v8755 = vadd.f32 %v8742, %v8754
        %v8756 = vpop.f32.mrf.mxu0
        %8757 = vdwg.mxu0
        %8758 = vmatpush.bf16.msra.mxu0 %v7171
        %8759 = vmatpush.bf16.msra.mxu0 %v7163
        %8760 = vmatpush.bf16.msra.mxu0 %v7155
        %8761 = vmatpush.bf16.msra.mxu0 %v7147
        %8762 = vmatpush.bf16.msra.mxu0 %v7139
        %8763 = vmatpush.bf16.msra.mxu0 %v7131
        %8764 = vmatpush.bf16.msra.mxu0 %v7123
        %8765 = vmatpush.bf16.msra.mxu0 %v7115
        %8766 = vmatmul.bf16.gmra.mxu0 %v4908
        %v8767 = vpop.f32.mrf.mxu0
        %v8768 = vadd.f32 %v8755, %v8767
        %v8769 = vpop.f32.mrf.mxu0
        %8770 = vdwg.mxu0
        %8771 = vmatpush.bf16.msra.mxu0 %v7235
        %8772 = vmatpush.bf16.msra.mxu0 %v7227
        %8773 = vmatpush.bf16.msra.mxu0 %v7219
        %8774 = vmatpush.bf16.msra.mxu0 %v7211
        %8775 = vmatpush.bf16.msra.mxu0 %v7203
        %8776 = vmatpush.bf16.msra.mxu0 %v7195
        %8777 = vmatpush.bf16.msra.mxu0 %v7187
        %8778 = vmatpush.bf16.msra.mxu0 %v7179
        %8779 = vmatmul.bf16.gmra.mxu0 %v4909
        %v8780 = vpop.f32.mrf.mxu0
        %v8781 = vadd.f32 %v8768, %v8780
        %v8782 = vpop.f32.mrf.mxu0
        %8783 = vdwg.mxu0
        %8784 = vmatpush.bf16.msra.mxu0 %v7299
        %8785 = vmatpush.bf16.msra.mxu0 %v7291
        %8786 = vmatpush.bf16.msra.mxu0 %v7283
        %8787 = vmatpush.bf16.msra.mxu0 %v7275
        %8788 = vmatpush.bf16.msra.mxu0 %v7267
        %8789 = vmatpush.bf16.msra.mxu0 %v7259
        %8790 = vmatpush.bf16.msra.mxu0 %v7251
        %8791 = vmatpush.bf16.msra.mxu0 %v7243
        %8792 = vmatmul.bf16.gmra.mxu0 %v4910
        %v8793 = vpop.f32.mrf.mxu0
        %v8794 = vadd.f32 %v8781, %v8793
        %v8795 = vpop.f32.mrf.mxu0
        %8796 = vdwg.mxu0
        %8797 = vmatpush.bf16.msra.mxu0 %v7363
        %8798 = vmatpush.bf16.msra.mxu0 %v7355
        %8799 = vmatpush.bf16.msra.mxu0 %v7347
        %8800 = vmatpush.bf16.msra.mxu0 %v7339
        %8801 = vmatpush.bf16.msra.mxu0 %v7331
        %8802 = vmatpush.bf16.msra.mxu0 %v7323
        %8803 = vmatpush.bf16.msra.mxu0 %v7315
        %8804 = vmatpush.bf16.msra.mxu0 %v7307
        %8805 = vmatmul.bf16.gmra.mxu0 %v4911
        %v8806 = vpop.f32.mrf.mxu0
        %v8807 = vadd.f32 %v8794, %v8806
        %v8808 = vpop.f32.mrf.mxu0
        %8809 = vdwg.mxu0
        %8810 = vmatpush.bf16.msra.mxu0 %v7427
        %8811 = vmatpush.bf16.msra.mxu0 %v7419
        %8812 = vmatpush.bf16.msra.mxu0 %v7411
        %8813 = vmatpush.bf16.msra.mxu0 %v7403
        %8814 = vmatpush.bf16.msra.mxu0 %v7395
        %8815 = vmatpush.bf16.msra.mxu0 %v7387
        %8816 = vmatpush.bf16.msra.mxu0 %v7379
        %8817 = vmatpush.bf16.msra.mxu0 %v7371
        %8818 = vmatmul.bf16.gmra.mxu0 %v4912
        %v8819 = vpop.f32.mrf.mxu0
        %v8820 = vadd.f32 %v8807, %v8819
        %v8821 = vpop.f32.mrf.mxu0
        %8822 = vdwg.mxu0
        %8823 = vmatpush.bf16.msra.mxu0 %v7491
        %8824 = vmatpush.bf16.msra.mxu0 %v7483
        %8825 = vmatpush.bf16.msra.mxu0 %v7475
        %8826 = vmatpush.bf16.msra.mxu0 %v7467
        %8827 = vmatpush.bf16.msra.mxu0 %v7459
        %8828 = vmatpush.bf16.msra.mxu0 %v7451
        %8829 = vmatpush.bf16.msra.mxu0 %v7443
        %8830 = vmatpush.bf16.msra.mxu0 %v7435
        %8831 = vmatmul.bf16.gmra.mxu0 %v4913
        %v8832 = vpop.f32.mrf.mxu0
        %v8833 = vadd.f32 %v8820, %v8832
        %v8834 = vpop.f32.mrf.mxu0
        %8835 = vdwg.mxu0
        %v8836 = vmax.f32 %v8105, 0.0
        %v8837 = vmax.f32 %v8209, 0.0
        %v8838 = vmax.f32 %v8313, 0.0
        %v8839 = vmax.f32 %v8417, 0.0
        %v8840 = vmax.f32 %v8521, 0.0
        %v8841 = vmax.f32 %v8625, 0.0
        %v8842 = vmax.f32 %v8729, 0.0
        %v8843 = vmax.f32 %v8833, 0.0
        %v8844 = vpack.c.bf16 %v8836, %v8836
        %v8845 = vpack.c.bf16 %v8837, %v8837
        %v8846 = vpack.c.bf16 %v8838, %v8838
        %v8847 = vpack.c.bf16 %v8839, %v8839
        %v8848 = vpack.c.bf16 %v8840, %v8840
        %v8849 = vpack.c.bf16 %v8841, %v8841
        %v8850 = vpack.c.bf16 %v8842, %v8842
        %v8851 = vpack.c.bf16 %v8843, %v8843
        %v8852 = vld [vmem:[%s549] sm:$0xf]
        %v8853 = vld [vmem:[%s549 + $0x4] sm:$0xf]
        %v8854 = vld [vmem:[%s549 + $0x8] sm:$0xf]
        %v8855 = vld [vmem:[%s549 + $0xc] sm:$0xf]
        %v8856 = vld [vmem:[%s549 + $0x10] sm:$0xf]
        %v8857 = vld [vmem:[%s549 + $0x14] sm:$0xf]
        %v8858 = vld [vmem:[%s549 + $0x18] sm:$0xf]
        %v8859 = vld [vmem:[%s549 + $0x1c] sm:$0xf]
        %v8860 = vld [vmem:[%s549 + $0x20] sm:$0xf]
        %v8861 = vld [vmem:[%s549 + $0x24] sm:$0xf]
        %v8862 = vld [vmem:[%s549 + $0x28] sm:$0xf]
        %v8863 = vld [vmem:[%s549 + $0x2c] sm:$0xf]
        %v8864 = vld [vmem:[%s549 + $0x30] sm:$0xf]
        %v8865 = vld [vmem:[%s549 + $0x34] sm:$0xf]
        %v8866 = vld [vmem:[%s549 + $0x38] sm:$0xf]
        %v8867 = vld [vmem:[%s549 + $0x3c] sm:$0xf]
        %v8868 = vld [vmem:[%s549 + $0x40] sm:$0xf]
        %v8869 = vld [vmem:[%s549 + $0x44] sm:$0xf]
        %v8870 = vld [vmem:[%s549 + $0x48] sm:$0xf]
        %v8871 = vld [vmem:[%s549 + $0x4c] sm:$0xf]
        %v8872 = vld [vmem:[%s549 + $0x50] sm:$0xf]
        %v8873 = vld [vmem:[%s549 + $0x54] sm:$0xf]
        %v8874 = vld [vmem:[%s549 + $0x58] sm:$0xf]
        %v8875 = vld [vmem:[%s549 + $0x5c] sm:$0xf]
        %v8876 = vld [vmem:[%s549 + $0x60] sm:$0xf]
        %v8877 = vld [vmem:[%s549 + $0x64] sm:$0xf]
        %v8878 = vld [vmem:[%s549 + $0x68] sm:$0xf]
        %v8879 = vld [vmem:[%s549 + $0x6c] sm:$0xf]
        %v8880 = vld [vmem:[%s549 + $0x70] sm:$0xf]
        %v8881 = vld [vmem:[%s549 + $0x74] sm:$0xf]
        %v8882 = vld [vmem:[%s549 + $0x78] sm:$0xf]
        %v8883 = vld [vmem:[%s549 + $0x7c] sm:$0xf]
        %v8884 = vld [vmem:[%s549 + $0x80] sm:$0xf]
        %v8885 = vld [vmem:[%s549 + $0x84] sm:$0xf]
        %v8886 = vld [vmem:[%s549 + $0x88] sm:$0xf]
        %v8887 = vld [vmem:[%s549 + $0x8c] sm:$0xf]
        %v8888 = vld [vmem:[%s549 + $0x90] sm:$0xf]
        %v8889 = vld [vmem:[%s549 + $0x94] sm:$0xf]
        %v8890 = vld [vmem:[%s549 + $0x98] sm:$0xf]
        %v8891 = vld [vmem:[%s549 + $0x9c] sm:$0xf]
        %v8892 = vld [vmem:[%s549 + $0xa0] sm:$0xf]
        %v8893 = vld [vmem:[%s549 + $0xa4] sm:$0xf]
        %v8894 = vld [vmem:[%s549 + $0xa8] sm:$0xf]
        %v8895 = vld [vmem:[%s549 + $0xac] sm:$0xf]
        %v8896 = vld [vmem:[%s549 + $0xb0] sm:$0xf]
        %v8897 = vld [vmem:[%s549 + $0xb4] sm:$0xf]
        %v8898 = vld [vmem:[%s549 + $0xb8] sm:$0xf]
        %v8899 = vld [vmem:[%s549 + $0xbc] sm:$0xf]
        %v8900 = vld [vmem:[%s549 + $0xc0] sm:$0xf]
        %v8901 = vld [vmem:[%s549 + $0xc4] sm:$0xf]
        %v8902 = vld [vmem:[%s549 + $0xc8] sm:$0xf]
        %v8903 = vld [vmem:[%s549 + $0xcc] sm:$0xf]
        %v8904 = vld [vmem:[%s549 + $0xd0] sm:$0xf]
        %v8905 = vld [vmem:[%s549 + $0xd4] sm:$0xf]
        %v8906 = vld [vmem:[%s549 + $0xd8] sm:$0xf]
        %v8907 = vld [vmem:[%s549 + $0xdc] sm:$0xf]
        %v8908 = vld [vmem:[%s549 + $0xe0] sm:$0xf]
        %v8909 = vld [vmem:[%s549 + $0xe4] sm:$0xf]
        %v8910 = vld [vmem:[%s549 + $0xe8] sm:$0xf]
        %v8911 = vld [vmem:[%s549 + $0xec] sm:$0xf]
        %v8912 = vld [vmem:[%s549 + $0xf0] sm:$0xf]
        %v8913 = vld [vmem:[%s549 + $0xf4] sm:$0xf]
        %v8914 = vld [vmem:[%s549 + $0xf8] sm:$0xf]
        %v8915 = vld [vmem:[%s549 + $0xfc] sm:$0xf]
        %v8916 = vld [vmem:[%s549 + $0x100] sm:$0xf]
        %v8917 = vld [vmem:[%s549 + $0x104] sm:$0xf]
        %v8918 = vld [vmem:[%s549 + $0x108] sm:$0xf]
        %v8919 = vld [vmem:[%s549 + $0x10c] sm:$0xf]
        %v8920 = vld [vmem:[%s549 + $0x110] sm:$0xf]
        %v8921 = vld [vmem:[%s549 + $0x114] sm:$0xf]
        %v8922 = vld [vmem:[%s549 + $0x118] sm:$0xf]
        %v8923 = vld [vmem:[%s549 + $0x11c] sm:$0xf]
        %v8924 = vld [vmem:[%s549 + $0x120] sm:$0xf]
        %v8925 = vld [vmem:[%s549 + $0x124] sm:$0xf]
        %v8926 = vld [vmem:[%s549 + $0x128] sm:$0xf]
        %v8927 = vld [vmem:[%s549 + $0x12c] sm:$0xf]
        %v8928 = vld [vmem:[%s549 + $0x130] sm:$0xf]
        %v8929 = vld [vmem:[%s549 + $0x134] sm:$0xf]
        %v8930 = vld [vmem:[%s549 + $0x138] sm:$0xf]
        %v8931 = vld [vmem:[%s549 + $0x13c] sm:$0xf]
        %v8932 = vld [vmem:[%s549 + $0x140] sm:$0xf]
        %v8933 = vld [vmem:[%s549 + $0x144] sm:$0xf]
        %v8934 = vld [vmem:[%s549 + $0x148] sm:$0xf]
        %v8935 = vld [vmem:[%s549 + $0x14c] sm:$0xf]
        %v8936 = vld [vmem:[%s549 + $0x150] sm:$0xf]
        %v8937 = vld [vmem:[%s549 + $0x154] sm:$0xf]
        %v8938 = vld [vmem:[%s549 + $0x158] sm:$0xf]
        %v8939 = vld [vmem:[%s549 + $0x15c] sm:$0xf]
        %v8940 = vld [vmem:[%s549 + $0x160] sm:$0xf]
        %v8941 = vld [vmem:[%s549 + $0x164] sm:$0xf]
        %v8942 = vld [vmem:[%s549 + $0x168] sm:$0xf]
        %v8943 = vld [vmem:[%s549 + $0x16c] sm:$0xf]
        %v8944 = vld [vmem:[%s549 + $0x170] sm:$0xf]
        %v8945 = vld [vmem:[%s549 + $0x174] sm:$0xf]
        %v8946 = vld [vmem:[%s549 + $0x178] sm:$0xf]
        %v8947 = vld [vmem:[%s549 + $0x17c] sm:$0xf]
        %v8948 = vld [vmem:[%s549 + $0x180] sm:$0xf]
        %v8949 = vld [vmem:[%s549 + $0x184] sm:$0xf]
        %v8950 = vld [vmem:[%s549 + $0x188] sm:$0xf]
        %v8951 = vld [vmem:[%s549 + $0x18c] sm:$0xf]
        %v8952 = vld [vmem:[%s549 + $0x190] sm:$0xf]
        %v8953 = vld [vmem:[%s549 + $0x194] sm:$0xf]
        %v8954 = vld [vmem:[%s549 + $0x198] sm:$0xf]
        %v8955 = vld [vmem:[%s549 + $0x19c] sm:$0xf]
        %v8956 = vld [vmem:[%s549 + $0x1a0] sm:$0xf]
        %v8957 = vld [vmem:[%s549 + $0x1a4] sm:$0xf]
        %v8958 = vld [vmem:[%s549 + $0x1a8] sm:$0xf]
        %v8959 = vld [vmem:[%s549 + $0x1ac] sm:$0xf]
        %v8960 = vld [vmem:[%s549 + $0x1b0] sm:$0xf]
        %v8961 = vld [vmem:[%s549 + $0x1b4] sm:$0xf]
        %v8962 = vld [vmem:[%s549 + $0x1b8] sm:$0xf]
        %v8963 = vld [vmem:[%s549 + $0x1bc] sm:$0xf]
        %v8964 = vld [vmem:[%s549 + $0x1c0] sm:$0xf]
        %v8965 = vld [vmem:[%s549 + $0x1c4] sm:$0xf]
        %v8966 = vld [vmem:[%s549 + $0x1c8] sm:$0xf]
        %v8967 = vld [vmem:[%s549 + $0x1cc] sm:$0xf]
        %v8968 = vld [vmem:[%s549 + $0x1d0] sm:$0xf]
        %v8969 = vld [vmem:[%s549 + $0x1d4] sm:$0xf]
        %v8970 = vld [vmem:[%s549 + $0x1d8] sm:$0xf]
        %v8971 = vld [vmem:[%s549 + $0x1dc] sm:$0xf]
        %v8972 = vld [vmem:[%s549 + $0x1e0] sm:$0xf]
        %v8973 = vld [vmem:[%s549 + $0x1e4] sm:$0xf]
        %v8974 = vld [vmem:[%s549 + $0x1e8] sm:$0xf]
        %v8975 = vld [vmem:[%s549 + $0x1ec] sm:$0xf]
        %v8976 = vld [vmem:[%s549 + $0x1f0] sm:$0xf]
        %v8977 = vld [vmem:[%s549 + $0x1f4] sm:$0xf]
        %v8978 = vld [vmem:[%s549 + $0x1f8] sm:$0xf]
        %v8979 = vld [vmem:[%s549 + $0x1fc] sm:$0xf]
        %v8980 = vld [vmem:[%s558] sm:$0x1]
        %v8982 = vperm.slane %v8980, 0
        %v9112 = vunpack.c.l.b16 %v8852
        %v9113 = vunpack.c.l.b16 %v8853
        %v9114 = vunpack.c.l.b16 %v8854
        %v9115 = vunpack.c.l.b16 %v8855
        %v9116 = vunpack.c.l.b16 %v8856
        %v9117 = vunpack.c.l.b16 %v8857
        %v9118 = vunpack.c.l.b16 %v8858
        %v9119 = vunpack.c.l.b16 %v8859
        %v9120 = vunpack.c.l.b16 %v8860
        %v9121 = vunpack.c.l.b16 %v8861
        %v9122 = vunpack.c.l.b16 %v8862
        %v9123 = vunpack.c.l.b16 %v8863
        %v9124 = vunpack.c.l.b16 %v8864
        %v9125 = vunpack.c.l.b16 %v8865
        %v9126 = vunpack.c.l.b16 %v8866
        %v9127 = vunpack.c.l.b16 %v8867
        %v9128 = vunpack.c.l.b16 %v8868
        %v9129 = vunpack.c.l.b16 %v8869
        %v9130 = vunpack.c.l.b16 %v8870
        %v9131 = vunpack.c.l.b16 %v8871
        %v9132 = vunpack.c.l.b16 %v8872
        %v9133 = vunpack.c.l.b16 %v8873
        %v9134 = vunpack.c.l.b16 %v8874
        %v9135 = vunpack.c.l.b16 %v8875
        %v9136 = vunpack.c.l.b16 %v8876
        %v9137 = vunpack.c.l.b16 %v8877
        %v9138 = vunpack.c.l.b16 %v8878
        %v9139 = vunpack.c.l.b16 %v8879
        %v9140 = vunpack.c.l.b16 %v8880
        %v9141 = vunpack.c.l.b16 %v8881
        %v9142 = vunpack.c.l.b16 %v8882
        %v9143 = vunpack.c.l.b16 %v8883
        %v9144 = vunpack.c.l.b16 %v8884
        %v9145 = vunpack.c.l.b16 %v8885
        %v9146 = vunpack.c.l.b16 %v8886
        %v9147 = vunpack.c.l.b16 %v8887
        %v9148 = vunpack.c.l.b16 %v8888
        %v9149 = vunpack.c.l.b16 %v8889
        %v9150 = vunpack.c.l.b16 %v8890
        %v9151 = vunpack.c.l.b16 %v8891
        %v9152 = vunpack.c.l.b16 %v8892
        %v9153 = vunpack.c.l.b16 %v8893
        %v9154 = vunpack.c.l.b16 %v8894
        %v9155 = vunpack.c.l.b16 %v8895
        %v9156 = vunpack.c.l.b16 %v8896
        %v9157 = vunpack.c.l.b16 %v8897
        %v9158 = vunpack.c.l.b16 %v8898
        %v9159 = vunpack.c.l.b16 %v8899
        %v9160 = vunpack.c.l.b16 %v8900
        %v9161 = vunpack.c.l.b16 %v8901
        %v9162 = vunpack.c.l.b16 %v8902
        %v9163 = vunpack.c.l.b16 %v8903
        %v9164 = vunpack.c.l.b16 %v8904
        %v9165 = vunpack.c.l.b16 %v8905
        %v9166 = vunpack.c.l.b16 %v8906
        %v9167 = vunpack.c.l.b16 %v8907
        %v9168 = vunpack.c.l.b16 %v8908
        %v9169 = vunpack.c.l.b16 %v8909
        %v9170 = vunpack.c.l.b16 %v8910
        %v9171 = vunpack.c.l.b16 %v8911
        %v9172 = vunpack.c.l.b16 %v8912
        %v9173 = vunpack.c.l.b16 %v8913
        %v9174 = vunpack.c.l.b16 %v8914
        %v9175 = vunpack.c.l.b16 %v8915
        %v9176 = vunpack.c.l.b16 %v8916
        %v9177 = vunpack.c.l.b16 %v8917
        %v9178 = vunpack.c.l.b16 %v8918
        %v9179 = vunpack.c.l.b16 %v8919
        %v9180 = vunpack.c.l.b16 %v8920
        %v9181 = vunpack.c.l.b16 %v8921
        %v9182 = vunpack.c.l.b16 %v8922
        %v9183 = vunpack.c.l.b16 %v8923
        %v9184 = vunpack.c.l.b16 %v8924
        %v9185 = vunpack.c.l.b16 %v8925
        %v9186 = vunpack.c.l.b16 %v8926
        %v9187 = vunpack.c.l.b16 %v8927
        %v9188 = vunpack.c.l.b16 %v8928
        %v9189 = vunpack.c.l.b16 %v8929
        %v9190 = vunpack.c.l.b16 %v8930
        %v9191 = vunpack.c.l.b16 %v8931
        %v9192 = vunpack.c.l.b16 %v8932
        %v9193 = vunpack.c.l.b16 %v8933
        %v9194 = vunpack.c.l.b16 %v8934
        %v9195 = vunpack.c.l.b16 %v8935
        %v9196 = vunpack.c.l.b16 %v8936
        %v9197 = vunpack.c.l.b16 %v8937
        %v9198 = vunpack.c.l.b16 %v8938
        %v9199 = vunpack.c.l.b16 %v8939
        %v9200 = vunpack.c.l.b16 %v8940
        %v9201 = vunpack.c.l.b16 %v8941
        %v9202 = vunpack.c.l.b16 %v8942
        %v9203 = vunpack.c.l.b16 %v8943
        %v9204 = vunpack.c.l.b16 %v8944
        %v9205 = vunpack.c.l.b16 %v8945
        %v9206 = vunpack.c.l.b16 %v8946
        %v9207 = vunpack.c.l.b16 %v8947
        %v9208 = vunpack.c.l.b16 %v8948
        %v9209 = vunpack.c.l.b16 %v8949
        %v9210 = vunpack.c.l.b16 %v8950
        %v9211 = vunpack.c.l.b16 %v8951
        %v9212 = vunpack.c.l.b16 %v8952
        %v9213 = vunpack.c.l.b16 %v8953
        %v9214 = vunpack.c.l.b16 %v8954
        %v9215 = vunpack.c.l.b16 %v8955
        %v9216 = vunpack.c.l.b16 %v8956
        %v9217 = vunpack.c.l.b16 %v8957
        %v9218 = vunpack.c.l.b16 %v8958
        %v9219 = vunpack.c.l.b16 %v8959
        %v9220 = vunpack.c.l.b16 %v8960
        %v9221 = vunpack.c.l.b16 %v8961
        %v9222 = vunpack.c.l.b16 %v8962
        %v9223 = vunpack.c.l.b16 %v8963
        %v9224 = vunpack.c.l.b16 %v8964
        %v9225 = vunpack.c.l.b16 %v8965
        %v9226 = vunpack.c.l.b16 %v8966
        %v9227 = vunpack.c.l.b16 %v8967
        %v9228 = vunpack.c.l.b16 %v8968
        %v9229 = vunpack.c.l.b16 %v8969
        %v9230 = vunpack.c.l.b16 %v8970
        %v9231 = vunpack.c.l.b16 %v8971
        %v9232 = vunpack.c.l.b16 %v8972
        %v9233 = vunpack.c.l.b16 %v8973
        %v9234 = vunpack.c.l.b16 %v8974
        %v9235 = vunpack.c.l.b16 %v8975
        %v9236 = vunpack.c.l.b16 %v8976
        %v9237 = vunpack.c.l.b16 %v8977
        %v9238 = vunpack.c.l.b16 %v8978
        %v9239 = vunpack.c.l.b16 %v8979
        %v9240 = vpack.c.b16 %v9113, %v9112
        %v9241 = vpack.c.b16 %v9115, %v9114
        %v9242 = vpack.c.b16 %v9117, %v9116
        %v9243 = vpack.c.b16 %v9119, %v9118
        %v9244 = vpack.c.b16 %v9121, %v9120
        %v9245 = vpack.c.b16 %v9123, %v9122
        %v9246 = vpack.c.b16 %v9125, %v9124
        %v9247 = vpack.c.b16 %v9127, %v9126
        %v9248 = vpack.c.b16 %v9129, %v9128
        %v9249 = vpack.c.b16 %v9131, %v9130
        %v9250 = vpack.c.b16 %v9133, %v9132
        %v9251 = vpack.c.b16 %v9135, %v9134
        %v9252 = vpack.c.b16 %v9137, %v9136
        %v9253 = vpack.c.b16 %v9139, %v9138
        %v9254 = vpack.c.b16 %v9141, %v9140
        %v9255 = vpack.c.b16 %v9143, %v9142
        %v9256 = vpack.c.b16 %v9145, %v9144
        %v9257 = vpack.c.b16 %v9147, %v9146
        %v9258 = vpack.c.b16 %v9149, %v9148
        %v9259 = vpack.c.b16 %v9151, %v9150
        %v9260 = vpack.c.b16 %v9153, %v9152
        %v9261 = vpack.c.b16 %v9155, %v9154
        %v9262 = vpack.c.b16 %v9157, %v9156
        %v9263 = vpack.c.b16 %v9159, %v9158
        %v9264 = vpack.c.b16 %v9161, %v9160
        %v9265 = vpack.c.b16 %v9163, %v9162
        %v9266 = vpack.c.b16 %v9165, %v9164
        %v9267 = vpack.c.b16 %v9167, %v9166
        %v9268 = vpack.c.b16 %v9169, %v9168
        %v9269 = vpack.c.b16 %v9171, %v9170
        %v9270 = vpack.c.b16 %v9173, %v9172
        %v9271 = vpack.c.b16 %v9175, %v9174
        %v9272 = vpack.c.b16 %v9177, %v9176
        %v9273 = vpack.c.b16 %v9179, %v9178
        %v9274 = vpack.c.b16 %v9181, %v9180
        %v9275 = vpack.c.b16 %v9183, %v9182
        %v9276 = vpack.c.b16 %v9185, %v9184
        %v9277 = vpack.c.b16 %v9187, %v9186
        %v9278 = vpack.c.b16 %v9189, %v9188
        %v9279 = vpack.c.b16 %v9191, %v9190
        %v9280 = vpack.c.b16 %v9193, %v9192
        %v9281 = vpack.c.b16 %v9195, %v9194
        %v9282 = vpack.c.b16 %v9197, %v9196
        %v9283 = vpack.c.b16 %v9199, %v9198
        %v9284 = vpack.c.b16 %v9201, %v9200
        %v9285 = vpack.c.b16 %v9203, %v9202
        %v9286 = vpack.c.b16 %v9205, %v9204
        %v9287 = vpack.c.b16 %v9207, %v9206
        %v9288 = vpack.c.b16 %v9209, %v9208
        %v9289 = vpack.c.b16 %v9211, %v9210
        %v9290 = vpack.c.b16 %v9213, %v9212
        %v9291 = vpack.c.b16 %v9215, %v9214
        %v9292 = vpack.c.b16 %v9217, %v9216
        %v9293 = vpack.c.b16 %v9219, %v9218
        %v9294 = vpack.c.b16 %v9221, %v9220
        %v9295 = vpack.c.b16 %v9223, %v9222
        %v9296 = vpack.c.b16 %v9225, %v9224
        %v9297 = vpack.c.b16 %v9227, %v9226
        %v9298 = vpack.c.b16 %v9229, %v9228
        %v9299 = vpack.c.b16 %v9231, %v9230
        %v9300 = vpack.c.b16 %v9233, %v9232
        %v9301 = vpack.c.b16 %v9235, %v9234
        %v9302 = vpack.c.b16 %v9237, %v9236
        %v9303 = vpack.c.b16 %v9239, %v9238
        %9368 = vmatpush.bf16.msra.mxu0 %v9247
        %9369 = vmatpush.bf16.msra.mxu0 %v9246
        %9370 = vmatpush.bf16.msra.mxu0 %v9245
        %9371 = vmatpush.bf16.msra.mxu0 %v9244
        %9372 = vmatpush.bf16.msra.mxu0 %v9243
        %9373 = vmatpush.bf16.msra.mxu0 %v9242
        %9374 = vmatpush.bf16.msra.mxu0 %v9241
        %9375 = vmatpush.bf16.msra.mxu0 %v9240
        %9376 = vmatmul.bf16.gmra.mxu0 %v8844
        %v9377 = vpop.f32.mrf.mxu0
        %v9378 = vadd.f32 %v8982, %v9377
        %v9379 = vpop.f32.mrf.mxu0
        %9380 = vdwg.mxu0
        %9381 = vmatpush.bf16.msra.mxu0 %v9255
        %9382 = vmatpush.bf16.msra.mxu0 %v9254
        %9383 = vmatpush.bf16.msra.mxu0 %v9253
        %9384 = vmatpush.bf16.msra.mxu0 %v9252
        %9385 = vmatpush.bf16.msra.mxu0 %v9251
        %9386 = vmatpush.bf16.msra.mxu0 %v9250
        %9387 = vmatpush.bf16.msra.mxu0 %v9249
        %9388 = vmatpush.bf16.msra.mxu0 %v9248
        %9389 = vmatmul.bf16.gmra.mxu0 %v8845
        %v9390 = vpop.f32.mrf.mxu0
        %v9391 = vadd.f32 %v9378, %v9390
        %v9392 = vpop.f32.mrf.mxu0
        %9393 = vdwg.mxu0
        %9394 = vmatpush.bf16.msra.mxu0 %v9263
        %9395 = vmatpush.bf16.msra.mxu0 %v9262
        %9396 = vmatpush.bf16.msra.mxu0 %v9261
        %9397 = vmatpush.bf16.msra.mxu0 %v9260
        %9398 = vmatpush.bf16.msra.mxu0 %v9259
        %9399 = vmatpush.bf16.msra.mxu0 %v9258
        %9400 = vmatpush.bf16.msra.mxu0 %v9257
        %9401 = vmatpush.bf16.msra.mxu0 %v9256
        %9402 = vmatmul.bf16.gmra.mxu0 %v8846
        %v9403 = vpop.f32.mrf.mxu0
        %v9404 = vadd.f32 %v9391, %v9403
        %v9405 = vpop.f32.mrf.mxu0
        %9406 = vdwg.mxu0
        %9407 = vmatpush.bf16.msra.mxu0 %v9271
        %9408 = vmatpush.bf16.msra.mxu0 %v9270
        %9409 = vmatpush.bf16.msra.mxu0 %v9269
        %9410 = vmatpush.bf16.msra.mxu0 %v9268
        %9411 = vmatpush.bf16.msra.mxu0 %v9267
        %9412 = vmatpush.bf16.msra.mxu0 %v9266
        %9413 = vmatpush.bf16.msra.mxu0 %v9265
        %9414 = vmatpush.bf16.msra.mxu0 %v9264
        %9415 = vmatmul.bf16.gmra.mxu0 %v8847
        %v9416 = vpop.f32.mrf.mxu0
        %v9417 = vadd.f32 %v9404, %v9416
        %v9418 = vpop.f32.mrf.mxu0
        %9419 = vdwg.mxu0
        %9420 = vmatpush.bf16.msra.mxu0 %v9279
        %9421 = vmatpush.bf16.msra.mxu0 %v9278
        %9422 = vmatpush.bf16.msra.mxu0 %v9277
        %9423 = vmatpush.bf16.msra.mxu0 %v9276
        %9424 = vmatpush.bf16.msra.mxu0 %v9275
        %9425 = vmatpush.bf16.msra.mxu0 %v9274
        %9426 = vmatpush.bf16.msra.mxu0 %v9273
        %9427 = vmatpush.bf16.msra.mxu0 %v9272
        %9428 = vmatmul.bf16.gmra.mxu0 %v8848
        %v9429 = vpop.f32.mrf.mxu0
        %v9430 = vadd.f32 %v9417, %v9429
        %v9431 = vpop.f32.mrf.mxu0
        %9432 = vdwg.mxu0
        %9433 = vmatpush.bf16.msra.mxu0 %v9287
        %9434 = vmatpush.bf16.msra.mxu0 %v9286
        %9435 = vmatpush.bf16.msra.mxu0 %v9285
        %9436 = vmatpush.bf16.msra.mxu0 %v9284
        %9437 = vmatpush.bf16.msra.mxu0 %v9283
        %9438 = vmatpush.bf16.msra.mxu0 %v9282
        %9439 = vmatpush.bf16.msra.mxu0 %v9281
        %9440 = vmatpush.bf16.msra.mxu0 %v9280
        %9441 = vmatmul.bf16.gmra.mxu0 %v8849
        %v9442 = vpop.f32.mrf.mxu0
        %v9443 = vadd.f32 %v9430, %v9442
        %v9444 = vpop.f32.mrf.mxu0
        %9445 = vdwg.mxu0
        %9446 = vmatpush.bf16.msra.mxu0 %v9295
        %9447 = vmatpush.bf16.msra.mxu0 %v9294
        %9448 = vmatpush.bf16.msra.mxu0 %v9293
        %9449 = vmatpush.bf16.msra.mxu0 %v9292
        %9450 = vmatpush.bf16.msra.mxu0 %v9291
        %9451 = vmatpush.bf16.msra.mxu0 %v9290
        %9452 = vmatpush.bf16.msra.mxu0 %v9289
        %9453 = vmatpush.bf16.msra.mxu0 %v9288
        %9454 = vmatmul.bf16.gmra.mxu0 %v8850
        %v9455 = vpop.f32.mrf.mxu0
        %v9456 = vadd.f32 %v9443, %v9455
        %v9457 = vpop.f32.mrf.mxu0
        %9458 = vdwg.mxu0
        %9459 = vmatpush.bf16.msra.mxu0 %v9303
        %9460 = vmatpush.bf16.msra.mxu0 %v9302
        %9461 = vmatpush.bf16.msra.mxu0 %v9301
        %9462 = vmatpush.bf16.msra.mxu0 %v9300
        %9463 = vmatpush.bf16.msra.mxu0 %v9299
        %9464 = vmatpush.bf16.msra.mxu0 %v9298
        %9465 = vmatpush.bf16.msra.mxu0 %v9297
        %9466 = vmatpush.bf16.msra.mxu0 %v9296
        %9467 = vmatmul.bf16.gmra.mxu0 %v8851
        %v9468 = vpop.f32.mrf.mxu0
        %v9469 = vadd.f32 %v9456, %v9468
        %v9470 = vpop.f32.mrf.mxu0
        %9471 = vdwg.mxu0
        %v9472 = vmax.f32 %v9469, 0.0
        %9473 = vst [vmem:[%s638] sm:$0xff] %v9472
        %p9474 = scmp.lt.s32.totalorder %s35, 1
        %s9475 = scalar_select %p9474, %s35, 1
        %s9476 = smul.addr %s9475, 8
        %s9477 = scalar_lea.vmem %s9, %s9476
        // Predicated region
        $region89: #{mvcln_fc_scene_forward.1} parent=55 // pred_check
          %p9478 = pneg %p287
        $region90: #{mvcln_fc_scene_forward.1} parent=55 // pred_check_branch
          %9480 = sbr.rel (%p9478) target = $region92
        $region91: #{mvcln_fc_scene_forward.1} parent=55 // pred_region
          _
        $region92: #{mvcln_fc_scene_forward.1} parent=55 // pred_fallthru
          _
      $region56: #{mvcln_fc_scene_forward.1} parent=5 // pred_fallthru
        _
      %p9481 = scmp.le.s32.totalorder 2, %s30
      // Predicated region
      $region93: #{mvcln_fc_scene_forward.1} parent=5 // pred_check
        %p9482 = pneg %p9481
      $region94: #{mvcln_fc_scene_forward.1} parent=5 // pred_check_branch
        %9484 = sbr.rel (%p9482) target = $region96
      $region95: #{mvcln_fc_scene_forward.1} parent=5 // pred_region
        %s9485 = ssub.s32 %s30, 2
        // Predicated region
        $region97: #{mvcln_fc_scene_forward.1} parent=95 // pred_check
          %p9486 = pneg %p293
        $region98: #{mvcln_fc_scene_forward.1} parent=95 // pred_check_branch
          %9488 = sbr.rel (%p9486) target = $region100
        $region99: #{mvcln_fc_scene_forward.1} parent=95 // pred_region
          %p9489 = scmp.lt.s32.totalorder %s36, 1
          %s9490 = scalar_select %p9489, %s36, 1
          %s9491 = smul.addr %s9490, 8
          %s9492 = scalar_lea.vmem %s9, %s9491
        $region100: #{mvcln_fc_scene_forward.1} parent=95 // pred_fallthru
          _
      $region96: #{mvcln_fc_scene_forward.1} parent=5 // pred_fallthru
        _
    $region6: #{mvcln_fc_scene_forward.1} parent=1 // loop_footer
      %s34 = sadd.s32 1, %s30
    $region7: #{mvcln_fc_scene_forward.1} parent=1 // loop_footer_branch
      %29 = sbr.rel target = $region3
    $region8: #{mvcln_fc_scene_forward.1} parent=1 // loop_exit
      _
    %9493 = vsyncpa [#allocation3], 1
    %s9494 = scalar_lea.sflag [#allocation3], 1
    %9495 = vsyncpa %s9494, 1
    %9496 = vsyncpa [#allocation5], 1
    %s9497 = scalar_lea.sflag [#allocation5], 1
    %9498 = vsyncpa %s9497, 1
    %9499 = vsyncpa [#allocation8], 1
    %s9500 = scalar_lea.sflag [#allocation8], 1
    %9501 = vsyncpa %s9500, 1
    %9502 = vsyncpa [#allocation11], 1
    %s9503 = scalar_lea.sflag [#allocation11], 1
    %9504 = vsyncpa %s9503, 1
    %9505 = vsyncpa [#allocation14], 1
    %s9506 = scalar_lea.sflag [#allocation14], 1
    %9507 = vsyncpa %s9506, 1

</llo_original>
